<compile_context>
chip_gen: v6e
topology: v6e:2x2x1
jax: 0.10.0
libtpu: 0.0.40
codegen_flags: <defaults>
</compile_context>

<pallas_src>
import functools

import jax
import jax.numpy as jnp
from jax.experimental import pallas as pl
from jax.experimental.pallas import tpu as pltpu


# ----------------------------------------------------------------------------
# Helpers
# ----------------------------------------------------------------------------
def _full_spec(shape):
    """BlockSpec covering the whole (small) array; grid has a single step."""
    nd = len(shape)

    def idx(i):
        return (0,) * nd

    return pl.BlockSpec(tuple(shape), idx)


_SEQ_PARAMS = pltpu.CompilerParams(dimension_semantics=("arbitrary",))


# ----------------------------------------------------------------------------
# Pallas kernels
# ----------------------------------------------------------------------------
def _conv_gemm_kernel(*refs, has_res, want_raw, want_act, pool_cfg):
    """Fused conv-as-GEMM.

    acc = A @ B (+ residual)
      -> optional raw output (pre-activation block output)
      -> optional act = relu(acc * scale + shift)  [consumer BN folded in],
         stored either as-is or pooled (mean+max over each image's rows,
         written into an 8-aligned feature slab).
    """
    it = iter(refs)
    a_ref = next(it)
    b_ref = next(it)
    res_ref = next(it) if has_res else None
    scale_ref = next(it) if want_act else None
    shift_ref = next(it) if want_act else None
    out_refs = list(it)

    acc = jnp.dot(a_ref[...], b_ref[...], preferred_element_type=jnp.float32)
    if has_res:
        acc = acc + res_ref[...].astype(jnp.float32)

    oi = 0
    if want_raw:
        out_refs[oi][...] = acc
        oi += 1
    if want_act:
        act = jnp.maximum(acc * scale_ref[...] + shift_ref[...], 0.0)
        o = out_refs[oi]
        if pool_cfg is None:
            o[...] = act
        else:
            nb, hw, rows_out = pool_cfg
            for n in range(nb):                      # static, tiny batch
                blk = act[n * hw:(n + 1) * hw, :]
                o[n:n + 1, :] = (jnp.mean(blk, axis=0, keepdims=True)
                                 + jnp.max(blk, axis=0, keepdims=True))
            if rows_out > nb:
                o[nb:rows_out, :] = jnp.zeros(
                    (rows_out - nb, o.shape[1]), jnp.float32)


def _head_kernel(feat_ref, wc_ref, bc_ref, wn_ref, wo_ref, bo_ref,
                 code_ref, cos_ref, out_ref, *, code_norm, norm_s):
    """fc_code + optional L2 code norm + cosine logits + fc_output, fused."""
    feat = feat_ref[...]
    code = jnp.dot(feat, wc_ref[...],
                   preferred_element_type=jnp.float32) + bc_ref[...]
    if code_norm:
        inv = jax.lax.rsqrt(jnp.maximum(
            jnp.sum(code * code, axis=1, keepdims=True), 1e-30))
        code = code * (inv * norm_s)
    code_ref[...] = code
    cos_ref[...] = jnp.dot(code, wn_ref[...],
                           preferred_element_type=jnp.float32)
    out_ref[...] = jnp.dot(code, wo_ref[...],
                           preferred_element_type=jnp.float32) + bo_ref[...]


# ----------------------------------------------------------------------------
# Fused conv wrapper (im2col stays in XLA; everything else is in the kernel)
# ----------------------------------------------------------------------------
def fused_conv(x, w_mat, ksize, stride, padding, *, scale=None, shift=None,
               residual=None, want_raw=False, want_act=True, pool_rows=None):
    kh_, kw_ = ksize
    sh, sw = stride
    ph, pw = padding
    N, H, W, C = x.shape
    K, Cout = w_mat.shape
    assert K == kh_ * kw_ * C
    Ho = (H + 2 * ph - kh_) // sh + 1
    Wo = (W + 2 * pw - kw_) // sw + 1
    M = N * Ho * Wo

    xp = jnp.pad(x, ((0, 0), (ph, ph), (pw, pw), (0, 0))) if (ph or pw) else x
    # im2col (tiny; strided window gather stays in XLA), bf16 for the MXU.
    cols = []
    for i in range(kh_):
        for j in range(kw_):
            cols.append(xp[:, i:i + sh * (Ho - 1) + 1:sh,
                           j:j + sw * (Wo - 1) + 1:sw, :])
    a = jnp.concatenate(cols, axis=-1).reshape(M, K).astype(jnp.bfloat16)

    has_res = residual is not None
    pool_cfg = None if pool_rows is None else (N, Ho * Wo, pool_rows)
    if pool_cfg is not None:
        assert want_act and not want_raw

    inputs = [a, w_mat]
    in_specs = [_full_spec(a.shape), _full_spec(w_mat.shape)]
    if has_res:
        r = residual.reshape(M, Cout).astype(jnp.float32)
        inputs.append(r)
        in_specs.append(_full_spec(r.shape))
    if want_act:
        inputs += [scale, shift]
        in_specs += [_full_spec(scale.shape), _full_spec(shift.shape)]

    out_shape = []
    out_specs = []
    if want_raw:
        out_shape.append(jax.ShapeDtypeStruct((M, Cout), jnp.float32))
        out_specs.append(_full_spec((M, Cout)))
    if want_act:
        act_rows = pool_rows if pool_cfg is not None else M
        out_shape.append(jax.ShapeDtypeStruct((act_rows, Cout), jnp.float32))
        out_specs.append(_full_spec((act_rows, Cout)))

    kernel = functools.partial(_conv_gemm_kernel, has_res=has_res,
                               want_raw=want_raw, want_act=want_act,
                               pool_cfg=pool_cfg)
    outs = pl.pallas_call(
        kernel,
        grid=(1,),
        in_specs=in_specs,
        out_specs=tuple(out_specs),
        out_shape=tuple(out_shape),
        compiler_params=_SEQ_PARAMS,
    )(*inputs)
    if not isinstance(outs, (tuple, list)):
        outs = (outs,)

    results = []
    oi = 0
    if want_raw:
        results.append(outs[oi].reshape(N, Ho, Wo, Cout))
        oi += 1
    if want_act:
        if pool_cfg is None:
            results.append(outs[oi].reshape(N, Ho, Wo, Cout))
        else:
            results.append(outs[oi])          # (pool_rows, Cout) feature slab
        oi += 1
    return tuple(results) if len(results) > 1 else results[0]


def head_forward(feat8, head, code_norm, norm_s, n_valid):
    Bp = feat8.shape[0]
    code_dim = head["wc"].shape[1]
    n_cls = head["wo"].shape[1]
    kernel = functools.partial(_head_kernel, code_norm=bool(code_norm),
                               norm_s=float(norm_s))
    code, cos, out = pl.pallas_call(
        kernel,
        grid=(1,),
        in_specs=[_full_spec(feat8.shape), _full_spec(head["wc"].shape),
                  _full_spec(head["bc"].shape), _full_spec(head["wn"].shape),
                  _full_spec(head["wo"].shape), _full_spec(head["bo"].shape)],
        out_specs=(_full_spec((Bp, code_dim)), _full_spec((Bp, n_cls)),
                   _full_spec((Bp, n_cls))),
        out_shape=(jax.ShapeDtypeStruct((Bp, code_dim), jnp.float32),
                   jax.ShapeDtypeStruct((Bp, n_cls), jnp.float32),
                   jax.ShapeDtypeStruct((Bp, n_cls), jnp.float32)),
        compiler_params=_SEQ_PARAMS,
    )(feat8, head["wc"], head["bc"], head["wn"], head["wo"], head["bo"])
    return code[:n_valid], cos[:n_valid], out[:n_valid]


# ----------------------------------------------------------------------------
# Parameters: conv weights pre-reshaped to im2col layout (bf16), BN folded to
# (scale, shift), fc weights pre-transposed / pre-normalized -- all at init.
# ----------------------------------------------------------------------------
def init_params(key, config):
    keys = iter(jax.random.split(key, 256))
    eps = 1e-5

    def conv_w_mat(cout, cin, kh, kw):   # kaiming_normal_ mode='fan_out'
        std = (2.0 / (cout * kh * kw)) ** 0.5
        w = jax.random.normal(next(keys), (cout, cin, kh, kw),
                              jnp.float32) * std
        # OIHW -> (KH*KW*Cin, Cout) im2col layout, bf16 operands for the MXU.
        return jnp.transpose(w, (2, 3, 1, 0)).reshape(
            kh * kw * cin, cout).astype(jnp.bfloat16)

    def bn_fold(c):                      # eval-mode BN -> per-channel affine
        gamma = jnp.ones((c,), jnp.float32)
        beta = jnp.zeros((c,), jnp.float32)
        mean = jnp.zeros((c,), jnp.float32)
        var = jnp.ones((c,), jnp.float32)
        scale = gamma / jnp.sqrt(var + eps)
        shift = beta - mean * scale
        return scale.reshape(1, c), shift.reshape(1, c)

    def linear(out_f, in_f):             # PyTorch default init, bias zeroed
        bound = 1.0 / (in_f ** 0.5)
        w = jax.random.uniform(next(keys), (out_f, in_f), jnp.float32,
                               -bound, bound)
        b = jnp.zeros((out_f,), jnp.float32)
        return w, b

    base = config["base_channels"]
    n_ch = [base, base, base * 2, base * 4, base * 8]
    cin0 = config["input_shape"][1]

    params = {"conv0_w": conv_w_mat(n_ch[0], cin0, 7, 7)}

    n_blocks_per_stage = [3, 4, 6, 4]
    stride_per_stage = [(1, 1), (2, 2), (2, 2), (2, 2)]
    preact_stage = [True, False, False, False]

    blocks = []
    for s in range(4):
        in_c, out_c = n_ch[s], n_ch[s + 1]
        for bidx in range(n_blocks_per_stage[s]):
            bc_in = in_c if bidx == 0 else out_c
            st = stride_per_stage[s] if bidx == 0 else (1, 1)
            pre = preact_stage[s] if bidx == 0 else False
            bn1_s, bn1_b = bn_fold(bc_in)
            bn2_s, bn2_b = bn_fold(out_c)
            blocks.append(dict(
                conv1_w=conv_w_mat(out_c, bc_in, 3, 3),
                conv2_w=conv_w_mat(out_c, out_c, 3, 3),
                bn1_scale=bn1_s, bn1_shift=bn1_b,
                bn2_scale=bn2_s, bn2_shift=bn2_b,
                stride=st, preact=pre,
                shortcut_w=(conv_w_mat(out_c, bc_in, 1, 1)
                            if bc_in != out_c else None)))
    params["blocks"] = blocks
    params["final_bn"] = bn_fold(n_ch[4])

    # probe input_shape has batch 1 -> flattened feature == final channels
    feature_size = n_ch[4]
    wc, bc = linear(config["code_dim"], feature_size)          # (code, feat)
    wo, bo = linear(config["n_classes"], config["code_dim"])   # (cls, code)
    wnorm = jnp.linalg.norm(wo, axis=1, keepdims=True)
    params["head"] = dict(
        wc=wc.T,                       # (feat, code)   pre-transposed
        bc=bc.reshape(1, -1),
        wo=wo.T,                       # (code, cls)
        bo=bo.reshape(1, -1),
        wn=(wo / wnorm).T,             # pre-normalized, (code, cls)
    )
    return params


# ----------------------------------------------------------------------------
# Forward
# ----------------------------------------------------------------------------
def forward_conv(x_nhwc, params, pool_rows):
    """Runs conv stem + all residual blocks; returns pooled (pool_rows, C)."""
    blocks = params["blocks"]
    final_scale, final_shift = params["final_bn"]
    n_blocks = len(blocks)
    b0 = blocks[0]

    # Stem 7x7 conv fused with block0's bn1+ReLU (block0 is pre-activation,
    # so both its conv1 and its identity shortcut consume the activated x).
    act = fused_conv(x_nhwc, params["conv0_w"], (7, 7), (1, 2), (1, 1),
                     scale=b0["bn1_scale"], shift=b0["bn1_shift"])
    raw = None

    for i, bp in enumerate(blocks):
        last = i == n_blocks - 1
        if last:
            nxt_scale, nxt_shift = final_scale, final_shift
        else:
            nxt_scale = blocks[i + 1]["bn1_scale"]
            nxt_shift = blocks[i + 1]["bn1_shift"]

        if bp["preact"]:
            res = act                                   # identity on act(x)
        elif bp["shortcut_w"] is not None:
            res = fused_conv(raw, bp["shortcut_w"], (1, 1), bp["stride"],
                             (0, 0), want_raw=True, want_act=False)
        else:
            res = raw                                   # identity on raw x

        # bn1+ReLU of this block was fused into the producer of `act`.
        h = fused_conv(act, bp["conv1_w"], (3, 3), bp["stride"], (1, 1),
                       scale=bp["bn2_scale"], shift=bp["bn2_shift"])

        if last:
            # conv2 + residual add + final bn+ReLU + global avg+max pool.
            return fused_conv(h, bp["conv2_w"], (3, 3), (1, 1), (1, 1),
                              residual=res, scale=nxt_scale, shift=nxt_shift,
                              pool_rows=pool_rows)
        # conv2 + residual add; emit raw (next block's shortcut) and
        # next-block bn1+ReLU activated version (next block's conv1 input).
        raw, act = fused_conv(h, bp["conv2_w"], (3, 3), (1, 1), (1, 1),
                              residual=res, scale=nxt_scale, shift=nxt_shift,
                              want_raw=True, want_act=True)


def network_forward(x_nchw, ans, ans2, params, config, is_test=False):
    x = jnp.transpose(x_nchw, (0, 2, 3, 1)).astype(jnp.float32)  # NCHW->NHWC
    n = x.shape[0]
    pool_rows = max(8, ((n + 7) // 8) * 8)
    feat = forward_conv(x, params, pool_rows)           # (pool_rows, C_final)

    code, cos, output = head_forward(feat, params["head"],
                                     config["code_norm"], config["norm_s"], n)
    if is_test:
        return code

    cos_target = jnp.take_along_axis(cos, ans.reshape(-1, 1), axis=1)
    cos_impo = jnp.take_along_axis(cos, ans2, axis=1)
    # TODO(synk): torch.topk(sorted=False) / gather / log-loss epilogue stays
    # in plain JAX (tiny, no clean Pallas win).
    hard_neg, _ = jax.lax.top_k(cos_impo, config["negative_k"])
    hard_neg = jnp.maximum(hard_neg, 0.0)
    H_loss = jnp.log(1.0 + jnp.sum(jnp.exp(hard_neg - cos_target), axis=1))
    return H_loss, output


# ----------------------------------------------------------------------------
# Main
# ----------------------------------------------------------------------------
if __name__ == "__main__":
    config = dict(
        input_shape=(1, 3, 20, 36),  # batch=1 like the PyTorch probe tensor
        n_classes=10,
        base_channels=4,
        n_stages=4,
        code_dim=16,
        code_norm=True,
        norm_s=4.0,
        negative_k=3,
    )
    key = jax.random.PRNGKey(0)
    kx, kp, ka, ka2 = jax.random.split(key, 4)

    params = init_params(kp, config)

    batch = 2
    _, C, H, W = config["input_shape"]
    x = jax.random.normal(kx, (batch, C, H, W), jnp.float32)
    ans = jax.random.randint(ka, (batch,), 0, config["n_classes"])
    ans2 = jax.random.randint(ka2, (batch, 6), 0, config["n_classes"])

    @jax.jit
    def run(x, ans, ans2):
        return network_forward(x, ans, ans2, params, config, is_test=False)

    H_loss, output = run(x, ans, ans2)
    jax.block_until_ready((H_loss, output))
    assert H_loss.shape == (batch,)
    assert output.shape == (batch, config["n_classes"])
    print("KERNEL_OK")
</pallas_src>

<mosaic_0001>
module attributes {stable_mosaic.version = 11 : i64} {
  func.func @_conv_gemm_kernel(%arg0: i32, %arg1: memref<512x147xbf16, #tpu.memory_space<vmem>>, %arg2: memref<147x4xbf16, #tpu.memory_space<vmem>>, %arg3: memref<1x4xf32, #tpu.memory_space<vmem>>, %arg4: memref<1x4xf32, #tpu.memory_space<vmem>>, %arg5: memref<512x4xf32, #tpu.memory_space<vmem>>) attributes {dimension_semantics = [#tpu.dimension_semantics<arbitrary>], iteration_bounds = array<i64: 1>, scalar_prefetch = 0 : i64, scratch_operands = 0 : i64, tpu.core_type = #tpu.core_type<tc>, window_params = [{pipeline_mode = #tpu.pipeline_mode<synchronous>, transform_indices = @transform_0, window_bounds = array<i64: 512, 147>}, {pipeline_mode = #tpu.pipeline_mode<synchronous>, transform_indices = @transform_1, window_bounds = array<i64: 147, 4>}, {pipeline_mode = #tpu.pipeline_mode<synchronous>, transform_indices = @transform_2, window_bounds = array<i64: 1, 4>}, {pipeline_mode = #tpu.pipeline_mode<synchronous>, transform_indices = @transform_3, window_bounds = array<i64: 1, 4>}, {pipeline_mode = #tpu.pipeline_mode<synchronous>, transform_indices = @transform_4, window_bounds = array<i64: 512, 4>}]} {
    %c0 = arith.constant 0 : index
    %c0_0 = arith.constant 0 : index
    %0 = vector.load %arg1[%c0, %c0_0] : memref<512x147xbf16, #tpu.memory_space<vmem>>, vector<512x147xbf16>
    %c0_1 = arith.constant 0 : index
    %c0_2 = arith.constant 0 : index
    %1 = vector.load %arg2[%c0_1, %c0_2] : memref<147x4xbf16, #tpu.memory_space<vmem>>, vector<147x4xbf16>
    %cst = arith.constant dense<0.000000e+00> : vector<512x4xf32>
    %2 = tpu.matmul %0, %1, %cst {dimension_numbers = #tpu.dot_dimension_numbers<[1], [0], [0], [1], [0, 0, 1, 1], [], []>} : vector<512x147xbf16>, vector<147x4xbf16>, vector<512x4xf32> -> vector<512x4xf32>
    %c0_3 = arith.constant 0 : index
    %c0_4 = arith.constant 0 : index
    %3 = vector.load %arg3[%c0_3, %c0_4] : memref<1x4xf32, #tpu.memory_space<vmem>>, vector<1x4xf32>
    %4 = vector.broadcast %3 : vector<1x4xf32> to vector<512x4xf32>
    %5 = arith.mulf %2, %4 : vector<512x4xf32>
    %c0_5 = arith.constant 0 : index
    %c0_6 = arith.constant 0 : index
    %6 = vector.load %arg4[%c0_5, %c0_6] : memref<1x4xf32, #tpu.memory_space<vmem>>, vector<1x4xf32>
    %7 = vector.broadcast %6 : vector<1x4xf32> to vector<512x4xf32>
    %8 = arith.addf %5, %7 : vector<512x4xf32>
    %cst_7 = arith.constant 0.000000e+00 : f32
    %9 = vector.broadcast %cst_7 : f32 to vector<512x4xf32>
    %10 = arith.maximumf %8, %9 : vector<512x4xf32>
    %c0_8 = arith.constant 0 : index
    %c0_9 = arith.constant 0 : index
    %11 = vector.load %arg5[%c0_8, %c0_9] : memref<512x4xf32, #tpu.memory_space<vmem>>, vector<512x4xf32>
    tpu.vector_store %arg5[%c0_8, %c0_9], %10 {strides = array<i32>} : memref<512x4xf32, #tpu.memory_space<vmem>>, vector<512x4xf32>,
    return
  }
  func.func @transform_0(%arg0: i32) -> (i32, i32) {
    %c0_i32 = arith.constant 0 : i32
    %c0_i32_0 = arith.constant 0 : i32
    %c0_i32_1 = arith.constant 0 : i32
    return %c0_i32, %c0_i32_0 : i32, i32
  }
  func.func @transform_1(%arg0: i32) -> (i32, i32) {
    %c0_i32 = arith.constant 0 : i32
    %c0_i32_0 = arith.constant 0 : i32
    %c0_i32_1 = arith.constant 0 : i32
    return %c0_i32, %c0_i32_0 : i32, i32
  }
  func.func @transform_2(%arg0: i32) -> (i32, i32) {
    %c0_i32 = arith.constant 0 : i32
    %c0_i32_0 = arith.constant 0 : i32
    %c0_i32_1 = arith.constant 0 : i32
    return %c0_i32, %c0_i32_0 : i32, i32
  }
  func.func @transform_3(%arg0: i32) -> (i32, i32) {
    %c0_i32 = arith.constant 0 : i32
    %c0_i32_0 = arith.constant 0 : i32
    %c0_i32_1 = arith.constant 0 : i32
    return %c0_i32, %c0_i32_0 : i32, i32
  }
  func.func @transform_4(%arg0: i32) -> (i32, i32) {
    %c0_i32 = arith.constant 0 : i32
    %c0_i32_0 = arith.constant 0 : i32
    %c0_i32_1 = arith.constant 0 : i32
    return %c0_i32, %c0_i32_0 : i32, i32
  }
}

module attributes {stable_mosaic.version = 11 : i64} {
  func.func @_conv_gemm_kernel(%arg0: i32, %arg1: memref<512x36xbf16, #tpu.memory_space<vmem>>, %arg2: memref<36x4xbf16, #tpu.memory_space<vmem>>, %arg3: memref<1x4xf32, #tpu.memory_space<vmem>>, %arg4: memref<1x4xf32, #tpu.memory_space<vmem>>, %arg5: memref<512x4xf32, #tpu.memory_space<vmem>>) attributes {dimension_semantics = [#tpu.dimension_semantics<arbitrary>], iteration_bounds = array<i64: 1>, scalar_prefetch = 0 : i64, scratch_operands = 0 : i64, tpu.core_type = #tpu.core_type<tc>, window_params = [{pipeline_mode = #tpu.pipeline_mode<synchronous>, transform_indices = @transform_0, window_bounds = array<i64: 512, 36>}, {pipeline_mode = #tpu.pipeline_mode<synchronous>, transform_indices = @transform_1, window_bounds = array<i64: 36, 4>}, {pipeline_mode = #tpu.pipeline_mode<synchronous>, transform_indices = @transform_2, window_bounds = array<i64: 1, 4>}, {pipeline_mode = #tpu.pipeline_mode<synchronous>, transform_indices = @transform_3, window_bounds = array<i64: 1, 4>}, {pipeline_mode = #tpu.pipeline_mode<synchronous>, transform_indices = @transform_4, window_bounds = array<i64: 512, 4>}]} {
    %c0 = arith.constant 0 : index
    %c0_0 = arith.constant 0 : index
    %0 = vector.load %arg1[%c0, %c0_0] : memref<512x36xbf16, #tpu.memory_space<vmem>>, vector<512x36xbf16>
    %c0_1 = arith.constant 0 : index
    %c0_2 = arith.constant 0 : index
    %1 = vector.load %arg2[%c0_1, %c0_2] : memref<36x4xbf16, #tpu.memory_space<vmem>>, vector<36x4xbf16>
    %cst = arith.constant dense<0.000000e+00> : vector<512x4xf32>
    %2 = tpu.matmul %0, %1, %cst {dimension_numbers = #tpu.dot_dimension_numbers<[1], [0], [0], [1], [0, 0, 1, 1], [], []>} : vector<512x36xbf16>, vector<36x4xbf16>, vector<512x4xf32> -> vector<512x4xf32>
    %c0_3 = arith.constant 0 : index
    %c0_4 = arith.constant 0 : index
    %3 = vector.load %arg3[%c0_3, %c0_4] : memref<1x4xf32, #tpu.memory_space<vmem>>, vector<1x4xf32>
    %4 = vector.broadcast %3 : vector<1x4xf32> to vector<512x4xf32>
    %5 = arith.mulf %2, %4 : vector<512x4xf32>
    %c0_5 = arith.constant 0 : index
    %c0_6 = arith.constant 0 : index
    %6 = vector.load %arg4[%c0_5, %c0_6] : memref<1x4xf32, #tpu.memory_space<vmem>>, vector<1x4xf32>
    %7 = vector.broadcast %6 : vector<1x4xf32> to vector<512x4xf32>
    %8 = arith.addf %5, %7 : vector<512x4xf32>
    %cst_7 = arith.constant 0.000000e+00 : f32
    %9 = vector.broadcast %cst_7 : f32 to vector<512x4xf32>
    %10 = arith.maximumf %8, %9 : vector<512x4xf32>
    %c0_8 = arith.constant 0 : index
    %c0_9 = arith.constant 0 : index
    %11 = vector.load %arg5[%c0_8, %c0_9] : memref<512x4xf32, #tpu.memory_space<vmem>>, vector<512x4xf32>
    tpu.vector_store %arg5[%c0_8, %c0_9], %10 {strides = array<i32>} : memref<512x4xf32, #tpu.memory_space<vmem>>, vector<512x4xf32>,
    return
  }
  func.func @transform_0(%arg0: i32) -> (i32, i32) {
    %c0_i32 = arith.constant 0 : i32
    %c0_i32_0 = arith.constant 0 : i32
    %c0_i32_1 = arith.constant 0 : i32
    return %c0_i32, %c0_i32_0 : i32, i32
  }
  func.func @transform_1(%arg0: i32) -> (i32, i32) {
    %c0_i32 = arith.constant 0 : i32
    %c0_i32_0 = arith.constant 0 : i32
    %c0_i32_1 = arith.constant 0 : i32
    return %c0_i32, %c0_i32_0 : i32, i32
  }
  func.func @transform_2(%arg0: i32) -> (i32, i32) {
    %c0_i32 = arith.constant 0 : i32
    %c0_i32_0 = arith.constant 0 : i32
    %c0_i32_1 = arith.constant 0 : i32
    return %c0_i32, %c0_i32_0 : i32, i32
  }
  func.func @transform_3(%arg0: i32) -> (i32, i32) {
    %c0_i32 = arith.constant 0 : i32
    %c0_i32_0 = arith.constant 0 : i32
    %c0_i32_1 = arith.constant 0 : i32
    return %c0_i32, %c0_i32_0 : i32, i32
  }
  func.func @transform_4(%arg0: i32) -> (i32, i32) {
    %c0_i32 = arith.constant 0 : i32
    %c0_i32_0 = arith.constant 0 : i32
    %c0_i32_1 = arith.constant 0 : i32
    return %c0_i32, %c0_i32_0 : i32, i32
  }
}

module attributes {stable_mosaic.version = 11 : i64} {
  func.func @_conv_gemm_kernel(%arg0: i32, %arg1: memref<512x36xbf16, #tpu.memory_space<vmem>>, %arg2: memref<36x4xbf16, #tpu.memory_space<vmem>>, %arg3: memref<512x4xf32, #tpu.memory_space<vmem>>, %arg4: memref<1x4xf32, #tpu.memory_space<vmem>>, %arg5: memref<1x4xf32, #tpu.memory_space<vmem>>, %arg6: memref<512x4xf32, #tpu.memory_space<vmem>>, %arg7: memref<512x4xf32, #tpu.memory_space<vmem>>) attributes {dimension_semantics = [#tpu.dimension_semantics<arbitrary>], iteration_bounds = array<i64: 1>, scalar_prefetch = 0 : i64, scratch_operands = 0 : i64, tpu.core_type = #tpu.core_type<tc>, window_params = [{pipeline_mode = #tpu.pipeline_mode<synchronous>, transform_indices = @transform_0, window_bounds = array<i64: 512, 36>}, {pipeline_mode = #tpu.pipeline_mode<synchronous>, transform_indices = @transform_1, window_bounds = array<i64: 36, 4>}, {pipeline_mode = #tpu.pipeline_mode<synchronous>, transform_indices = @transform_2, window_bounds = array<i64: 512, 4>}, {pipeline_mode = #tpu.pipeline_mode<synchronous>, transform_indices = @transform_3, window_bounds = array<i64: 1, 4>}, {pipeline_mode = #tpu.pipeline_mode<synchronous>, transform_indices = @transform_4, window_bounds = array<i64: 1, 4>}, {pipeline_mode = #tpu.pipeline_mode<synchronous>, transform_indices = @transform_5, window_bounds = array<i64: 512, 4>}, {pipeline_mode = #tpu.pipeline_mode<synchronous>, transform_indices = @transform_6, window_bounds = array<i64: 512, 4>}]} {
    %c0 = arith.constant 0 : index
    %c0_0 = arith.constant 0 : index
    %0 = vector.load %arg1[%c0, %c0_0] : memref<512x36xbf16, #tpu.memory_space<vmem>>, vector<512x36xbf16>
    %c0_1 = arith.constant 0 : index
    %c0_2 = arith.constant 0 : index
    %1 = vector.load %arg2[%c0_1, %c0_2] : memref<36x4xbf16, #tpu.memory_space<vmem>>, vector<36x4xbf16>
    %cst = arith.constant dense<0.000000e+00> : vector<512x4xf32>
    %2 = tpu.matmul %0, %1, %cst {dimension_numbers = #tpu.dot_dimension_numbers<[1], [0], [0], [1], [0, 0, 1, 1], [], []>} : vector<512x36xbf16>, vector<36x4xbf16>, vector<512x4xf32> -> vector<512x4xf32>
    %c0_3 = arith.constant 0 : index
    %c0_4 = arith.constant 0 : index
    %3 = vector.load %arg3[%c0_3, %c0_4] : memref<512x4xf32, #tpu.memory_space<vmem>>, vector<512x4xf32>
    %4 = arith.addf %2, %3 : vector<512x4xf32>
    %c0_5 = arith.constant 0 : index
    %c0_6 = arith.constant 0 : index
    %5 = vector.load %arg6[%c0_5, %c0_6] : memref<512x4xf32, #tpu.memory_space<vmem>>, vector<512x4xf32>
    tpu.vector_store %arg6[%c0_5, %c0_6], %4 {strides = array<i32>} : memref<512x4xf32, #tpu.memory_space<vmem>>, vector<512x4xf32>,
    %c0_7 = arith.constant 0 : index
    %c0_8 = arith.constant 0 : index
    %6 = vector.load %arg4[%c0_7, %c0_8] : memref<1x4xf32, #tpu.memory_space<vmem>>, vector<1x4xf32>
    %7 = vector.broadcast %6 : vector<1x4xf32> to vector<512x4xf32>
    %8 = arith.mulf %4, %7 : vector<512x4xf32>
    %c0_9 = arith.constant 0 : index
    %c0_10 = arith.constant 0 : index
    %9 = vector.load %arg5[%c0_9, %c0_10] : memref<1x4xf32, #tpu.memory_space<vmem>>, vector<1x4xf32>
    %10 = vector.broadcast %9 : vector<1x4xf32> to vector<512x4xf32>
    %11 = arith.addf %8, %10 : vector<512x4xf32>
    %cst_11 = arith.constant 0.000000e+00 : f32
    %12 = vector.broadcast %cst_11 : f32 to vector<512x4xf32>
    %13 = arith.maximumf %11, %12 : vector<512x4xf32>
    %c0_12 = arith.constant 0 : index
    %c0_13 = arith.constant 0 : index
    %14 = vector.load %arg7[%c0_12, %c0_13] : memref<512x4xf32, #tpu.memory_space<vmem>>, vector<512x4xf32>
    tpu.vector_store %arg7[%c0_12, %c0_13], %13 {strides = array<i32>} : memref<512x4xf32, #tpu.memory_space<vmem>>, vector<512x4xf32>,
    return
  }
  func.func @transform_0(%arg0: i32) -> (i32, i32) {
    %c0_i32 = arith.constant 0 : i32
    %c0_i32_0 = arith.constant 0 : i32
    %c0_i32_1 = arith.constant 0 : i32
    return %c0_i32, %c0_i32_0 : i32, i32
  }
  func.func @transform_1(%arg0: i32) -> (i32, i32) {
    %c0_i32 = arith.constant 0 : i32
    %c0_i32_0 = arith.constant 0 : i32
    %c0_i32_1 = arith.constant 0 : i32
    return %c0_i32, %c0_i32_0 : i32, i32
  }
  func.func @transform_2(%arg0: i32) -> (i32, i32) {
    %c0_i32 = arith.constant 0 : i32
    %c0_i32_0 = arith.constant 0 : i32
    %c0_i32_1 = arith.constant 0 : i32
    return %c0_i32, %c0_i32_0 : i32, i32
  }
  func.func @transform_3(%arg0: i32) -> (i32, i32) {
    %c0_i32 = arith.constant 0 : i32
    %c0_i32_0 = arith.constant 0 : i32
    %c0_i32_1 = arith.constant 0 : i32
    return %c0_i32, %c0_i32_0 : i32, i32
  }
  func.func @transform_4(%arg0: i32) -> (i32, i32) {
    %c0_i32 = arith.constant 0 : i32
    %c0_i32_0 = arith.constant 0 : i32
    %c0_i32_1 = arith.constant 0 : i32
    return %c0_i32, %c0_i32_0 : i32, i32
  }
  func.func @transform_5(%arg0: i32) -> (i32, i32) {
    %c0_i32 = arith.constant 0 : i32
    %c0_i32_0 = arith.constant 0 : i32
    %c0_i32_1 = arith.constant 0 : i32
    return %c0_i32, %c0_i32_0 : i32, i32
  }
  func.func @transform_6(%arg0: i32) -> (i32, i32) {
    %c0_i32 = arith.constant 0 : i32
    %c0_i32_0 = arith.constant 0 : i32
    %c0_i32_1 = arith.constant 0 : i32
    return %c0_i32, %c0_i32_0 : i32, i32
  }
}

module attributes {stable_mosaic.version = 11 : i64} {
  func.func @_conv_gemm_kernel(%arg0: i32, %arg1: memref<128x36xbf16, #tpu.memory_space<vmem>>, %arg2: memref<36x8xbf16, #tpu.memory_space<vmem>>, %arg3: memref<1x8xf32, #tpu.memory_space<vmem>>, %arg4: memref<1x8xf32, #tpu.memory_space<vmem>>, %arg5: memref<128x8xf32, #tpu.memory_space<vmem>>) attributes {dimension_semantics = [#tpu.dimension_semantics<arbitrary>], iteration_bounds = array<i64: 1>, scalar_prefetch = 0 : i64, scratch_operands = 0 : i64, tpu.core_type = #tpu.core_type<tc>, window_params = [{pipeline_mode = #tpu.pipeline_mode<synchronous>, transform_indices = @transform_0, window_bounds = array<i64: 128, 36>}, {pipeline_mode = #tpu.pipeline_mode<synchronous>, transform_indices = @transform_1, window_bounds = array<i64: 36, 8>}, {pipeline_mode = #tpu.pipeline_mode<synchronous>, transform_indices = @transform_2, window_bounds = array<i64: 1, 8>}, {pipeline_mode = #tpu.pipeline_mode<synchronous>, transform_indices = @transform_3, window_bounds = array<i64: 1, 8>}, {pipeline_mode = #tpu.pipeline_mode<synchronous>, transform_indices = @transform_4, window_bounds = array<i64: 128, 8>}]} {
    %c0 = arith.constant 0 : index
    %c0_0 = arith.constant 0 : index
    %0 = vector.load %arg1[%c0, %c0_0] : memref<128x36xbf16, #tpu.memory_space<vmem>>, vector<128x36xbf16>
    %c0_1 = arith.constant 0 : index
    %c0_2 = arith.constant 0 : index
    %1 = vector.load %arg2[%c0_1, %c0_2] : memref<36x8xbf16, #tpu.memory_space<vmem>>, vector<36x8xbf16>
    %cst = arith.constant dense<0.000000e+00> : vector<128x8xf32>
    %2 = tpu.matmul %0, %1, %cst {dimension_numbers = #tpu.dot_dimension_numbers<[1], [0], [0], [1], [0, 0, 1, 1], [], []>} : vector<128x36xbf16>, vector<36x8xbf16>, vector<128x8xf32> -> vector<128x8xf32>
    %c0_3 = arith.constant 0 : index
    %c0_4 = arith.constant 0 : index
    %3 = vector.load %arg3[%c0_3, %c0_4] : memref<1x8xf32, #tpu.memory_space<vmem>>, vector<1x8xf32>
    %4 = vector.broadcast %3 : vector<1x8xf32> to vector<128x8xf32>
    %5 = arith.mulf %2, %4 : vector<128x8xf32>
    %c0_5 = arith.constant 0 : index
    %c0_6 = arith.constant 0 : index
    %6 = vector.load %arg4[%c0_5, %c0_6] : memref<1x8xf32, #tpu.memory_space<vmem>>, vector<1x8xf32>
    %7 = vector.broadcast %6 : vector<1x8xf32> to vector<128x8xf32>
    %8 = arith.addf %5, %7 : vector<128x8xf32>
    %cst_7 = arith.constant 0.000000e+00 : f32
    %9 = vector.broadcast %cst_7 : f32 to vector<128x8xf32>
    %10 = arith.maximumf %8, %9 : vector<128x8xf32>
    %c0_8 = arith.constant 0 : index
    %c0_9 = arith.constant 0 : index
    %11 = vector.load %arg5[%c0_8, %c0_9] : memref<128x8xf32, #tpu.memory_space<vmem>>, vector<128x8xf32>
    tpu.vector_store %arg5[%c0_8, %c0_9], %10 {strides = array<i32>} : memref<128x8xf32, #tpu.memory_space<vmem>>, vector<128x8xf32>,
    return
  }
  func.func @transform_0(%arg0: i32) -> (i32, i32) {
    %c0_i32 = arith.constant 0 : i32
    %c0_i32_0 = arith.constant 0 : i32
    %c0_i32_1 = arith.constant 0 : i32
    return %c0_i32, %c0_i32_0 : i32, i32
  }
  func.func @transform_1(%arg0: i32) -> (i32, i32) {
    %c0_i32 = arith.constant 0 : i32
    %c0_i32_0 = arith.constant 0 : i32
    %c0_i32_1 = arith.constant 0 : i32
    return %c0_i32, %c0_i32_0 : i32, i32
  }
  func.func @transform_2(%arg0: i32) -> (i32, i32) {
    %c0_i32 = arith.constant 0 : i32
    %c0_i32_0 = arith.constant 0 : i32
    %c0_i32_1 = arith.constant 0 : i32
    return %c0_i32, %c0_i32_0 : i32, i32
  }
  func.func @transform_3(%arg0: i32) -> (i32, i32) {
    %c0_i32 = arith.constant 0 : i32
    %c0_i32_0 = arith.constant 0 : i32
    %c0_i32_1 = arith.constant 0 : i32
    return %c0_i32, %c0_i32_0 : i32, i32
  }
  func.func @transform_4(%arg0: i32) -> (i32, i32) {
    %c0_i32 = arith.constant 0 : i32
    %c0_i32_0 = arith.constant 0 : i32
    %c0_i32_1 = arith.constant 0 : i32
    return %c0_i32, %c0_i32_0 : i32, i32
  }
}

module attributes {stable_mosaic.version = 11 : i64} {
  func.func @_conv_gemm_kernel(%arg0: i32, %arg1: memref<128x4xbf16, #tpu.memory_space<vmem>>, %arg2: memref<4x8xbf16, #tpu.memory_space<vmem>>, %arg3: memref<128x8xf32, #tpu.memory_space<vmem>>) attributes {dimension_semantics = [#tpu.dimension_semantics<arbitrary>], iteration_bounds = array<i64: 1>, scalar_prefetch = 0 : i64, scratch_operands = 0 : i64, tpu.core_type = #tpu.core_type<tc>, window_params = [{pipeline_mode = #tpu.pipeline_mode<synchronous>, transform_indices = @transform_0, window_bounds = array<i64: 128, 4>}, {pipeline_mode = #tpu.pipeline_mode<synchronous>, transform_indices = @transform_1, window_bounds = array<i64: 4, 8>}, {pipeline_mode = #tpu.pipeline_mode<synchronous>, transform_indices = @transform_2, window_bounds = array<i64: 128, 8>}]} {
    %c0 = arith.constant 0 : index
    %c0_0 = arith.constant 0 : index
    %0 = vector.load %arg1[%c0, %c0_0] : memref<128x4xbf16, #tpu.memory_space<vmem>>, vector<128x4xbf16>
    %c0_1 = arith.constant 0 : index
    %c0_2 = arith.constant 0 : index
    %1 = vector.load %arg2[%c0_1, %c0_2] : memref<4x8xbf16, #tpu.memory_space<vmem>>, vector<4x8xbf16>
    %cst = arith.constant dense<0.000000e+00> : vector<128x8xf32>
    %2 = tpu.matmul %0, %1, %cst {dimension_numbers = #tpu.dot_dimension_numbers<[1], [0], [0], [1], [0, 0, 1, 1], [], []>} : vector<128x4xbf16>, vector<4x8xbf16>, vector<128x8xf32> -> vector<128x8xf32>
    %c0_3 = arith.constant 0 : index
    %c0_4 = arith.constant 0 : index
    %3 = vector.load %arg3[%c0_3, %c0_4] : memref<128x8xf32, #tpu.memory_space<vmem>>, vector<128x8xf32>
    tpu.vector_store %arg3[%c0_3, %c0_4], %2 {strides = array<i32>} : memref<128x8xf32, #tpu.memory_space<vmem>>, vector<128x8xf32>,
    return
  }
  func.func @transform_0(%arg0: i32) -> (i32, i32) {
    %c0_i32 = arith.constant 0 : i32
    %c0_i32_0 = arith.constant 0 : i32
    %c0_i32_1 = arith.constant 0 : i32
    return %c0_i32, %c0_i32_0 : i32, i32
  }
  func.func @transform_1(%arg0: i32) -> (i32, i32) {
    %c0_i32 = arith.constant 0 : i32
    %c0_i32_0 = arith.constant 0 : i32
    %c0_i32_1 = arith.constant 0 : i32
    return %c0_i32, %c0_i32_0 : i32, i32
  }
  func.func @transform_2(%arg0: i32) -> (i32, i32) {
    %c0_i32 = arith.constant 0 : i32
    %c0_i32_0 = arith.constant 0 : i32
    %c0_i32_1 = arith.constant 0 : i32
    return %c0_i32, %c0_i32_0 : i32, i32
  }
}

module attributes {stable_mosaic.version = 11 : i64} {
  func.func @_conv_gemm_kernel(%arg0: i32, %arg1: memref<128x72xbf16, #tpu.memory_space<vmem>>, %arg2: memref<72x8xbf16, #tpu.memory_space<vmem>>, %arg3: memref<128x8xf32, #tpu.memory_space<vmem>>, %arg4: memref<1x8xf32, #tpu.memory_space<vmem>>, %arg5: memref<1x8xf32, #tpu.memory_space<vmem>>, %arg6: memref<128x8xf32, #tpu.memory_space<vmem>>, %arg7: memref<128x8xf32, #tpu.memory_space<vmem>>) attributes {dimension_semantics = [#tpu.dimension_semantics<arbitrary>], iteration_bounds = array<i64: 1>, scalar_prefetch = 0 : i64, scratch_operands = 0 : i64, tpu.core_type = #tpu.core_type<tc>, window_params = [{pipeline_mode = #tpu.pipeline_mode<synchronous>, transform_indices = @transform_0, window_bounds = array<i64: 128, 72>}, {pipeline_mode = #tpu.pipeline_mode<synchronous>, transform_indices = @transform_1, window_bounds = array<i64: 72, 8>}, {pipeline_mode = #tpu.pipeline_mode<synchronous>, transform_indices = @transform_2, window_bounds = array<i64: 128, 8>}, {pipeline_mode = #tpu.pipeline_mode<synchronous>, transform_indices = @transform_3, window_bounds = array<i64: 1, 8>}, {pipeline_mode = #tpu.pipeline_mode<synchronous>, transform_indices = @transform_4, window_bounds = array<i64: 1, 8>}, {pipeline_mode = #tpu.pipeline_mode<synchronous>, transform_indices = @transform_5, window_bounds = array<i64: 128, 8>}, {pipeline_mode = #tpu.pipeline_mode<synchronous>, transform_indices = @transform_6, window_bounds = array<i64: 128, 8>}]} {
    %c0 = arith.constant 0 : index
    %c0_0 = arith.constant 0 : index
    %0 = vector.load %arg1[%c0, %c0_0] : memref<128x72xbf16, #tpu.memory_space<vmem>>, vector<128x72xbf16>
    %c0_1 = arith.constant 0 : index
    %c0_2 = arith.constant 0 : index
    %1 = vector.load %arg2[%c0_1, %c0_2] : memref<72x8xbf16, #tpu.memory_space<vmem>>, vector<72x8xbf16>
    %cst = arith.constant dense<0.000000e+00> : vector<128x8xf32>
    %2 = tpu.matmul %0, %1, %cst {dimension_numbers = #tpu.dot_dimension_numbers<[1], [0], [0], [1], [0, 0, 1, 1], [], []>} : vector<128x72xbf16>, vector<72x8xbf16>, vector<128x8xf32> -> vector<128x8xf32>
    %c0_3 = arith.constant 0 : index
    %c0_4 = arith.constant 0 : index
    %3 = vector.load %arg3[%c0_3, %c0_4] : memref<128x8xf32, #tpu.memory_space<vmem>>, vector<128x8xf32>
    %4 = arith.addf %2, %3 : vector<128x8xf32>
    %c0_5 = arith.constant 0 : index
    %c0_6 = arith.constant 0 : index
    %5 = vector.load %arg6[%c0_5, %c0_6] : memref<128x8xf32, #tpu.memory_space<vmem>>, vector<128x8xf32>
    tpu.vector_store %arg6[%c0_5, %c0_6], %4 {strides = array<i32>} : memref<128x8xf32, #tpu.memory_space<vmem>>, vector<128x8xf32>,
    %c0_7 = arith.constant 0 : index
    %c0_8 = arith.constant 0 : index
    %6 = vector.load %arg4[%c0_7, %c0_8] : memref<1x8xf32, #tpu.memory_space<vmem>>, vector<1x8xf32>
    %7 = vector.broadcast %6 : vector<1x8xf32> to vector<128x8xf32>
    %8 = arith.mulf %4, %7 : vector<128x8xf32>
    %c0_9 = arith.constant 0 : index
    %c0_10 = arith.constant 0 : index
    %9 = vector.load %arg5[%c0_9, %c0_10] : memref<1x8xf32, #tpu.memory_space<vmem>>, vector<1x8xf32>
    %10 = vector.broadcast %9 : vector<1x8xf32> to vector<128x8xf32>
    %11 = arith.addf %8, %10 : vector<128x8xf32>
    %cst_11 = arith.constant 0.000000e+00 : f32
    %12 = vector.broadcast %cst_11 : f32 to vector<128x8xf32>
    %13 = arith.maximumf %11, %12 : vector<128x8xf32>
    %c0_12 = arith.constant 0 : index
    %c0_13 = arith.constant 0 : index
    %14 = vector.load %arg7[%c0_12, %c0_13] : memref<128x8xf32, #tpu.memory_space<vmem>>, vector<128x8xf32>
    tpu.vector_store %arg7[%c0_12, %c0_13], %13 {strides = array<i32>} : memref<128x8xf32, #tpu.memory_space<vmem>>, vector<128x8xf32>,
    return
  }
  func.func @transform_0(%arg0: i32) -> (i32, i32) {
    %c0_i32 = arith.constant 0 : i32
    %c0_i32_0 = arith.constant 0 : i32
    %c0_i32_1 = arith.constant 0 : i32
    return %c0_i32, %c0_i32_0 : i32, i32
  }
  func.func @transform_1(%arg0: i32) -> (i32, i32) {
    %c0_i32 = arith.constant 0 : i32
    %c0_i32_0 = arith.constant 0 : i32
    %c0_i32_1 = arith.constant 0 : i32
    return %c0_i32, %c0_i32_0 : i32, i32
  }
  func.func @transform_2(%arg0: i32) -> (i32, i32) {
    %c0_i32 = arith.constant 0 : i32
    %c0_i32_0 = arith.constant 0 : i32
    %c0_i32_1 = arith.constant 0 : i32
    return %c0_i32, %c0_i32_0 : i32, i32
  }
  func.func @transform_3(%arg0: i32) -> (i32, i32) {
    %c0_i32 = arith.constant 0 : i32
    %c0_i32_0 = arith.constant 0 : i32
    %c0_i32_1 = arith.constant 0 : i32
    return %c0_i32, %c0_i32_0 : i32, i32
  }
  func.func @transform_4(%arg0: i32) -> (i32, i32) {
    %c0_i32 = arith.constant 0 : i32
    %c0_i32_0 = arith.constant 0 : i32
    %c0_i32_1 = arith.constant 0 : i32
    return %c0_i32, %c0_i32_0 : i32, i32
  }
  func.func @transform_5(%arg0: i32) -> (i32, i32) {
    %c0_i32 = arith.constant 0 : i32
    %c0_i32_0 = arith.constant 0 : i32
    %c0_i32_1 = arith.constant 0 : i32
    return %c0_i32, %c0_i32_0 : i32, i32
  }
  func.func @transform_6(%arg0: i32) -> (i32, i32) {
    %c0_i32 = arith.constant 0 : i32
    %c0_i32_0 = arith.constant 0 : i32
    %c0_i32_1 = arith.constant 0 : i32
    return %c0_i32, %c0_i32_0 : i32, i32
  }
}

module attributes {stable_mosaic.version = 11 : i64} {
  func.func @_conv_gemm_kernel(%arg0: i32, %arg1: memref<128x72xbf16, #tpu.memory_space<vmem>>, %arg2: memref<72x8xbf16, #tpu.memory_space<vmem>>, %arg3: memref<1x8xf32, #tpu.memory_space<vmem>>, %arg4: memref<1x8xf32, #tpu.memory_space<vmem>>, %arg5: memref<128x8xf32, #tpu.memory_space<vmem>>) attributes {dimension_semantics = [#tpu.dimension_semantics<arbitrary>], iteration_bounds = array<i64: 1>, scalar_prefetch = 0 : i64, scratch_operands = 0 : i64, tpu.core_type = #tpu.core_type<tc>, window_params = [{pipeline_mode = #tpu.pipeline_mode<synchronous>, transform_indices = @transform_0, window_bounds = array<i64: 128, 72>}, {pipeline_mode = #tpu.pipeline_mode<synchronous>, transform_indices = @transform_1, window_bounds = array<i64: 72, 8>}, {pipeline_mode = #tpu.pipeline_mode<synchronous>, transform_indices = @transform_2, window_bounds = array<i64: 1, 8>}, {pipeline_mode = #tpu.pipeline_mode<synchronous>, transform_indices = @transform_3, window_bounds = array<i64: 1, 8>}, {pipeline_mode = #tpu.pipeline_mode<synchronous>, transform_indices = @transform_4, window_bounds = array<i64: 128, 8>}]} {
    %c0 = arith.constant 0 : index
    %c0_0 = arith.constant 0 : index
    %0 = vector.load %arg1[%c0, %c0_0] : memref<128x72xbf16, #tpu.memory_space<vmem>>, vector<128x72xbf16>
    %c0_1 = arith.constant 0 : index
    %c0_2 = arith.constant 0 : index
    %1 = vector.load %arg2[%c0_1, %c0_2] : memref<72x8xbf16, #tpu.memory_space<vmem>>, vector<72x8xbf16>
    %cst = arith.constant dense<0.000000e+00> : vector<128x8xf32>
    %2 = tpu.matmul %0, %1, %cst {dimension_numbers = #tpu.dot_dimension_numbers<[1], [0], [0], [1], [0, 0, 1, 1], [], []>} : vector<128x72xbf16>, vector<72x8xbf16>, vector<128x8xf32> -> vector<128x8xf32>
    %c0_3 = arith.constant 0 : index
    %c0_4 = arith.constant 0 : index
    %3 = vector.load %arg3[%c0_3, %c0_4] : memref<1x8xf32, #tpu.memory_space<vmem>>, vector<1x8xf32>
    %4 = vector.broadcast %3 : vector<1x8xf32> to vector<128x8xf32>
    %5 = arith.mulf %2, %4 : vector<128x8xf32>
    %c0_5 = arith.constant 0 : index
    %c0_6 = arith.constant 0 : index
    %6 = vector.load %arg4[%c0_5, %c0_6] : memref<1x8xf32, #tpu.memory_space<vmem>>, vector<1x8xf32>
    %7 = vector.broadcast %6 : vector<1x8xf32> to vector<128x8xf32>
    %8 = arith.addf %5, %7 : vector<128x8xf32>
    %cst_7 = arith.constant 0.000000e+00 : f32
    %9 = vector.broadcast %cst_7 : f32 to vector<128x8xf32>
    %10 = arith.maximumf %8, %9 : vector<128x8xf32>
    %c0_8 = arith.constant 0 : index
    %c0_9 = arith.constant 0 : index
    %11 = vector.load %arg5[%c0_8, %c0_9] : memref<128x8xf32, #tpu.memory_space<vmem>>, vector<128x8xf32>
    tpu.vector_store %arg5[%c0_8, %c0_9], %10 {strides = array<i32>} : memref<128x8xf32, #tpu.memory_space<vmem>>, vector<128x8xf32>,
    return
  }
  func.func @transform_0(%arg0: i32) -> (i32, i32) {
    %c0_i32 = arith.constant 0 : i32
    %c0_i32_0 = arith.constant 0 : i32
    %c0_i32_1 = arith.constant 0 : i32
    return %c0_i32, %c0_i32_0 : i32, i32
  }
  func.func @transform_1(%arg0: i32) -> (i32, i32) {
    %c0_i32 = arith.constant 0 : i32
    %c0_i32_0 = arith.constant 0 : i32
    %c0_i32_1 = arith.constant 0 : i32
    return %c0_i32, %c0_i32_0 : i32, i32
  }
  func.func @transform_2(%arg0: i32) -> (i32, i32) {
    %c0_i32 = arith.constant 0 : i32
    %c0_i32_0 = arith.constant 0 : i32
    %c0_i32_1 = arith.constant 0 : i32
    return %c0_i32, %c0_i32_0 : i32, i32
  }
  func.func @transform_3(%arg0: i32) -> (i32, i32) {
    %c0_i32 = arith.constant 0 : i32
    %c0_i32_0 = arith.constant 0 : i32
    %c0_i32_1 = arith.constant 0 : i32
    return %c0_i32, %c0_i32_0 : i32, i32
  }
  func.func @transform_4(%arg0: i32) -> (i32, i32) {
    %c0_i32 = arith.constant 0 : i32
    %c0_i32_0 = arith.constant 0 : i32
    %c0_i32_1 = arith.constant 0 : i32
    return %c0_i32, %c0_i32_0 : i32, i32
  }
}

module attributes {stable_mosaic.version = 11 : i64} {
  func.func @_conv_gemm_kernel(%arg0: i32, %arg1: memref<32x72xbf16, #tpu.memory_space<vmem>>, %arg2: memref<72x16xbf16, #tpu.memory_space<vmem>>, %arg3: memref<1x16xf32, #tpu.memory_space<vmem>>, %arg4: memref<1x16xf32, #tpu.memory_space<vmem>>, %arg5: memref<32x16xf32, #tpu.memory_space<vmem>>) attributes {dimension_semantics = [#tpu.dimension_semantics<arbitrary>], iteration_bounds = array<i64: 1>, scalar_prefetch = 0 : i64, scratch_operands = 0 : i64, tpu.core_type = #tpu.core_type<tc>, window_params = [{pipeline_mode = #tpu.pipeline_mode<synchronous>, transform_indices = @transform_0, window_bounds = array<i64: 32, 72>}, {pipeline_mode = #tpu.pipeline_mode<synchronous>, transform_indices = @transform_1, window_bounds = array<i64: 72, 16>}, {pipeline_mode = #tpu.pipeline_mode<synchronous>, transform_indices = @transform_2, window_bounds = array<i64: 1, 16>}, {pipeline_mode = #tpu.pipeline_mode<synchronous>, transform_indices = @transform_3, window_bounds = array<i64: 1, 16>}, {pipeline_mode = #tpu.pipeline_mode<synchronous>, transform_indices = @transform_4, window_bounds = array<i64: 32, 16>}]} {
    %c0 = arith.constant 0 : index
    %c0_0 = arith.constant 0 : index
    %0 = vector.load %arg1[%c0, %c0_0] : memref<32x72xbf16, #tpu.memory_space<vmem>>, vector<32x72xbf16>
    %c0_1 = arith.constant 0 : index
    %c0_2 = arith.constant 0 : index
    %1 = vector.load %arg2[%c0_1, %c0_2] : memref<72x16xbf16, #tpu.memory_space<vmem>>, vector<72x16xbf16>
    %cst = arith.constant dense<0.000000e+00> : vector<32x16xf32>
    %2 = tpu.matmul %0, %1, %cst {dimension_numbers = #tpu.dot_dimension_numbers<[1], [0], [0], [1], [0, 0, 1, 1], [], []>} : vector<32x72xbf16>, vector<72x16xbf16>, vector<32x16xf32> -> vector<32x16xf32>
    %c0_3 = arith.constant 0 : index
    %c0_4 = arith.constant 0 : index
    %3 = vector.load %arg3[%c0_3, %c0_4] : memref<1x16xf32, #tpu.memory_space<vmem>>, vector<1x16xf32>
    %4 = vector.broadcast %3 : vector<1x16xf32> to vector<32x16xf32>
    %5 = arith.mulf %2, %4 : vector<32x16xf32>
    %c0_5 = arith.constant 0 : index
    %c0_6 = arith.constant 0 : index
    %6 = vector.load %arg4[%c0_5, %c0_6] : memref<1x16xf32, #tpu.memory_space<vmem>>, vector<1x16xf32>
    %7 = vector.broadcast %6 : vector<1x16xf32> to vector<32x16xf32>
    %8 = arith.addf %5, %7 : vector<32x16xf32>
    %cst_7 = arith.constant 0.000000e+00 : f32
    %9 = vector.broadcast %cst_7 : f32 to vector<32x16xf32>
    %10 = arith.maximumf %8, %9 : vector<32x16xf32>
    %c0_8 = arith.constant 0 : index
    %c0_9 = arith.constant 0 : index
    %11 = vector.load %arg5[%c0_8, %c0_9] : memref<32x16xf32, #tpu.memory_space<vmem>>, vector<32x16xf32>
    tpu.vector_store %arg5[%c0_8, %c0_9], %10 {strides = array<i32>} : memref<32x16xf32, #tpu.memory_space<vmem>>, vector<32x16xf32>,
    return
  }
  func.func @transform_0(%arg0: i32) -> (i32, i32) {
    %c0_i32 = arith.constant 0 : i32
    %c0_i32_0 = arith.constant 0 : i32
    %c0_i32_1 = arith.constant 0 : i32
    return %c0_i32, %c0_i32_0 : i32, i32
  }
  func.func @transform_1(%arg0: i32) -> (i32, i32) {
    %c0_i32 = arith.constant 0 : i32
    %c0_i32_0 = arith.constant 0 : i32
    %c0_i32_1 = arith.constant 0 : i32
    return %c0_i32, %c0_i32_0 : i32, i32
  }
  func.func @transform_2(%arg0: i32) -> (i32, i32) {
    %c0_i32 = arith.constant 0 : i32
    %c0_i32_0 = arith.constant 0 : i32
    %c0_i32_1 = arith.constant 0 : i32
    return %c0_i32, %c0_i32_0 : i32, i32
  }
  func.func @transform_3(%arg0: i32) -> (i32, i32) {
    %c0_i32 = arith.constant 0 : i32
    %c0_i32_0 = arith.constant 0 : i32
    %c0_i32_1 = arith.constant 0 : i32
    return %c0_i32, %c0_i32_0 : i32, i32
  }
  func.func @transform_4(%arg0: i32) -> (i32, i32) {
    %c0_i32 = arith.constant 0 : i32
    %c0_i32_0 = arith.constant 0 : i32
    %c0_i32_1 = arith.constant 0 : i32
    return %c0_i32, %c0_i32_0 : i32, i32
  }
}

module attributes {stable_mosaic.version = 11 : i64} {
  func.func @_conv_gemm_kernel(%arg0: i32, %arg1: memref<32x8xbf16, #tpu.memory_space<vmem>>, %arg2: memref<8x16xbf16, #tpu.memory_space<vmem>>, %arg3: memref<32x16xf32, #tpu.memory_space<vmem>>) attributes {dimension_semantics = [#tpu.dimension_semantics<arbitrary>], iteration_bounds = array<i64: 1>, scalar_prefetch = 0 : i64, scratch_operands = 0 : i64, tpu.core_type = #tpu.core_type<tc>, window_params = [{pipeline_mode = #tpu.pipeline_mode<synchronous>, transform_indices = @transform_0, window_bounds = array<i64: 32, 8>}, {pipeline_mode = #tpu.pipeline_mode<synchronous>, transform_indices = @transform_1, window_bounds = array<i64: 8, 16>}, {pipeline_mode = #tpu.pipeline_mode<synchronous>, transform_indices = @transform_2, window_bounds = array<i64: 32, 16>}]} {
    %c0 = arith.constant 0 : index
    %c0_0 = arith.constant 0 : index
    %0 = vector.load %arg1[%c0, %c0_0] : memref<32x8xbf16, #tpu.memory_space<vmem>>, vector<32x8xbf16>
    %c0_1 = arith.constant 0 : index
    %c0_2 = arith.constant 0 : index
    %1 = vector.load %arg2[%c0_1, %c0_2] : memref<8x16xbf16, #tpu.memory_space<vmem>>, vector<8x16xbf16>
    %cst = arith.constant dense<0.000000e+00> : vector<32x16xf32>
    %2 = tpu.matmul %0, %1, %cst {dimension_numbers = #tpu.dot_dimension_numbers<[1], [0], [0], [1], [0, 0, 1, 1], [], []>} : vector<32x8xbf16>, vector<8x16xbf16>, vector<32x16xf32> -> vector<32x16xf32>
    %c0_3 = arith.constant 0 : index
    %c0_4 = arith.constant 0 : index
    %3 = vector.load %arg3[%c0_3, %c0_4] : memref<32x16xf32, #tpu.memory_space<vmem>>, vector<32x16xf32>
    tpu.vector_store %arg3[%c0_3, %c0_4], %2 {strides = array<i32>} : memref<32x16xf32, #tpu.memory_space<vmem>>, vector<32x16xf32>,
    return
  }
  func.func @transform_0(%arg0: i32) -> (i32, i32) {
    %c0_i32 = arith.constant 0 : i32
    %c0_i32_0 = arith.constant 0 : i32
    %c0_i32_1 = arith.constant 0 : i32
    return %c0_i32, %c0_i32_0 : i32, i32
  }
  func.func @transform_1(%arg0: i32) -> (i32, i32) {
    %c0_i32 = arith.constant 0 : i32
    %c0_i32_0 = arith.constant 0 : i32
    %c0_i32_1 = arith.constant 0 : i32
    return %c0_i32, %c0_i32_0 : i32, i32
  }
  func.func @transform_2(%arg0: i32) -> (i32, i32) {
    %c0_i32 = arith.constant 0 : i32
    %c0_i32_0 = arith.constant 0 : i32
    %c0_i32_1 = arith.constant 0 : i32
    return %c0_i32, %c0_i32_0 : i32, i32
  }
}

module attributes {stable_mosaic.version = 11 : i64} {
  func.func @_conv_gemm_kernel(%arg0: i32, %arg1: memref<32x144xbf16, #tpu.memory_space<vmem>>, %arg2: memref<144x16xbf16, #tpu.memory_space<vmem>>, %arg3: memref<32x16xf32, #tpu.memory_space<vmem>>, %arg4: memref<1x16xf32, #tpu.memory_space<vmem>>, %arg5: memref<1x16xf32, #tpu.memory_space<vmem>>, %arg6: memref<32x16xf32, #tpu.memory_space<vmem>>, %arg7: memref<32x16xf32, #tpu.memory_space<vmem>>) attributes {dimension_semantics = [#tpu.dimension_semantics<arbitrary>], iteration_bounds = array<i64: 1>, scalar_prefetch = 0 : i64, scratch_operands = 0 : i64, tpu.core_type = #tpu.core_type<tc>, window_params = [{pipeline_mode = #tpu.pipeline_mode<synchronous>, transform_indices = @transform_0, window_bounds = array<i64: 32, 144>}, {pipeline_mode = #tpu.pipeline_mode<synchronous>, transform_indices = @transform_1, window_bounds = array<i64: 144, 16>}, {pipeline_mode = #tpu.pipeline_mode<synchronous>, transform_indices = @transform_2, window_bounds = array<i64: 32, 16>}, {pipeline_mode = #tpu.pipeline_mode<synchronous>, transform_indices = @transform_3, window_bounds = array<i64: 1, 16>}, {pipeline_mode = #tpu.pipeline_mode<synchronous>, transform_indices = @transform_4, window_bounds = array<i64: 1, 16>}, {pipeline_mode = #tpu.pipeline_mode<synchronous>, transform_indices = @transform_5, window_bounds = array<i64: 32, 16>}, {pipeline_mode = #tpu.pipeline_mode<synchronous>, transform_indices = @transform_6, window_bounds = array<i64: 32, 16>}]} {
    %c0 = arith.constant 0 : index
    %c0_0 = arith.constant 0 : index
    %0 = vector.load %arg1[%c0, %c0_0] : memref<32x144xbf16, #tpu.memory_space<vmem>>, vector<32x144xbf16>
    %c0_1 = arith.constant 0 : index
    %c0_2 = arith.constant 0 : index
    %1 = vector.load %arg2[%c0_1, %c0_2] : memref<144x16xbf16, #tpu.memory_space<vmem>>, vector<144x16xbf16>
    %cst = arith.constant dense<0.000000e+00> : vector<32x16xf32>
    %2 = tpu.matmul %0, %1, %cst {dimension_numbers = #tpu.dot_dimension_numbers<[1], [0], [0], [1], [0, 0, 1, 1], [], []>} : vector<32x144xbf16>, vector<144x16xbf16>, vector<32x16xf32> -> vector<32x16xf32>
    %c0_3 = arith.constant 0 : index
    %c0_4 = arith.constant 0 : index
    %3 = vector.load %arg3[%c0_3, %c0_4] : memref<32x16xf32, #tpu.memory_space<vmem>>, vector<32x16xf32>
    %4 = arith.addf %2, %3 : vector<32x16xf32>
    %c0_5 = arith.constant 0 : index
    %c0_6 = arith.constant 0 : index
    %5 = vector.load %arg6[%c0_5, %c0_6] : memref<32x16xf32, #tpu.memory_space<vmem>>, vector<32x16xf32>
    tpu.vector_store %arg6[%c0_5, %c0_6], %4 {strides = array<i32>} : memref<32x16xf32, #tpu.memory_space<vmem>>, vector<32x16xf32>,
    %c0_7 = arith.constant 0 : index
    %c0_8 = arith.constant 0 : index
    %6 = vector.load %arg4[%c0_7, %c0_8] : memref<1x16xf32, #tpu.memory_space<vmem>>, vector<1x16xf32>
    %7 = vector.broadcast %6 : vector<1x16xf32> to vector<32x16xf32>
    %8 = arith.mulf %4, %7 : vector<32x16xf32>
    %c0_9 = arith.constant 0 : index
    %c0_10 = arith.constant 0 : index
    %9 = vector.load %arg5[%c0_9, %c0_10] : memref<1x16xf32, #tpu.memory_space<vmem>>, vector<1x16xf32>
    %10 = vector.broadcast %9 : vector<1x16xf32> to vector<32x16xf32>
    %11 = arith.addf %8, %10 : vector<32x16xf32>
    %cst_11 = arith.constant 0.000000e+00 : f32
    %12 = vector.broadcast %cst_11 : f32 to vector<32x16xf32>
    %13 = arith.maximumf %11, %12 : vector<32x16xf32>
    %c0_12 = arith.constant 0 : index
    %c0_13 = arith.constant 0 : index
    %14 = vector.load %arg7[%c0_12, %c0_13] : memref<32x16xf32, #tpu.memory_space<vmem>>, vector<32x16xf32>
    tpu.vector_store %arg7[%c0_12, %c0_13], %13 {strides = array<i32>} : memref<32x16xf32, #tpu.memory_space<vmem>>, vector<32x16xf32>,
    return
  }
  func.func @transform_0(%arg0: i32) -> (i32, i32) {
    %c0_i32 = arith.constant 0 : i32
    %c0_i32_0 = arith.constant 0 : i32
    %c0_i32_1 = arith.constant 0 : i32
    return %c0_i32, %c0_i32_0 : i32, i32
  }
  func.func @transform_1(%arg0: i32) -> (i32, i32) {
    %c0_i32 = arith.constant 0 : i32
    %c0_i32_0 = arith.constant 0 : i32
    %c0_i32_1 = arith.constant 0 : i32
    return %c0_i32, %c0_i32_0 : i32, i32
  }
  func.func @transform_2(%arg0: i32) -> (i32, i32) {
    %c0_i32 = arith.constant 0 : i32
    %c0_i32_0 = arith.constant 0 : i32
    %c0_i32_1 = arith.constant 0 : i32
    return %c0_i32, %c0_i32_0 : i32, i32
  }
  func.func @transform_3(%arg0: i32) -> (i32, i32) {
    %c0_i32 = arith.constant 0 : i32
    %c0_i32_0 = arith.constant 0 : i32
    %c0_i32_1 = arith.constant 0 : i32
    return %c0_i32, %c0_i32_0 : i32, i32
  }
  func.func @transform_4(%arg0: i32) -> (i32, i32) {
    %c0_i32 = arith.constant 0 : i32
    %c0_i32_0 = arith.constant 0 : i32
    %c0_i32_1 = arith.constant 0 : i32
    return %c0_i32, %c0_i32_0 : i32, i32
  }
  func.func @transform_5(%arg0: i32) -> (i32, i32) {
    %c0_i32 = arith.constant 0 : i32
    %c0_i32_0 = arith.constant 0 : i32
    %c0_i32_1 = arith.constant 0 : i32
    return %c0_i32, %c0_i32_0 : i32, i32
  }
  func.func @transform_6(%arg0: i32) -> (i32, i32) {
    %c0_i32 = arith.constant 0 : i32
    %c0_i32_0 = arith.constant 0 : i32
    %c0_i32_1 = arith.constant 0 : i32
    return %c0_i32, %c0_i32_0 : i32, i32
  }
}

module attributes {stable_mosaic.version = 11 : i64} {
  func.func @_conv_gemm_kernel(%arg0: i32, %arg1: memref<32x144xbf16, #tpu.memory_space<vmem>>, %arg2: memref<144x16xbf16, #tpu.memory_space<vmem>>, %arg3: memref<1x16xf32, #tpu.memory_space<vmem>>, %arg4: memref<1x16xf32, #tpu.memory_space<vmem>>, %arg5: memref<32x16xf32, #tpu.memory_space<vmem>>) attributes {dimension_semantics = [#tpu.dimension_semantics<arbitrary>], iteration_bounds = array<i64: 1>, scalar_prefetch = 0 : i64, scratch_operands = 0 : i64, tpu.core_type = #tpu.core_type<tc>, window_params = [{pipeline_mode = #tpu.pipeline_mode<synchronous>, transform_indices = @transform_0, window_bounds = array<i64: 32, 144>}, {pipeline_mode = #tpu.pipeline_mode<synchronous>, transform_indices = @transform_1, window_bounds = array<i64: 144, 16>}, {pipeline_mode = #tpu.pipeline_mode<synchronous>, transform_indices = @transform_2, window_bounds = array<i64: 1, 16>}, {pipeline_mode = #tpu.pipeline_mode<synchronous>, transform_indices = @transform_3, window_bounds = array<i64: 1, 16>}, {pipeline_mode = #tpu.pipeline_mode<synchronous>, transform_indices = @transform_4, window_bounds = array<i64: 32, 16>}]} {
    %c0 = arith.constant 0 : index
    %c0_0 = arith.constant 0 : index
    %0 = vector.load %arg1[%c0, %c0_0] : memref<32x144xbf16, #tpu.memory_space<vmem>>, vector<32x144xbf16>
    %c0_1 = arith.constant 0 : index
    %c0_2 = arith.constant 0 : index
    %1 = vector.load %arg2[%c0_1, %c0_2] : memref<144x16xbf16, #tpu.memory_space<vmem>>, vector<144x16xbf16>
    %cst = arith.constant dense<0.000000e+00> : vector<32x16xf32>
    %2 = tpu.matmul %0, %1, %cst {dimension_numbers = #tpu.dot_dimension_numbers<[1], [0], [0], [1], [0, 0, 1, 1], [], []>} : vector<32x144xbf16>, vector<144x16xbf16>, vector<32x16xf32> -> vector<32x16xf32>
    %c0_3 = arith.constant 0 : index
    %c0_4 = arith.constant 0 : index
    %3 = vector.load %arg3[%c0_3, %c0_4] : memref<1x16xf32, #tpu.memory_space<vmem>>, vector<1x16xf32>
    %4 = vector.broadcast %3 : vector<1x16xf32> to vector<32x16xf32>
    %5 = arith.mulf %2, %4 : vector<32x16xf32>
    %c0_5 = arith.constant 0 : index
    %c0_6 = arith.constant 0 : index
    %6 = vector.load %arg4[%c0_5, %c0_6] : memref<1x16xf32, #tpu.memory_space<vmem>>, vector<1x16xf32>
    %7 = vector.broadcast %6 : vector<1x16xf32> to vector<32x16xf32>
    %8 = arith.addf %5, %7 : vector<32x16xf32>
    %cst_7 = arith.constant 0.000000e+00 : f32
    %9 = vector.broadcast %cst_7 : f32 to vector<32x16xf32>
    %10 = arith.maximumf %8, %9 : vector<32x16xf32>
    %c0_8 = arith.constant 0 : index
    %c0_9 = arith.constant 0 : index
    %11 = vector.load %arg5[%c0_8, %c0_9] : memref<32x16xf32, #tpu.memory_space<vmem>>, vector<32x16xf32>
    tpu.vector_store %arg5[%c0_8, %c0_9], %10 {strides = array<i32>} : memref<32x16xf32, #tpu.memory_space<vmem>>, vector<32x16xf32>,
    return
  }
  func.func @transform_0(%arg0: i32) -> (i32, i32) {
    %c0_i32 = arith.constant 0 : i32
    %c0_i32_0 = arith.constant 0 : i32
    %c0_i32_1 = arith.constant 0 : i32
    return %c0_i32, %c0_i32_0 : i32, i32
  }
  func.func @transform_1(%arg0: i32) -> (i32, i32) {
    %c0_i32 = arith.constant 0 : i32
    %c0_i32_0 = arith.constant 0 : i32
    %c0_i32_1 = arith.constant 0 : i32
    return %c0_i32, %c0_i32_0 : i32, i32
  }
  func.func @transform_2(%arg0: i32) -> (i32, i32) {
    %c0_i32 = arith.constant 0 : i32
    %c0_i32_0 = arith.constant 0 : i32
    %c0_i32_1 = arith.constant 0 : i32
    return %c0_i32, %c0_i32_0 : i32, i32
  }
  func.func @transform_3(%arg0: i32) -> (i32, i32) {
    %c0_i32 = arith.constant 0 : i32
    %c0_i32_0 = arith.constant 0 : i32
    %c0_i32_1 = arith.constant 0 : i32
    return %c0_i32, %c0_i32_0 : i32, i32
  }
  func.func @transform_4(%arg0: i32) -> (i32, i32) {
    %c0_i32 = arith.constant 0 : i32
    %c0_i32_0 = arith.constant 0 : i32
    %c0_i32_1 = arith.constant 0 : i32
    return %c0_i32, %c0_i32_0 : i32, i32
  }
}

module attributes {stable_mosaic.version = 11 : i64} {
  func.func @_conv_gemm_kernel(%arg0: i32, %arg1: memref<8x144xbf16, #tpu.memory_space<vmem>>, %arg2: memref<144x32xbf16, #tpu.memory_space<vmem>>, %arg3: memref<1x32xf32, #tpu.memory_space<vmem>>, %arg4: memref<1x32xf32, #tpu.memory_space<vmem>>, %arg5: memref<8x32xf32, #tpu.memory_space<vmem>>) attributes {dimension_semantics = [#tpu.dimension_semantics<arbitrary>], iteration_bounds = array<i64: 1>, scalar_prefetch = 0 : i64, scratch_operands = 0 : i64, tpu.core_type = #tpu.core_type<tc>, window_params = [{pipeline_mode = #tpu.pipeline_mode<synchronous>, transform_indices = @transform_0, window_bounds = array<i64: 8, 144>}, {pipeline_mode = #tpu.pipeline_mode<synchronous>, transform_indices = @transform_1, window_bounds = array<i64: 144, 32>}, {pipeline_mode = #tpu.pipeline_mode<synchronous>, transform_indices = @transform_2, window_bounds = array<i64: 1, 32>}, {pipeline_mode = #tpu.pipeline_mode<synchronous>, transform_indices = @transform_3, window_bounds = array<i64: 1, 32>}, {pipeline_mode = #tpu.pipeline_mode<synchronous>, transform_indices = @transform_4, window_bounds = array<i64: 8, 32>}]} {
    %c0 = arith.constant 0 : index
    %c0_0 = arith.constant 0 : index
    %0 = vector.load %arg1[%c0, %c0_0] : memref<8x144xbf16, #tpu.memory_space<vmem>>, vector<8x144xbf16>
    %c0_1 = arith.constant 0 : index
    %c0_2 = arith.constant 0 : index
    %1 = vector.load %arg2[%c0_1, %c0_2] : memref<144x32xbf16, #tpu.memory_space<vmem>>, vector<144x32xbf16>
    %cst = arith.constant dense<0.000000e+00> : vector<8x32xf32>
    %2 = tpu.matmul %0, %1, %cst {dimension_numbers = #tpu.dot_dimension_numbers<[1], [0], [0], [1], [0, 0, 1, 1], [], []>} : vector<8x144xbf16>, vector<144x32xbf16>, vector<8x32xf32> -> vector<8x32xf32>
    %c0_3 = arith.constant 0 : index
    %c0_4 = arith.constant 0 : index
    %3 = vector.load %arg3[%c0_3, %c0_4] : memref<1x32xf32, #tpu.memory_space<vmem>>, vector<1x32xf32>
    %4 = vector.broadcast %3 : vector<1x32xf32> to vector<8x32xf32>
    %5 = arith.mulf %2, %4 : vector<8x32xf32>
    %c0_5 = arith.constant 0 : index
    %c0_6 = arith.constant 0 : index
    %6 = vector.load %arg4[%c0_5, %c0_6] : memref<1x32xf32, #tpu.memory_space<vmem>>, vector<1x32xf32>
    %7 = vector.broadcast %6 : vector<1x32xf32> to vector<8x32xf32>
    %8 = arith.addf %5, %7 : vector<8x32xf32>
    %cst_7 = arith.constant 0.000000e+00 : f32
    %9 = vector.broadcast %cst_7 : f32 to vector<8x32xf32>
    %10 = arith.maximumf %8, %9 : vector<8x32xf32>
    %c0_8 = arith.constant 0 : index
    %c0_9 = arith.constant 0 : index
    %11 = vector.load %arg5[%c0_8, %c0_9] : memref<8x32xf32, #tpu.memory_space<vmem>>, vector<8x32xf32>
    tpu.vector_store %arg5[%c0_8, %c0_9], %10 {strides = array<i32>} : memref<8x32xf32, #tpu.memory_space<vmem>>, vector<8x32xf32>,
    return
  }
  func.func @transform_0(%arg0: i32) -> (i32, i32) {
    %c0_i32 = arith.constant 0 : i32
    %c0_i32_0 = arith.constant 0 : i32
    %c0_i32_1 = arith.constant 0 : i32
    return %c0_i32, %c0_i32_0 : i32, i32
  }
  func.func @transform_1(%arg0: i32) -> (i32, i32) {
    %c0_i32 = arith.constant 0 : i32
    %c0_i32_0 = arith.constant 0 : i32
    %c0_i32_1 = arith.constant 0 : i32
    return %c0_i32, %c0_i32_0 : i32, i32
  }
  func.func @transform_2(%arg0: i32) -> (i32, i32) {
    %c0_i32 = arith.constant 0 : i32
    %c0_i32_0 = arith.constant 0 : i32
    %c0_i32_1 = arith.constant 0 : i32
    return %c0_i32, %c0_i32_0 : i32, i32
  }
  func.func @transform_3(%arg0: i32) -> (i32, i32) {
    %c0_i32 = arith.constant 0 : i32
    %c0_i32_0 = arith.constant 0 : i32
    %c0_i32_1 = arith.constant 0 : i32
    return %c0_i32, %c0_i32_0 : i32, i32
  }
  func.func @transform_4(%arg0: i32) -> (i32, i32) {
    %c0_i32 = arith.constant 0 : i32
    %c0_i32_0 = arith.constant 0 : i32
    %c0_i32_1 = arith.constant 0 : i32
    return %c0_i32, %c0_i32_0 : i32, i32
  }
}

module attributes {stable_mosaic.version = 11 : i64} {
  func.func @_conv_gemm_kernel(%arg0: i32, %arg1: memref<8x288xbf16, #tpu.memory_space<vmem>>, %arg2: memref<288x32xbf16, #tpu.memory_space<vmem>>, %arg3: memref<8x32xf32, #tpu.memory_space<vmem>>, %arg4: memref<1x32xf32, #tpu.memory_space<vmem>>, %arg5: memref<1x32xf32, #tpu.memory_space<vmem>>, %arg6: memref<8x32xf32, #tpu.memory_space<vmem>>, %arg7: memref<8x32xf32, #tpu.memory_space<vmem>>) attributes {dimension_semantics = [#tpu.dimension_semantics<arbitrary>], iteration_bounds = array<i64: 1>, scalar_prefetch = 0 : i64, scratch_operands = 0 : i64, tpu.core_type = #tpu.core_type<tc>, window_params = [{pipeline_mode = #tpu.pipeline_mode<synchronous>, transform_indices = @transform_0, window_bounds = array<i64: 8, 288>}, {pipeline_mode = #tpu.pipeline_mode<synchronous>, transform_indices = @transform_1, window_bounds = array<i64: 288, 32>}, {pipeline_mode = #tpu.pipeline_mode<synchronous>, transform_indices = @transform_2, window_bounds = array<i64: 8, 32>}, {pipeline_mode = #tpu.pipeline_mode<synchronous>, transform_indices = @transform_3, window_bounds = array<i64: 1, 32>}, {pipeline_mode = #tpu.pipeline_mode<synchronous>, transform_indices = @transform_4, window_bounds = array<i64: 1, 32>}, {pipeline_mode = #tpu.pipeline_mode<synchronous>, transform_indices = @transform_5, window_bounds = array<i64: 8, 32>}, {pipeline_mode = #tpu.pipeline_mode<synchronous>, transform_indices = @transform_6, window_bounds = array<i64: 8, 32>}]} {
    %c0 = arith.constant 0 : index
    %c0_0 = arith.constant 0 : index
    %0 = vector.load %arg1[%c0, %c0_0] : memref<8x288xbf16, #tpu.memory_space<vmem>>, vector<8x288xbf16>
    %c0_1 = arith.constant 0 : index
    %c0_2 = arith.constant 0 : index
    %1 = vector.load %arg2[%c0_1, %c0_2] : memref<288x32xbf16, #tpu.memory_space<vmem>>, vector<288x32xbf16>
    %cst = arith.constant dense<0.000000e+00> : vector<8x32xf32>
    %2 = tpu.matmul %0, %1, %cst {dimension_numbers = #tpu.dot_dimension_numbers<[1], [0], [0], [1], [0, 0, 1, 1], [], []>} : vector<8x288xbf16>, vector<288x32xbf16>, vector<8x32xf32> -> vector<8x32xf32>
    %c0_3 = arith.constant 0 : index
    %c0_4 = arith.constant 0 : index
    %3 = vector.load %arg3[%c0_3, %c0_4] : memref<8x32xf32, #tpu.memory_space<vmem>>, vector<8x32xf32>
    %4 = arith.addf %2, %3 : vector<8x32xf32>
    %c0_5 = arith.constant 0 : index
    %c0_6 = arith.constant 0 : index
    %5 = vector.load %arg6[%c0_5, %c0_6] : memref<8x32xf32, #tpu.memory_space<vmem>>, vector<8x32xf32>
    tpu.vector_store %arg6[%c0_5, %c0_6], %4 {strides = array<i32>} : memref<8x32xf32, #tpu.memory_space<vmem>>, vector<8x32xf32>,
    %c0_7 = arith.constant 0 : index
    %c0_8 = arith.constant 0 : index
    %6 = vector.load %arg4[%c0_7, %c0_8] : memref<1x32xf32, #tpu.memory_space<vmem>>, vector<1x32xf32>
    %7 = vector.broadcast %6 : vector<1x32xf32> to vector<8x32xf32>
    %8 = arith.mulf %4, %7 : vector<8x32xf32>
    %c0_9 = arith.constant 0 : index
    %c0_10 = arith.constant 0 : index
    %9 = vector.load %arg5[%c0_9, %c0_10] : memref<1x32xf32, #tpu.memory_space<vmem>>, vector<1x32xf32>
    %10 = vector.broadcast %9 : vector<1x32xf32> to vector<8x32xf32>
    %11 = arith.addf %8, %10 : vector<8x32xf32>
    %cst_11 = arith.constant 0.000000e+00 : f32
    %12 = vector.broadcast %cst_11 : f32 to vector<8x32xf32>
    %13 = arith.maximumf %11, %12 : vector<8x32xf32>
    %c0_12 = arith.constant 0 : index
    %c0_13 = arith.constant 0 : index
    %14 = vector.load %arg7[%c0_12, %c0_13] : memref<8x32xf32, #tpu.memory_space<vmem>>, vector<8x32xf32>
    tpu.vector_store %arg7[%c0_12, %c0_13], %13 {strides = array<i32>} : memref<8x32xf32, #tpu.memory_space<vmem>>, vector<8x32xf32>,
    return
  }
  func.func @transform_0(%arg0: i32) -> (i32, i32) {
    %c0_i32 = arith.constant 0 : i32
    %c0_i32_0 = arith.constant 0 : i32
    %c0_i32_1 = arith.constant 0 : i32
    return %c0_i32, %c0_i32_0 : i32, i32
  }
  func.func @transform_1(%arg0: i32) -> (i32, i32) {
    %c0_i32 = arith.constant 0 : i32
    %c0_i32_0 = arith.constant 0 : i32
    %c0_i32_1 = arith.constant 0 : i32
    return %c0_i32, %c0_i32_0 : i32, i32
  }
  func.func @transform_2(%arg0: i32) -> (i32, i32) {
    %c0_i32 = arith.constant 0 : i32
    %c0_i32_0 = arith.constant 0 : i32
    %c0_i32_1 = arith.constant 0 : i32
    return %c0_i32, %c0_i32_0 : i32, i32
  }
  func.func @transform_3(%arg0: i32) -> (i32, i32) {
    %c0_i32 = arith.constant 0 : i32
    %c0_i32_0 = arith.constant 0 : i32
    %c0_i32_1 = arith.constant 0 : i32
    return %c0_i32, %c0_i32_0 : i32, i32
  }
  func.func @transform_4(%arg0: i32) -> (i32, i32) {
    %c0_i32 = arith.constant 0 : i32
    %c0_i32_0 = arith.constant 0 : i32
    %c0_i32_1 = arith.constant 0 : i32
    return %c0_i32, %c0_i32_0 : i32, i32
  }
  func.func @transform_5(%arg0: i32) -> (i32, i32) {
    %c0_i32 = arith.constant 0 : i32
    %c0_i32_0 = arith.constant 0 : i32
    %c0_i32_1 = arith.constant 0 : i32
    return %c0_i32, %c0_i32_0 : i32, i32
  }
  func.func @transform_6(%arg0: i32) -> (i32, i32) {
    %c0_i32 = arith.constant 0 : i32
    %c0_i32_0 = arith.constant 0 : i32
    %c0_i32_1 = arith.constant 0 : i32
    return %c0_i32, %c0_i32_0 : i32, i32
  }
}

module attributes {stable_mosaic.version = 11 : i64} {
  func.func @_conv_gemm_kernel(%arg0: i32, %arg1: memref<8x16xbf16, #tpu.memory_space<vmem>>, %arg2: memref<16x32xbf16, #tpu.memory_space<vmem>>, %arg3: memref<8x32xf32, #tpu.memory_space<vmem>>) attributes {dimension_semantics = [#tpu.dimension_semantics<arbitrary>], iteration_bounds = array<i64: 1>, scalar_prefetch = 0 : i64, scratch_operands = 0 : i64, tpu.core_type = #tpu.core_type<tc>, window_params = [{pipeline_mode = #tpu.pipeline_mode<synchronous>, transform_indices = @transform_0, window_bounds = array<i64: 8, 16>}, {pipeline_mode = #tpu.pipeline_mode<synchronous>, transform_indices = @transform_1, window_bounds = array<i64: 16, 32>}, {pipeline_mode = #tpu.pipeline_mode<synchronous>, transform_indices = @transform_2, window_bounds = array<i64: 8, 32>}]} {
    %c0 = arith.constant 0 : index
    %c0_0 = arith.constant 0 : index
    %0 = vector.load %arg1[%c0, %c0_0] : memref<8x16xbf16, #tpu.memory_space<vmem>>, vector<8x16xbf16>
    %c0_1 = arith.constant 0 : index
    %c0_2 = arith.constant 0 : index
    %1 = vector.load %arg2[%c0_1, %c0_2] : memref<16x32xbf16, #tpu.memory_space<vmem>>, vector<16x32xbf16>
    %cst = arith.constant dense<0.000000e+00> : vector<8x32xf32>
    %2 = tpu.matmul %0, %1, %cst {dimension_numbers = #tpu.dot_dimension_numbers<[1], [0], [0], [1], [0, 0, 1, 1], [], []>} : vector<8x16xbf16>, vector<16x32xbf16>, vector<8x32xf32> -> vector<8x32xf32>
    %c0_3 = arith.constant 0 : index
    %c0_4 = arith.constant 0 : index
    %3 = vector.load %arg3[%c0_3, %c0_4] : memref<8x32xf32, #tpu.memory_space<vmem>>, vector<8x32xf32>
    tpu.vector_store %arg3[%c0_3, %c0_4], %2 {strides = array<i32>} : memref<8x32xf32, #tpu.memory_space<vmem>>, vector<8x32xf32>,
    return
  }
  func.func @transform_0(%arg0: i32) -> (i32, i32) {
    %c0_i32 = arith.constant 0 : i32
    %c0_i32_0 = arith.constant 0 : i32
    %c0_i32_1 = arith.constant 0 : i32
    return %c0_i32, %c0_i32_0 : i32, i32
  }
  func.func @transform_1(%arg0: i32) -> (i32, i32) {
    %c0_i32 = arith.constant 0 : i32
    %c0_i32_0 = arith.constant 0 : i32
    %c0_i32_1 = arith.constant 0 : i32
    return %c0_i32, %c0_i32_0 : i32, i32
  }
  func.func @transform_2(%arg0: i32) -> (i32, i32) {
    %c0_i32 = arith.constant 0 : i32
    %c0_i32_0 = arith.constant 0 : i32
    %c0_i32_1 = arith.constant 0 : i32
    return %c0_i32, %c0_i32_0 : i32, i32
  }
}

module attributes {stable_mosaic.version = 11 : i64} {
  func.func @_conv_gemm_kernel(%arg0: i32, %arg1: memref<8x288xbf16, #tpu.memory_space<vmem>>, %arg2: memref<288x32xbf16, #tpu.memory_space<vmem>>, %arg3: memref<1x32xf32, #tpu.memory_space<vmem>>, %arg4: memref<1x32xf32, #tpu.memory_space<vmem>>, %arg5: memref<8x32xf32, #tpu.memory_space<vmem>>) attributes {dimension_semantics = [#tpu.dimension_semantics<arbitrary>], iteration_bounds = array<i64: 1>, scalar_prefetch = 0 : i64, scratch_operands = 0 : i64, tpu.core_type = #tpu.core_type<tc>, window_params = [{pipeline_mode = #tpu.pipeline_mode<synchronous>, transform_indices = @transform_0, window_bounds = array<i64: 8, 288>}, {pipeline_mode = #tpu.pipeline_mode<synchronous>, transform_indices = @transform_1, window_bounds = array<i64: 288, 32>}, {pipeline_mode = #tpu.pipeline_mode<synchronous>, transform_indices = @transform_2, window_bounds = array<i64: 1, 32>}, {pipeline_mode = #tpu.pipeline_mode<synchronous>, transform_indices = @transform_3, window_bounds = array<i64: 1, 32>}, {pipeline_mode = #tpu.pipeline_mode<synchronous>, transform_indices = @transform_4, window_bounds = array<i64: 8, 32>}]} {
    %c0 = arith.constant 0 : index
    %c0_0 = arith.constant 0 : index
    %0 = vector.load %arg1[%c0, %c0_0] : memref<8x288xbf16, #tpu.memory_space<vmem>>, vector<8x288xbf16>
    %c0_1 = arith.constant 0 : index
    %c0_2 = arith.constant 0 : index
    %1 = vector.load %arg2[%c0_1, %c0_2] : memref<288x32xbf16, #tpu.memory_space<vmem>>, vector<288x32xbf16>
    %cst = arith.constant dense<0.000000e+00> : vector<8x32xf32>
    %2 = tpu.matmul %0, %1, %cst {dimension_numbers = #tpu.dot_dimension_numbers<[1], [0], [0], [1], [0, 0, 1, 1], [], []>} : vector<8x288xbf16>, vector<288x32xbf16>, vector<8x32xf32> -> vector<8x32xf32>
    %c0_3 = arith.constant 0 : index
    %c0_4 = arith.constant 0 : index
    %3 = vector.load %arg3[%c0_3, %c0_4] : memref<1x32xf32, #tpu.memory_space<vmem>>, vector<1x32xf32>
    %4 = vector.broadcast %3 : vector<1x32xf32> to vector<8x32xf32>
    %5 = arith.mulf %2, %4 : vector<8x32xf32>
    %c0_5 = arith.constant 0 : index
    %c0_6 = arith.constant 0 : index
    %6 = vector.load %arg4[%c0_5, %c0_6] : memref<1x32xf32, #tpu.memory_space<vmem>>, vector<1x32xf32>
    %7 = vector.broadcast %6 : vector<1x32xf32> to vector<8x32xf32>
    %8 = arith.addf %5, %7 : vector<8x32xf32>
    %cst_7 = arith.constant 0.000000e+00 : f32
    %9 = vector.broadcast %cst_7 : f32 to vector<8x32xf32>
    %10 = arith.maximumf %8, %9 : vector<8x32xf32>
    %c0_8 = arith.constant 0 : index
    %c0_9 = arith.constant 0 : index
    %11 = vector.load %arg5[%c0_8, %c0_9] : memref<8x32xf32, #tpu.memory_space<vmem>>, vector<8x32xf32>
    tpu.vector_store %arg5[%c0_8, %c0_9], %10 {strides = array<i32>} : memref<8x32xf32, #tpu.memory_space<vmem>>, vector<8x32xf32>,
    return
  }
  func.func @transform_0(%arg0: i32) -> (i32, i32) {
    %c0_i32 = arith.constant 0 : i32
    %c0_i32_0 = arith.constant 0 : i32
    %c0_i32_1 = arith.constant 0 : i32
    return %c0_i32, %c0_i32_0 : i32, i32
  }
  func.func @transform_1(%arg0: i32) -> (i32, i32) {
    %c0_i32 = arith.constant 0 : i32
    %c0_i32_0 = arith.constant 0 : i32
    %c0_i32_1 = arith.constant 0 : i32
    return %c0_i32, %c0_i32_0 : i32, i32
  }
  func.func @transform_2(%arg0: i32) -> (i32, i32) {
    %c0_i32 = arith.constant 0 : i32
    %c0_i32_0 = arith.constant 0 : i32
    %c0_i32_1 = arith.constant 0 : i32
    return %c0_i32, %c0_i32_0 : i32, i32
  }
  func.func @transform_3(%arg0: i32) -> (i32, i32) {
    %c0_i32 = arith.constant 0 : i32
    %c0_i32_0 = arith.constant 0 : i32
    %c0_i32_1 = arith.constant 0 : i32
    return %c0_i32, %c0_i32_0 : i32, i32
  }
  func.func @transform_4(%arg0: i32) -> (i32, i32) {
    %c0_i32 = arith.constant 0 : i32
    %c0_i32_0 = arith.constant 0 : i32
    %c0_i32_1 = arith.constant 0 : i32
    return %c0_i32, %c0_i32_0 : i32, i32
  }
}

module attributes {stable_mosaic.version = 11 : i64} {
  func.func @_conv_gemm_kernel(%arg0: i32, %arg1: memref<8x288xbf16, #tpu.memory_space<vmem>>, %arg2: memref<288x32xbf16, #tpu.memory_space<vmem>>, %arg3: memref<8x32xf32, #tpu.memory_space<vmem>>, %arg4: memref<1x32xf32, #tpu.memory_space<vmem>>, %arg5: memref<1x32xf32, #tpu.memory_space<vmem>>, %arg6: memref<8x32xf32, #tpu.memory_space<vmem>>) attributes {dimension_semantics = [#tpu.dimension_semantics<arbitrary>], iteration_bounds = array<i64: 1>, scalar_prefetch = 0 : i64, scratch_operands = 0 : i64, tpu.core_type = #tpu.core_type<tc>, window_params = [{pipeline_mode = #tpu.pipeline_mode<synchronous>, transform_indices = @transform_0, window_bounds = array<i64: 8, 288>}, {pipeline_mode = #tpu.pipeline_mode<synchronous>, transform_indices = @transform_1, window_bounds = array<i64: 288, 32>}, {pipeline_mode = #tpu.pipeline_mode<synchronous>, transform_indices = @transform_2, window_bounds = array<i64: 8, 32>}, {pipeline_mode = #tpu.pipeline_mode<synchronous>, transform_indices = @transform_3, window_bounds = array<i64: 1, 32>}, {pipeline_mode = #tpu.pipeline_mode<synchronous>, transform_indices = @transform_4, window_bounds = array<i64: 1, 32>}, {pipeline_mode = #tpu.pipeline_mode<synchronous>, transform_indices = @transform_5, window_bounds = array<i64: 8, 32>}]} {
    %c0 = arith.constant 0 : index
    %c0_0 = arith.constant 0 : index
    %0 = vector.load %arg1[%c0, %c0_0] : memref<8x288xbf16, #tpu.memory_space<vmem>>, vector<8x288xbf16>
    %c0_1 = arith.constant 0 : index
    %c0_2 = arith.constant 0 : index
    %1 = vector.load %arg2[%c0_1, %c0_2] : memref<288x32xbf16, #tpu.memory_space<vmem>>, vector<288x32xbf16>
    %cst = arith.constant dense<0.000000e+00> : vector<8x32xf32>
    %2 = tpu.matmul %0, %1, %cst {dimension_numbers = #tpu.dot_dimension_numbers<[1], [0], [0], [1], [0, 0, 1, 1], [], []>} : vector<8x288xbf16>, vector<288x32xbf16>, vector<8x32xf32> -> vector<8x32xf32>
    %c0_3 = arith.constant 0 : index
    %c0_4 = arith.constant 0 : index
    %3 = vector.load %arg3[%c0_3, %c0_4] : memref<8x32xf32, #tpu.memory_space<vmem>>, vector<8x32xf32>
    %4 = arith.addf %2, %3 : vector<8x32xf32>
    %c0_5 = arith.constant 0 : index
    %c0_6 = arith.constant 0 : index
    %5 = vector.load %arg4[%c0_5, %c0_6] : memref<1x32xf32, #tpu.memory_space<vmem>>, vector<1x32xf32>
    %6 = vector.broadcast %5 : vector<1x32xf32> to vector<8x32xf32>
    %7 = arith.mulf %4, %6 : vector<8x32xf32>
    %c0_7 = arith.constant 0 : index
    %c0_8 = arith.constant 0 : index
    %8 = vector.load %arg5[%c0_7, %c0_8] : memref<1x32xf32, #tpu.memory_space<vmem>>, vector<1x32xf32>
    %9 = vector.broadcast %8 : vector<1x32xf32> to vector<8x32xf32>
    %10 = arith.addf %7, %9 : vector<8x32xf32>
    %cst_9 = arith.constant 0.000000e+00 : f32
    %11 = vector.broadcast %cst_9 : f32 to vector<8x32xf32>
    %12 = arith.maximumf %10, %11 : vector<8x32xf32>
    %13 = vector.extract_strided_slice %12 {offsets = [0, 0], sizes = [4, 32], strides = [1, 1]} : vector<8x32xf32> to vector<4x32xf32>
    %cst_10 = arith.constant dense<0.000000e+00> : vector<32xf32>
    %14 = vector.multi_reduction <add>, %13, %cst_10 [0] : vector<4x32xf32> to vector<32xf32>
    %15 = vector.shape_cast %14 : vector<32xf32> to vector<1x32xf32>
    %cst_11 = arith.constant 4.000000e+00 : f32
    %16 = vector.broadcast %cst_11 : f32 to vector<1x32xf32>
    %17 = arith.divf %15, %16 : vector<1x32xf32>
    %cst_12 = arith.constant dense<0xFF800000> : vector<32xf32>
    %18 = vector.multi_reduction <maximumf>, %13, %cst_12 [0] : vector<4x32xf32> to vector<32xf32>
    %19 = vector.shape_cast %18 : vector<32xf32> to vector<1x32xf32>
    %20 = arith.addf %17, %19 : vector<1x32xf32>
    %c0_13 = arith.constant 0 : index
    %c0_14 = arith.constant 0 : index
    %21 = vector.load %arg6[%c0_13, %c0_14] : memref<8x32xf32, #tpu.memory_space<vmem>>, vector<1x32xf32>
    tpu.vector_store %arg6[%c0_13, %c0_14], %20 {strides = array<i32>} : memref<8x32xf32, #tpu.memory_space<vmem>>, vector<1x32xf32>,
    %22 = vector.extract_strided_slice %12 {offsets = [4, 0], sizes = [4, 32], strides = [1, 1]} : vector<8x32xf32> to vector<4x32xf32>
    %cst_15 = arith.constant dense<0.000000e+00> : vector<32xf32>
    %23 = vector.multi_reduction <add>, %22, %cst_15 [0] : vector<4x32xf32> to vector<32xf32>
    %24 = vector.shape_cast %23 : vector<32xf32> to vector<1x32xf32>
    %cst_16 = arith.constant 4.000000e+00 : f32
    %25 = vector.broadcast %cst_16 : f32 to vector<1x32xf32>
    %26 = arith.divf %24, %25 : vector<1x32xf32>
    %cst_17 = arith.constant dense<0xFF800000> : vector<32xf32>
    %27 = vector.multi_reduction <maximumf>, %22, %cst_17 [0] : vector<4x32xf32> to vector<32xf32>
    %28 = vector.shape_cast %27 : vector<32xf32> to vector<1x32xf32>
    %29 = arith.addf %26, %28 : vector<1x32xf32>
    %c1 = arith.constant 1 : index
    %c0_18 = arith.constant 0 : index
    %30 = vector.load %arg6[%c1, %c0_18] : memref<8x32xf32, #tpu.memory_space<vmem>>, vector<1x32xf32>
    tpu.vector_store %arg6[%c1, %c0_18], %29 {strides = array<i32>} : memref<8x32xf32, #tpu.memory_space<vmem>>, vector<1x32xf32>,
    %cst_19 = arith.constant 0.000000e+00 : f32
    %31 = vector.broadcast %cst_19 : f32 to vector<6x32xf32>
    %c2 = arith.constant 2 : index
    %c0_20 = arith.constant 0 : index
    %32 = vector.load %arg6[%c2, %c0_20] : memref<8x32xf32, #tpu.memory_space<vmem>>, vector<6x32xf32>
    tpu.vector_store %arg6[%c2, %c0_20], %31 {strides = array<i32>} : memref<8x32xf32, #tpu.memory_space<vmem>>, vector<6x32xf32>,
    return
  }
  func.func @transform_0(%arg0: i32) -> (i32, i32) {
    %c0_i32 = arith.constant 0 : i32
    %c0_i32_0 = arith.constant 0 : i32
    %c0_i32_1 = arith.constant 0 : i32
    return %c0_i32, %c0_i32_0 : i32, i32
  }
  func.func @transform_1(%arg0: i32) -> (i32, i32) {
    %c0_i32 = arith.constant 0 : i32
    %c0_i32_0 = arith.constant 0 : i32
    %c0_i32_1 = arith.constant 0 : i32
    return %c0_i32, %c0_i32_0 : i32, i32
  }
  func.func @transform_2(%arg0: i32) -> (i32, i32) {
    %c0_i32 = arith.constant 0 : i32
    %c0_i32_0 = arith.constant 0 : i32
    %c0_i32_1 = arith.constant 0 : i32
    return %c0_i32, %c0_i32_0 : i32, i32
  }
  func.func @transform_3(%arg0: i32) -> (i32, i32) {
    %c0_i32 = arith.constant 0 : i32
    %c0_i32_0 = arith.constant 0 : i32
    %c0_i32_1 = arith.constant 0 : i32
    return %c0_i32, %c0_i32_0 : i32, i32
  }
  func.func @transform_4(%arg0: i32) -> (i32, i32) {
    %c0_i32 = arith.constant 0 : i32
    %c0_i32_0 = arith.constant 0 : i32
    %c0_i32_1 = arith.constant 0 : i32
    return %c0_i32, %c0_i32_0 : i32, i32
  }
  func.func @transform_5(%arg0: i32) -> (i32, i32) {
    %c0_i32 = arith.constant 0 : i32
    %c0_i32_0 = arith.constant 0 : i32
    %c0_i32_1 = arith.constant 0 : i32
    return %c0_i32, %c0_i32_0 : i32, i32
  }
}

module attributes {stable_mosaic.version = 11 : i64} {
  func.func @_head_kernel(%arg0: i32, %arg1: memref<8x32xf32, #tpu.memory_space<vmem>>, %arg2: memref<32x16xf32, #tpu.memory_space<vmem>>, %arg3: memref<1x16xf32, #tpu.memory_space<vmem>>, %arg4: memref<16x10xf32, #tpu.memory_space<vmem>>, %arg5: memref<16x10xf32, #tpu.memory_space<vmem>>, %arg6: memref<1x10xf32, #tpu.memory_space<vmem>>, %arg7: memref<8x16xf32, #tpu.memory_space<vmem>>, %arg8: memref<8x10xf32, #tpu.memory_space<vmem>>, %arg9: memref<8x10xf32, #tpu.memory_space<vmem>>) attributes {dimension_semantics = [#tpu.dimension_semantics<arbitrary>], iteration_bounds = array<i64: 1>, scalar_prefetch = 0 : i64, scratch_operands = 0 : i64, tpu.core_type = #tpu.core_type<tc>, window_params = [{pipeline_mode = #tpu.pipeline_mode<synchronous>, transform_indices = @transform_0, window_bounds = array<i64: 8, 32>}, {pipeline_mode = #tpu.pipeline_mode<synchronous>, transform_indices = @transform_1, window_bounds = array<i64: 32, 16>}, {pipeline_mode = #tpu.pipeline_mode<synchronous>, transform_indices = @transform_2, window_bounds = array<i64: 1, 16>}, {pipeline_mode = #tpu.pipeline_mode<synchronous>, transform_indices = @transform_3, window_bounds = array<i64: 16, 10>}, {pipeline_mode = #tpu.pipeline_mode<synchronous>, transform_indices = @transform_4, window_bounds = array<i64: 16, 10>}, {pipeline_mode = #tpu.pipeline_mode<synchronous>, transform_indices = @transform_5, window_bounds = array<i64: 1, 10>}, {pipeline_mode = #tpu.pipeline_mode<synchronous>, transform_indices = @transform_6, window_bounds = array<i64: 8, 16>}, {pipeline_mode = #tpu.pipeline_mode<synchronous>, transform_indices = @transform_7, window_bounds = array<i64: 8, 10>}, {pipeline_mode = #tpu.pipeline_mode<synchronous>, transform_indices = @transform_8, window_bounds = array<i64: 8, 10>}]} {
    %c0 = arith.constant 0 : index
    %c0_0 = arith.constant 0 : index
    %0 = vector.load %arg1[%c0, %c0_0] : memref<8x32xf32, #tpu.memory_space<vmem>>, vector<8x32xf32>
    %c0_1 = arith.constant 0 : index
    %c0_2 = arith.constant 0 : index
    %1 = vector.load %arg2[%c0_1, %c0_2] : memref<32x16xf32, #tpu.memory_space<vmem>>, vector<32x16xf32>
    %cst = arith.constant dense<0.000000e+00> : vector<8x16xf32>
    %2 = tpu.matmul %0, %1, %cst {dimension_numbers = #tpu.dot_dimension_numbers<[1], [0], [0], [1], [0, 0, 1, 1], [], []>} : vector<8x32xf32>, vector<32x16xf32>, vector<8x16xf32> -> vector<8x16xf32>
    %c0_3 = arith.constant 0 : index
    %c0_4 = arith.constant 0 : index
    %3 = vector.load %arg3[%c0_3, %c0_4] : memref<1x16xf32, #tpu.memory_space<vmem>>, vector<1x16xf32>
    %4 = vector.broadcast %3 : vector<1x16xf32> to vector<8x16xf32>
    %5 = arith.addf %2, %4 : vector<8x16xf32>
    %6 = arith.mulf %5, %5 : vector<8x16xf32>
    %cst_5 = arith.constant dense<0.000000e+00> : vector<8xf32>
    %7 = vector.multi_reduction <add>, %6, %cst_5 [1] : vector<8x16xf32> to vector<8xf32>
    %8 = vector.shape_cast %7 : vector<8xf32> to vector<8x1xf32>
    %cst_6 = arith.constant 1.000000e-30 : f32
    %9 = vector.broadcast %cst_6 : f32 to vector<8x1xf32>
    %10 = arith.maximumf %8, %9 : vector<8x1xf32>
    %11 = math.rsqrt %10 : vector<8x1xf32>
    %cst_7 = arith.constant 4.000000e+00 : f32
    %12 = vector.broadcast %cst_7 : f32 to vector<8x1xf32>
    %13 = arith.mulf %11, %12 : vector<8x1xf32>
    %14 = vector.broadcast %13 : vector<8x1xf32> to vector<8x16xf32>
    %15 = arith.mulf %5, %14 : vector<8x16xf32>
    %c0_8 = arith.constant 0 : index
    %c0_9 = arith.constant 0 : index
    %16 = vector.load %arg7[%c0_8, %c0_9] : memref<8x16xf32, #tpu.memory_space<vmem>>, vector<8x16xf32>
    tpu.vector_store %arg7[%c0_8, %c0_9], %15 {strides = array<i32>} : memref<8x16xf32, #tpu.memory_space<vmem>>, vector<8x16xf32>,
    %c0_10 = arith.constant 0 : index
    %c0_11 = arith.constant 0 : index
    %17 = vector.load %arg4[%c0_10, %c0_11] : memref<16x10xf32, #tpu.memory_space<vmem>>, vector<16x10xf32>
    %cst_12 = arith.constant dense<0.000000e+00> : vector<8x10xf32>
    %18 = tpu.matmul %15, %17, %cst_12 {dimension_numbers = #tpu.dot_dimension_numbers<[1], [0], [0], [1], [0, 0, 1, 1], [], []>} : vector<8x16xf32>, vector<16x10xf32>, vector<8x10xf32> -> vector<8x10xf32>
    %c0_13 = arith.constant 0 : index
    %c0_14 = arith.constant 0 : index
    %19 = vector.load %arg8[%c0_13, %c0_14] : memref<8x10xf32, #tpu.memory_space<vmem>>, vector<8x10xf32>
    tpu.vector_store %arg8[%c0_13, %c0_14], %18 {strides = array<i32>} : memref<8x10xf32, #tpu.memory_space<vmem>>, vector<8x10xf32>,
    %c0_15 = arith.constant 0 : index
    %c0_16 = arith.constant 0 : index
    %20 = vector.load %arg5[%c0_15, %c0_16] : memref<16x10xf32, #tpu.memory_space<vmem>>, vector<16x10xf32>
    %cst_17 = arith.constant dense<0.000000e+00> : vector<8x10xf32>
    %21 = tpu.matmul %15, %20, %cst_17 {dimension_numbers = #tpu.dot_dimension_numbers<[1], [0], [0], [1], [0, 0, 1, 1], [], []>} : vector<8x16xf32>, vector<16x10xf32>, vector<8x10xf32> -> vector<8x10xf32>
    %c0_18 = arith.constant 0 : index
    %c0_19 = arith.constant 0 : index
    %22 = vector.load %arg6[%c0_18, %c0_19] : memref<1x10xf32, #tpu.memory_space<vmem>>, vector<1x10xf32>
    %23 = vector.broadcast %22 : vector<1x10xf32> to vector<8x10xf32>
    %24 = arith.addf %21, %23 : vector<8x10xf32>
    %c0_20 = arith.constant 0 : index
    %c0_21 = arith.constant 0 : index
    %25 = vector.load %arg9[%c0_20, %c0_21] : memref<8x10xf32, #tpu.memory_space<vmem>>, vector<8x10xf32>
    tpu.vector_store %arg9[%c0_20, %c0_21], %24 {strides = array<i32>} : memref<8x10xf32, #tpu.memory_space<vmem>>, vector<8x10xf32>,
    return
  }
  func.func @transform_0(%arg0: i32) -> (i32, i32) {
    %c0_i32 = arith.constant 0 : i32
    %c0_i32_0 = arith.constant 0 : i32
    %c0_i32_1 = arith.constant 0 : i32
    return %c0_i32, %c0_i32_0 : i32, i32
  }
  func.func @transform_1(%arg0: i32) -> (i32, i32) {
    %c0_i32 = arith.constant 0 : i32
    %c0_i32_0 = arith.constant 0 : i32
    %c0_i32_1 = arith.constant 0 : i32
    return %c0_i32, %c0_i32_0 : i32, i32
  }
  func.func @transform_2(%arg0: i32) -> (i32, i32) {
    %c0_i32 = arith.constant 0 : i32
    %c0_i32_0 = arith.constant 0 : i32
    %c0_i32_1 = arith.constant 0 : i32
    return %c0_i32, %c0_i32_0 : i32, i32
  }
  func.func @transform_3(%arg0: i32) -> (i32, i32) {
    %c0_i32 = arith.constant 0 : i32
    %c0_i32_0 = arith.constant 0 : i32
    %c0_i32_1 = arith.constant 0 : i32
    return %c0_i32, %c0_i32_0 : i32, i32
  }
  func.func @transform_4(%arg0: i32) -> (i32, i32) {
    %c0_i32 = arith.constant 0 : i32
    %c0_i32_0 = arith.constant 0 : i32
    %c0_i32_1 = arith.constant 0 : i32
    return %c0_i32, %c0_i32_0 : i32, i32
  }
  func.func @transform_5(%arg0: i32) -> (i32, i32) {
    %c0_i32 = arith.constant 0 : i32
    %c0_i32_0 = arith.constant 0 : i32
    %c0_i32_1 = arith.constant 0 : i32
    return %c0_i32, %c0_i32_0 : i32, i32
  }
  func.func @transform_6(%arg0: i32) -> (i32, i32) {
    %c0_i32 = arith.constant 0 : i32
    %c0_i32_0 = arith.constant 0 : i32
    %c0_i32_1 = arith.constant 0 : i32
    return %c0_i32, %c0_i32_0 : i32, i32
  }
  func.func @transform_7(%arg0: i32) -> (i32, i32) {
    %c0_i32 = arith.constant 0 : i32
    %c0_i32_0 = arith.constant 0 : i32
    %c0_i32_1 = arith.constant 0 : i32
    return %c0_i32, %c0_i32_0 : i32, i32
  }
  func.func @transform_8(%arg0: i32) -> (i32, i32) {
    %c0_i32 = arith.constant 0 : i32
    %c0_i32_0 = arith.constant 0 : i32
    %c0_i32_1 = arith.constant 0 : i32
    return %c0_i32, %c0_i32_0 : i32, i32
  }
}

</mosaic_0001>

<llo_original>
// kernel: run.39
$region0: #{run.39}
  #allocation0 [shape = 'u32[]', space=smem, size = 0x4, offset = 0x4, fixed_abs, tag = 'smem constant byte address 0x4 - core index']
  #allocation1 [shape = 'u32[144,128]{1,0:T(1,128)}', space=vmem, size = 0x12000, scoped, tag = 'internal scratch']
  %s0 = inlined_call_operand.vmem [shape: bf16[512,147], index: 0, kind: input, shape index: {}]
  %s1 = inlined_call_operand.vmem [shape: bf16[147,4], index: 1, kind: input, shape index: {}]
  %s2 = inlined_call_operand.vmem [shape: f32[1,4], index: 2, kind: input, shape index: {}]
  %s3 = inlined_call_operand.vmem [shape: f32[1,4], index: 3, kind: input, shape index: {}]
  %s4 = inlined_call_operand.vmem [shape: f32[512,4], index: 4, kind: output, shape index: {}]
  %s5 = sld [smem:[#allocation0]]
  $region26: #{run.39} parent=0
    _
  %s7 = ssub.s32 1, %s5
  %s8 = scalar_select 0, %s7, %s5
  // Predicated region
  $region2: #{run.39} parent=0 // pred_check
    _
  $region3: #{run.39} parent=0 // pred_check_branch
    %10 = sbr.rel (0) target = $region5
  $region4: #{run.39} parent=0 // pred_region
    _
  $region5: #{run.39} parent=0 // pred_fallthru
    _
  // Predicated region
  $region6: #{run.39} parent=0 // pred_check
    _
  $region7: #{run.39} parent=0 // pred_check_branch
    %12 = sbr.rel (0) target = $region9
  $region8: #{run.39} parent=0 // pred_region
    _
  $region9: #{run.39} parent=0 // pred_fallthru
    _
  // Predicated region
  $region10: #{run.39} parent=0 // pred_check
    _
  $region11: #{run.39} parent=0 // pred_check_branch
    %14 = sbr.rel (0) target = $region13
  $region12: #{run.39} parent=0 // pred_region
    _
  $region13: #{run.39} parent=0 // pred_fallthru
    _
  // Predicated region
  $region14: #{run.39} parent=0 // pred_check
    _
  $region15: #{run.39} parent=0 // pred_check_branch
    %16 = sbr.rel (0) target = $region17
  $region16: #{run.39} parent=0 // pred_region
    _
  $region17: #{run.39} parent=0 // pred_fallthru
    _
  %v18 = vld [vmem:[%s0] sm:$0xff]
  %v19 = vld [vmem:[%s0 + $0x8] sm:$0xff]
  %v20 = vld [vmem:[%s0 + $0x10] sm:$0xff]
  %v21 = vld [vmem:[%s0 + $0x18] sm:$0xff]
  %v22 = vld [vmem:[%s0 + $0x20] sm:$0xff]
  %v23 = vld [vmem:[%s0 + $0x28] sm:$0xff]
  %v24 = vld [vmem:[%s0 + $0x30] sm:$0xff]
  %v25 = vld [vmem:[%s0 + $0x38] sm:$0xff]
  %v26 = vld [vmem:[%s0 + $0x40] sm:$0xff]
  %v27 = vld [vmem:[%s0 + $0x48] sm:$0xff]
  %v28 = vld [vmem:[%s0 + $0x50] sm:$0xff]
  %v29 = vld [vmem:[%s0 + $0x58] sm:$0xff]
  %v30 = vld [vmem:[%s0 + $0x60] sm:$0xff]
  %v31 = vld [vmem:[%s0 + $0x68] sm:$0xff]
  %v32 = vld [vmem:[%s0 + $0x70] sm:$0xff]
  %v33 = vld [vmem:[%s0 + $0x78] sm:$0xff]
  %v34 = vld [vmem:[%s0 + $0x80] sm:$0xff]
  %v35 = vld [vmem:[%s0 + $0x88] sm:$0xff]
  %v36 = vld [vmem:[%s0 + $0x90] sm:$0xff]
  %v37 = vld [vmem:[%s0 + $0x98] sm:$0xff]
  %v38 = vld [vmem:[%s0 + $0xa0] sm:$0xff]
  %v39 = vld [vmem:[%s0 + $0xa8] sm:$0xff]
  %v40 = vld [vmem:[%s0 + $0xb0] sm:$0xff]
  %v41 = vld [vmem:[%s0 + $0xb8] sm:$0xff]
  %v42 = vld [vmem:[%s0 + $0xc0] sm:$0xff]
  %v43 = vld [vmem:[%s0 + $0xc8] sm:$0xff]
  %v44 = vld [vmem:[%s0 + $0xd0] sm:$0xff]
  %v45 = vld [vmem:[%s0 + $0xd8] sm:$0xff]
  %v46 = vld [vmem:[%s0 + $0xe0] sm:$0xff]
  %v47 = vld [vmem:[%s0 + $0xe8] sm:$0xff]
  %v48 = vld [vmem:[%s0 + $0xf0] sm:$0xff]
  %v49 = vld [vmem:[%s0 + $0xf8] sm:$0xff]
  %v50 = vld [vmem:[%s0 + $0x100] sm:$0xff]
  %v51 = vld [vmem:[%s0 + $0x108] sm:$0xff]
  %v52 = vld [vmem:[%s0 + $0x110] sm:$0xff]
  %v53 = vld [vmem:[%s0 + $0x118] sm:$0xff]
  %v54 = vld [vmem:[%s0 + $0x120] sm:$0xff]
  %v55 = vld [vmem:[%s0 + $0x128] sm:$0xff]
  %v56 = vld [vmem:[%s0 + $0x130] sm:$0xff]
  %v57 = vld [vmem:[%s0 + $0x138] sm:$0xff]
  %v58 = vld [vmem:[%s0 + $0x140] sm:$0xff]
  %v59 = vld [vmem:[%s0 + $0x148] sm:$0xff]
  %v60 = vld [vmem:[%s0 + $0x150] sm:$0xff]
  %v61 = vld [vmem:[%s0 + $0x158] sm:$0xff]
  %v62 = vld [vmem:[%s0 + $0x160] sm:$0xff]
  %v63 = vld [vmem:[%s0 + $0x168] sm:$0xff]
  %v64 = vld [vmem:[%s0 + $0x170] sm:$0xff]
  %v65 = vld [vmem:[%s0 + $0x178] sm:$0xff]
  %v66 = vld [vmem:[%s0 + $0x180] sm:$0xff]
  %v67 = vld [vmem:[%s0 + $0x188] sm:$0xff]
  %v68 = vld [vmem:[%s0 + $0x190] sm:$0xff]
  %v69 = vld [vmem:[%s0 + $0x198] sm:$0xff]
  %v70 = vld [vmem:[%s0 + $0x1a0] sm:$0xff]
  %v71 = vld [vmem:[%s0 + $0x1a8] sm:$0xff]
  %v72 = vld [vmem:[%s0 + $0x1b0] sm:$0xff]
  %v73 = vld [vmem:[%s0 + $0x1b8] sm:$0xff]
  %v74 = vld [vmem:[%s0 + $0x1c0] sm:$0xff]
  %v75 = vld [vmem:[%s0 + $0x1c8] sm:$0xff]
  %v76 = vld [vmem:[%s0 + $0x1d0] sm:$0xff]
  %v77 = vld [vmem:[%s0 + $0x1d8] sm:$0xff]
  %v78 = vld [vmem:[%s0 + $0x1e0] sm:$0xff]
  %v79 = vld [vmem:[%s0 + $0x1e8] sm:$0xff]
  %v80 = vld [vmem:[%s0 + $0x1f0] sm:$0xff]
  %v81 = vld [vmem:[%s0 + $0x1f8] sm:$0xff]
  %v82 = vld [vmem:[%s1] sm:$0xf]
  %v83 = vld [vmem:[%s1 + $0x4] sm:$0xf]
  %v84 = vld [vmem:[%s1 + $0x8] sm:$0xf]
  %v85 = vld [vmem:[%s1 + $0xc] sm:$0xf]
  %v86 = vld [vmem:[%s1 + $0x10] sm:$0xf]
  %v87 = vld [vmem:[%s1 + $0x14] sm:$0xf]
  %v88 = vld [vmem:[%s1 + $0x18] sm:$0xf]
  %v89 = vld [vmem:[%s1 + $0x1c] sm:$0xf]
  %v90 = vld [vmem:[%s1 + $0x20] sm:$0xf]
  %v91 = vld [vmem:[%s1 + $0x24] sm:$0xf]
  %v92 = vld [vmem:[%s1 + $0x28] sm:$0xf]
  %v93 = vld [vmem:[%s1 + $0x2c] sm:$0xf]
  %v94 = vld [vmem:[%s1 + $0x30] sm:$0xf]
  %v95 = vld [vmem:[%s1 + $0x34] sm:$0xf]
  %v96 = vld [vmem:[%s1 + $0x38] sm:$0xf]
  %v97 = vld [vmem:[%s1 + $0x3c] sm:$0xf]
  %v98 = vld [vmem:[%s1 + $0x40] sm:$0xf]
  %v99 = vld [vmem:[%s1 + $0x44] sm:$0xf]
  %v100 = vld [vmem:[%s1 + $0x48] sm:$0x3]
  %v165 = vunpack.c.l.b16 %v18
  %v166 = vunpack.c.h.b16 %v18
  %v167 = vunpack.c.l.b16 %v19
  %v168 = vunpack.c.h.b16 %v19
  %v169 = vunpack.c.l.b16 %v20
  %v170 = vunpack.c.h.b16 %v20
  %v171 = vunpack.c.l.b16 %v21
  %v172 = vunpack.c.h.b16 %v21
  %v173 = vunpack.c.l.b16 %v22
  %v174 = vunpack.c.h.b16 %v22
  %v175 = vunpack.c.l.b16 %v23
  %v176 = vunpack.c.h.b16 %v23
  %v177 = vunpack.c.l.b16 %v24
  %v178 = vunpack.c.h.b16 %v24
  %v179 = vunpack.c.l.b16 %v25
  %v180 = vunpack.c.h.b16 %v25
  %v181 = vunpack.c.l.b16 %v26
  %v182 = vunpack.c.h.b16 %v26
  %v183 = vunpack.c.l.b16 %v27
  %v184 = vunpack.c.h.b16 %v27
  %v185 = vunpack.c.l.b16 %v28
  %v186 = vunpack.c.h.b16 %v28
  %v187 = vunpack.c.l.b16 %v29
  %v188 = vunpack.c.h.b16 %v29
  %v189 = vunpack.c.l.b16 %v30
  %v190 = vunpack.c.h.b16 %v30
  %v191 = vunpack.c.l.b16 %v31
  %v192 = vunpack.c.h.b16 %v31
  %v193 = vunpack.c.l.b16 %v32
  %v194 = vunpack.c.h.b16 %v32
  %v195 = vunpack.c.l.b16 %v33
  %v196 = vunpack.c.h.b16 %v33
  %v197 = vunpack.c.l.b16 %v34
  %v198 = vunpack.c.h.b16 %v34
  %v199 = vunpack.c.l.b16 %v35
  %v200 = vunpack.c.h.b16 %v35
  %v201 = vunpack.c.l.b16 %v36
  %v202 = vunpack.c.h.b16 %v36
  %v203 = vunpack.c.l.b16 %v37
  %v204 = vunpack.c.h.b16 %v37
  %v205 = vunpack.c.l.b16 %v38
  %v206 = vunpack.c.h.b16 %v38
  %v207 = vunpack.c.l.b16 %v39
  %v208 = vunpack.c.h.b16 %v39
  %v209 = vunpack.c.l.b16 %v40
  %v210 = vunpack.c.h.b16 %v40
  %v211 = vunpack.c.l.b16 %v41
  %v212 = vunpack.c.h.b16 %v41
  %v213 = vunpack.c.l.b16 %v42
  %v214 = vunpack.c.h.b16 %v42
  %v215 = vunpack.c.l.b16 %v43
  %v216 = vunpack.c.h.b16 %v43
  %v217 = vunpack.c.l.b16 %v44
  %v218 = vunpack.c.h.b16 %v44
  %v219 = vunpack.c.l.b16 %v45
  %v220 = vunpack.c.h.b16 %v45
  %v221 = vunpack.c.l.b16 %v46
  %v222 = vunpack.c.h.b16 %v46
  %v223 = vunpack.c.l.b16 %v47
  %v224 = vunpack.c.h.b16 %v47
  %v225 = vunpack.c.l.b16 %v48
  %v226 = vunpack.c.h.b16 %v48
  %v227 = vunpack.c.l.b16 %v49
  %v228 = vunpack.c.h.b16 %v49
  %v229 = vunpack.c.l.b16 %v50
  %v230 = vunpack.c.h.b16 %v50
  %v231 = vunpack.c.l.b16 %v51
  %v232 = vunpack.c.h.b16 %v51
  %v233 = vunpack.c.l.b16 %v52
  %v234 = vunpack.c.h.b16 %v52
  %v235 = vunpack.c.l.b16 %v53
  %v236 = vunpack.c.h.b16 %v53
  %v237 = vunpack.c.l.b16 %v54
  %v238 = vunpack.c.h.b16 %v54
  %v239 = vunpack.c.l.b16 %v55
  %v240 = vunpack.c.h.b16 %v55
  %v241 = vunpack.c.l.b16 %v56
  %v242 = vunpack.c.h.b16 %v56
  %v243 = vunpack.c.l.b16 %v57
  %v244 = vunpack.c.h.b16 %v57
  %v245 = vunpack.c.l.b16 %v58
  %v246 = vunpack.c.h.b16 %v58
  %v247 = vunpack.c.l.b16 %v59
  %v248 = vunpack.c.h.b16 %v59
  %v249 = vunpack.c.l.b16 %v60
  %v250 = vunpack.c.h.b16 %v60
  %v251 = vunpack.c.l.b16 %v61
  %v252 = vunpack.c.h.b16 %v61
  %v253 = vunpack.c.l.b16 %v62
  %v254 = vunpack.c.h.b16 %v62
  %v255 = vunpack.c.l.b16 %v63
  %v256 = vunpack.c.h.b16 %v63
  %v257 = vunpack.c.l.b16 %v64
  %v258 = vunpack.c.h.b16 %v64
  %v259 = vunpack.c.l.b16 %v65
  %v260 = vunpack.c.h.b16 %v65
  %v261 = vunpack.c.l.b16 %v66
  %v262 = vunpack.c.h.b16 %v66
  %v263 = vunpack.c.l.b16 %v67
  %v264 = vunpack.c.h.b16 %v67
  %v265 = vunpack.c.l.b16 %v68
  %v266 = vunpack.c.h.b16 %v68
  %v267 = vunpack.c.l.b16 %v69
  %v268 = vunpack.c.h.b16 %v69
  %v269 = vunpack.c.l.b16 %v70
  %v270 = vunpack.c.h.b16 %v70
  %v271 = vunpack.c.l.b16 %v71
  %v272 = vunpack.c.h.b16 %v71
  %v273 = vunpack.c.l.b16 %v72
  %v274 = vunpack.c.h.b16 %v72
  %v275 = vunpack.c.l.b16 %v73
  %v276 = vunpack.c.h.b16 %v73
  %v277 = vunpack.c.l.b16 %v74
  %v278 = vunpack.c.h.b16 %v74
  %v279 = vunpack.c.l.b16 %v75
  %v280 = vunpack.c.h.b16 %v75
  %v281 = vunpack.c.l.b16 %v76
  %v282 = vunpack.c.h.b16 %v76
  %v283 = vunpack.c.l.b16 %v77
  %v284 = vunpack.c.h.b16 %v77
  %v285 = vunpack.c.l.b16 %v78
  %v286 = vunpack.c.h.b16 %v78
  %v287 = vunpack.c.l.b16 %v79
  %v288 = vunpack.c.h.b16 %v79
  %v289 = vunpack.c.l.b16 %v80
  %v290 = vunpack.c.h.b16 %v80
  %v291 = vunpack.c.l.b16 %v81
  %v292 = vunpack.c.h.b16 %v81
  %v293 = vpack.c.b16 %v167, %v165
  %v294 = vpack.c.b16 %v168, %v166
  %v295 = vpack.c.b16 %v171, %v169
  %v296 = vpack.c.b16 %v172, %v170
  %v297 = vpack.c.b16 %v175, %v173
  %v298 = vpack.c.b16 %v176, %v174
  %v299 = vpack.c.b16 %v179, %v177
  %v300 = vpack.c.b16 %v180, %v178
  %v301 = vpack.c.b16 %v183, %v181
  %v302 = vpack.c.b16 %v184, %v182
  %v303 = vpack.c.b16 %v187, %v185
  %v304 = vpack.c.b16 %v188, %v186
  %v305 = vpack.c.b16 %v191, %v189
  %v306 = vpack.c.b16 %v192, %v190
  %v307 = vpack.c.b16 %v195, %v193
  %v308 = vpack.c.b16 %v196, %v194
  %v309 = vpack.c.b16 %v199, %v197
  %v310 = vpack.c.b16 %v200, %v198
  %v311 = vpack.c.b16 %v203, %v201
  %v312 = vpack.c.b16 %v204, %v202
  %v313 = vpack.c.b16 %v207, %v205
  %v314 = vpack.c.b16 %v208, %v206
  %v315 = vpack.c.b16 %v211, %v209
  %v316 = vpack.c.b16 %v212, %v210
  %v317 = vpack.c.b16 %v215, %v213
  %v318 = vpack.c.b16 %v216, %v214
  %v319 = vpack.c.b16 %v219, %v217
  %v320 = vpack.c.b16 %v220, %v218
  %v321 = vpack.c.b16 %v223, %v221
  %v322 = vpack.c.b16 %v224, %v222
  %v323 = vpack.c.b16 %v227, %v225
  %v324 = vpack.c.b16 %v228, %v226
  %v325 = vpack.c.b16 %v231, %v229
  %v326 = vpack.c.b16 %v232, %v230
  %v327 = vpack.c.b16 %v235, %v233
  %v328 = vpack.c.b16 %v236, %v234
  %v329 = vpack.c.b16 %v239, %v237
  %v330 = vpack.c.b16 %v240, %v238
  %v331 = vpack.c.b16 %v243, %v241
  %v332 = vpack.c.b16 %v244, %v242
  %v333 = vpack.c.b16 %v247, %v245
  %v334 = vpack.c.b16 %v248, %v246
  %v335 = vpack.c.b16 %v251, %v249
  %v336 = vpack.c.b16 %v252, %v250
  %v337 = vpack.c.b16 %v255, %v253
  %v338 = vpack.c.b16 %v256, %v254
  %v339 = vpack.c.b16 %v259, %v257
  %v340 = vpack.c.b16 %v260, %v258
  %v341 = vpack.c.b16 %v263, %v261
  %v342 = vpack.c.b16 %v264, %v262
  %v343 = vpack.c.b16 %v267, %v265
  %v344 = vpack.c.b16 %v268, %v266
  %v345 = vpack.c.b16 %v271, %v269
  %v346 = vpack.c.b16 %v272, %v270
  %v347 = vpack.c.b16 %v275, %v273
  %v348 = vpack.c.b16 %v276, %v274
  %v349 = vpack.c.b16 %v279, %v277
  %v350 = vpack.c.b16 %v280, %v278
  %v351 = vpack.c.b16 %v283, %v281
  %v352 = vpack.c.b16 %v284, %v282
  %v353 = vpack.c.b16 %v287, %v285
  %v354 = vpack.c.b16 %v288, %v286
  %v355 = vpack.c.b16 %v291, %v289
  %v356 = vpack.c.b16 %v292, %v290
  %v408 = vunpack.c.l.b16 %v82
  %v409 = vunpack.c.l.b16 %v83
  %v410 = vunpack.c.l.b16 %v84
  %v411 = vunpack.c.l.b16 %v85
  %v412 = vunpack.c.l.b16 %v86
  %v413 = vunpack.c.l.b16 %v87
  %v414 = vunpack.c.l.b16 %v88
  %v415 = vunpack.c.l.b16 %v89
  %v416 = vunpack.c.l.b16 %v90
  %v417 = vunpack.c.l.b16 %v91
  %v418 = vunpack.c.l.b16 %v92
  %v419 = vunpack.c.l.b16 %v93
  %v420 = vunpack.c.l.b16 %v94
  %v421 = vunpack.c.l.b16 %v95
  %v422 = vunpack.c.l.b16 %v96
  %v423 = vunpack.c.l.b16 %v97
  %v424 = vunpack.c.l.b16 %v98
  %v425 = vunpack.c.l.b16 %v99
  %v426 = vunpack.c.l.b16 %v100
  %v427 = vpack.c.b16 %v409, %v408
  %v428 = vpack.c.b16 %v411, %v410
  %v429 = vpack.c.b16 %v413, %v412
  %v430 = vpack.c.b16 %v415, %v414
  %v431 = vpack.c.b16 %v417, %v416
  %v432 = vpack.c.b16 %v419, %v418
  %v433 = vpack.c.b16 %v421, %v420
  %v434 = vpack.c.b16 %v423, %v422
  %v435 = vpack.c.b16 %v425, %v424
  %v436 = vpack.c.b16 %v426, %v426
  %vm446 = vcmask 154624
  %v448 = vsel %vm446, %v294, 0
  %v451 = vsel %vm446, %v296, 0
  %v454 = vsel %vm446, %v298, 0
  %v457 = vsel %vm446, %v300, 0
  %v460 = vsel %vm446, %v302, 0
  %v463 = vsel %vm446, %v304, 0
  %v466 = vsel %vm446, %v306, 0
  %v469 = vsel %vm446, %v308, 0
  %v472 = vsel %vm446, %v310, 0
  %v475 = vsel %vm446, %v312, 0
  %v478 = vsel %vm446, %v314, 0
  %v481 = vsel %vm446, %v316, 0
  %v484 = vsel %vm446, %v318, 0
  %v487 = vsel %vm446, %v320, 0
  %v490 = vsel %vm446, %v322, 0
  %v493 = vsel %vm446, %v324, 0
  %v496 = vsel %vm446, %v326, 0
  %v499 = vsel %vm446, %v328, 0
  %v502 = vsel %vm446, %v330, 0
  %v505 = vsel %vm446, %v332, 0
  %v508 = vsel %vm446, %v334, 0
  %v511 = vsel %vm446, %v336, 0
  %v514 = vsel %vm446, %v338, 0
  %v517 = vsel %vm446, %v340, 0
  %v520 = vsel %vm446, %v342, 0
  %v523 = vsel %vm446, %v344, 0
  %v526 = vsel %vm446, %v346, 0
  %v529 = vsel %vm446, %v348, 0
  %v532 = vsel %vm446, %v350, 0
  %v535 = vsel %vm446, %v352, 0
  %v538 = vsel %vm446, %v354, 0
  %v541 = vsel %vm446, %v356, 0
  %vm543 = vcmask 1040384
  %vm544 = vcmask 1041408
  %v545 = vsel %vm543, 4294967295, 65535
  %v546 = vsel %vm544, %v545, 0
  %v548 = vand.u32 %v436, %v546
  %550 = vmatprep.subr.bf16.mxu0 0
  %551 = vmatpush1.bf16.msra.mxu0 %v434
  %552 = vmatprep.subr.bf16.mxu0 0
  %553 = vmatpush1.bf16.msra.mxu0 %v433
  %554 = vmatprep.subr.bf16.mxu0 0
  %555 = vmatpush1.bf16.msra.mxu0 %v432
  %556 = vmatprep.subr.bf16.mxu0 0
  %557 = vmatpush1.bf16.msra.mxu0 %v431
  %558 = vmatprep.subr.bf16.mxu0 0
  %559 = vmatpush1.bf16.msra.mxu0 %v430
  %560 = vmatprep.subr.bf16.mxu0 0
  %561 = vmatpush1.bf16.msra.mxu0 %v429
  %562 = vmatprep.subr.bf16.mxu0 0
  %563 = vmatpush1.bf16.msra.mxu0 %v428
  %564 = vmatprep.subr.bf16.mxu0 0
  %565 = vmatpush1.bf16.msra.mxu0 %v427
  %566 = vmatprep.subr.bf16.mxu0 0
  %567 = vmatpush2.bf16.msra.mxu0 0
  %568 = vmatprep.subr.bf16.mxu0 0
  %569 = vmatpush2.bf16.msra.mxu0 0
  %570 = vmatprep.subr.bf16.mxu0 0
  %571 = vmatpush2.bf16.msra.mxu0 0
  %572 = vmatprep.subr.bf16.mxu0 0
  %573 = vmatpush2.bf16.msra.mxu0 0
  %574 = vmatprep.subr.bf16.mxu0 0
  %575 = vmatpush2.bf16.msra.mxu0 0
  %576 = vmatprep.subr.bf16.mxu0 0
  %577 = vmatpush2.bf16.msra.mxu0 0
  %578 = vmatprep.subr.bf16.mxu0 0
  %579 = vmatpush2.bf16.msra.mxu0 %v548
  %580 = vmatprep.subr.bf16.mxu0 0
  %581 = vmatpush2.bf16.msra.mxu0 %v435
  %582 = vmatprep.mubr.bf16.mxu0 %v448
  %583 = vmatmul.mubr.bf16.gmra.mxu0 %v293
  %v584 = vpop.f32.mrf.mxu0
  %v585 = vadd.f32 0.0, %v584
  %v586 = vpop.f32.mrf.mxu0
  %v587 = vpop.f32.mrf.mxu0
  %v588 = vadd.f32 0.0, %v587
  %v589 = vpop.f32.mrf.mxu0
  %590 = vmatprep.mubr.bf16.mxu0 %v451
  %591 = vmatmul.mubr.bf16.gmra.mxu0 %v295
  %v592 = vpop.f32.mrf.mxu0
  %v593 = vadd.f32 0.0, %v592
  %v594 = vpop.f32.mrf.mxu0
  %v595 = vpop.f32.mrf.mxu0
  %v596 = vadd.f32 0.0, %v595
  %v597 = vpop.f32.mrf.mxu0
  %598 = vmatprep.mubr.bf16.mxu0 %v454
  %599 = vmatmul.mubr.bf16.gmra.mxu0 %v297
  %v600 = vpop.f32.mrf.mxu0
  %v601 = vadd.f32 0.0, %v600
  %v602 = vpop.f32.mrf.mxu0
  %v603 = vpop.f32.mrf.mxu0
  %v604 = vadd.f32 0.0, %v603
  %v605 = vpop.f32.mrf.mxu0
  %606 = vmatprep.mubr.bf16.mxu0 %v457
  %607 = vmatmul.mubr.bf16.gmra.mxu0 %v299
  %v608 = vpop.f32.mrf.mxu0
  %v609 = vadd.f32 0.0, %v608
  %v610 = vpop.f32.mrf.mxu0
  %v611 = vpop.f32.mrf.mxu0
  %v612 = vadd.f32 0.0, %v611
  %v613 = vpop.f32.mrf.mxu0
  %614 = vmatprep.mubr.bf16.mxu0 %v460
  %615 = vmatmul.mubr.bf16.gmra.mxu0 %v301
  %v616 = vpop.f32.mrf.mxu0
  %v617 = vadd.f32 0.0, %v616
  %v618 = vpop.f32.mrf.mxu0
  %v619 = vpop.f32.mrf.mxu0
  %v620 = vadd.f32 0.0, %v619
  %v621 = vpop.f32.mrf.mxu0
  %622 = vmatprep.mubr.bf16.mxu0 %v463
  %623 = vmatmul.mubr.bf16.gmra.mxu0 %v303
  %v624 = vpop.f32.mrf.mxu0
  %v625 = vadd.f32 0.0, %v624
  %v626 = vpop.f32.mrf.mxu0
  %v627 = vpop.f32.mrf.mxu0
  %v628 = vadd.f32 0.0, %v627
  %v629 = vpop.f32.mrf.mxu0
  %630 = vmatprep.mubr.bf16.mxu0 %v466
  %631 = vmatmul.mubr.bf16.gmra.mxu0 %v305
  %v632 = vpop.f32.mrf.mxu0
  %v633 = vadd.f32 0.0, %v632
  %v634 = vpop.f32.mrf.mxu0
  %v635 = vpop.f32.mrf.mxu0
  %v636 = vadd.f32 0.0, %v635
  %v637 = vpop.f32.mrf.mxu0
  %638 = vmatprep.mubr.bf16.mxu0 %v469
  %639 = vmatmul.mubr.bf16.gmra.mxu0 %v307
  %v640 = vpop.f32.mrf.mxu0
  %v641 = vadd.f32 0.0, %v640
  %v642 = vpop.f32.mrf.mxu0
  %v643 = vpop.f32.mrf.mxu0
  %v644 = vadd.f32 0.0, %v643
  %v645 = vpop.f32.mrf.mxu0
  %646 = vmatprep.mubr.bf16.mxu0 %v472
  %647 = vmatmul.mubr.bf16.gmra.mxu0 %v309
  %v648 = vpop.f32.mrf.mxu0
  %v649 = vadd.f32 0.0, %v648
  %v650 = vpop.f32.mrf.mxu0
  %v651 = vpop.f32.mrf.mxu0
  %v652 = vadd.f32 0.0, %v651
  %v653 = vpop.f32.mrf.mxu0
  %654 = vmatprep.mubr.bf16.mxu0 %v475
  %655 = vmatmul.mubr.bf16.gmra.mxu0 %v311
  %v656 = vpop.f32.mrf.mxu0
  %v657 = vadd.f32 0.0, %v656
  %v658 = vpop.f32.mrf.mxu0
  %v659 = vpop.f32.mrf.mxu0
  %v660 = vadd.f32 0.0, %v659
  %v661 = vpop.f32.mrf.mxu0
  %662 = vmatprep.mubr.bf16.mxu0 %v478
  %663 = vmatmul.mubr.bf16.gmra.mxu0 %v313
  %v664 = vpop.f32.mrf.mxu0
  %v665 = vadd.f32 0.0, %v664
  %v666 = vpop.f32.mrf.mxu0
  %v667 = vpop.f32.mrf.mxu0
  %v668 = vadd.f32 0.0, %v667
  %v669 = vpop.f32.mrf.mxu0
  %670 = vmatprep.mubr.bf16.mxu0 %v481
  %671 = vmatmul.mubr.bf16.gmra.mxu0 %v315
  %v672 = vpop.f32.mrf.mxu0
  %v673 = vadd.f32 0.0, %v672
  %v674 = vpop.f32.mrf.mxu0
  %v675 = vpop.f32.mrf.mxu0
  %v676 = vadd.f32 0.0, %v675
  %v677 = vpop.f32.mrf.mxu0
  %678 = vmatprep.mubr.bf16.mxu0 %v484
  %679 = vmatmul.mubr.bf16.gmra.mxu0 %v317
  %v680 = vpop.f32.mrf.mxu0
  %v681 = vadd.f32 0.0, %v680
  %v682 = vpop.f32.mrf.mxu0
  %v683 = vpop.f32.mrf.mxu0
  %v684 = vadd.f32 0.0, %v683
  %v685 = vpop.f32.mrf.mxu0
  %686 = vmatprep.mubr.bf16.mxu0 %v487
  %687 = vmatmul.mubr.bf16.gmra.mxu0 %v319
  %v688 = vpop.f32.mrf.mxu0
  %v689 = vadd.f32 0.0, %v688
  %v690 = vpop.f32.mrf.mxu0
  %v691 = vpop.f32.mrf.mxu0
  %v692 = vadd.f32 0.0, %v691
  %v693 = vpop.f32.mrf.mxu0
  %694 = vmatprep.mubr.bf16.mxu0 %v490
  %695 = vmatmul.mubr.bf16.gmra.mxu0 %v321
  %v696 = vpop.f32.mrf.mxu0
  %v697 = vadd.f32 0.0, %v696
  %v698 = vpop.f32.mrf.mxu0
  %v699 = vpop.f32.mrf.mxu0
  %v700 = vadd.f32 0.0, %v699
  %v701 = vpop.f32.mrf.mxu0
  %702 = vmatprep.mubr.bf16.mxu0 %v493
  %703 = vmatmul.mubr.bf16.gmra.mxu0 %v323
  %v704 = vpop.f32.mrf.mxu0
  %v705 = vadd.f32 0.0, %v704
  %v706 = vpop.f32.mrf.mxu0
  %v707 = vpop.f32.mrf.mxu0
  %v708 = vadd.f32 0.0, %v707
  %v709 = vpop.f32.mrf.mxu0
  %710 = vmatprep.mubr.bf16.mxu0 %v496
  %711 = vmatmul.mubr.bf16.gmra.mxu0 %v325
  %v712 = vpop.f32.mrf.mxu0
  %v713 = vadd.f32 0.0, %v712
  %v714 = vpop.f32.mrf.mxu0
  %v715 = vpop.f32.mrf.mxu0
  %v716 = vadd.f32 0.0, %v715
  %v717 = vpop.f32.mrf.mxu0
  %718 = vmatprep.mubr.bf16.mxu0 %v499
  %719 = vmatmul.mubr.bf16.gmra.mxu0 %v327
  %v720 = vpop.f32.mrf.mxu0
  %v721 = vadd.f32 0.0, %v720
  %v722 = vpop.f32.mrf.mxu0
  %v723 = vpop.f32.mrf.mxu0
  %v724 = vadd.f32 0.0, %v723
  %v725 = vpop.f32.mrf.mxu0
  %726 = vmatprep.mubr.bf16.mxu0 %v502
  %727 = vmatmul.mubr.bf16.gmra.mxu0 %v329
  %v728 = vpop.f32.mrf.mxu0
  %v729 = vadd.f32 0.0, %v728
  %v730 = vpop.f32.mrf.mxu0
  %v731 = vpop.f32.mrf.mxu0
  %v732 = vadd.f32 0.0, %v731
  %v733 = vpop.f32.mrf.mxu0
  %734 = vmatprep.mubr.bf16.mxu0 %v505
  %735 = vmatmul.mubr.bf16.gmra.mxu0 %v331
  %v736 = vpop.f32.mrf.mxu0
  %v737 = vadd.f32 0.0, %v736
  %v738 = vpop.f32.mrf.mxu0
  %v739 = vpop.f32.mrf.mxu0
  %v740 = vadd.f32 0.0, %v739
  %v741 = vpop.f32.mrf.mxu0
  %742 = vmatprep.mubr.bf16.mxu0 %v508
  %743 = vmatmul.mubr.bf16.gmra.mxu0 %v333
  %v744 = vpop.f32.mrf.mxu0
  %v745 = vadd.f32 0.0, %v744
  %v746 = vpop.f32.mrf.mxu0
  %v747 = vpop.f32.mrf.mxu0
  %v748 = vadd.f32 0.0, %v747
  %v749 = vpop.f32.mrf.mxu0
  %750 = vmatprep.mubr.bf16.mxu0 %v511
  %751 = vmatmul.mubr.bf16.gmra.mxu0 %v335
  %v752 = vpop.f32.mrf.mxu0
  %v753 = vadd.f32 0.0, %v752
  %v754 = vpop.f32.mrf.mxu0
  %v755 = vpop.f32.mrf.mxu0
  %v756 = vadd.f32 0.0, %v755
  %v757 = vpop.f32.mrf.mxu0
  %758 = vmatprep.mubr.bf16.mxu0 %v514
  %759 = vmatmul.mubr.bf16.gmra.mxu0 %v337
  %v760 = vpop.f32.mrf.mxu0
  %v761 = vadd.f32 0.0, %v760
  %v762 = vpop.f32.mrf.mxu0
  %v763 = vpop.f32.mrf.mxu0
  %v764 = vadd.f32 0.0, %v763
  %v765 = vpop.f32.mrf.mxu0
  %766 = vmatprep.mubr.bf16.mxu0 %v517
  %767 = vmatmul.mubr.bf16.gmra.mxu0 %v339
  %v768 = vpop.f32.mrf.mxu0
  %v769 = vadd.f32 0.0, %v768
  %v770 = vpop.f32.mrf.mxu0
  %v771 = vpop.f32.mrf.mxu0
  %v772 = vadd.f32 0.0, %v771
  %v773 = vpop.f32.mrf.mxu0
  %774 = vmatprep.mubr.bf16.mxu0 %v520
  %775 = vmatmul.mubr.bf16.gmra.mxu0 %v341
  %v776 = vpop.f32.mrf.mxu0
  %v777 = vadd.f32 0.0, %v776
  %v778 = vpop.f32.mrf.mxu0
  %v779 = vpop.f32.mrf.mxu0
  %v780 = vadd.f32 0.0, %v779
  %v781 = vpop.f32.mrf.mxu0
  %782 = vmatprep.mubr.bf16.mxu0 %v523
  %783 = vmatmul.mubr.bf16.gmra.mxu0 %v343
  %v784 = vpop.f32.mrf.mxu0
  %v785 = vadd.f32 0.0, %v784
  %v786 = vpop.f32.mrf.mxu0
  %v787 = vpop.f32.mrf.mxu0
  %v788 = vadd.f32 0.0, %v787
  %v789 = vpop.f32.mrf.mxu0
  %790 = vmatprep.mubr.bf16.mxu0 %v526
  %791 = vmatmul.mubr.bf16.gmra.mxu0 %v345
  %v792 = vpop.f32.mrf.mxu0
  %v793 = vadd.f32 0.0, %v792
  %v794 = vpop.f32.mrf.mxu0
  %v795 = vpop.f32.mrf.mxu0
  %v796 = vadd.f32 0.0, %v795
  %v797 = vpop.f32.mrf.mxu0
  %798 = vmatprep.mubr.bf16.mxu0 %v529
  %799 = vmatmul.mubr.bf16.gmra.mxu0 %v347
  %v800 = vpop.f32.mrf.mxu0
  %v801 = vadd.f32 0.0, %v800
  %v802 = vpop.f32.mrf.mxu0
  %v803 = vpop.f32.mrf.mxu0
  %v804 = vadd.f32 0.0, %v803
  %v805 = vpop.f32.mrf.mxu0
  %806 = vmatprep.mubr.bf16.mxu0 %v532
  %807 = vmatmul.mubr.bf16.gmra.mxu0 %v349
  %v808 = vpop.f32.mrf.mxu0
  %v809 = vadd.f32 0.0, %v808
  %v810 = vpop.f32.mrf.mxu0
  %v811 = vpop.f32.mrf.mxu0
  %v812 = vadd.f32 0.0, %v811
  %v813 = vpop.f32.mrf.mxu0
  %814 = vmatprep.mubr.bf16.mxu0 %v535
  %815 = vmatmul.mubr.bf16.gmra.mxu0 %v351
  %v816 = vpop.f32.mrf.mxu0
  %v817 = vadd.f32 0.0, %v816
  %v818 = vpop.f32.mrf.mxu0
  %v819 = vpop.f32.mrf.mxu0
  %v820 = vadd.f32 0.0, %v819
  %v821 = vpop.f32.mrf.mxu0
  %822 = vmatprep.mubr.bf16.mxu0 %v538
  %823 = vmatmul.mubr.bf16.gmra.mxu0 %v353
  %v824 = vpop.f32.mrf.mxu0
  %v825 = vadd.f32 0.0, %v824
  %v826 = vpop.f32.mrf.mxu0
  %v827 = vpop.f32.mrf.mxu0
  %v828 = vadd.f32 0.0, %v827
  %v829 = vpop.f32.mrf.mxu0
  %830 = vmatprep.mubr.bf16.mxu0 %v541
  %831 = vmatmul.mubr.bf16.gmra.mxu0 %v355
  %v832 = vpop.f32.mrf.mxu0
  %v833 = vadd.f32 0.0, %v832
  %v834 = vpop.f32.mrf.mxu0
  %v835 = vpop.f32.mrf.mxu0
  %v836 = vadd.f32 0.0, %v835
  %v837 = vpop.f32.mrf.mxu0
  %838 = vdwg.mxu0
  %v839 = vld [vmem:[%s2] sm:$0x1]
  %v841 = vlaneseq
  %v842 = vshrl.u32 %v841, 7
  %v843 = vsub.s32 0, %v842
  %v844 = vrot.slane %v839, %v843
  %v846 = vmul.f32 %v585, %v844
  %v847 = vmul.f32 %v588, %v844
  %v848 = vmul.f32 %v593, %v844
  %v849 = vmul.f32 %v596, %v844
  %v850 = vmul.f32 %v601, %v844
  %v851 = vmul.f32 %v604, %v844
  %v852 = vmul.f32 %v609, %v844
  %v853 = vmul.f32 %v612, %v844
  %v854 = vmul.f32 %v617, %v844
  %v855 = vmul.f32 %v620, %v844
  %v856 = vmul.f32 %v625, %v844
  %v857 = vmul.f32 %v628, %v844
  %v858 = vmul.f32 %v633, %v844
  %v859 = vmul.f32 %v636, %v844
  %v860 = vmul.f32 %v641, %v844
  %v861 = vmul.f32 %v644, %v844
  %v862 = vmul.f32 %v649, %v844
  %v863 = vmul.f32 %v652, %v844
  %v864 = vmul.f32 %v657, %v844
  %v865 = vmul.f32 %v660, %v844
  %v866 = vmul.f32 %v665, %v844
  %v867 = vmul.f32 %v668, %v844
  %v868 = vmul.f32 %v673, %v844
  %v869 = vmul.f32 %v676, %v844
  %v870 = vmul.f32 %v681, %v844
  %v871 = vmul.f32 %v684, %v844
  %v872 = vmul.f32 %v689, %v844
  %v873 = vmul.f32 %v692, %v844
  %v874 = vmul.f32 %v697, %v844
  %v875 = vmul.f32 %v700, %v844
  %v876 = vmul.f32 %v705, %v844
  %v877 = vmul.f32 %v708, %v844
  %v878 = vmul.f32 %v713, %v844
  %v879 = vmul.f32 %v716, %v844
  %v880 = vmul.f32 %v721, %v844
  %v881 = vmul.f32 %v724, %v844
  %v882 = vmul.f32 %v729, %v844
  %v883 = vmul.f32 %v732, %v844
  %v884 = vmul.f32 %v737, %v844
  %v885 = vmul.f32 %v740, %v844
  %v886 = vmul.f32 %v745, %v844
  %v887 = vmul.f32 %v748, %v844
  %v888 = vmul.f32 %v753, %v844
  %v889 = vmul.f32 %v756, %v844
  %v890 = vmul.f32 %v761, %v844
  %v891 = vmul.f32 %v764, %v844
  %v892 = vmul.f32 %v769, %v844
  %v893 = vmul.f32 %v772, %v844
  %v894 = vmul.f32 %v777, %v844
  %v895 = vmul.f32 %v780, %v844
  %v896 = vmul.f32 %v785, %v844
  %v897 = vmul.f32 %v788, %v844
  %v898 = vmul.f32 %v793, %v844
  %v899 = vmul.f32 %v796, %v844
  %v900 = vmul.f32 %v801, %v844
  %v901 = vmul.f32 %v804, %v844
  %v902 = vmul.f32 %v809, %v844
  %v903 = vmul.f32 %v812, %v844
  %v904 = vmul.f32 %v817, %v844
  %v905 = vmul.f32 %v820, %v844
  %v906 = vmul.f32 %v825, %v844
  %v907 = vmul.f32 %v828, %v844
  %v908 = vmul.f32 %v833, %v844
  %v909 = vmul.f32 %v836, %v844
  %v910 = vld [vmem:[%s3] sm:$0x1]
  %v912 = vlaneseq
  %v913 = vshrl.u32 %v912, 7
  %v914 = vsub.s32 0, %v913
  %v915 = vrot.slane %v910, %v914
  %v917 = vadd.f32 %v846, %v915
  %v918 = vadd.f32 %v847, %v915
  %v919 = vadd.f32 %v848, %v915
  %v920 = vadd.f32 %v849, %v915
  %v921 = vadd.f32 %v850, %v915
  %v922 = vadd.f32 %v851, %v915
  %v923 = vadd.f32 %v852, %v915
  %v924 = vadd.f32 %v853, %v915
  %v925 = vadd.f32 %v854, %v915
  %v926 = vadd.f32 %v855, %v915
  %v927 = vadd.f32 %v856, %v915
  %v928 = vadd.f32 %v857, %v915
  %v929 = vadd.f32 %v858, %v915
  %v930 = vadd.f32 %v859, %v915
  %v931 = vadd.f32 %v860, %v915
  %v932 = vadd.f32 %v861, %v915
  %v933 = vadd.f32 %v862, %v915
  %v934 = vadd.f32 %v863, %v915
  %v935 = vadd.f32 %v864, %v915
  %v936 = vadd.f32 %v865, %v915
  %v937 = vadd.f32 %v866, %v915
  %v938 = vadd.f32 %v867, %v915
  %v939 = vadd.f32 %v868, %v915
  %v940 = vadd.f32 %v869, %v915
  %v941 = vadd.f32 %v870, %v915
  %v942 = vadd.f32 %v871, %v915
  %v943 = vadd.f32 %v872, %v915
  %v944 = vadd.f32 %v873, %v915
  %v945 = vadd.f32 %v874, %v915
  %v946 = vadd.f32 %v875, %v915
  %v947 = vadd.f32 %v876, %v915
  %v948 = vadd.f32 %v877, %v915
  %v949 = vadd.f32 %v878, %v915
  %v950 = vadd.f32 %v879, %v915
  %v951 = vadd.f32 %v880, %v915
  %v952 = vadd.f32 %v881, %v915
  %v953 = vadd.f32 %v882, %v915
  %v954 = vadd.f32 %v883, %v915
  %v955 = vadd.f32 %v884, %v915
  %v956 = vadd.f32 %v885, %v915
  %v957 = vadd.f32 %v886, %v915
  %v958 = vadd.f32 %v887, %v915
  %v959 = vadd.f32 %v888, %v915
  %v960 = vadd.f32 %v889, %v915
  %v961 = vadd.f32 %v890, %v915
  %v962 = vadd.f32 %v891, %v915
  %v963 = vadd.f32 %v892, %v915
  %v964 = vadd.f32 %v893, %v915
  %v965 = vadd.f32 %v894, %v915
  %v966 = vadd.f32 %v895, %v915
  %v967 = vadd.f32 %v896, %v915
  %v968 = vadd.f32 %v897, %v915
  %v969 = vadd.f32 %v898, %v915
  %v970 = vadd.f32 %v899, %v915
  %v971 = vadd.f32 %v900, %v915
  %v972 = vadd.f32 %v901, %v915
  %v973 = vadd.f32 %v902, %v915
  %v974 = vadd.f32 %v903, %v915
  %v975 = vadd.f32 %v904, %v915
  %v976 = vadd.f32 %v905, %v915
  %v977 = vadd.f32 %v906, %v915
  %v978 = vadd.f32 %v907, %v915
  %v979 = vadd.f32 %v908, %v915
  %v980 = vadd.f32 %v909, %v915
  %v981 = vmax.f32 %v917, 0.0
  %v982 = vmax.f32 %v918, 0.0
  %v983 = vmax.f32 %v919, 0.0
  %v984 = vmax.f32 %v920, 0.0
  %v985 = vmax.f32 %v921, 0.0
  %v986 = vmax.f32 %v922, 0.0
  %v987 = vmax.f32 %v923, 0.0
  %v988 = vmax.f32 %v924, 0.0
  %v989 = vmax.f32 %v925, 0.0
  %v990 = vmax.f32 %v926, 0.0
  %v991 = vmax.f32 %v927, 0.0
  %v992 = vmax.f32 %v928, 0.0
  %v993 = vmax.f32 %v929, 0.0
  %v994 = vmax.f32 %v930, 0.0
  %v995 = vmax.f32 %v931, 0.0
  %v996 = vmax.f32 %v932, 0.0
  %v997 = vmax.f32 %v933, 0.0
  %v998 = vmax.f32 %v934, 0.0
  %v999 = vmax.f32 %v935, 0.0
  %v1000 = vmax.f32 %v936, 0.0
  %v1001 = vmax.f32 %v937, 0.0
  %v1002 = vmax.f32 %v938, 0.0
  %v1003 = vmax.f32 %v939, 0.0
  %v1004 = vmax.f32 %v940, 0.0
  %v1005 = vmax.f32 %v941, 0.0
  %v1006 = vmax.f32 %v942, 0.0
  %v1007 = vmax.f32 %v943, 0.0
  %v1008 = vmax.f32 %v944, 0.0
  %v1009 = vmax.f32 %v945, 0.0
  %v1010 = vmax.f32 %v946, 0.0
  %v1011 = vmax.f32 %v947, 0.0
  %v1012 = vmax.f32 %v948, 0.0
  %v1013 = vmax.f32 %v949, 0.0
  %v1014 = vmax.f32 %v950, 0.0
  %v1015 = vmax.f32 %v951, 0.0
  %v1016 = vmax.f32 %v952, 0.0
  %v1017 = vmax.f32 %v953, 0.0
  %v1018 = vmax.f32 %v954, 0.0
  %v1019 = vmax.f32 %v955, 0.0
  %v1020 = vmax.f32 %v956, 0.0
  %v1021 = vmax.f32 %v957, 0.0
  %v1022 = vmax.f32 %v958, 0.0
  %v1023 = vmax.f32 %v959, 0.0
  %v1024 = vmax.f32 %v960, 0.0
  %v1025 = vmax.f32 %v961, 0.0
  %v1026 = vmax.f32 %v962, 0.0
  %v1027 = vmax.f32 %v963, 0.0
  %v1028 = vmax.f32 %v964, 0.0
  %v1029 = vmax.f32 %v965, 0.0
  %v1030 = vmax.f32 %v966, 0.0
  %v1031 = vmax.f32 %v967, 0.0
  %v1032 = vmax.f32 %v968, 0.0
  %v1033 = vmax.f32 %v969, 0.0
  %v1034 = vmax.f32 %v970, 0.0
  %v1035 = vmax.f32 %v971, 0.0
  %v1036 = vmax.f32 %v972, 0.0
  %v1037 = vmax.f32 %v973, 0.0
  %v1038 = vmax.f32 %v974, 0.0
  %v1039 = vmax.f32 %v975, 0.0
  %v1040 = vmax.f32 %v976, 0.0
  %v1041 = vmax.f32 %v977, 0.0
  %v1042 = vmax.f32 %v978, 0.0
  %v1043 = vmax.f32 %v979, 0.0
  %v1044 = vmax.f32 %v980, 0.0
  %vm1045 = vcmask 31744
  %1046 = vst.msk [vmem:[%s4] sm:$0xff] %vm1045, %v981
  %1047 = vst.msk [vmem:[%s4 + $0x8] sm:$0xff] %vm1045, %v982
  %1048 = vst.msk [vmem:[%s4 + $0x10] sm:$0xff] %vm1045, %v983
  %1049 = vst.msk [vmem:[%s4 + $0x18] sm:$0xff] %vm1045, %v984
  %1050 = vst.msk [vmem:[%s4 + $0x20] sm:$0xff] %vm1045, %v985
  %1051 = vst.msk [vmem:[%s4 + $0x28] sm:$0xff] %vm1045, %v986
  %1052 = vst.msk [vmem:[%s4 + $0x30] sm:$0xff] %vm1045, %v987
  %1053 = vst.msk [vmem:[%s4 + $0x38] sm:$0xff] %vm1045, %v988
  %1054 = vst.msk [vmem:[%s4 + $0x40] sm:$0xff] %vm1045, %v989
  %1055 = vst.msk [vmem:[%s4 + $0x48] sm:$0xff] %vm1045, %v990
  %1056 = vst.msk [vmem:[%s4 + $0x50] sm:$0xff] %vm1045, %v991
  %1057 = vst.msk [vmem:[%s4 + $0x58] sm:$0xff] %vm1045, %v992
  %1058 = vst.msk [vmem:[%s4 + $0x60] sm:$0xff] %vm1045, %v993
  %1059 = vst.msk [vmem:[%s4 + $0x68] sm:$0xff] %vm1045, %v994
  %1060 = vst.msk [vmem:[%s4 + $0x70] sm:$0xff] %vm1045, %v995
  %1061 = vst.msk [vmem:[%s4 + $0x78] sm:$0xff] %vm1045, %v996
  %1062 = vst.msk [vmem:[%s4 + $0x80] sm:$0xff] %vm1045, %v997
  %1063 = vst.msk [vmem:[%s4 + $0x88] sm:$0xff] %vm1045, %v998
  %1064 = vst.msk [vmem:[%s4 + $0x90] sm:$0xff] %vm1045, %v999
  %1065 = vst.msk [vmem:[%s4 + $0x98] sm:$0xff] %vm1045, %v1000
  %1066 = vst.msk [vmem:[%s4 + $0xa0] sm:$0xff] %vm1045, %v1001
  %1067 = vst.msk [vmem:[%s4 + $0xa8] sm:$0xff] %vm1045, %v1002
  %1068 = vst.msk [vmem:[%s4 + $0xb0] sm:$0xff] %vm1045, %v1003
  %1069 = vst.msk [vmem:[%s4 + $0xb8] sm:$0xff] %vm1045, %v1004
  %1070 = vst.msk [vmem:[%s4 + $0xc0] sm:$0xff] %vm1045, %v1005
  %1071 = vst.msk [vmem:[%s4 + $0xc8] sm:$0xff] %vm1045, %v1006
  %1072 = vst.msk [vmem:[%s4 + $0xd0] sm:$0xff] %vm1045, %v1007
  %1073 = vst.msk [vmem:[%s4 + $0xd8] sm:$0xff] %vm1045, %v1008
  %1074 = vst.msk [vmem:[%s4 + $0xe0] sm:$0xff] %vm1045, %v1009
  %1075 = vst.msk [vmem:[%s4 + $0xe8] sm:$0xff] %vm1045, %v1010
  %1076 = vst.msk [vmem:[%s4 + $0xf0] sm:$0xff] %vm1045, %v1011
  %1077 = vst.msk [vmem:[%s4 + $0xf8] sm:$0xff] %vm1045, %v1012
  %1078 = vst.msk [vmem:[%s4 + $0x100] sm:$0xff] %vm1045, %v1013
  %1079 = vst.msk [vmem:[%s4 + $0x108] sm:$0xff] %vm1045, %v1014
  %1080 = vst.msk [vmem:[%s4 + $0x110] sm:$0xff] %vm1045, %v1015
  %1081 = vst.msk [vmem:[%s4 + $0x118] sm:$0xff] %vm1045, %v1016
  %1082 = vst.msk [vmem:[%s4 + $0x120] sm:$0xff] %vm1045, %v1017
  %1083 = vst.msk [vmem:[%s4 + $0x128] sm:$0xff] %vm1045, %v1018
  %1084 = vst.msk [vmem:[%s4 + $0x130] sm:$0xff] %vm1045, %v1019
  %1085 = vst.msk [vmem:[%s4 + $0x138] sm:$0xff] %vm1045, %v1020
  %1086 = vst.msk [vmem:[%s4 + $0x140] sm:$0xff] %vm1045, %v1021
  %1087 = vst.msk [vmem:[%s4 + $0x148] sm:$0xff] %vm1045, %v1022
  %1088 = vst.msk [vmem:[%s4 + $0x150] sm:$0xff] %vm1045, %v1023
  %1089 = vst.msk [vmem:[%s4 + $0x158] sm:$0xff] %vm1045, %v1024
  %1090 = vst.msk [vmem:[%s4 + $0x160] sm:$0xff] %vm1045, %v1025
  %1091 = vst.msk [vmem:[%s4 + $0x168] sm:$0xff] %vm1045, %v1026
  %1092 = vst.msk [vmem:[%s4 + $0x170] sm:$0xff] %vm1045, %v1027
  %1093 = vst.msk [vmem:[%s4 + $0x178] sm:$0xff] %vm1045, %v1028
  %1094 = vst.msk [vmem:[%s4 + $0x180] sm:$0xff] %vm1045, %v1029
  %1095 = vst.msk [vmem:[%s4 + $0x188] sm:$0xff] %vm1045, %v1030
  %1096 = vst.msk [vmem:[%s4 + $0x190] sm:$0xff] %vm1045, %v1031
  %1097 = vst.msk [vmem:[%s4 + $0x198] sm:$0xff] %vm1045, %v1032
  %1098 = vst.msk [vmem:[%s4 + $0x1a0] sm:$0xff] %vm1045, %v1033
  %1099 = vst.msk [vmem:[%s4 + $0x1a8] sm:$0xff] %vm1045, %v1034
  %1100 = vst.msk [vmem:[%s4 + $0x1b0] sm:$0xff] %vm1045, %v1035
  %1101 = vst.msk [vmem:[%s4 + $0x1b8] sm:$0xff] %vm1045, %v1036
  %1102 = vst.msk [vmem:[%s4 + $0x1c0] sm:$0xff] %vm1045, %v1037
  %1103 = vst.msk [vmem:[%s4 + $0x1c8] sm:$0xff] %vm1045, %v1038
  %1104 = vst.msk [vmem:[%s4 + $0x1d0] sm:$0xff] %vm1045, %v1039
  %1105 = vst.msk [vmem:[%s4 + $0x1d8] sm:$0xff] %vm1045, %v1040
  %1106 = vst.msk [vmem:[%s4 + $0x1e0] sm:$0xff] %vm1045, %v1041
  %1107 = vst.msk [vmem:[%s4 + $0x1e8] sm:$0xff] %vm1045, %v1042
  %1108 = vst.msk [vmem:[%s4 + $0x1f0] sm:$0xff] %vm1045, %v1043
  %1109 = vst.msk [vmem:[%s4 + $0x1f8] sm:$0xff] %vm1045, %v1044
  // Predicated region
  $region18: #{run.39} parent=0 // pred_check
    _
  $region19: #{run.39} parent=0 // pred_check_branch
    %1111 = sbr.rel (0) target = $region21
  $region20: #{run.39} parent=0 // pred_region
    _
  $region21: #{run.39} parent=0 // pred_fallthru
    _
  // Predicated region
  $region22: #{run.39} parent=0 // pred_check
    _
  $region23: #{run.39} parent=0 // pred_check_branch
    %1113 = sbr.rel (0) target = $region25
  $region24: #{run.39} parent=0 // pred_region
    _
  $region25: #{run.39} parent=0 // pred_fallthru
    _

// kernel: run.40
$region0: #{run.40}
  #allocation0 [shape = 'u32[]', space=smem, size = 0x4, offset = 0x4, fixed_abs, tag = 'smem constant byte address 0x4 - core index']
  #allocation1 [shape = 'u32[144,128]{1,0:T(1,128)}', space=vmem, size = 0x12000, scoped, tag = 'internal scratch']
  %s0 = inlined_call_operand.vmem [shape: bf16[512,36], index: 0, kind: input, shape index: {}]
  %s1 = inlined_call_operand.vmem [shape: bf16[36,4], index: 1, kind: input, shape index: {}]
  %s2 = inlined_call_operand.vmem [shape: f32[1,4], index: 2, kind: input, shape index: {}]
  %s3 = inlined_call_operand.vmem [shape: f32[1,4], index: 3, kind: input, shape index: {}]
  %s4 = inlined_call_operand.vmem [shape: f32[512,4], index: 4, kind: output, shape index: {}]
  %s5 = sld [smem:[#allocation0]]
  $region26: #{run.40} parent=0
    _
  %s7 = ssub.s32 1, %s5
  %s8 = scalar_select 0, %s7, %s5
  // Predicated region
  $region2: #{run.40} parent=0 // pred_check
    _
  $region3: #{run.40} parent=0 // pred_check_branch
    %10 = sbr.rel (0) target = $region5
  $region4: #{run.40} parent=0 // pred_region
    _
  $region5: #{run.40} parent=0 // pred_fallthru
    _
  // Predicated region
  $region6: #{run.40} parent=0 // pred_check
    _
  $region7: #{run.40} parent=0 // pred_check_branch
    %12 = sbr.rel (0) target = $region9
  $region8: #{run.40} parent=0 // pred_region
    _
  $region9: #{run.40} parent=0 // pred_fallthru
    _
  // Predicated region
  $region10: #{run.40} parent=0 // pred_check
    _
  $region11: #{run.40} parent=0 // pred_check_branch
    %14 = sbr.rel (0) target = $region13
  $region12: #{run.40} parent=0 // pred_region
    _
  $region13: #{run.40} parent=0 // pred_fallthru
    _
  // Predicated region
  $region14: #{run.40} parent=0 // pred_check
    _
  $region15: #{run.40} parent=0 // pred_check_branch
    %16 = sbr.rel (0) target = $region17
  $region16: #{run.40} parent=0 // pred_region
    _
  $region17: #{run.40} parent=0 // pred_fallthru
    _
  %v18 = vld [vmem:[%s0] sm:$0xf]
  %v19 = vld [vmem:[%s0 + $0x4] sm:$0xf]
  %v20 = vld [vmem:[%s0 + $0x8] sm:$0xf]
  %v21 = vld [vmem:[%s0 + $0xc] sm:$0xf]
  %v22 = vld [vmem:[%s0 + $0x10] sm:$0xf]
  %v23 = vld [vmem:[%s0 + $0x14] sm:$0xf]
  %v24 = vld [vmem:[%s0 + $0x18] sm:$0xf]
  %v25 = vld [vmem:[%s0 + $0x1c] sm:$0xf]
  %v26 = vld [vmem:[%s0 + $0x20] sm:$0xf]
  %v27 = vld [vmem:[%s0 + $0x24] sm:$0xf]
  %v28 = vld [vmem:[%s0 + $0x28] sm:$0xf]
  %v29 = vld [vmem:[%s0 + $0x2c] sm:$0xf]
  %v30 = vld [vmem:[%s0 + $0x30] sm:$0xf]
  %v31 = vld [vmem:[%s0 + $0x34] sm:$0xf]
  %v32 = vld [vmem:[%s0 + $0x38] sm:$0xf]
  %v33 = vld [vmem:[%s0 + $0x3c] sm:$0xf]
  %v34 = vld [vmem:[%s0 + $0x40] sm:$0xf]
  %v35 = vld [vmem:[%s0 + $0x44] sm:$0xf]
  %v36 = vld [vmem:[%s0 + $0x48] sm:$0xf]
  %v37 = vld [vmem:[%s0 + $0x4c] sm:$0xf]
  %v38 = vld [vmem:[%s0 + $0x50] sm:$0xf]
  %v39 = vld [vmem:[%s0 + $0x54] sm:$0xf]
  %v40 = vld [vmem:[%s0 + $0x58] sm:$0xf]
  %v41 = vld [vmem:[%s0 + $0x5c] sm:$0xf]
  %v42 = vld [vmem:[%s0 + $0x60] sm:$0xf]
  %v43 = vld [vmem:[%s0 + $0x64] sm:$0xf]
  %v44 = vld [vmem:[%s0 + $0x68] sm:$0xf]
  %v45 = vld [vmem:[%s0 + $0x6c] sm:$0xf]
  %v46 = vld [vmem:[%s0 + $0x70] sm:$0xf]
  %v47 = vld [vmem:[%s0 + $0x74] sm:$0xf]
  %v48 = vld [vmem:[%s0 + $0x78] sm:$0xf]
  %v49 = vld [vmem:[%s0 + $0x7c] sm:$0xf]
  %v50 = vld [vmem:[%s0 + $0x80] sm:$0xf]
  %v51 = vld [vmem:[%s0 + $0x84] sm:$0xf]
  %v52 = vld [vmem:[%s0 + $0x88] sm:$0xf]
  %v53 = vld [vmem:[%s0 + $0x8c] sm:$0xf]
  %v54 = vld [vmem:[%s0 + $0x90] sm:$0xf]
  %v55 = vld [vmem:[%s0 + $0x94] sm:$0xf]
  %v56 = vld [vmem:[%s0 + $0x98] sm:$0xf]
  %v57 = vld [vmem:[%s0 + $0x9c] sm:$0xf]
  %v58 = vld [vmem:[%s0 + $0xa0] sm:$0xf]
  %v59 = vld [vmem:[%s0 + $0xa4] sm:$0xf]
  %v60 = vld [vmem:[%s0 + $0xa8] sm:$0xf]
  %v61 = vld [vmem:[%s0 + $0xac] sm:$0xf]
  %v62 = vld [vmem:[%s0 + $0xb0] sm:$0xf]
  %v63 = vld [vmem:[%s0 + $0xb4] sm:$0xf]
  %v64 = vld [vmem:[%s0 + $0xb8] sm:$0xf]
  %v65 = vld [vmem:[%s0 + $0xbc] sm:$0xf]
  %v66 = vld [vmem:[%s0 + $0xc0] sm:$0xf]
  %v67 = vld [vmem:[%s0 + $0xc4] sm:$0xf]
  %v68 = vld [vmem:[%s0 + $0xc8] sm:$0xf]
  %v69 = vld [vmem:[%s0 + $0xcc] sm:$0xf]
  %v70 = vld [vmem:[%s0 + $0xd0] sm:$0xf]
  %v71 = vld [vmem:[%s0 + $0xd4] sm:$0xf]
  %v72 = vld [vmem:[%s0 + $0xd8] sm:$0xf]
  %v73 = vld [vmem:[%s0 + $0xdc] sm:$0xf]
  %v74 = vld [vmem:[%s0 + $0xe0] sm:$0xf]
  %v75 = vld [vmem:[%s0 + $0xe4] sm:$0xf]
  %v76 = vld [vmem:[%s0 + $0xe8] sm:$0xf]
  %v77 = vld [vmem:[%s0 + $0xec] sm:$0xf]
  %v78 = vld [vmem:[%s0 + $0xf0] sm:$0xf]
  %v79 = vld [vmem:[%s0 + $0xf4] sm:$0xf]
  %v80 = vld [vmem:[%s0 + $0xf8] sm:$0xf]
  %v81 = vld [vmem:[%s0 + $0xfc] sm:$0xf]
  %v82 = vld [vmem:[%s1] sm:$0xf]
  %v83 = vld [vmem:[%s1 + $0x4] sm:$0xf]
  %v84 = vld [vmem:[%s1 + $0x8] sm:$0xf]
  %v85 = vld [vmem:[%s1 + $0xc] sm:$0xf]
  %v86 = vld [vmem:[%s1 + $0x10] sm:$0x3]
  %v151 = vunpack.c.l.b16 %v18
  %v152 = vunpack.c.l.b16 %v19
  %v153 = vunpack.c.l.b16 %v20
  %v154 = vunpack.c.l.b16 %v21
  %v155 = vunpack.c.l.b16 %v22
  %v156 = vunpack.c.l.b16 %v23
  %v157 = vunpack.c.l.b16 %v24
  %v158 = vunpack.c.l.b16 %v25
  %v159 = vunpack.c.l.b16 %v26
  %v160 = vunpack.c.l.b16 %v27
  %v161 = vunpack.c.l.b16 %v28
  %v162 = vunpack.c.l.b16 %v29
  %v163 = vunpack.c.l.b16 %v30
  %v164 = vunpack.c.l.b16 %v31
  %v165 = vunpack.c.l.b16 %v32
  %v166 = vunpack.c.l.b16 %v33
  %v167 = vunpack.c.l.b16 %v34
  %v168 = vunpack.c.l.b16 %v35
  %v169 = vunpack.c.l.b16 %v36
  %v170 = vunpack.c.l.b16 %v37
  %v171 = vunpack.c.l.b16 %v38
  %v172 = vunpack.c.l.b16 %v39
  %v173 = vunpack.c.l.b16 %v40
  %v174 = vunpack.c.l.b16 %v41
  %v175 = vunpack.c.l.b16 %v42
  %v176 = vunpack.c.l.b16 %v43
  %v177 = vunpack.c.l.b16 %v44
  %v178 = vunpack.c.l.b16 %v45
  %v179 = vunpack.c.l.b16 %v46
  %v180 = vunpack.c.l.b16 %v47
  %v181 = vunpack.c.l.b16 %v48
  %v182 = vunpack.c.l.b16 %v49
  %v183 = vunpack.c.l.b16 %v50
  %v184 = vunpack.c.l.b16 %v51
  %v185 = vunpack.c.l.b16 %v52
  %v186 = vunpack.c.l.b16 %v53
  %v187 = vunpack.c.l.b16 %v54
  %v188 = vunpack.c.l.b16 %v55
  %v189 = vunpack.c.l.b16 %v56
  %v190 = vunpack.c.l.b16 %v57
  %v191 = vunpack.c.l.b16 %v58
  %v192 = vunpack.c.l.b16 %v59
  %v193 = vunpack.c.l.b16 %v60
  %v194 = vunpack.c.l.b16 %v61
  %v195 = vunpack.c.l.b16 %v62
  %v196 = vunpack.c.l.b16 %v63
  %v197 = vunpack.c.l.b16 %v64
  %v198 = vunpack.c.l.b16 %v65
  %v199 = vunpack.c.l.b16 %v66
  %v200 = vunpack.c.l.b16 %v67
  %v201 = vunpack.c.l.b16 %v68
  %v202 = vunpack.c.l.b16 %v69
  %v203 = vunpack.c.l.b16 %v70
  %v204 = vunpack.c.l.b16 %v71
  %v205 = vunpack.c.l.b16 %v72
  %v206 = vunpack.c.l.b16 %v73
  %v207 = vunpack.c.l.b16 %v74
  %v208 = vunpack.c.l.b16 %v75
  %v209 = vunpack.c.l.b16 %v76
  %v210 = vunpack.c.l.b16 %v77
  %v211 = vunpack.c.l.b16 %v78
  %v212 = vunpack.c.l.b16 %v79
  %v213 = vunpack.c.l.b16 %v80
  %v214 = vunpack.c.l.b16 %v81
  %v215 = vpack.c.b16 %v152, %v151
  %v216 = vpack.c.b16 %v154, %v153
  %v217 = vpack.c.b16 %v156, %v155
  %v218 = vpack.c.b16 %v158, %v157
  %v219 = vpack.c.b16 %v160, %v159
  %v220 = vpack.c.b16 %v162, %v161
  %v221 = vpack.c.b16 %v164, %v163
  %v222 = vpack.c.b16 %v166, %v165
  %v223 = vpack.c.b16 %v168, %v167
  %v224 = vpack.c.b16 %v170, %v169
  %v225 = vpack.c.b16 %v172, %v171
  %v226 = vpack.c.b16 %v174, %v173
  %v227 = vpack.c.b16 %v176, %v175
  %v228 = vpack.c.b16 %v178, %v177
  %v229 = vpack.c.b16 %v180, %v179
  %v230 = vpack.c.b16 %v182, %v181
  %v231 = vpack.c.b16 %v184, %v183
  %v232 = vpack.c.b16 %v186, %v185
  %v233 = vpack.c.b16 %v188, %v187
  %v234 = vpack.c.b16 %v190, %v189
  %v235 = vpack.c.b16 %v192, %v191
  %v236 = vpack.c.b16 %v194, %v193
  %v237 = vpack.c.b16 %v196, %v195
  %v238 = vpack.c.b16 %v198, %v197
  %v239 = vpack.c.b16 %v200, %v199
  %v240 = vpack.c.b16 %v202, %v201
  %v241 = vpack.c.b16 %v204, %v203
  %v242 = vpack.c.b16 %v206, %v205
  %v243 = vpack.c.b16 %v208, %v207
  %v244 = vpack.c.b16 %v210, %v209
  %v245 = vpack.c.b16 %v212, %v211
  %v246 = vpack.c.b16 %v214, %v213
  %v252 = vunpack.c.l.b16 %v82
  %v253 = vunpack.c.l.b16 %v83
  %v254 = vunpack.c.l.b16 %v84
  %v255 = vunpack.c.l.b16 %v85
  %v256 = vunpack.c.l.b16 %v86
  %v257 = vpack.c.b16 %v253, %v252
  %v258 = vpack.c.b16 %v255, %v254
  %v259 = vpack.c.b16 %v256, %v256
  %vm262 = vcmask 293888
  %v264 = vsel %vm262, %v215, 0
  %v267 = vsel %vm262, %v216, 0
  %v270 = vsel %vm262, %v217, 0
  %v273 = vsel %vm262, %v218, 0
  %v276 = vsel %vm262, %v219, 0
  %v279 = vsel %vm262, %v220, 0
  %v282 = vsel %vm262, %v221, 0
  %v285 = vsel %vm262, %v222, 0
  %v288 = vsel %vm262, %v223, 0
  %v291 = vsel %vm262, %v224, 0
  %v294 = vsel %vm262, %v225, 0
  %v297 = vsel %vm262, %v226, 0
  %v300 = vsel %vm262, %v227, 0
  %v303 = vsel %vm262, %v228, 0
  %v306 = vsel %vm262, %v229, 0
  %v309 = vsel %vm262, %v230, 0
  %v312 = vsel %vm262, %v231, 0
  %v315 = vsel %vm262, %v232, 0
  %v318 = vsel %vm262, %v233, 0
  %v321 = vsel %vm262, %v234, 0
  %v324 = vsel %vm262, %v235, 0
  %v327 = vsel %vm262, %v236, 0
  %v330 = vsel %vm262, %v237, 0
  %v333 = vsel %vm262, %v238, 0
  %v336 = vsel %vm262, %v239, 0
  %v339 = vsel %vm262, %v240, 0
  %v342 = vsel %vm262, %v241, 0
  %v345 = vsel %vm262, %v242, 0
  %v348 = vsel %vm262, %v243, 0
  %v351 = vsel %vm262, %v244, 0
  %v354 = vsel %vm262, %v245, 0
  %v357 = vsel %vm262, %v246, 0
  %vm359 = vcmask 1041408
  %v361 = vsel %vm359, %v259, 0
  %363 = vmatprep.subr.bf16.mxu0 0
  %364 = vmatpush1.bf16.msra.mxu0 0
  %365 = vmatprep.subr.bf16.mxu0 0
  %366 = vmatpush1.bf16.msra.mxu0 0
  %367 = vmatprep.subr.bf16.mxu0 0
  %368 = vmatpush1.bf16.msra.mxu0 0
  %369 = vmatprep.subr.bf16.mxu0 0
  %370 = vmatpush1.bf16.msra.mxu0 0
  %371 = vmatprep.subr.bf16.mxu0 0
  %372 = vmatpush1.bf16.msra.mxu0 0
  %373 = vmatprep.subr.bf16.mxu0 0
  %374 = vmatpush1.bf16.msra.mxu0 %v361
  %375 = vmatprep.subr.bf16.mxu0 0
  %376 = vmatpush1.bf16.msra.mxu0 %v258
  %377 = vmatprep.subr.bf16.mxu0 0
  %378 = vmatpush1.bf16.msra.mxu0 %v257
  %379 = vmatprep.subr.bf16.mxu0 0
  %380 = vmatpush2.bf16.msra.mxu0 0
  %381 = vmatprep.subr.bf16.mxu0 0
  %382 = vmatpush2.bf16.msra.mxu0 0
  %383 = vmatprep.subr.bf16.mxu0 0
  %384 = vmatpush2.bf16.msra.mxu0 0
  %385 = vmatprep.subr.bf16.mxu0 0
  %386 = vmatpush2.bf16.msra.mxu0 0
  %387 = vmatprep.subr.bf16.mxu0 0
  %388 = vmatpush2.bf16.msra.mxu0 0
  %389 = vmatprep.subr.bf16.mxu0 0
  %390 = vmatpush2.bf16.msra.mxu0 0
  %391 = vmatprep.subr.bf16.mxu0 0
  %392 = vmatpush2.bf16.msra.mxu0 0
  %393 = vmatprep.subr.bf16.mxu0 0
  %394 = vmatpush2.bf16.msra.mxu0 0
  %395 = vmatprep.mubr.bf16.mxu0 0
  %396 = vmatmul.mubr.bf16.gmra.mxu0 %v264
  %v397 = vpop.f32.mrf.mxu0
  %v398 = vadd.f32 0.0, %v397
  %v399 = vpop.f32.mrf.mxu0
  %v400 = vpop.f32.mrf.mxu0
  %v401 = vadd.f32 0.0, %v400
  %v402 = vpop.f32.mrf.mxu0
  %403 = vmatprep.mubr.bf16.mxu0 0
  %404 = vmatmul.mubr.bf16.gmra.mxu0 %v267
  %v405 = vpop.f32.mrf.mxu0
  %v406 = vadd.f32 0.0, %v405
  %v407 = vpop.f32.mrf.mxu0
  %v408 = vpop.f32.mrf.mxu0
  %v409 = vadd.f32 0.0, %v408
  %v410 = vpop.f32.mrf.mxu0
  %411 = vmatprep.mubr.bf16.mxu0 0
  %412 = vmatmul.mubr.bf16.gmra.mxu0 %v270
  %v413 = vpop.f32.mrf.mxu0
  %v414 = vadd.f32 0.0, %v413
  %v415 = vpop.f32.mrf.mxu0
  %v416 = vpop.f32.mrf.mxu0
  %v417 = vadd.f32 0.0, %v416
  %v418 = vpop.f32.mrf.mxu0
  %419 = vmatprep.mubr.bf16.mxu0 0
  %420 = vmatmul.mubr.bf16.gmra.mxu0 %v273
  %v421 = vpop.f32.mrf.mxu0
  %v422 = vadd.f32 0.0, %v421
  %v423 = vpop.f32.mrf.mxu0
  %v424 = vpop.f32.mrf.mxu0
  %v425 = vadd.f32 0.0, %v424
  %v426 = vpop.f32.mrf.mxu0
  %427 = vmatprep.mubr.bf16.mxu0 0
  %428 = vmatmul.mubr.bf16.gmra.mxu0 %v276
  %v429 = vpop.f32.mrf.mxu0
  %v430 = vadd.f32 0.0, %v429
  %v431 = vpop.f32.mrf.mxu0
  %v432 = vpop.f32.mrf.mxu0
  %v433 = vadd.f32 0.0, %v432
  %v434 = vpop.f32.mrf.mxu0
  %435 = vmatprep.mubr.bf16.mxu0 0
  %436 = vmatmul.mubr.bf16.gmra.mxu0 %v279
  %v437 = vpop.f32.mrf.mxu0
  %v438 = vadd.f32 0.0, %v437
  %v439 = vpop.f32.mrf.mxu0
  %v440 = vpop.f32.mrf.mxu0
  %v441 = vadd.f32 0.0, %v440
  %v442 = vpop.f32.mrf.mxu0
  %443 = vmatprep.mubr.bf16.mxu0 0
  %444 = vmatmul.mubr.bf16.gmra.mxu0 %v282
  %v445 = vpop.f32.mrf.mxu0
  %v446 = vadd.f32 0.0, %v445
  %v447 = vpop.f32.mrf.mxu0
  %v448 = vpop.f32.mrf.mxu0
  %v449 = vadd.f32 0.0, %v448
  %v450 = vpop.f32.mrf.mxu0
  %451 = vmatprep.mubr.bf16.mxu0 0
  %452 = vmatmul.mubr.bf16.gmra.mxu0 %v285
  %v453 = vpop.f32.mrf.mxu0
  %v454 = vadd.f32 0.0, %v453
  %v455 = vpop.f32.mrf.mxu0
  %v456 = vpop.f32.mrf.mxu0
  %v457 = vadd.f32 0.0, %v456
  %v458 = vpop.f32.mrf.mxu0
  %459 = vmatprep.mubr.bf16.mxu0 0
  %460 = vmatmul.mubr.bf16.gmra.mxu0 %v288
  %v461 = vpop.f32.mrf.mxu0
  %v462 = vadd.f32 0.0, %v461
  %v463 = vpop.f32.mrf.mxu0
  %v464 = vpop.f32.mrf.mxu0
  %v465 = vadd.f32 0.0, %v464
  %v466 = vpop.f32.mrf.mxu0
  %467 = vmatprep.mubr.bf16.mxu0 0
  %468 = vmatmul.mubr.bf16.gmra.mxu0 %v291
  %v469 = vpop.f32.mrf.mxu0
  %v470 = vadd.f32 0.0, %v469
  %v471 = vpop.f32.mrf.mxu0
  %v472 = vpop.f32.mrf.mxu0
  %v473 = vadd.f32 0.0, %v472
  %v474 = vpop.f32.mrf.mxu0
  %475 = vmatprep.mubr.bf16.mxu0 0
  %476 = vmatmul.mubr.bf16.gmra.mxu0 %v294
  %v477 = vpop.f32.mrf.mxu0
  %v478 = vadd.f32 0.0, %v477
  %v479 = vpop.f32.mrf.mxu0
  %v480 = vpop.f32.mrf.mxu0
  %v481 = vadd.f32 0.0, %v480
  %v482 = vpop.f32.mrf.mxu0
  %483 = vmatprep.mubr.bf16.mxu0 0
  %484 = vmatmul.mubr.bf16.gmra.mxu0 %v297
  %v485 = vpop.f32.mrf.mxu0
  %v486 = vadd.f32 0.0, %v485
  %v487 = vpop.f32.mrf.mxu0
  %v488 = vpop.f32.mrf.mxu0
  %v489 = vadd.f32 0.0, %v488
  %v490 = vpop.f32.mrf.mxu0
  %491 = vmatprep.mubr.bf16.mxu0 0
  %492 = vmatmul.mubr.bf16.gmra.mxu0 %v300
  %v493 = vpop.f32.mrf.mxu0
  %v494 = vadd.f32 0.0, %v493
  %v495 = vpop.f32.mrf.mxu0
  %v496 = vpop.f32.mrf.mxu0
  %v497 = vadd.f32 0.0, %v496
  %v498 = vpop.f32.mrf.mxu0
  %499 = vmatprep.mubr.bf16.mxu0 0
  %500 = vmatmul.mubr.bf16.gmra.mxu0 %v303
  %v501 = vpop.f32.mrf.mxu0
  %v502 = vadd.f32 0.0, %v501
  %v503 = vpop.f32.mrf.mxu0
  %v504 = vpop.f32.mrf.mxu0
  %v505 = vadd.f32 0.0, %v504
  %v506 = vpop.f32.mrf.mxu0
  %507 = vmatprep.mubr.bf16.mxu0 0
  %508 = vmatmul.mubr.bf16.gmra.mxu0 %v306
  %v509 = vpop.f32.mrf.mxu0
  %v510 = vadd.f32 0.0, %v509
  %v511 = vpop.f32.mrf.mxu0
  %v512 = vpop.f32.mrf.mxu0
  %v513 = vadd.f32 0.0, %v512
  %v514 = vpop.f32.mrf.mxu0
  %515 = vmatprep.mubr.bf16.mxu0 0
  %516 = vmatmul.mubr.bf16.gmra.mxu0 %v309
  %v517 = vpop.f32.mrf.mxu0
  %v518 = vadd.f32 0.0, %v517
  %v519 = vpop.f32.mrf.mxu0
  %v520 = vpop.f32.mrf.mxu0
  %v521 = vadd.f32 0.0, %v520
  %v522 = vpop.f32.mrf.mxu0
  %523 = vmatprep.mubr.bf16.mxu0 0
  %524 = vmatmul.mubr.bf16.gmra.mxu0 %v312
  %v525 = vpop.f32.mrf.mxu0
  %v526 = vadd.f32 0.0, %v525
  %v527 = vpop.f32.mrf.mxu0
  %v528 = vpop.f32.mrf.mxu0
  %v529 = vadd.f32 0.0, %v528
  %v530 = vpop.f32.mrf.mxu0
  %531 = vmatprep.mubr.bf16.mxu0 0
  %532 = vmatmul.mubr.bf16.gmra.mxu0 %v315
  %v533 = vpop.f32.mrf.mxu0
  %v534 = vadd.f32 0.0, %v533
  %v535 = vpop.f32.mrf.mxu0
  %v536 = vpop.f32.mrf.mxu0
  %v537 = vadd.f32 0.0, %v536
  %v538 = vpop.f32.mrf.mxu0
  %539 = vmatprep.mubr.bf16.mxu0 0
  %540 = vmatmul.mubr.bf16.gmra.mxu0 %v318
  %v541 = vpop.f32.mrf.mxu0
  %v542 = vadd.f32 0.0, %v541
  %v543 = vpop.f32.mrf.mxu0
  %v544 = vpop.f32.mrf.mxu0
  %v545 = vadd.f32 0.0, %v544
  %v546 = vpop.f32.mrf.mxu0
  %547 = vmatprep.mubr.bf16.mxu0 0
  %548 = vmatmul.mubr.bf16.gmra.mxu0 %v321
  %v549 = vpop.f32.mrf.mxu0
  %v550 = vadd.f32 0.0, %v549
  %v551 = vpop.f32.mrf.mxu0
  %v552 = vpop.f32.mrf.mxu0
  %v553 = vadd.f32 0.0, %v552
  %v554 = vpop.f32.mrf.mxu0
  %555 = vmatprep.mubr.bf16.mxu0 0
  %556 = vmatmul.mubr.bf16.gmra.mxu0 %v324
  %v557 = vpop.f32.mrf.mxu0
  %v558 = vadd.f32 0.0, %v557
  %v559 = vpop.f32.mrf.mxu0
  %v560 = vpop.f32.mrf.mxu0
  %v561 = vadd.f32 0.0, %v560
  %v562 = vpop.f32.mrf.mxu0
  %563 = vmatprep.mubr.bf16.mxu0 0
  %564 = vmatmul.mubr.bf16.gmra.mxu0 %v327
  %v565 = vpop.f32.mrf.mxu0
  %v566 = vadd.f32 0.0, %v565
  %v567 = vpop.f32.mrf.mxu0
  %v568 = vpop.f32.mrf.mxu0
  %v569 = vadd.f32 0.0, %v568
  %v570 = vpop.f32.mrf.mxu0
  %571 = vmatprep.mubr.bf16.mxu0 0
  %572 = vmatmul.mubr.bf16.gmra.mxu0 %v330
  %v573 = vpop.f32.mrf.mxu0
  %v574 = vadd.f32 0.0, %v573
  %v575 = vpop.f32.mrf.mxu0
  %v576 = vpop.f32.mrf.mxu0
  %v577 = vadd.f32 0.0, %v576
  %v578 = vpop.f32.mrf.mxu0
  %579 = vmatprep.mubr.bf16.mxu0 0
  %580 = vmatmul.mubr.bf16.gmra.mxu0 %v333
  %v581 = vpop.f32.mrf.mxu0
  %v582 = vadd.f32 0.0, %v581
  %v583 = vpop.f32.mrf.mxu0
  %v584 = vpop.f32.mrf.mxu0
  %v585 = vadd.f32 0.0, %v584
  %v586 = vpop.f32.mrf.mxu0
  %587 = vmatprep.mubr.bf16.mxu0 0
  %588 = vmatmul.mubr.bf16.gmra.mxu0 %v336
  %v589 = vpop.f32.mrf.mxu0
  %v590 = vadd.f32 0.0, %v589
  %v591 = vpop.f32.mrf.mxu0
  %v592 = vpop.f32.mrf.mxu0
  %v593 = vadd.f32 0.0, %v592
  %v594 = vpop.f32.mrf.mxu0
  %595 = vmatprep.mubr.bf16.mxu0 0
  %596 = vmatmul.mubr.bf16.gmra.mxu0 %v339
  %v597 = vpop.f32.mrf.mxu0
  %v598 = vadd.f32 0.0, %v597
  %v599 = vpop.f32.mrf.mxu0
  %v600 = vpop.f32.mrf.mxu0
  %v601 = vadd.f32 0.0, %v600
  %v602 = vpop.f32.mrf.mxu0
  %603 = vmatprep.mubr.bf16.mxu0 0
  %604 = vmatmul.mubr.bf16.gmra.mxu0 %v342
  %v605 = vpop.f32.mrf.mxu0
  %v606 = vadd.f32 0.0, %v605
  %v607 = vpop.f32.mrf.mxu0
  %v608 = vpop.f32.mrf.mxu0
  %v609 = vadd.f32 0.0, %v608
  %v610 = vpop.f32.mrf.mxu0
  %611 = vmatprep.mubr.bf16.mxu0 0
  %612 = vmatmul.mubr.bf16.gmra.mxu0 %v345
  %v613 = vpop.f32.mrf.mxu0
  %v614 = vadd.f32 0.0, %v613
  %v615 = vpop.f32.mrf.mxu0
  %v616 = vpop.f32.mrf.mxu0
  %v617 = vadd.f32 0.0, %v616
  %v618 = vpop.f32.mrf.mxu0
  %619 = vmatprep.mubr.bf16.mxu0 0
  %620 = vmatmul.mubr.bf16.gmra.mxu0 %v348
  %v621 = vpop.f32.mrf.mxu0
  %v622 = vadd.f32 0.0, %v621
  %v623 = vpop.f32.mrf.mxu0
  %v624 = vpop.f32.mrf.mxu0
  %v625 = vadd.f32 0.0, %v624
  %v626 = vpop.f32.mrf.mxu0
  %627 = vmatprep.mubr.bf16.mxu0 0
  %628 = vmatmul.mubr.bf16.gmra.mxu0 %v351
  %v629 = vpop.f32.mrf.mxu0
  %v630 = vadd.f32 0.0, %v629
  %v631 = vpop.f32.mrf.mxu0
  %v632 = vpop.f32.mrf.mxu0
  %v633 = vadd.f32 0.0, %v632
  %v634 = vpop.f32.mrf.mxu0
  %635 = vmatprep.mubr.bf16.mxu0 0
  %636 = vmatmul.mubr.bf16.gmra.mxu0 %v354
  %v637 = vpop.f32.mrf.mxu0
  %v638 = vadd.f32 0.0, %v637
  %v639 = vpop.f32.mrf.mxu0
  %v640 = vpop.f32.mrf.mxu0
  %v641 = vadd.f32 0.0, %v640
  %v642 = vpop.f32.mrf.mxu0
  %643 = vmatprep.mubr.bf16.mxu0 0
  %644 = vmatmul.mubr.bf16.gmra.mxu0 %v357
  %v645 = vpop.f32.mrf.mxu0
  %v646 = vadd.f32 0.0, %v645
  %v647 = vpop.f32.mrf.mxu0
  %v648 = vpop.f32.mrf.mxu0
  %v649 = vadd.f32 0.0, %v648
  %v650 = vpop.f32.mrf.mxu0
  %651 = vdwg.mxu0
  %v652 = vld [vmem:[%s2] sm:$0x1]
  %v654 = vlaneseq
  %v655 = vshrl.u32 %v654, 7
  %v656 = vsub.s32 0, %v655
  %v657 = vrot.slane %v652, %v656
  %v659 = vmul.f32 %v398, %v657
  %v660 = vmul.f32 %v401, %v657
  %v661 = vmul.f32 %v406, %v657
  %v662 = vmul.f32 %v409, %v657
  %v663 = vmul.f32 %v414, %v657
  %v664 = vmul.f32 %v417, %v657
  %v665 = vmul.f32 %v422, %v657
  %v666 = vmul.f32 %v425, %v657
  %v667 = vmul.f32 %v430, %v657
  %v668 = vmul.f32 %v433, %v657
  %v669 = vmul.f32 %v438, %v657
  %v670 = vmul.f32 %v441, %v657
  %v671 = vmul.f32 %v446, %v657
  %v672 = vmul.f32 %v449, %v657
  %v673 = vmul.f32 %v454, %v657
  %v674 = vmul.f32 %v457, %v657
  %v675 = vmul.f32 %v462, %v657
  %v676 = vmul.f32 %v465, %v657
  %v677 = vmul.f32 %v470, %v657
  %v678 = vmul.f32 %v473, %v657
  %v679 = vmul.f32 %v478, %v657
  %v680 = vmul.f32 %v481, %v657
  %v681 = vmul.f32 %v486, %v657
  %v682 = vmul.f32 %v489, %v657
  %v683 = vmul.f32 %v494, %v657
  %v684 = vmul.f32 %v497, %v657
  %v685 = vmul.f32 %v502, %v657
  %v686 = vmul.f32 %v505, %v657
  %v687 = vmul.f32 %v510, %v657
  %v688 = vmul.f32 %v513, %v657
  %v689 = vmul.f32 %v518, %v657
  %v690 = vmul.f32 %v521, %v657
  %v691 = vmul.f32 %v526, %v657
  %v692 = vmul.f32 %v529, %v657
  %v693 = vmul.f32 %v534, %v657
  %v694 = vmul.f32 %v537, %v657
  %v695 = vmul.f32 %v542, %v657
  %v696 = vmul.f32 %v545, %v657
  %v697 = vmul.f32 %v550, %v657
  %v698 = vmul.f32 %v553, %v657
  %v699 = vmul.f32 %v558, %v657
  %v700 = vmul.f32 %v561, %v657
  %v701 = vmul.f32 %v566, %v657
  %v702 = vmul.f32 %v569, %v657
  %v703 = vmul.f32 %v574, %v657
  %v704 = vmul.f32 %v577, %v657
  %v705 = vmul.f32 %v582, %v657
  %v706 = vmul.f32 %v585, %v657
  %v707 = vmul.f32 %v590, %v657
  %v708 = vmul.f32 %v593, %v657
  %v709 = vmul.f32 %v598, %v657
  %v710 = vmul.f32 %v601, %v657
  %v711 = vmul.f32 %v606, %v657
  %v712 = vmul.f32 %v609, %v657
  %v713 = vmul.f32 %v614, %v657
  %v714 = vmul.f32 %v617, %v657
  %v715 = vmul.f32 %v622, %v657
  %v716 = vmul.f32 %v625, %v657
  %v717 = vmul.f32 %v630, %v657
  %v718 = vmul.f32 %v633, %v657
  %v719 = vmul.f32 %v638, %v657
  %v720 = vmul.f32 %v641, %v657
  %v721 = vmul.f32 %v646, %v657
  %v722 = vmul.f32 %v649, %v657
  %v723 = vld [vmem:[%s3] sm:$0x1]
  %v725 = vlaneseq
  %v726 = vshrl.u32 %v725, 7
  %v727 = vsub.s32 0, %v726
  %v728 = vrot.slane %v723, %v727
  %v730 = vadd.f32 %v659, %v728
  %v731 = vadd.f32 %v660, %v728
  %v732 = vadd.f32 %v661, %v728
  %v733 = vadd.f32 %v662, %v728
  %v734 = vadd.f32 %v663, %v728
  %v735 = vadd.f32 %v664, %v728
  %v736 = vadd.f32 %v665, %v728
  %v737 = vadd.f32 %v666, %v728
  %v738 = vadd.f32 %v667, %v728
  %v739 = vadd.f32 %v668, %v728
  %v740 = vadd.f32 %v669, %v728
  %v741 = vadd.f32 %v670, %v728
  %v742 = vadd.f32 %v671, %v728
  %v743 = vadd.f32 %v672, %v728
  %v744 = vadd.f32 %v673, %v728
  %v745 = vadd.f32 %v674, %v728
  %v746 = vadd.f32 %v675, %v728
  %v747 = vadd.f32 %v676, %v728
  %v748 = vadd.f32 %v677, %v728
  %v749 = vadd.f32 %v678, %v728
  %v750 = vadd.f32 %v679, %v728
  %v751 = vadd.f32 %v680, %v728
  %v752 = vadd.f32 %v681, %v728
  %v753 = vadd.f32 %v682, %v728
  %v754 = vadd.f32 %v683, %v728
  %v755 = vadd.f32 %v684, %v728
  %v756 = vadd.f32 %v685, %v728
  %v757 = vadd.f32 %v686, %v728
  %v758 = vadd.f32 %v687, %v728
  %v759 = vadd.f32 %v688, %v728
  %v760 = vadd.f32 %v689, %v728
  %v761 = vadd.f32 %v690, %v728
  %v762 = vadd.f32 %v691, %v728
  %v763 = vadd.f32 %v692, %v728
  %v764 = vadd.f32 %v693, %v728
  %v765 = vadd.f32 %v694, %v728
  %v766 = vadd.f32 %v695, %v728
  %v767 = vadd.f32 %v696, %v728
  %v768 = vadd.f32 %v697, %v728
  %v769 = vadd.f32 %v698, %v728
  %v770 = vadd.f32 %v699, %v728
  %v771 = vadd.f32 %v700, %v728
  %v772 = vadd.f32 %v701, %v728
  %v773 = vadd.f32 %v702, %v728
  %v774 = vadd.f32 %v703, %v728
  %v775 = vadd.f32 %v704, %v728
  %v776 = vadd.f32 %v705, %v728
  %v777 = vadd.f32 %v706, %v728
  %v778 = vadd.f32 %v707, %v728
  %v779 = vadd.f32 %v708, %v728
  %v780 = vadd.f32 %v709, %v728
  %v781 = vadd.f32 %v710, %v728
  %v782 = vadd.f32 %v711, %v728
  %v783 = vadd.f32 %v712, %v728
  %v784 = vadd.f32 %v713, %v728
  %v785 = vadd.f32 %v714, %v728
  %v786 = vadd.f32 %v715, %v728
  %v787 = vadd.f32 %v716, %v728
  %v788 = vadd.f32 %v717, %v728
  %v789 = vadd.f32 %v718, %v728
  %v790 = vadd.f32 %v719, %v728
  %v791 = vadd.f32 %v720, %v728
  %v792 = vadd.f32 %v721, %v728
  %v793 = vadd.f32 %v722, %v728
  %v794 = vmax.f32 %v730, 0.0
  %v795 = vmax.f32 %v731, 0.0
  %v796 = vmax.f32 %v732, 0.0
  %v797 = vmax.f32 %v733, 0.0
  %v798 = vmax.f32 %v734, 0.0
  %v799 = vmax.f32 %v735, 0.0
  %v800 = vmax.f32 %v736, 0.0
  %v801 = vmax.f32 %v737, 0.0
  %v802 = vmax.f32 %v738, 0.0
  %v803 = vmax.f32 %v739, 0.0
  %v804 = vmax.f32 %v740, 0.0
  %v805 = vmax.f32 %v741, 0.0
  %v806 = vmax.f32 %v742, 0.0
  %v807 = vmax.f32 %v743, 0.0
  %v808 = vmax.f32 %v744, 0.0
  %v809 = vmax.f32 %v745, 0.0
  %v810 = vmax.f32 %v746, 0.0
  %v811 = vmax.f32 %v747, 0.0
  %v812 = vmax.f32 %v748, 0.0
  %v813 = vmax.f32 %v749, 0.0
  %v814 = vmax.f32 %v750, 0.0
  %v815 = vmax.f32 %v751, 0.0
  %v816 = vmax.f32 %v752, 0.0
  %v817 = vmax.f32 %v753, 0.0
  %v818 = vmax.f32 %v754, 0.0
  %v819 = vmax.f32 %v755, 0.0
  %v820 = vmax.f32 %v756, 0.0
  %v821 = vmax.f32 %v757, 0.0
  %v822 = vmax.f32 %v758, 0.0
  %v823 = vmax.f32 %v759, 0.0
  %v824 = vmax.f32 %v760, 0.0
  %v825 = vmax.f32 %v761, 0.0
  %v826 = vmax.f32 %v762, 0.0
  %v827 = vmax.f32 %v763, 0.0
  %v828 = vmax.f32 %v764, 0.0
  %v829 = vmax.f32 %v765, 0.0
  %v830 = vmax.f32 %v766, 0.0
  %v831 = vmax.f32 %v767, 0.0
  %v832 = vmax.f32 %v768, 0.0
  %v833 = vmax.f32 %v769, 0.0
  %v834 = vmax.f32 %v770, 0.0
  %v835 = vmax.f32 %v771, 0.0
  %v836 = vmax.f32 %v772, 0.0
  %v837 = vmax.f32 %v773, 0.0
  %v838 = vmax.f32 %v774, 0.0
  %v839 = vmax.f32 %v775, 0.0
  %v840 = vmax.f32 %v776, 0.0
  %v841 = vmax.f32 %v777, 0.0
  %v842 = vmax.f32 %v778, 0.0
  %v843 = vmax.f32 %v779, 0.0
  %v844 = vmax.f32 %v780, 0.0
  %v845 = vmax.f32 %v781, 0.0
  %v846 = vmax.f32 %v782, 0.0
  %v847 = vmax.f32 %v783, 0.0
  %v848 = vmax.f32 %v784, 0.0
  %v849 = vmax.f32 %v785, 0.0
  %v850 = vmax.f32 %v786, 0.0
  %v851 = vmax.f32 %v787, 0.0
  %v852 = vmax.f32 %v788, 0.0
  %v853 = vmax.f32 %v789, 0.0
  %v854 = vmax.f32 %v790, 0.0
  %v855 = vmax.f32 %v791, 0.0
  %v856 = vmax.f32 %v792, 0.0
  %v857 = vmax.f32 %v793, 0.0
  %vm858 = vcmask 31744
  %859 = vst.msk [vmem:[%s4] sm:$0xff] %vm858, %v794
  %860 = vst.msk [vmem:[%s4 + $0x8] sm:$0xff] %vm858, %v795
  %861 = vst.msk [vmem:[%s4 + $0x10] sm:$0xff] %vm858, %v796
  %862 = vst.msk [vmem:[%s4 + $0x18] sm:$0xff] %vm858, %v797
  %863 = vst.msk [vmem:[%s4 + $0x20] sm:$0xff] %vm858, %v798
  %864 = vst.msk [vmem:[%s4 + $0x28] sm:$0xff] %vm858, %v799
  %865 = vst.msk [vmem:[%s4 + $0x30] sm:$0xff] %vm858, %v800
  %866 = vst.msk [vmem:[%s4 + $0x38] sm:$0xff] %vm858, %v801
  %867 = vst.msk [vmem:[%s4 + $0x40] sm:$0xff] %vm858, %v802
  %868 = vst.msk [vmem:[%s4 + $0x48] sm:$0xff] %vm858, %v803
  %869 = vst.msk [vmem:[%s4 + $0x50] sm:$0xff] %vm858, %v804
  %870 = vst.msk [vmem:[%s4 + $0x58] sm:$0xff] %vm858, %v805
  %871 = vst.msk [vmem:[%s4 + $0x60] sm:$0xff] %vm858, %v806
  %872 = vst.msk [vmem:[%s4 + $0x68] sm:$0xff] %vm858, %v807
  %873 = vst.msk [vmem:[%s4 + $0x70] sm:$0xff] %vm858, %v808
  %874 = vst.msk [vmem:[%s4 + $0x78] sm:$0xff] %vm858, %v809
  %875 = vst.msk [vmem:[%s4 + $0x80] sm:$0xff] %vm858, %v810
  %876 = vst.msk [vmem:[%s4 + $0x88] sm:$0xff] %vm858, %v811
  %877 = vst.msk [vmem:[%s4 + $0x90] sm:$0xff] %vm858, %v812
  %878 = vst.msk [vmem:[%s4 + $0x98] sm:$0xff] %vm858, %v813
  %879 = vst.msk [vmem:[%s4 + $0xa0] sm:$0xff] %vm858, %v814
  %880 = vst.msk [vmem:[%s4 + $0xa8] sm:$0xff] %vm858, %v815
  %881 = vst.msk [vmem:[%s4 + $0xb0] sm:$0xff] %vm858, %v816
  %882 = vst.msk [vmem:[%s4 + $0xb8] sm:$0xff] %vm858, %v817
  %883 = vst.msk [vmem:[%s4 + $0xc0] sm:$0xff] %vm858, %v818
  %884 = vst.msk [vmem:[%s4 + $0xc8] sm:$0xff] %vm858, %v819
  %885 = vst.msk [vmem:[%s4 + $0xd0] sm:$0xff] %vm858, %v820
  %886 = vst.msk [vmem:[%s4 + $0xd8] sm:$0xff] %vm858, %v821
  %887 = vst.msk [vmem:[%s4 + $0xe0] sm:$0xff] %vm858, %v822
  %888 = vst.msk [vmem:[%s4 + $0xe8] sm:$0xff] %vm858, %v823
  %889 = vst.msk [vmem:[%s4 + $0xf0] sm:$0xff] %vm858, %v824
  %890 = vst.msk [vmem:[%s4 + $0xf8] sm:$0xff] %vm858, %v825
  %891 = vst.msk [vmem:[%s4 + $0x100] sm:$0xff] %vm858, %v826
  %892 = vst.msk [vmem:[%s4 + $0x108] sm:$0xff] %vm858, %v827
  %893 = vst.msk [vmem:[%s4 + $0x110] sm:$0xff] %vm858, %v828
  %894 = vst.msk [vmem:[%s4 + $0x118] sm:$0xff] %vm858, %v829
  %895 = vst.msk [vmem:[%s4 + $0x120] sm:$0xff] %vm858, %v830
  %896 = vst.msk [vmem:[%s4 + $0x128] sm:$0xff] %vm858, %v831
  %897 = vst.msk [vmem:[%s4 + $0x130] sm:$0xff] %vm858, %v832
  %898 = vst.msk [vmem:[%s4 + $0x138] sm:$0xff] %vm858, %v833
  %899 = vst.msk [vmem:[%s4 + $0x140] sm:$0xff] %vm858, %v834
  %900 = vst.msk [vmem:[%s4 + $0x148] sm:$0xff] %vm858, %v835
  %901 = vst.msk [vmem:[%s4 + $0x150] sm:$0xff] %vm858, %v836
  %902 = vst.msk [vmem:[%s4 + $0x158] sm:$0xff] %vm858, %v837
  %903 = vst.msk [vmem:[%s4 + $0x160] sm:$0xff] %vm858, %v838
  %904 = vst.msk [vmem:[%s4 + $0x168] sm:$0xff] %vm858, %v839
  %905 = vst.msk [vmem:[%s4 + $0x170] sm:$0xff] %vm858, %v840
  %906 = vst.msk [vmem:[%s4 + $0x178] sm:$0xff] %vm858, %v841
  %907 = vst.msk [vmem:[%s4 + $0x180] sm:$0xff] %vm858, %v842
  %908 = vst.msk [vmem:[%s4 + $0x188] sm:$0xff] %vm858, %v843
  %909 = vst.msk [vmem:[%s4 + $0x190] sm:$0xff] %vm858, %v844
  %910 = vst.msk [vmem:[%s4 + $0x198] sm:$0xff] %vm858, %v845
  %911 = vst.msk [vmem:[%s4 + $0x1a0] sm:$0xff] %vm858, %v846
  %912 = vst.msk [vmem:[%s4 + $0x1a8] sm:$0xff] %vm858, %v847
  %913 = vst.msk [vmem:[%s4 + $0x1b0] sm:$0xff] %vm858, %v848
  %914 = vst.msk [vmem:[%s4 + $0x1b8] sm:$0xff] %vm858, %v849
  %915 = vst.msk [vmem:[%s4 + $0x1c0] sm:$0xff] %vm858, %v850
  %916 = vst.msk [vmem:[%s4 + $0x1c8] sm:$0xff] %vm858, %v851
  %917 = vst.msk [vmem:[%s4 + $0x1d0] sm:$0xff] %vm858, %v852
  %918 = vst.msk [vmem:[%s4 + $0x1d8] sm:$0xff] %vm858, %v853
  %919 = vst.msk [vmem:[%s4 + $0x1e0] sm:$0xff] %vm858, %v854
  %920 = vst.msk [vmem:[%s4 + $0x1e8] sm:$0xff] %vm858, %v855
  %921 = vst.msk [vmem:[%s4 + $0x1f0] sm:$0xff] %vm858, %v856
  %922 = vst.msk [vmem:[%s4 + $0x1f8] sm:$0xff] %vm858, %v857
  // Predicated region
  $region18: #{run.40} parent=0 // pred_check
    _
  $region19: #{run.40} parent=0 // pred_check_branch
    %924 = sbr.rel (0) target = $region21
  $region20: #{run.40} parent=0 // pred_region
    _
  $region21: #{run.40} parent=0 // pred_fallthru
    _
  // Predicated region
  $region22: #{run.40} parent=0 // pred_check
    _
  $region23: #{run.40} parent=0 // pred_check_branch
    %926 = sbr.rel (0) target = $region25
  $region24: #{run.40} parent=0 // pred_region
    _
  $region25: #{run.40} parent=0 // pred_fallthru
    _

// kernel: run.47
$region0: #{run.47}
  #allocation0 [shape = 'u32[]', space=smem, size = 0x4, offset = 0x4, fixed_abs, tag = 'smem constant byte address 0x4 - core index']
  #allocation1 [shape = 'u32[144,128]{1,0:T(1,128)}', space=vmem, size = 0x12000, scoped, tag = 'internal scratch']
  %s0 = inlined_call_operand.vmem [shape: bf16[128,36], index: 0, kind: input, shape index: {}]
  %s1 = inlined_call_operand.vmem [shape: bf16[36,8], index: 1, kind: input, shape index: {}]
  %s2 = inlined_call_operand.vmem [shape: f32[1,8], index: 2, kind: input, shape index: {}]
  %s3 = inlined_call_operand.vmem [shape: f32[1,8], index: 3, kind: input, shape index: {}]
  %s4 = inlined_call_operand.vmem [shape: f32[128,8], index: 4, kind: output, shape index: {}]
  %s5 = sld [smem:[#allocation0]]
  $region26: #{run.47} parent=0
    _
  %s7 = ssub.s32 1, %s5
  %s8 = scalar_select 0, %s7, %s5
  // Predicated region
  $region2: #{run.47} parent=0 // pred_check
    _
  $region3: #{run.47} parent=0 // pred_check_branch
    %10 = sbr.rel (0) target = $region5
  $region4: #{run.47} parent=0 // pred_region
    _
  $region5: #{run.47} parent=0 // pred_fallthru
    _
  // Predicated region
  $region6: #{run.47} parent=0 // pred_check
    _
  $region7: #{run.47} parent=0 // pred_check_branch
    %12 = sbr.rel (0) target = $region9
  $region8: #{run.47} parent=0 // pred_region
    _
  $region9: #{run.47} parent=0 // pred_fallthru
    _
  // Predicated region
  $region10: #{run.47} parent=0 // pred_check
    _
  $region11: #{run.47} parent=0 // pred_check_branch
    %14 = sbr.rel (0) target = $region13
  $region12: #{run.47} parent=0 // pred_region
    _
  $region13: #{run.47} parent=0 // pred_fallthru
    _
  // Predicated region
  $region14: #{run.47} parent=0 // pred_check
    _
  $region15: #{run.47} parent=0 // pred_check_branch
    %16 = sbr.rel (0) target = $region17
  $region16: #{run.47} parent=0 // pred_region
    _
  $region17: #{run.47} parent=0 // pred_fallthru
    _
  %v18 = vld [vmem:[%s0] sm:$0xf]
  %v19 = vld [vmem:[%s0 + $0x4] sm:$0xf]
  %v20 = vld [vmem:[%s0 + $0x8] sm:$0xf]
  %v21 = vld [vmem:[%s0 + $0xc] sm:$0xf]
  %v22 = vld [vmem:[%s0 + $0x10] sm:$0xf]
  %v23 = vld [vmem:[%s0 + $0x14] sm:$0xf]
  %v24 = vld [vmem:[%s0 + $0x18] sm:$0xf]
  %v25 = vld [vmem:[%s0 + $0x1c] sm:$0xf]
  %v26 = vld [vmem:[%s0 + $0x20] sm:$0xf]
  %v27 = vld [vmem:[%s0 + $0x24] sm:$0xf]
  %v28 = vld [vmem:[%s0 + $0x28] sm:$0xf]
  %v29 = vld [vmem:[%s0 + $0x2c] sm:$0xf]
  %v30 = vld [vmem:[%s0 + $0x30] sm:$0xf]
  %v31 = vld [vmem:[%s0 + $0x34] sm:$0xf]
  %v32 = vld [vmem:[%s0 + $0x38] sm:$0xf]
  %v33 = vld [vmem:[%s0 + $0x3c] sm:$0xf]
  %v34 = vld [vmem:[%s1] sm:$0xf]
  %v35 = vld [vmem:[%s1 + $0x4] sm:$0xf]
  %v36 = vld [vmem:[%s1 + $0x8] sm:$0xf]
  %v37 = vld [vmem:[%s1 + $0xc] sm:$0xf]
  %v38 = vld [vmem:[%s1 + $0x10] sm:$0x3]
  %v55 = vunpack.c.l.b16 %v18
  %v56 = vunpack.c.l.b16 %v19
  %v57 = vunpack.c.l.b16 %v20
  %v58 = vunpack.c.l.b16 %v21
  %v59 = vunpack.c.l.b16 %v22
  %v60 = vunpack.c.l.b16 %v23
  %v61 = vunpack.c.l.b16 %v24
  %v62 = vunpack.c.l.b16 %v25
  %v63 = vunpack.c.l.b16 %v26
  %v64 = vunpack.c.l.b16 %v27
  %v65 = vunpack.c.l.b16 %v28
  %v66 = vunpack.c.l.b16 %v29
  %v67 = vunpack.c.l.b16 %v30
  %v68 = vunpack.c.l.b16 %v31
  %v69 = vunpack.c.l.b16 %v32
  %v70 = vunpack.c.l.b16 %v33
  %v71 = vpack.c.b16 %v56, %v55
  %v72 = vpack.c.b16 %v58, %v57
  %v73 = vpack.c.b16 %v60, %v59
  %v74 = vpack.c.b16 %v62, %v61
  %v75 = vpack.c.b16 %v64, %v63
  %v76 = vpack.c.b16 %v66, %v65
  %v77 = vpack.c.b16 %v68, %v67
  %v78 = vpack.c.b16 %v70, %v69
  %v84 = vunpack.c.l.b16 %v34
  %v85 = vunpack.c.l.b16 %v35
  %v86 = vunpack.c.l.b16 %v36
  %v87 = vunpack.c.l.b16 %v37
  %v88 = vunpack.c.l.b16 %v38
  %v89 = vpack.c.b16 %v85, %v84
  %v90 = vpack.c.b16 %v87, %v86
  %v91 = vpack.c.b16 %v88, %v88
  %vm94 = vcmask 293888
  %v96 = vsel %vm94, %v71, 0
  %v99 = vsel %vm94, %v72, 0
  %v102 = vsel %vm94, %v73, 0
  %v105 = vsel %vm94, %v74, 0
  %v108 = vsel %vm94, %v75, 0
  %v111 = vsel %vm94, %v76, 0
  %v114 = vsel %vm94, %v77, 0
  %v117 = vsel %vm94, %v78, 0
  %vm119 = vcmask 1041408
  %v121 = vsel %vm119, %v91, 0
  %123 = vmatprep.subr.bf16.mxu0 0
  %124 = vmatpush1.bf16.msra.mxu0 0
  %125 = vmatprep.subr.bf16.mxu0 0
  %126 = vmatpush1.bf16.msra.mxu0 0
  %127 = vmatprep.subr.bf16.mxu0 0
  %128 = vmatpush1.bf16.msra.mxu0 0
  %129 = vmatprep.subr.bf16.mxu0 0
  %130 = vmatpush1.bf16.msra.mxu0 0
  %131 = vmatprep.subr.bf16.mxu0 0
  %132 = vmatpush1.bf16.msra.mxu0 0
  %133 = vmatprep.subr.bf16.mxu0 0
  %134 = vmatpush1.bf16.msra.mxu0 %v121
  %135 = vmatprep.subr.bf16.mxu0 0
  %136 = vmatpush1.bf16.msra.mxu0 %v90
  %137 = vmatprep.subr.bf16.mxu0 0
  %138 = vmatpush1.bf16.msra.mxu0 %v89
  %139 = vmatprep.subr.bf16.mxu0 0
  %140 = vmatpush2.bf16.msra.mxu0 0
  %141 = vmatprep.subr.bf16.mxu0 0
  %142 = vmatpush2.bf16.msra.mxu0 0
  %143 = vmatprep.subr.bf16.mxu0 0
  %144 = vmatpush2.bf16.msra.mxu0 0
  %145 = vmatprep.subr.bf16.mxu0 0
  %146 = vmatpush2.bf16.msra.mxu0 0
  %147 = vmatprep.subr.bf16.mxu0 0
  %148 = vmatpush2.bf16.msra.mxu0 0
  %149 = vmatprep.subr.bf16.mxu0 0
  %150 = vmatpush2.bf16.msra.mxu0 0
  %151 = vmatprep.subr.bf16.mxu0 0
  %152 = vmatpush2.bf16.msra.mxu0 0
  %153 = vmatprep.subr.bf16.mxu0 0
  %154 = vmatpush2.bf16.msra.mxu0 0
  %155 = vmatprep.mubr.bf16.mxu0 0
  %156 = vmatmul.mubr.bf16.gmra.mxu0 %v96
  %v157 = vpop.f32.mrf.mxu0
  %v158 = vadd.f32 0.0, %v157
  %v159 = vpop.f32.mrf.mxu0
  %v160 = vpop.f32.mrf.mxu0
  %v161 = vadd.f32 0.0, %v160
  %v162 = vpop.f32.mrf.mxu0
  %163 = vmatprep.mubr.bf16.mxu0 0
  %164 = vmatmul.mubr.bf16.gmra.mxu0 %v99
  %v165 = vpop.f32.mrf.mxu0
  %v166 = vadd.f32 0.0, %v165
  %v167 = vpop.f32.mrf.mxu0
  %v168 = vpop.f32.mrf.mxu0
  %v169 = vadd.f32 0.0, %v168
  %v170 = vpop.f32.mrf.mxu0
  %171 = vmatprep.mubr.bf16.mxu0 0
  %172 = vmatmul.mubr.bf16.gmra.mxu0 %v102
  %v173 = vpop.f32.mrf.mxu0
  %v174 = vadd.f32 0.0, %v173
  %v175 = vpop.f32.mrf.mxu0
  %v176 = vpop.f32.mrf.mxu0
  %v177 = vadd.f32 0.0, %v176
  %v178 = vpop.f32.mrf.mxu0
  %179 = vmatprep.mubr.bf16.mxu0 0
  %180 = vmatmul.mubr.bf16.gmra.mxu0 %v105
  %v181 = vpop.f32.mrf.mxu0
  %v182 = vadd.f32 0.0, %v181
  %v183 = vpop.f32.mrf.mxu0
  %v184 = vpop.f32.mrf.mxu0
  %v185 = vadd.f32 0.0, %v184
  %v186 = vpop.f32.mrf.mxu0
  %187 = vmatprep.mubr.bf16.mxu0 0
  %188 = vmatmul.mubr.bf16.gmra.mxu0 %v108
  %v189 = vpop.f32.mrf.mxu0
  %v190 = vadd.f32 0.0, %v189
  %v191 = vpop.f32.mrf.mxu0
  %v192 = vpop.f32.mrf.mxu0
  %v193 = vadd.f32 0.0, %v192
  %v194 = vpop.f32.mrf.mxu0
  %195 = vmatprep.mubr.bf16.mxu0 0
  %196 = vmatmul.mubr.bf16.gmra.mxu0 %v111
  %v197 = vpop.f32.mrf.mxu0
  %v198 = vadd.f32 0.0, %v197
  %v199 = vpop.f32.mrf.mxu0
  %v200 = vpop.f32.mrf.mxu0
  %v201 = vadd.f32 0.0, %v200
  %v202 = vpop.f32.mrf.mxu0
  %203 = vmatprep.mubr.bf16.mxu0 0
  %204 = vmatmul.mubr.bf16.gmra.mxu0 %v114
  %v205 = vpop.f32.mrf.mxu0
  %v206 = vadd.f32 0.0, %v205
  %v207 = vpop.f32.mrf.mxu0
  %v208 = vpop.f32.mrf.mxu0
  %v209 = vadd.f32 0.0, %v208
  %v210 = vpop.f32.mrf.mxu0
  %211 = vmatprep.mubr.bf16.mxu0 0
  %212 = vmatmul.mubr.bf16.gmra.mxu0 %v117
  %v213 = vpop.f32.mrf.mxu0
  %v214 = vadd.f32 0.0, %v213
  %v215 = vpop.f32.mrf.mxu0
  %v216 = vpop.f32.mrf.mxu0
  %v217 = vadd.f32 0.0, %v216
  %v218 = vpop.f32.mrf.mxu0
  %219 = vdwg.mxu0
  %v220 = vld [vmem:[%s2] sm:$0x1]
  %v222 = vlaneseq
  %v223 = vshrl.u32 %v222, 7
  %v224 = vsub.s32 0, %v223
  %v225 = vrot.slane %v220, %v224
  %v227 = vmul.f32 %v158, %v225
  %v228 = vmul.f32 %v161, %v225
  %v229 = vmul.f32 %v166, %v225
  %v230 = vmul.f32 %v169, %v225
  %v231 = vmul.f32 %v174, %v225
  %v232 = vmul.f32 %v177, %v225
  %v233 = vmul.f32 %v182, %v225
  %v234 = vmul.f32 %v185, %v225
  %v235 = vmul.f32 %v190, %v225
  %v236 = vmul.f32 %v193, %v225
  %v237 = vmul.f32 %v198, %v225
  %v238 = vmul.f32 %v201, %v225
  %v239 = vmul.f32 %v206, %v225
  %v240 = vmul.f32 %v209, %v225
  %v241 = vmul.f32 %v214, %v225
  %v242 = vmul.f32 %v217, %v225
  %v243 = vld [vmem:[%s3] sm:$0x1]
  %v245 = vlaneseq
  %v246 = vshrl.u32 %v245, 7
  %v247 = vsub.s32 0, %v246
  %v248 = vrot.slane %v243, %v247
  %v250 = vadd.f32 %v227, %v248
  %v251 = vadd.f32 %v228, %v248
  %v252 = vadd.f32 %v229, %v248
  %v253 = vadd.f32 %v230, %v248
  %v254 = vadd.f32 %v231, %v248
  %v255 = vadd.f32 %v232, %v248
  %v256 = vadd.f32 %v233, %v248
  %v257 = vadd.f32 %v234, %v248
  %v258 = vadd.f32 %v235, %v248
  %v259 = vadd.f32 %v236, %v248
  %v260 = vadd.f32 %v237, %v248
  %v261 = vadd.f32 %v238, %v248
  %v262 = vadd.f32 %v239, %v248
  %v263 = vadd.f32 %v240, %v248
  %v264 = vadd.f32 %v241, %v248
  %v265 = vadd.f32 %v242, %v248
  %v266 = vmax.f32 %v250, 0.0
  %v267 = vmax.f32 %v251, 0.0
  %v268 = vmax.f32 %v252, 0.0
  %v269 = vmax.f32 %v253, 0.0
  %v270 = vmax.f32 %v254, 0.0
  %v271 = vmax.f32 %v255, 0.0
  %v272 = vmax.f32 %v256, 0.0
  %v273 = vmax.f32 %v257, 0.0
  %v274 = vmax.f32 %v258, 0.0
  %v275 = vmax.f32 %v259, 0.0
  %v276 = vmax.f32 %v260, 0.0
  %v277 = vmax.f32 %v261, 0.0
  %v278 = vmax.f32 %v262, 0.0
  %v279 = vmax.f32 %v263, 0.0
  %v280 = vmax.f32 %v264, 0.0
  %v281 = vmax.f32 %v265, 0.0
  %vm282 = vcmask 64512
  %283 = vst.msk [vmem:[%s4] sm:$0xff] %vm282, %v266
  %284 = vst.msk [vmem:[%s4 + $0x8] sm:$0xff] %vm282, %v267
  %285 = vst.msk [vmem:[%s4 + $0x10] sm:$0xff] %vm282, %v268
  %286 = vst.msk [vmem:[%s4 + $0x18] sm:$0xff] %vm282, %v269
  %287 = vst.msk [vmem:[%s4 + $0x20] sm:$0xff] %vm282, %v270
  %288 = vst.msk [vmem:[%s4 + $0x28] sm:$0xff] %vm282, %v271
  %289 = vst.msk [vmem:[%s4 + $0x30] sm:$0xff] %vm282, %v272
  %290 = vst.msk [vmem:[%s4 + $0x38] sm:$0xff] %vm282, %v273
  %291 = vst.msk [vmem:[%s4 + $0x40] sm:$0xff] %vm282, %v274
  %292 = vst.msk [vmem:[%s4 + $0x48] sm:$0xff] %vm282, %v275
  %293 = vst.msk [vmem:[%s4 + $0x50] sm:$0xff] %vm282, %v276
  %294 = vst.msk [vmem:[%s4 + $0x58] sm:$0xff] %vm282, %v277
  %295 = vst.msk [vmem:[%s4 + $0x60] sm:$0xff] %vm282, %v278
  %296 = vst.msk [vmem:[%s4 + $0x68] sm:$0xff] %vm282, %v279
  %297 = vst.msk [vmem:[%s4 + $0x70] sm:$0xff] %vm282, %v280
  %298 = vst.msk [vmem:[%s4 + $0x78] sm:$0xff] %vm282, %v281
  // Predicated region
  $region18: #{run.47} parent=0 // pred_check
    _
  $region19: #{run.47} parent=0 // pred_check_branch
    %300 = sbr.rel (0) target = $region21
  $region20: #{run.47} parent=0 // pred_region
    _
  $region21: #{run.47} parent=0 // pred_fallthru
    _
  // Predicated region
  $region22: #{run.47} parent=0 // pred_check
    _
  $region23: #{run.47} parent=0 // pred_check_branch
    %302 = sbr.rel (0) target = $region25
  $region24: #{run.47} parent=0 // pred_region
    _
  $region25: #{run.47} parent=0 // pred_fallthru
    _

// kernel: run.46
$region0: #{run.46}
  #allocation0 [shape = 'u32[]', space=smem, size = 0x4, offset = 0x4, fixed_abs, tag = 'smem constant byte address 0x4 - core index']
  #allocation1 [shape = 'u32[144,128]{1,0:T(1,128)}', space=vmem, size = 0x12000, scoped, tag = 'internal scratch']
  %s0 = inlined_call_operand.vmem [shape: bf16[128,4], index: 0, kind: input, shape index: {}]
  %s1 = inlined_call_operand.vmem [shape: bf16[4,8], index: 1, kind: input, shape index: {}]
  %s2 = inlined_call_operand.vmem [shape: f32[128,8], index: 2, kind: output, shape index: {}]
  %s3 = sld [smem:[#allocation0]]
  $region18: #{run.46} parent=0
    _
  %s5 = ssub.s32 1, %s3
  %s6 = scalar_select 0, %s5, %s3
  // Predicated region
  $region2: #{run.46} parent=0 // pred_check
    _
  $region3: #{run.46} parent=0 // pred_check_branch
    %8 = sbr.rel (0) target = $region5
  $region4: #{run.46} parent=0 // pred_region
    _
  $region5: #{run.46} parent=0 // pred_fallthru
    _
  // Predicated region
  $region6: #{run.46} parent=0 // pred_check
    _
  $region7: #{run.46} parent=0 // pred_check_branch
    %10 = sbr.rel (0) target = $region9
  $region8: #{run.46} parent=0 // pred_region
    _
  $region9: #{run.46} parent=0 // pred_fallthru
    _
  %v12 = vld [vmem:[%s0] sm:$0xf]
  %v13 = vld [vmem:[%s0 + $0x4] sm:$0xf]
  %v14 = vld [vmem:[%s0 + $0x8] sm:$0xf]
  %v15 = vld [vmem:[%s0 + $0xc] sm:$0xf]
  %v16 = vld [vmem:[%s0 + $0x10] sm:$0xf]
  %v17 = vld [vmem:[%s0 + $0x14] sm:$0xf]
  %v18 = vld [vmem:[%s0 + $0x18] sm:$0xf]
  %v19 = vld [vmem:[%s0 + $0x1c] sm:$0xf]
  %v20 = vld [vmem:[%s0 + $0x20] sm:$0xf]
  %v21 = vld [vmem:[%s0 + $0x24] sm:$0xf]
  %v22 = vld [vmem:[%s0 + $0x28] sm:$0xf]
  %v23 = vld [vmem:[%s0 + $0x2c] sm:$0xf]
  %v24 = vld [vmem:[%s0 + $0x30] sm:$0xf]
  %v25 = vld [vmem:[%s0 + $0x34] sm:$0xf]
  %v26 = vld [vmem:[%s0 + $0x38] sm:$0xf]
  %v27 = vld [vmem:[%s0 + $0x3c] sm:$0xf]
  %v28 = vld [vmem:[%s1] sm:$0x3]
  %v45 = vunpack.c.l.b16 %v12
  %v46 = vunpack.c.l.b16 %v13
  %v47 = vunpack.c.l.b16 %v14
  %v48 = vunpack.c.l.b16 %v15
  %v49 = vunpack.c.l.b16 %v16
  %v50 = vunpack.c.l.b16 %v17
  %v51 = vunpack.c.l.b16 %v18
  %v52 = vunpack.c.l.b16 %v19
  %v53 = vunpack.c.l.b16 %v20
  %v54 = vunpack.c.l.b16 %v21
  %v55 = vunpack.c.l.b16 %v22
  %v56 = vunpack.c.l.b16 %v23
  %v57 = vunpack.c.l.b16 %v24
  %v58 = vunpack.c.l.b16 %v25
  %v59 = vunpack.c.l.b16 %v26
  %v60 = vunpack.c.l.b16 %v27
  %v61 = vpack.c.b16 %v46, %v45
  %v62 = vpack.c.b16 %v48, %v47
  %v63 = vpack.c.b16 %v50, %v49
  %v64 = vpack.c.b16 %v52, %v51
  %v65 = vpack.c.b16 %v54, %v53
  %v66 = vpack.c.b16 %v56, %v55
  %v67 = vpack.c.b16 %v58, %v57
  %v68 = vpack.c.b16 %v60, %v59
  %vm69 = vcmask 31744
  %v71 = vsel %vm69, %v61, 0
  %v74 = vsel %vm69, %v62, 0
  %v77 = vsel %vm69, %v63, 0
  %v80 = vsel %vm69, %v64, 0
  %v83 = vsel %vm69, %v65, 0
  %v86 = vsel %vm69, %v66, 0
  %v89 = vsel %vm69, %v67, 0
  %v92 = vsel %vm69, %v68, 0
  %vm94 = vcmask 1041408
  %v96 = vsel %vm94, %v28, 0
  %98 = vmatprep.subr.bf16.mxu0 0
  %99 = vmatpush1.bf16.msra.mxu0 0
  %100 = vmatprep.subr.bf16.mxu0 0
  %101 = vmatpush1.bf16.msra.mxu0 0
  %102 = vmatprep.subr.bf16.mxu0 0
  %103 = vmatpush1.bf16.msra.mxu0 0
  %104 = vmatprep.subr.bf16.mxu0 0
  %105 = vmatpush1.bf16.msra.mxu0 0
  %106 = vmatprep.subr.bf16.mxu0 0
  %107 = vmatpush1.bf16.msra.mxu0 0
  %108 = vmatprep.subr.bf16.mxu0 0
  %109 = vmatpush1.bf16.msra.mxu0 0
  %110 = vmatprep.subr.bf16.mxu0 0
  %111 = vmatpush1.bf16.msra.mxu0 0
  %112 = vmatprep.subr.bf16.mxu0 0
  %113 = vmatpush1.bf16.msra.mxu0 %v96
  %114 = vmatprep.subr.bf16.mxu0 0
  %115 = vmatpush2.bf16.msra.mxu0 0
  %116 = vmatprep.subr.bf16.mxu0 0
  %117 = vmatpush2.bf16.msra.mxu0 0
  %118 = vmatprep.subr.bf16.mxu0 0
  %119 = vmatpush2.bf16.msra.mxu0 0
  %120 = vmatprep.subr.bf16.mxu0 0
  %121 = vmatpush2.bf16.msra.mxu0 0
  %122 = vmatprep.subr.bf16.mxu0 0
  %123 = vmatpush2.bf16.msra.mxu0 0
  %124 = vmatprep.subr.bf16.mxu0 0
  %125 = vmatpush2.bf16.msra.mxu0 0
  %126 = vmatprep.subr.bf16.mxu0 0
  %127 = vmatpush2.bf16.msra.mxu0 0
  %128 = vmatprep.subr.bf16.mxu0 0
  %129 = vmatpush2.bf16.msra.mxu0 0
  %130 = vmatprep.mubr.bf16.mxu0 0
  %131 = vmatmul.mubr.bf16.gmra.mxu0 %v71
  %v132 = vpop.f32.mrf.mxu0
  %v133 = vadd.f32 0.0, %v132
  %v134 = vpop.f32.mrf.mxu0
  %v135 = vpop.f32.mrf.mxu0
  %v136 = vadd.f32 0.0, %v135
  %v137 = vpop.f32.mrf.mxu0
  %138 = vmatprep.mubr.bf16.mxu0 0
  %139 = vmatmul.mubr.bf16.gmra.mxu0 %v74
  %v140 = vpop.f32.mrf.mxu0
  %v141 = vadd.f32 0.0, %v140
  %v142 = vpop.f32.mrf.mxu0
  %v143 = vpop.f32.mrf.mxu0
  %v144 = vadd.f32 0.0, %v143
  %v145 = vpop.f32.mrf.mxu0
  %146 = vmatprep.mubr.bf16.mxu0 0
  %147 = vmatmul.mubr.bf16.gmra.mxu0 %v77
  %v148 = vpop.f32.mrf.mxu0
  %v149 = vadd.f32 0.0, %v148
  %v150 = vpop.f32.mrf.mxu0
  %v151 = vpop.f32.mrf.mxu0
  %v152 = vadd.f32 0.0, %v151
  %v153 = vpop.f32.mrf.mxu0
  %154 = vmatprep.mubr.bf16.mxu0 0
  %155 = vmatmul.mubr.bf16.gmra.mxu0 %v80
  %v156 = vpop.f32.mrf.mxu0
  %v157 = vadd.f32 0.0, %v156
  %v158 = vpop.f32.mrf.mxu0
  %v159 = vpop.f32.mrf.mxu0
  %v160 = vadd.f32 0.0, %v159
  %v161 = vpop.f32.mrf.mxu0
  %162 = vmatprep.mubr.bf16.mxu0 0
  %163 = vmatmul.mubr.bf16.gmra.mxu0 %v83
  %v164 = vpop.f32.mrf.mxu0
  %v165 = vadd.f32 0.0, %v164
  %v166 = vpop.f32.mrf.mxu0
  %v167 = vpop.f32.mrf.mxu0
  %v168 = vadd.f32 0.0, %v167
  %v169 = vpop.f32.mrf.mxu0
  %170 = vmatprep.mubr.bf16.mxu0 0
  %171 = vmatmul.mubr.bf16.gmra.mxu0 %v86
  %v172 = vpop.f32.mrf.mxu0
  %v173 = vadd.f32 0.0, %v172
  %v174 = vpop.f32.mrf.mxu0
  %v175 = vpop.f32.mrf.mxu0
  %v176 = vadd.f32 0.0, %v175
  %v177 = vpop.f32.mrf.mxu0
  %178 = vmatprep.mubr.bf16.mxu0 0
  %179 = vmatmul.mubr.bf16.gmra.mxu0 %v89
  %v180 = vpop.f32.mrf.mxu0
  %v181 = vadd.f32 0.0, %v180
  %v182 = vpop.f32.mrf.mxu0
  %v183 = vpop.f32.mrf.mxu0
  %v184 = vadd.f32 0.0, %v183
  %v185 = vpop.f32.mrf.mxu0
  %186 = vmatprep.mubr.bf16.mxu0 0
  %187 = vmatmul.mubr.bf16.gmra.mxu0 %v92
  %v188 = vpop.f32.mrf.mxu0
  %v189 = vadd.f32 0.0, %v188
  %v190 = vpop.f32.mrf.mxu0
  %v191 = vpop.f32.mrf.mxu0
  %v192 = vadd.f32 0.0, %v191
  %v193 = vpop.f32.mrf.mxu0
  %194 = vdwg.mxu0
  %vm195 = vcmask 64512
  %196 = vst.msk [vmem:[%s2] sm:$0xff] %vm195, %v133
  %197 = vst.msk [vmem:[%s2 + $0x8] sm:$0xff] %vm195, %v136
  %198 = vst.msk [vmem:[%s2 + $0x10] sm:$0xff] %vm195, %v141
  %199 = vst.msk [vmem:[%s2 + $0x18] sm:$0xff] %vm195, %v144
  %200 = vst.msk [vmem:[%s2 + $0x20] sm:$0xff] %vm195, %v149
  %201 = vst.msk [vmem:[%s2 + $0x28] sm:$0xff] %vm195, %v152
  %202 = vst.msk [vmem:[%s2 + $0x30] sm:$0xff] %vm195, %v157
  %203 = vst.msk [vmem:[%s2 + $0x38] sm:$0xff] %vm195, %v160
  %204 = vst.msk [vmem:[%s2 + $0x40] sm:$0xff] %vm195, %v165
  %205 = vst.msk [vmem:[%s2 + $0x48] sm:$0xff] %vm195, %v168
  %206 = vst.msk [vmem:[%s2 + $0x50] sm:$0xff] %vm195, %v173
  %207 = vst.msk [vmem:[%s2 + $0x58] sm:$0xff] %vm195, %v176
  %208 = vst.msk [vmem:[%s2 + $0x60] sm:$0xff] %vm195, %v181
  %209 = vst.msk [vmem:[%s2 + $0x68] sm:$0xff] %vm195, %v184
  %210 = vst.msk [vmem:[%s2 + $0x70] sm:$0xff] %vm195, %v189
  %211 = vst.msk [vmem:[%s2 + $0x78] sm:$0xff] %vm195, %v192
  // Predicated region
  $region10: #{run.46} parent=0 // pred_check
    _
  $region11: #{run.46} parent=0 // pred_check_branch
    %213 = sbr.rel (0) target = $region13
  $region12: #{run.46} parent=0 // pred_region
    _
  $region13: #{run.46} parent=0 // pred_fallthru
    _
  // Predicated region
  $region14: #{run.46} parent=0 // pred_check
    _
  $region15: #{run.46} parent=0 // pred_check_branch
    %215 = sbr.rel (0) target = $region17
  $region16: #{run.46} parent=0 // pred_region
    _
  $region17: #{run.46} parent=0 // pred_fallthru
    _

// kernel: run.41
$region0: #{run.41}
  #allocation0 [shape = 'u32[]', space=smem, size = 0x4, offset = 0x4, fixed_abs, tag = 'smem constant byte address 0x4 - core index']
  #allocation1 [shape = 'u32[144,128]{1,0:T(1,128)}', space=vmem, size = 0x12000, scoped, tag = 'internal scratch']
  %s0 = inlined_call_operand.vmem [shape: bf16[512,36], index: 0, kind: input, shape index: {}]
  %s1 = inlined_call_operand.vmem [shape: bf16[36,4], index: 1, kind: input, shape index: {}]
  %s2 = inlined_call_operand.vmem [shape: f32[512,4], index: 2, kind: input, shape index: {}]
  %s3 = inlined_call_operand.vmem [shape: f32[1,4], index: 3, kind: input, shape index: {}]
  %s4 = inlined_call_operand.vmem [shape: f32[1,4], index: 4, kind: input, shape index: {}]
  %s5 = inlined_call_operand.vmem [shape: f32[512,4], index: 5, kind: output, shape index: {0}]
  %s6 = inlined_call_operand.vmem [shape: f32[512,4], index: 6, kind: output, shape index: {1}]
  %7 = xla_tuple %s5, %s6
  %s8 = sld [smem:[#allocation0]]
  $region38: #{run.41} parent=0
    _
  %s10 = ssub.s32 1, %s8
  %s11 = scalar_select 0, %s10, %s8
  // Predicated region
  $region2: #{run.41} parent=0 // pred_check
    _
  $region3: #{run.41} parent=0 // pred_check_branch
    %13 = sbr.rel (0) target = $region5
  $region4: #{run.41} parent=0 // pred_region
    _
  $region5: #{run.41} parent=0 // pred_fallthru
    _
  // Predicated region
  $region6: #{run.41} parent=0 // pred_check
    _
  $region7: #{run.41} parent=0 // pred_check_branch
    %15 = sbr.rel (0) target = $region9
  $region8: #{run.41} parent=0 // pred_region
    _
  $region9: #{run.41} parent=0 // pred_fallthru
    _
  // Predicated region
  $region10: #{run.41} parent=0 // pred_check
    _
  $region11: #{run.41} parent=0 // pred_check_branch
    %17 = sbr.rel (0) target = $region13
  $region12: #{run.41} parent=0 // pred_region
    _
  $region13: #{run.41} parent=0 // pred_fallthru
    _
  // Predicated region
  $region14: #{run.41} parent=0 // pred_check
    _
  $region15: #{run.41} parent=0 // pred_check_branch
    %19 = sbr.rel (0) target = $region17
  $region16: #{run.41} parent=0 // pred_region
    _
  $region17: #{run.41} parent=0 // pred_fallthru
    _
  // Predicated region
  $region18: #{run.41} parent=0 // pred_check
    _
  $region19: #{run.41} parent=0 // pred_check_branch
    %21 = sbr.rel (0) target = $region21
  $region20: #{run.41} parent=0 // pred_region
    _
  $region21: #{run.41} parent=0 // pred_fallthru
    _
  %v23 = vld [vmem:[%s0] sm:$0xf]
  %v24 = vld [vmem:[%s0 + $0x4] sm:$0xf]
  %v25 = vld [vmem:[%s0 + $0x8] sm:$0xf]
  %v26 = vld [vmem:[%s0 + $0xc] sm:$0xf]
  %v27 = vld [vmem:[%s0 + $0x10] sm:$0xf]
  %v28 = vld [vmem:[%s0 + $0x14] sm:$0xf]
  %v29 = vld [vmem:[%s0 + $0x18] sm:$0xf]
  %v30 = vld [vmem:[%s0 + $0x1c] sm:$0xf]
  %v31 = vld [vmem:[%s0 + $0x20] sm:$0xf]
  %v32 = vld [vmem:[%s0 + $0x24] sm:$0xf]
  %v33 = vld [vmem:[%s0 + $0x28] sm:$0xf]
  %v34 = vld [vmem:[%s0 + $0x2c] sm:$0xf]
  %v35 = vld [vmem:[%s0 + $0x30] sm:$0xf]
  %v36 = vld [vmem:[%s0 + $0x34] sm:$0xf]
  %v37 = vld [vmem:[%s0 + $0x38] sm:$0xf]
  %v38 = vld [vmem:[%s0 + $0x3c] sm:$0xf]
  %v39 = vld [vmem:[%s0 + $0x40] sm:$0xf]
  %v40 = vld [vmem:[%s0 + $0x44] sm:$0xf]
  %v41 = vld [vmem:[%s0 + $0x48] sm:$0xf]
  %v42 = vld [vmem:[%s0 + $0x4c] sm:$0xf]
  %v43 = vld [vmem:[%s0 + $0x50] sm:$0xf]
  %v44 = vld [vmem:[%s0 + $0x54] sm:$0xf]
  %v45 = vld [vmem:[%s0 + $0x58] sm:$0xf]
  %v46 = vld [vmem:[%s0 + $0x5c] sm:$0xf]
  %v47 = vld [vmem:[%s0 + $0x60] sm:$0xf]
  %v48 = vld [vmem:[%s0 + $0x64] sm:$0xf]
  %v49 = vld [vmem:[%s0 + $0x68] sm:$0xf]
  %v50 = vld [vmem:[%s0 + $0x6c] sm:$0xf]
  %v51 = vld [vmem:[%s0 + $0x70] sm:$0xf]
  %v52 = vld [vmem:[%s0 + $0x74] sm:$0xf]
  %v53 = vld [vmem:[%s0 + $0x78] sm:$0xf]
  %v54 = vld [vmem:[%s0 + $0x7c] sm:$0xf]
  %v55 = vld [vmem:[%s0 + $0x80] sm:$0xf]
  %v56 = vld [vmem:[%s0 + $0x84] sm:$0xf]
  %v57 = vld [vmem:[%s0 + $0x88] sm:$0xf]
  %v58 = vld [vmem:[%s0 + $0x8c] sm:$0xf]
  %v59 = vld [vmem:[%s0 + $0x90] sm:$0xf]
  %v60 = vld [vmem:[%s0 + $0x94] sm:$0xf]
  %v61 = vld [vmem:[%s0 + $0x98] sm:$0xf]
  %v62 = vld [vmem:[%s0 + $0x9c] sm:$0xf]
  %v63 = vld [vmem:[%s0 + $0xa0] sm:$0xf]
  %v64 = vld [vmem:[%s0 + $0xa4] sm:$0xf]
  %v65 = vld [vmem:[%s0 + $0xa8] sm:$0xf]
  %v66 = vld [vmem:[%s0 + $0xac] sm:$0xf]
  %v67 = vld [vmem:[%s0 + $0xb0] sm:$0xf]
  %v68 = vld [vmem:[%s0 + $0xb4] sm:$0xf]
  %v69 = vld [vmem:[%s0 + $0xb8] sm:$0xf]
  %v70 = vld [vmem:[%s0 + $0xbc] sm:$0xf]
  %v71 = vld [vmem:[%s0 + $0xc0] sm:$0xf]
  %v72 = vld [vmem:[%s0 + $0xc4] sm:$0xf]
  %v73 = vld [vmem:[%s0 + $0xc8] sm:$0xf]
  %v74 = vld [vmem:[%s0 + $0xcc] sm:$0xf]
  %v75 = vld [vmem:[%s0 + $0xd0] sm:$0xf]
  %v76 = vld [vmem:[%s0 + $0xd4] sm:$0xf]
  %v77 = vld [vmem:[%s0 + $0xd8] sm:$0xf]
  %v78 = vld [vmem:[%s0 + $0xdc] sm:$0xf]
  %v79 = vld [vmem:[%s0 + $0xe0] sm:$0xf]
  %v80 = vld [vmem:[%s0 + $0xe4] sm:$0xf]
  %v81 = vld [vmem:[%s0 + $0xe8] sm:$0xf]
  %v82 = vld [vmem:[%s0 + $0xec] sm:$0xf]
  %v83 = vld [vmem:[%s0 + $0xf0] sm:$0xf]
  %v84 = vld [vmem:[%s0 + $0xf4] sm:$0xf]
  %v85 = vld [vmem:[%s0 + $0xf8] sm:$0xf]
  %v86 = vld [vmem:[%s0 + $0xfc] sm:$0xf]
  %v87 = vld [vmem:[%s1] sm:$0xf]
  %v88 = vld [vmem:[%s1 + $0x4] sm:$0xf]
  %v89 = vld [vmem:[%s1 + $0x8] sm:$0xf]
  %v90 = vld [vmem:[%s1 + $0xc] sm:$0xf]
  %v91 = vld [vmem:[%s1 + $0x10] sm:$0x3]
  %v92 = vld [vmem:[%s2] sm:$0xff]
  %v93 = vld [vmem:[%s2 + $0x8] sm:$0xff]
  %v94 = vld [vmem:[%s2 + $0x10] sm:$0xff]
  %v95 = vld [vmem:[%s2 + $0x18] sm:$0xff]
  %v96 = vld [vmem:[%s2 + $0x20] sm:$0xff]
  %v97 = vld [vmem:[%s2 + $0x28] sm:$0xff]
  %v98 = vld [vmem:[%s2 + $0x30] sm:$0xff]
  %v99 = vld [vmem:[%s2 + $0x38] sm:$0xff]
  %v100 = vld [vmem:[%s2 + $0x40] sm:$0xff]
  %v101 = vld [vmem:[%s2 + $0x48] sm:$0xff]
  %v102 = vld [vmem:[%s2 + $0x50] sm:$0xff]
  %v103 = vld [vmem:[%s2 + $0x58] sm:$0xff]
  %v104 = vld [vmem:[%s2 + $0x60] sm:$0xff]
  %v105 = vld [vmem:[%s2 + $0x68] sm:$0xff]
  %v106 = vld [vmem:[%s2 + $0x70] sm:$0xff]
  %v107 = vld [vmem:[%s2 + $0x78] sm:$0xff]
  %v108 = vld [vmem:[%s2 + $0x80] sm:$0xff]
  %v109 = vld [vmem:[%s2 + $0x88] sm:$0xff]
  %v110 = vld [vmem:[%s2 + $0x90] sm:$0xff]
  %v111 = vld [vmem:[%s2 + $0x98] sm:$0xff]
  %v112 = vld [vmem:[%s2 + $0xa0] sm:$0xff]
  %v113 = vld [vmem:[%s2 + $0xa8] sm:$0xff]
  %v114 = vld [vmem:[%s2 + $0xb0] sm:$0xff]
  %v115 = vld [vmem:[%s2 + $0xb8] sm:$0xff]
  %v116 = vld [vmem:[%s2 + $0xc0] sm:$0xff]
  %v117 = vld [vmem:[%s2 + $0xc8] sm:$0xff]
  %v118 = vld [vmem:[%s2 + $0xd0] sm:$0xff]
  %v119 = vld [vmem:[%s2 + $0xd8] sm:$0xff]
  %v120 = vld [vmem:[%s2 + $0xe0] sm:$0xff]
  %v121 = vld [vmem:[%s2 + $0xe8] sm:$0xff]
  %v122 = vld [vmem:[%s2 + $0xf0] sm:$0xff]
  %v123 = vld [vmem:[%s2 + $0xf8] sm:$0xff]
  %v124 = vld [vmem:[%s2 + $0x100] sm:$0xff]
  %v125 = vld [vmem:[%s2 + $0x108] sm:$0xff]
  %v126 = vld [vmem:[%s2 + $0x110] sm:$0xff]
  %v127 = vld [vmem:[%s2 + $0x118] sm:$0xff]
  %v128 = vld [vmem:[%s2 + $0x120] sm:$0xff]
  %v129 = vld [vmem:[%s2 + $0x128] sm:$0xff]
  %v130 = vld [vmem:[%s2 + $0x130] sm:$0xff]
  %v131 = vld [vmem:[%s2 + $0x138] sm:$0xff]
  %v132 = vld [vmem:[%s2 + $0x140] sm:$0xff]
  %v133 = vld [vmem:[%s2 + $0x148] sm:$0xff]
  %v134 = vld [vmem:[%s2 + $0x150] sm:$0xff]
  %v135 = vld [vmem:[%s2 + $0x158] sm:$0xff]
  %v136 = vld [vmem:[%s2 + $0x160] sm:$0xff]
  %v137 = vld [vmem:[%s2 + $0x168] sm:$0xff]
  %v138 = vld [vmem:[%s2 + $0x170] sm:$0xff]
  %v139 = vld [vmem:[%s2 + $0x178] sm:$0xff]
  %v140 = vld [vmem:[%s2 + $0x180] sm:$0xff]
  %v141 = vld [vmem:[%s2 + $0x188] sm:$0xff]
  %v142 = vld [vmem:[%s2 + $0x190] sm:$0xff]
  %v143 = vld [vmem:[%s2 + $0x198] sm:$0xff]
  %v144 = vld [vmem:[%s2 + $0x1a0] sm:$0xff]
  %v145 = vld [vmem:[%s2 + $0x1a8] sm:$0xff]
  %v146 = vld [vmem:[%s2 + $0x1b0] sm:$0xff]
  %v147 = vld [vmem:[%s2 + $0x1b8] sm:$0xff]
  %v148 = vld [vmem:[%s2 + $0x1c0] sm:$0xff]
  %v149 = vld [vmem:[%s2 + $0x1c8] sm:$0xff]
  %v150 = vld [vmem:[%s2 + $0x1d0] sm:$0xff]
  %v151 = vld [vmem:[%s2 + $0x1d8] sm:$0xff]
  %v152 = vld [vmem:[%s2 + $0x1e0] sm:$0xff]
  %v153 = vld [vmem:[%s2 + $0x1e8] sm:$0xff]
  %v154 = vld [vmem:[%s2 + $0x1f0] sm:$0xff]
  %v155 = vld [vmem:[%s2 + $0x1f8] sm:$0xff]
  %v220 = vunpack.c.l.b16 %v23
  %v221 = vunpack.c.l.b16 %v24
  %v222 = vunpack.c.l.b16 %v25
  %v223 = vunpack.c.l.b16 %v26
  %v224 = vunpack.c.l.b16 %v27
  %v225 = vunpack.c.l.b16 %v28
  %v226 = vunpack.c.l.b16 %v29
  %v227 = vunpack.c.l.b16 %v30
  %v228 = vunpack.c.l.b16 %v31
  %v229 = vunpack.c.l.b16 %v32
  %v230 = vunpack.c.l.b16 %v33
  %v231 = vunpack.c.l.b16 %v34
  %v232 = vunpack.c.l.b16 %v35
  %v233 = vunpack.c.l.b16 %v36
  %v234 = vunpack.c.l.b16 %v37
  %v235 = vunpack.c.l.b16 %v38
  %v236 = vunpack.c.l.b16 %v39
  %v237 = vunpack.c.l.b16 %v40
  %v238 = vunpack.c.l.b16 %v41
  %v239 = vunpack.c.l.b16 %v42
  %v240 = vunpack.c.l.b16 %v43
  %v241 = vunpack.c.l.b16 %v44
  %v242 = vunpack.c.l.b16 %v45
  %v243 = vunpack.c.l.b16 %v46
  %v244 = vunpack.c.l.b16 %v47
  %v245 = vunpack.c.l.b16 %v48
  %v246 = vunpack.c.l.b16 %v49
  %v247 = vunpack.c.l.b16 %v50
  %v248 = vunpack.c.l.b16 %v51
  %v249 = vunpack.c.l.b16 %v52
  %v250 = vunpack.c.l.b16 %v53
  %v251 = vunpack.c.l.b16 %v54
  %v252 = vunpack.c.l.b16 %v55
  %v253 = vunpack.c.l.b16 %v56
  %v254 = vunpack.c.l.b16 %v57
  %v255 = vunpack.c.l.b16 %v58
  %v256 = vunpack.c.l.b16 %v59
  %v257 = vunpack.c.l.b16 %v60
  %v258 = vunpack.c.l.b16 %v61
  %v259 = vunpack.c.l.b16 %v62
  %v260 = vunpack.c.l.b16 %v63
  %v261 = vunpack.c.l.b16 %v64
  %v262 = vunpack.c.l.b16 %v65
  %v263 = vunpack.c.l.b16 %v66
  %v264 = vunpack.c.l.b16 %v67
  %v265 = vunpack.c.l.b16 %v68
  %v266 = vunpack.c.l.b16 %v69
  %v267 = vunpack.c.l.b16 %v70
  %v268 = vunpack.c.l.b16 %v71
  %v269 = vunpack.c.l.b16 %v72
  %v270 = vunpack.c.l.b16 %v73
  %v271 = vunpack.c.l.b16 %v74
  %v272 = vunpack.c.l.b16 %v75
  %v273 = vunpack.c.l.b16 %v76
  %v274 = vunpack.c.l.b16 %v77
  %v275 = vunpack.c.l.b16 %v78
  %v276 = vunpack.c.l.b16 %v79
  %v277 = vunpack.c.l.b16 %v80
  %v278 = vunpack.c.l.b16 %v81
  %v279 = vunpack.c.l.b16 %v82
  %v280 = vunpack.c.l.b16 %v83
  %v281 = vunpack.c.l.b16 %v84
  %v282 = vunpack.c.l.b16 %v85
  %v283 = vunpack.c.l.b16 %v86
  %v284 = vpack.c.b16 %v221, %v220
  %v285 = vpack.c.b16 %v223, %v222
  %v286 = vpack.c.b16 %v225, %v224
  %v287 = vpack.c.b16 %v227, %v226
  %v288 = vpack.c.b16 %v229, %v228
  %v289 = vpack.c.b16 %v231, %v230
  %v290 = vpack.c.b16 %v233, %v232
  %v291 = vpack.c.b16 %v235, %v234
  %v292 = vpack.c.b16 %v237, %v236
  %v293 = vpack.c.b16 %v239, %v238
  %v294 = vpack.c.b16 %v241, %v240
  %v295 = vpack.c.b16 %v243, %v242
  %v296 = vpack.c.b16 %v245, %v244
  %v297 = vpack.c.b16 %v247, %v246
  %v298 = vpack.c.b16 %v249, %v248
  %v299 = vpack.c.b16 %v251, %v250
  %v300 = vpack.c.b16 %v253, %v252
  %v301 = vpack.c.b16 %v255, %v254
  %v302 = vpack.c.b16 %v257, %v256
  %v303 = vpack.c.b16 %v259, %v258
  %v304 = vpack.c.b16 %v261, %v260
  %v305 = vpack.c.b16 %v263, %v262
  %v306 = vpack.c.b16 %v265, %v264
  %v307 = vpack.c.b16 %v267, %v266
  %v308 = vpack.c.b16 %v269, %v268
  %v309 = vpack.c.b16 %v271, %v270
  %v310 = vpack.c.b16 %v273, %v272
  %v311 = vpack.c.b16 %v275, %v274
  %v312 = vpack.c.b16 %v277, %v276
  %v313 = vpack.c.b16 %v279, %v278
  %v314 = vpack.c.b16 %v281, %v280
  %v315 = vpack.c.b16 %v283, %v282
  %v321 = vunpack.c.l.b16 %v87
  %v322 = vunpack.c.l.b16 %v88
  %v323 = vunpack.c.l.b16 %v89
  %v324 = vunpack.c.l.b16 %v90
  %v325 = vunpack.c.l.b16 %v91
  %v326 = vpack.c.b16 %v322, %v321
  %v327 = vpack.c.b16 %v324, %v323
  %v328 = vpack.c.b16 %v325, %v325
  %vm331 = vcmask 293888
  %v333 = vsel %vm331, %v284, 0
  %v336 = vsel %vm331, %v285, 0
  %v339 = vsel %vm331, %v286, 0
  %v342 = vsel %vm331, %v287, 0
  %v345 = vsel %vm331, %v288, 0
  %v348 = vsel %vm331, %v289, 0
  %v351 = vsel %vm331, %v290, 0
  %v354 = vsel %vm331, %v291, 0
  %v357 = vsel %vm331, %v292, 0
  %v360 = vsel %vm331, %v293, 0
  %v363 = vsel %vm331, %v294, 0
  %v366 = vsel %vm331, %v295, 0
  %v369 = vsel %vm331, %v296, 0
  %v372 = vsel %vm331, %v297, 0
  %v375 = vsel %vm331, %v298, 0
  %v378 = vsel %vm331, %v299, 0
  %v381 = vsel %vm331, %v300, 0
  %v384 = vsel %vm331, %v301, 0
  %v387 = vsel %vm331, %v302, 0
  %v390 = vsel %vm331, %v303, 0
  %v393 = vsel %vm331, %v304, 0
  %v396 = vsel %vm331, %v305, 0
  %v399 = vsel %vm331, %v306, 0
  %v402 = vsel %vm331, %v307, 0
  %v405 = vsel %vm331, %v308, 0
  %v408 = vsel %vm331, %v309, 0
  %v411 = vsel %vm331, %v310, 0
  %v414 = vsel %vm331, %v311, 0
  %v417 = vsel %vm331, %v312, 0
  %v420 = vsel %vm331, %v313, 0
  %v423 = vsel %vm331, %v314, 0
  %v426 = vsel %vm331, %v315, 0
  %vm428 = vcmask 1041408
  %v430 = vsel %vm428, %v328, 0
  %432 = vmatprep.subr.bf16.mxu0 0
  %433 = vmatpush1.bf16.msra.mxu0 0
  %434 = vmatprep.subr.bf16.mxu0 0
  %435 = vmatpush1.bf16.msra.mxu0 0
  %436 = vmatprep.subr.bf16.mxu0 0
  %437 = vmatpush1.bf16.msra.mxu0 0
  %438 = vmatprep.subr.bf16.mxu0 0
  %439 = vmatpush1.bf16.msra.mxu0 0
  %440 = vmatprep.subr.bf16.mxu0 0
  %441 = vmatpush1.bf16.msra.mxu0 0
  %442 = vmatprep.subr.bf16.mxu0 0
  %443 = vmatpush1.bf16.msra.mxu0 %v430
  %444 = vmatprep.subr.bf16.mxu0 0
  %445 = vmatpush1.bf16.msra.mxu0 %v327
  %446 = vmatprep.subr.bf16.mxu0 0
  %447 = vmatpush1.bf16.msra.mxu0 %v326
  %448 = vmatprep.subr.bf16.mxu0 0
  %449 = vmatpush2.bf16.msra.mxu0 0
  %450 = vmatprep.subr.bf16.mxu0 0
  %451 = vmatpush2.bf16.msra.mxu0 0
  %452 = vmatprep.subr.bf16.mxu0 0
  %453 = vmatpush2.bf16.msra.mxu0 0
  %454 = vmatprep.subr.bf16.mxu0 0
  %455 = vmatpush2.bf16.msra.mxu0 0
  %456 = vmatprep.subr.bf16.mxu0 0
  %457 = vmatpush2.bf16.msra.mxu0 0
  %458 = vmatprep.subr.bf16.mxu0 0
  %459 = vmatpush2.bf16.msra.mxu0 0
  %460 = vmatprep.subr.bf16.mxu0 0
  %461 = vmatpush2.bf16.msra.mxu0 0
  %462 = vmatprep.subr.bf16.mxu0 0
  %463 = vmatpush2.bf16.msra.mxu0 0
  %464 = vmatprep.mubr.bf16.mxu0 0
  %465 = vmatmul.mubr.bf16.gmra.mxu0 %v333
  %v466 = vpop.f32.mrf.mxu0
  %v467 = vadd.f32 %v92, %v466
  %v468 = vpop.f32.mrf.mxu0
  %v469 = vpop.f32.mrf.mxu0
  %v470 = vadd.f32 %v93, %v469
  %v471 = vpop.f32.mrf.mxu0
  %472 = vmatprep.mubr.bf16.mxu0 0
  %473 = vmatmul.mubr.bf16.gmra.mxu0 %v336
  %v474 = vpop.f32.mrf.mxu0
  %v475 = vadd.f32 %v94, %v474
  %v476 = vpop.f32.mrf.mxu0
  %v477 = vpop.f32.mrf.mxu0
  %v478 = vadd.f32 %v95, %v477
  %v479 = vpop.f32.mrf.mxu0
  %480 = vmatprep.mubr.bf16.mxu0 0
  %481 = vmatmul.mubr.bf16.gmra.mxu0 %v339
  %v482 = vpop.f32.mrf.mxu0
  %v483 = vadd.f32 %v96, %v482
  %v484 = vpop.f32.mrf.mxu0
  %v485 = vpop.f32.mrf.mxu0
  %v486 = vadd.f32 %v97, %v485
  %v487 = vpop.f32.mrf.mxu0
  %488 = vmatprep.mubr.bf16.mxu0 0
  %489 = vmatmul.mubr.bf16.gmra.mxu0 %v342
  %v490 = vpop.f32.mrf.mxu0
  %v491 = vadd.f32 %v98, %v490
  %v492 = vpop.f32.mrf.mxu0
  %v493 = vpop.f32.mrf.mxu0
  %v494 = vadd.f32 %v99, %v493
  %v495 = vpop.f32.mrf.mxu0
  %496 = vmatprep.mubr.bf16.mxu0 0
  %497 = vmatmul.mubr.bf16.gmra.mxu0 %v345
  %v498 = vpop.f32.mrf.mxu0
  %v499 = vadd.f32 %v100, %v498
  %v500 = vpop.f32.mrf.mxu0
  %v501 = vpop.f32.mrf.mxu0
  %v502 = vadd.f32 %v101, %v501
  %v503 = vpop.f32.mrf.mxu0
  %504 = vmatprep.mubr.bf16.mxu0 0
  %505 = vmatmul.mubr.bf16.gmra.mxu0 %v348
  %v506 = vpop.f32.mrf.mxu0
  %v507 = vadd.f32 %v102, %v506
  %v508 = vpop.f32.mrf.mxu0
  %v509 = vpop.f32.mrf.mxu0
  %v510 = vadd.f32 %v103, %v509
  %v511 = vpop.f32.mrf.mxu0
  %512 = vmatprep.mubr.bf16.mxu0 0
  %513 = vmatmul.mubr.bf16.gmra.mxu0 %v351
  %v514 = vpop.f32.mrf.mxu0
  %v515 = vadd.f32 %v104, %v514
  %v516 = vpop.f32.mrf.mxu0
  %v517 = vpop.f32.mrf.mxu0
  %v518 = vadd.f32 %v105, %v517
  %v519 = vpop.f32.mrf.mxu0
  %520 = vmatprep.mubr.bf16.mxu0 0
  %521 = vmatmul.mubr.bf16.gmra.mxu0 %v354
  %v522 = vpop.f32.mrf.mxu0
  %v523 = vadd.f32 %v106, %v522
  %v524 = vpop.f32.mrf.mxu0
  %v525 = vpop.f32.mrf.mxu0
  %v526 = vadd.f32 %v107, %v525
  %v527 = vpop.f32.mrf.mxu0
  %528 = vmatprep.mubr.bf16.mxu0 0
  %529 = vmatmul.mubr.bf16.gmra.mxu0 %v357
  %v530 = vpop.f32.mrf.mxu0
  %v531 = vadd.f32 %v108, %v530
  %v532 = vpop.f32.mrf.mxu0
  %v533 = vpop.f32.mrf.mxu0
  %v534 = vadd.f32 %v109, %v533
  %v535 = vpop.f32.mrf.mxu0
  %536 = vmatprep.mubr.bf16.mxu0 0
  %537 = vmatmul.mubr.bf16.gmra.mxu0 %v360
  %v538 = vpop.f32.mrf.mxu0
  %v539 = vadd.f32 %v110, %v538
  %v540 = vpop.f32.mrf.mxu0
  %v541 = vpop.f32.mrf.mxu0
  %v542 = vadd.f32 %v111, %v541
  %v543 = vpop.f32.mrf.mxu0
  %544 = vmatprep.mubr.bf16.mxu0 0
  %545 = vmatmul.mubr.bf16.gmra.mxu0 %v363
  %v546 = vpop.f32.mrf.mxu0
  %v547 = vadd.f32 %v112, %v546
  %v548 = vpop.f32.mrf.mxu0
  %v549 = vpop.f32.mrf.mxu0
  %v550 = vadd.f32 %v113, %v549
  %v551 = vpop.f32.mrf.mxu0
  %552 = vmatprep.mubr.bf16.mxu0 0
  %553 = vmatmul.mubr.bf16.gmra.mxu0 %v366
  %v554 = vpop.f32.mrf.mxu0
  %v555 = vadd.f32 %v114, %v554
  %v556 = vpop.f32.mrf.mxu0
  %v557 = vpop.f32.mrf.mxu0
  %v558 = vadd.f32 %v115, %v557
  %v559 = vpop.f32.mrf.mxu0
  %560 = vmatprep.mubr.bf16.mxu0 0
  %561 = vmatmul.mubr.bf16.gmra.mxu0 %v369
  %v562 = vpop.f32.mrf.mxu0
  %v563 = vadd.f32 %v116, %v562
  %v564 = vpop.f32.mrf.mxu0
  %v565 = vpop.f32.mrf.mxu0
  %v566 = vadd.f32 %v117, %v565
  %v567 = vpop.f32.mrf.mxu0
  %568 = vmatprep.mubr.bf16.mxu0 0
  %569 = vmatmul.mubr.bf16.gmra.mxu0 %v372
  %v570 = vpop.f32.mrf.mxu0
  %v571 = vadd.f32 %v118, %v570
  %v572 = vpop.f32.mrf.mxu0
  %v573 = vpop.f32.mrf.mxu0
  %v574 = vadd.f32 %v119, %v573
  %v575 = vpop.f32.mrf.mxu0
  %576 = vmatprep.mubr.bf16.mxu0 0
  %577 = vmatmul.mubr.bf16.gmra.mxu0 %v375
  %v578 = vpop.f32.mrf.mxu0
  %v579 = vadd.f32 %v120, %v578
  %v580 = vpop.f32.mrf.mxu0
  %v581 = vpop.f32.mrf.mxu0
  %v582 = vadd.f32 %v121, %v581
  %v583 = vpop.f32.mrf.mxu0
  %584 = vmatprep.mubr.bf16.mxu0 0
  %585 = vmatmul.mubr.bf16.gmra.mxu0 %v378
  %v586 = vpop.f32.mrf.mxu0
  %v587 = vadd.f32 %v122, %v586
  %v588 = vpop.f32.mrf.mxu0
  %v589 = vpop.f32.mrf.mxu0
  %v590 = vadd.f32 %v123, %v589
  %v591 = vpop.f32.mrf.mxu0
  %592 = vmatprep.mubr.bf16.mxu0 0
  %593 = vmatmul.mubr.bf16.gmra.mxu0 %v381
  %v594 = vpop.f32.mrf.mxu0
  %v595 = vadd.f32 %v124, %v594
  %v596 = vpop.f32.mrf.mxu0
  %v597 = vpop.f32.mrf.mxu0
  %v598 = vadd.f32 %v125, %v597
  %v599 = vpop.f32.mrf.mxu0
  %600 = vmatprep.mubr.bf16.mxu0 0
  %601 = vmatmul.mubr.bf16.gmra.mxu0 %v384
  %v602 = vpop.f32.mrf.mxu0
  %v603 = vadd.f32 %v126, %v602
  %v604 = vpop.f32.mrf.mxu0
  %v605 = vpop.f32.mrf.mxu0
  %v606 = vadd.f32 %v127, %v605
  %v607 = vpop.f32.mrf.mxu0
  %608 = vmatprep.mubr.bf16.mxu0 0
  %609 = vmatmul.mubr.bf16.gmra.mxu0 %v387
  %v610 = vpop.f32.mrf.mxu0
  %v611 = vadd.f32 %v128, %v610
  %v612 = vpop.f32.mrf.mxu0
  %v613 = vpop.f32.mrf.mxu0
  %v614 = vadd.f32 %v129, %v613
  %v615 = vpop.f32.mrf.mxu0
  %616 = vmatprep.mubr.bf16.mxu0 0
  %617 = vmatmul.mubr.bf16.gmra.mxu0 %v390
  %v618 = vpop.f32.mrf.mxu0
  %v619 = vadd.f32 %v130, %v618
  %v620 = vpop.f32.mrf.mxu0
  %v621 = vpop.f32.mrf.mxu0
  %v622 = vadd.f32 %v131, %v621
  %v623 = vpop.f32.mrf.mxu0
  %624 = vmatprep.mubr.bf16.mxu0 0
  %625 = vmatmul.mubr.bf16.gmra.mxu0 %v393
  %v626 = vpop.f32.mrf.mxu0
  %v627 = vadd.f32 %v132, %v626
  %v628 = vpop.f32.mrf.mxu0
  %v629 = vpop.f32.mrf.mxu0
  %v630 = vadd.f32 %v133, %v629
  %v631 = vpop.f32.mrf.mxu0
  %632 = vmatprep.mubr.bf16.mxu0 0
  %633 = vmatmul.mubr.bf16.gmra.mxu0 %v396
  %v634 = vpop.f32.mrf.mxu0
  %v635 = vadd.f32 %v134, %v634
  %v636 = vpop.f32.mrf.mxu0
  %v637 = vpop.f32.mrf.mxu0
  %v638 = vadd.f32 %v135, %v637
  %v639 = vpop.f32.mrf.mxu0
  %640 = vmatprep.mubr.bf16.mxu0 0
  %641 = vmatmul.mubr.bf16.gmra.mxu0 %v399
  %v642 = vpop.f32.mrf.mxu0
  %v643 = vadd.f32 %v136, %v642
  %v644 = vpop.f32.mrf.mxu0
  %v645 = vpop.f32.mrf.mxu0
  %v646 = vadd.f32 %v137, %v645
  %v647 = vpop.f32.mrf.mxu0
  %648 = vmatprep.mubr.bf16.mxu0 0
  %649 = vmatmul.mubr.bf16.gmra.mxu0 %v402
  %v650 = vpop.f32.mrf.mxu0
  %v651 = vadd.f32 %v138, %v650
  %v652 = vpop.f32.mrf.mxu0
  %v653 = vpop.f32.mrf.mxu0
  %v654 = vadd.f32 %v139, %v653
  %v655 = vpop.f32.mrf.mxu0
  %656 = vmatprep.mubr.bf16.mxu0 0
  %657 = vmatmul.mubr.bf16.gmra.mxu0 %v405
  %v658 = vpop.f32.mrf.mxu0
  %v659 = vadd.f32 %v140, %v658
  %v660 = vpop.f32.mrf.mxu0
  %v661 = vpop.f32.mrf.mxu0
  %v662 = vadd.f32 %v141, %v661
  %v663 = vpop.f32.mrf.mxu0
  %664 = vmatprep.mubr.bf16.mxu0 0
  %665 = vmatmul.mubr.bf16.gmra.mxu0 %v408
  %v666 = vpop.f32.mrf.mxu0
  %v667 = vadd.f32 %v142, %v666
  %v668 = vpop.f32.mrf.mxu0
  %v669 = vpop.f32.mrf.mxu0
  %v670 = vadd.f32 %v143, %v669
  %v671 = vpop.f32.mrf.mxu0
  %672 = vmatprep.mubr.bf16.mxu0 0
  %673 = vmatmul.mubr.bf16.gmra.mxu0 %v411
  %v674 = vpop.f32.mrf.mxu0
  %v675 = vadd.f32 %v144, %v674
  %v676 = vpop.f32.mrf.mxu0
  %v677 = vpop.f32.mrf.mxu0
  %v678 = vadd.f32 %v145, %v677
  %v679 = vpop.f32.mrf.mxu0
  %680 = vmatprep.mubr.bf16.mxu0 0
  %681 = vmatmul.mubr.bf16.gmra.mxu0 %v414
  %v682 = vpop.f32.mrf.mxu0
  %v683 = vadd.f32 %v146, %v682
  %v684 = vpop.f32.mrf.mxu0
  %v685 = vpop.f32.mrf.mxu0
  %v686 = vadd.f32 %v147, %v685
  %v687 = vpop.f32.mrf.mxu0
  %688 = vmatprep.mubr.bf16.mxu0 0
  %689 = vmatmul.mubr.bf16.gmra.mxu0 %v417
  %v690 = vpop.f32.mrf.mxu0
  %v691 = vadd.f32 %v148, %v690
  %v692 = vpop.f32.mrf.mxu0
  %v693 = vpop.f32.mrf.mxu0
  %v694 = vadd.f32 %v149, %v693
  %v695 = vpop.f32.mrf.mxu0
  %696 = vmatprep.mubr.bf16.mxu0 0
  %697 = vmatmul.mubr.bf16.gmra.mxu0 %v420
  %v698 = vpop.f32.mrf.mxu0
  %v699 = vadd.f32 %v150, %v698
  %v700 = vpop.f32.mrf.mxu0
  %v701 = vpop.f32.mrf.mxu0
  %v702 = vadd.f32 %v151, %v701
  %v703 = vpop.f32.mrf.mxu0
  %704 = vmatprep.mubr.bf16.mxu0 0
  %705 = vmatmul.mubr.bf16.gmra.mxu0 %v423
  %v706 = vpop.f32.mrf.mxu0
  %v707 = vadd.f32 %v152, %v706
  %v708 = vpop.f32.mrf.mxu0
  %v709 = vpop.f32.mrf.mxu0
  %v710 = vadd.f32 %v153, %v709
  %v711 = vpop.f32.mrf.mxu0
  %712 = vmatprep.mubr.bf16.mxu0 0
  %713 = vmatmul.mubr.bf16.gmra.mxu0 %v426
  %v714 = vpop.f32.mrf.mxu0
  %v715 = vadd.f32 %v154, %v714
  %v716 = vpop.f32.mrf.mxu0
  %v717 = vpop.f32.mrf.mxu0
  %v718 = vadd.f32 %v155, %v717
  %v719 = vpop.f32.mrf.mxu0
  %720 = vdwg.mxu0
  %vm721 = vcmask 31744
  %722 = vst.msk [vmem:[%s5] sm:$0xff] %vm721, %v467
  %723 = vst.msk [vmem:[%s5 + $0x8] sm:$0xff] %vm721, %v470
  %724 = vst.msk [vmem:[%s5 + $0x10] sm:$0xff] %vm721, %v475
  %725 = vst.msk [vmem:[%s5 + $0x18] sm:$0xff] %vm721, %v478
  %726 = vst.msk [vmem:[%s5 + $0x20] sm:$0xff] %vm721, %v483
  %727 = vst.msk [vmem:[%s5 + $0x28] sm:$0xff] %vm721, %v486
  %728 = vst.msk [vmem:[%s5 + $0x30] sm:$0xff] %vm721, %v491
  %729 = vst.msk [vmem:[%s5 + $0x38] sm:$0xff] %vm721, %v494
  %730 = vst.msk [vmem:[%s5 + $0x40] sm:$0xff] %vm721, %v499
  %731 = vst.msk [vmem:[%s5 + $0x48] sm:$0xff] %vm721, %v502
  %732 = vst.msk [vmem:[%s5 + $0x50] sm:$0xff] %vm721, %v507
  %733 = vst.msk [vmem:[%s5 + $0x58] sm:$0xff] %vm721, %v510
  %734 = vst.msk [vmem:[%s5 + $0x60] sm:$0xff] %vm721, %v515
  %735 = vst.msk [vmem:[%s5 + $0x68] sm:$0xff] %vm721, %v518
  %736 = vst.msk [vmem:[%s5 + $0x70] sm:$0xff] %vm721, %v523
  %737 = vst.msk [vmem:[%s5 + $0x78] sm:$0xff] %vm721, %v526
  %738 = vst.msk [vmem:[%s5 + $0x80] sm:$0xff] %vm721, %v531
  %739 = vst.msk [vmem:[%s5 + $0x88] sm:$0xff] %vm721, %v534
  %740 = vst.msk [vmem:[%s5 + $0x90] sm:$0xff] %vm721, %v539
  %741 = vst.msk [vmem:[%s5 + $0x98] sm:$0xff] %vm721, %v542
  %742 = vst.msk [vmem:[%s5 + $0xa0] sm:$0xff] %vm721, %v547
  %743 = vst.msk [vmem:[%s5 + $0xa8] sm:$0xff] %vm721, %v550
  %744 = vst.msk [vmem:[%s5 + $0xb0] sm:$0xff] %vm721, %v555
  %745 = vst.msk [vmem:[%s5 + $0xb8] sm:$0xff] %vm721, %v558
  %746 = vst.msk [vmem:[%s5 + $0xc0] sm:$0xff] %vm721, %v563
  %747 = vst.msk [vmem:[%s5 + $0xc8] sm:$0xff] %vm721, %v566
  %748 = vst.msk [vmem:[%s5 + $0xd0] sm:$0xff] %vm721, %v571
  %749 = vst.msk [vmem:[%s5 + $0xd8] sm:$0xff] %vm721, %v574
  %750 = vst.msk [vmem:[%s5 + $0xe0] sm:$0xff] %vm721, %v579
  %751 = vst.msk [vmem:[%s5 + $0xe8] sm:$0xff] %vm721, %v582
  %752 = vst.msk [vmem:[%s5 + $0xf0] sm:$0xff] %vm721, %v587
  %753 = vst.msk [vmem:[%s5 + $0xf8] sm:$0xff] %vm721, %v590
  %754 = vst.msk [vmem:[%s5 + $0x100] sm:$0xff] %vm721, %v595
  %755 = vst.msk [vmem:[%s5 + $0x108] sm:$0xff] %vm721, %v598
  %756 = vst.msk [vmem:[%s5 + $0x110] sm:$0xff] %vm721, %v603
  %757 = vst.msk [vmem:[%s5 + $0x118] sm:$0xff] %vm721, %v606
  %758 = vst.msk [vmem:[%s5 + $0x120] sm:$0xff] %vm721, %v611
  %759 = vst.msk [vmem:[%s5 + $0x128] sm:$0xff] %vm721, %v614
  %760 = vst.msk [vmem:[%s5 + $0x130] sm:$0xff] %vm721, %v619
  %761 = vst.msk [vmem:[%s5 + $0x138] sm:$0xff] %vm721, %v622
  %762 = vst.msk [vmem:[%s5 + $0x140] sm:$0xff] %vm721, %v627
  %763 = vst.msk [vmem:[%s5 + $0x148] sm:$0xff] %vm721, %v630
  %764 = vst.msk [vmem:[%s5 + $0x150] sm:$0xff] %vm721, %v635
  %765 = vst.msk [vmem:[%s5 + $0x158] sm:$0xff] %vm721, %v638
  %766 = vst.msk [vmem:[%s5 + $0x160] sm:$0xff] %vm721, %v643
  %767 = vst.msk [vmem:[%s5 + $0x168] sm:$0xff] %vm721, %v646
  %768 = vst.msk [vmem:[%s5 + $0x170] sm:$0xff] %vm721, %v651
  %769 = vst.msk [vmem:[%s5 + $0x178] sm:$0xff] %vm721, %v654
  %770 = vst.msk [vmem:[%s5 + $0x180] sm:$0xff] %vm721, %v659
  %771 = vst.msk [vmem:[%s5 + $0x188] sm:$0xff] %vm721, %v662
  %772 = vst.msk [vmem:[%s5 + $0x190] sm:$0xff] %vm721, %v667
  %773 = vst.msk [vmem:[%s5 + $0x198] sm:$0xff] %vm721, %v670
  %774 = vst.msk [vmem:[%s5 + $0x1a0] sm:$0xff] %vm721, %v675
  %775 = vst.msk [vmem:[%s5 + $0x1a8] sm:$0xff] %vm721, %v678
  %776 = vst.msk [vmem:[%s5 + $0x1b0] sm:$0xff] %vm721, %v683
  %777 = vst.msk [vmem:[%s5 + $0x1b8] sm:$0xff] %vm721, %v686
  %778 = vst.msk [vmem:[%s5 + $0x1c0] sm:$0xff] %vm721, %v691
  %779 = vst.msk [vmem:[%s5 + $0x1c8] sm:$0xff] %vm721, %v694
  %780 = vst.msk [vmem:[%s5 + $0x1d0] sm:$0xff] %vm721, %v699
  %781 = vst.msk [vmem:[%s5 + $0x1d8] sm:$0xff] %vm721, %v702
  %782 = vst.msk [vmem:[%s5 + $0x1e0] sm:$0xff] %vm721, %v707
  %783 = vst.msk [vmem:[%s5 + $0x1e8] sm:$0xff] %vm721, %v710
  %784 = vst.msk [vmem:[%s5 + $0x1f0] sm:$0xff] %vm721, %v715
  %785 = vst.msk [vmem:[%s5 + $0x1f8] sm:$0xff] %vm721, %v718
  %v786 = vld [vmem:[%s3] sm:$0x1]
  %v788 = vlaneseq
  %v789 = vshrl.u32 %v788, 7
  %v790 = vsub.s32 0, %v789
  %v791 = vrot.slane %v786, %v790
  %v793 = vmul.f32 %v467, %v791
  %v794 = vmul.f32 %v470, %v791
  %v795 = vmul.f32 %v475, %v791
  %v796 = vmul.f32 %v478, %v791
  %v797 = vmul.f32 %v483, %v791
  %v798 = vmul.f32 %v486, %v791
  %v799 = vmul.f32 %v491, %v791
  %v800 = vmul.f32 %v494, %v791
  %v801 = vmul.f32 %v499, %v791
  %v802 = vmul.f32 %v502, %v791
  %v803 = vmul.f32 %v507, %v791
  %v804 = vmul.f32 %v510, %v791
  %v805 = vmul.f32 %v515, %v791
  %v806 = vmul.f32 %v518, %v791
  %v807 = vmul.f32 %v523, %v791
  %v808 = vmul.f32 %v526, %v791
  %v809 = vmul.f32 %v531, %v791
  %v810 = vmul.f32 %v534, %v791
  %v811 = vmul.f32 %v539, %v791
  %v812 = vmul.f32 %v542, %v791
  %v813 = vmul.f32 %v547, %v791
  %v814 = vmul.f32 %v550, %v791
  %v815 = vmul.f32 %v555, %v791
  %v816 = vmul.f32 %v558, %v791
  %v817 = vmul.f32 %v563, %v791
  %v818 = vmul.f32 %v566, %v791
  %v819 = vmul.f32 %v571, %v791
  %v820 = vmul.f32 %v574, %v791
  %v821 = vmul.f32 %v579, %v791
  %v822 = vmul.f32 %v582, %v791
  %v823 = vmul.f32 %v587, %v791
  %v824 = vmul.f32 %v590, %v791
  %v825 = vmul.f32 %v595, %v791
  %v826 = vmul.f32 %v598, %v791
  %v827 = vmul.f32 %v603, %v791
  %v828 = vmul.f32 %v606, %v791
  %v829 = vmul.f32 %v611, %v791
  %v830 = vmul.f32 %v614, %v791
  %v831 = vmul.f32 %v619, %v791
  %v832 = vmul.f32 %v622, %v791
  %v833 = vmul.f32 %v627, %v791
  %v834 = vmul.f32 %v630, %v791
  %v835 = vmul.f32 %v635, %v791
  %v836 = vmul.f32 %v638, %v791
  %v837 = vmul.f32 %v643, %v791
  %v838 = vmul.f32 %v646, %v791
  %v839 = vmul.f32 %v651, %v791
  %v840 = vmul.f32 %v654, %v791
  %v841 = vmul.f32 %v659, %v791
  %v842 = vmul.f32 %v662, %v791
  %v843 = vmul.f32 %v667, %v791
  %v844 = vmul.f32 %v670, %v791
  %v845 = vmul.f32 %v675, %v791
  %v846 = vmul.f32 %v678, %v791
  %v847 = vmul.f32 %v683, %v791
  %v848 = vmul.f32 %v686, %v791
  %v849 = vmul.f32 %v691, %v791
  %v850 = vmul.f32 %v694, %v791
  %v851 = vmul.f32 %v699, %v791
  %v852 = vmul.f32 %v702, %v791
  %v853 = vmul.f32 %v707, %v791
  %v854 = vmul.f32 %v710, %v791
  %v855 = vmul.f32 %v715, %v791
  %v856 = vmul.f32 %v718, %v791
  %v857 = vld [vmem:[%s4] sm:$0x1]
  %v859 = vlaneseq
  %v860 = vshrl.u32 %v859, 7
  %v861 = vsub.s32 0, %v860
  %v862 = vrot.slane %v857, %v861
  %v864 = vadd.f32 %v793, %v862
  %v865 = vadd.f32 %v794, %v862
  %v866 = vadd.f32 %v795, %v862
  %v867 = vadd.f32 %v796, %v862
  %v868 = vadd.f32 %v797, %v862
  %v869 = vadd.f32 %v798, %v862
  %v870 = vadd.f32 %v799, %v862
  %v871 = vadd.f32 %v800, %v862
  %v872 = vadd.f32 %v801, %v862
  %v873 = vadd.f32 %v802, %v862
  %v874 = vadd.f32 %v803, %v862
  %v875 = vadd.f32 %v804, %v862
  %v876 = vadd.f32 %v805, %v862
  %v877 = vadd.f32 %v806, %v862
  %v878 = vadd.f32 %v807, %v862
  %v879 = vadd.f32 %v808, %v862
  %v880 = vadd.f32 %v809, %v862
  %v881 = vadd.f32 %v810, %v862
  %v882 = vadd.f32 %v811, %v862
  %v883 = vadd.f32 %v812, %v862
  %v884 = vadd.f32 %v813, %v862
  %v885 = vadd.f32 %v814, %v862
  %v886 = vadd.f32 %v815, %v862
  %v887 = vadd.f32 %v816, %v862
  %v888 = vadd.f32 %v817, %v862
  %v889 = vadd.f32 %v818, %v862
  %v890 = vadd.f32 %v819, %v862
  %v891 = vadd.f32 %v820, %v862
  %v892 = vadd.f32 %v821, %v862
  %v893 = vadd.f32 %v822, %v862
  %v894 = vadd.f32 %v823, %v862
  %v895 = vadd.f32 %v824, %v862
  %v896 = vadd.f32 %v825, %v862
  %v897 = vadd.f32 %v826, %v862
  %v898 = vadd.f32 %v827, %v862
  %v899 = vadd.f32 %v828, %v862
  %v900 = vadd.f32 %v829, %v862
  %v901 = vadd.f32 %v830, %v862
  %v902 = vadd.f32 %v831, %v862
  %v903 = vadd.f32 %v832, %v862
  %v904 = vadd.f32 %v833, %v862
  %v905 = vadd.f32 %v834, %v862
  %v906 = vadd.f32 %v835, %v862
  %v907 = vadd.f32 %v836, %v862
  %v908 = vadd.f32 %v837, %v862
  %v909 = vadd.f32 %v838, %v862
  %v910 = vadd.f32 %v839, %v862
  %v911 = vadd.f32 %v840, %v862
  %v912 = vadd.f32 %v841, %v862
  %v913 = vadd.f32 %v842, %v862
  %v914 = vadd.f32 %v843, %v862
  %v915 = vadd.f32 %v844, %v862
  %v916 = vadd.f32 %v845, %v862
  %v917 = vadd.f32 %v846, %v862
  %v918 = vadd.f32 %v847, %v862
  %v919 = vadd.f32 %v848, %v862
  %v920 = vadd.f32 %v849, %v862
  %v921 = vadd.f32 %v850, %v862
  %v922 = vadd.f32 %v851, %v862
  %v923 = vadd.f32 %v852, %v862
  %v924 = vadd.f32 %v853, %v862
  %v925 = vadd.f32 %v854, %v862
  %v926 = vadd.f32 %v855, %v862
  %v927 = vadd.f32 %v856, %v862
  %v928 = vmax.f32 %v864, 0.0
  %v929 = vmax.f32 %v865, 0.0
  %v930 = vmax.f32 %v866, 0.0
  %v931 = vmax.f32 %v867, 0.0
  %v932 = vmax.f32 %v868, 0.0
  %v933 = vmax.f32 %v869, 0.0
  %v934 = vmax.f32 %v870, 0.0
  %v935 = vmax.f32 %v871, 0.0
  %v936 = vmax.f32 %v872, 0.0
  %v937 = vmax.f32 %v873, 0.0
  %v938 = vmax.f32 %v874, 0.0
  %v939 = vmax.f32 %v875, 0.0
  %v940 = vmax.f32 %v876, 0.0
  %v941 = vmax.f32 %v877, 0.0
  %v942 = vmax.f32 %v878, 0.0
  %v943 = vmax.f32 %v879, 0.0
  %v944 = vmax.f32 %v880, 0.0
  %v945 = vmax.f32 %v881, 0.0
  %v946 = vmax.f32 %v882, 0.0
  %v947 = vmax.f32 %v883, 0.0
  %v948 = vmax.f32 %v884, 0.0
  %v949 = vmax.f32 %v885, 0.0
  %v950 = vmax.f32 %v886, 0.0
  %v951 = vmax.f32 %v887, 0.0
  %v952 = vmax.f32 %v888, 0.0
  %v953 = vmax.f32 %v889, 0.0
  %v954 = vmax.f32 %v890, 0.0
  %v955 = vmax.f32 %v891, 0.0
  %v956 = vmax.f32 %v892, 0.0
  %v957 = vmax.f32 %v893, 0.0
  %v958 = vmax.f32 %v894, 0.0
  %v959 = vmax.f32 %v895, 0.0
  %v960 = vmax.f32 %v896, 0.0
  %v961 = vmax.f32 %v897, 0.0
  %v962 = vmax.f32 %v898, 0.0
  %v963 = vmax.f32 %v899, 0.0
  %v964 = vmax.f32 %v900, 0.0
  %v965 = vmax.f32 %v901, 0.0
  %v966 = vmax.f32 %v902, 0.0
  %v967 = vmax.f32 %v903, 0.0
  %v968 = vmax.f32 %v904, 0.0
  %v969 = vmax.f32 %v905, 0.0
  %v970 = vmax.f32 %v906, 0.0
  %v971 = vmax.f32 %v907, 0.0
  %v972 = vmax.f32 %v908, 0.0
  %v973 = vmax.f32 %v909, 0.0
  %v974 = vmax.f32 %v910, 0.0
  %v975 = vmax.f32 %v911, 0.0
  %v976 = vmax.f32 %v912, 0.0
  %v977 = vmax.f32 %v913, 0.0
  %v978 = vmax.f32 %v914, 0.0
  %v979 = vmax.f32 %v915, 0.0
  %v980 = vmax.f32 %v916, 0.0
  %v981 = vmax.f32 %v917, 0.0
  %v982 = vmax.f32 %v918, 0.0
  %v983 = vmax.f32 %v919, 0.0
  %v984 = vmax.f32 %v920, 0.0
  %v985 = vmax.f32 %v921, 0.0
  %v986 = vmax.f32 %v922, 0.0
  %v987 = vmax.f32 %v923, 0.0
  %v988 = vmax.f32 %v924, 0.0
  %v989 = vmax.f32 %v925, 0.0
  %v990 = vmax.f32 %v926, 0.0
  %v991 = vmax.f32 %v927, 0.0
  %992 = vst.msk [vmem:[%s6] sm:$0xff] %vm721, %v928
  %993 = vst.msk [vmem:[%s6 + $0x8] sm:$0xff] %vm721, %v929
  %994 = vst.msk [vmem:[%s6 + $0x10] sm:$0xff] %vm721, %v930
  %995 = vst.msk [vmem:[%s6 + $0x18] sm:$0xff] %vm721, %v931
  %996 = vst.msk [vmem:[%s6 + $0x20] sm:$0xff] %vm721, %v932
  %997 = vst.msk [vmem:[%s6 + $0x28] sm:$0xff] %vm721, %v933
  %998 = vst.msk [vmem:[%s6 + $0x30] sm:$0xff] %vm721, %v934
  %999 = vst.msk [vmem:[%s6 + $0x38] sm:$0xff] %vm721, %v935
  %1000 = vst.msk [vmem:[%s6 + $0x40] sm:$0xff] %vm721, %v936
  %1001 = vst.msk [vmem:[%s6 + $0x48] sm:$0xff] %vm721, %v937
  %1002 = vst.msk [vmem:[%s6 + $0x50] sm:$0xff] %vm721, %v938
  %1003 = vst.msk [vmem:[%s6 + $0x58] sm:$0xff] %vm721, %v939
  %1004 = vst.msk [vmem:[%s6 + $0x60] sm:$0xff] %vm721, %v940
  %1005 = vst.msk [vmem:[%s6 + $0x68] sm:$0xff] %vm721, %v941
  %1006 = vst.msk [vmem:[%s6 + $0x70] sm:$0xff] %vm721, %v942
  %1007 = vst.msk [vmem:[%s6 + $0x78] sm:$0xff] %vm721, %v943
  %1008 = vst.msk [vmem:[%s6 + $0x80] sm:$0xff] %vm721, %v944
  %1009 = vst.msk [vmem:[%s6 + $0x88] sm:$0xff] %vm721, %v945
  %1010 = vst.msk [vmem:[%s6 + $0x90] sm:$0xff] %vm721, %v946
  %1011 = vst.msk [vmem:[%s6 + $0x98] sm:$0xff] %vm721, %v947
  %1012 = vst.msk [vmem:[%s6 + $0xa0] sm:$0xff] %vm721, %v948
  %1013 = vst.msk [vmem:[%s6 + $0xa8] sm:$0xff] %vm721, %v949
  %1014 = vst.msk [vmem:[%s6 + $0xb0] sm:$0xff] %vm721, %v950
  %1015 = vst.msk [vmem:[%s6 + $0xb8] sm:$0xff] %vm721, %v951
  %1016 = vst.msk [vmem:[%s6 + $0xc0] sm:$0xff] %vm721, %v952
  %1017 = vst.msk [vmem:[%s6 + $0xc8] sm:$0xff] %vm721, %v953
  %1018 = vst.msk [vmem:[%s6 + $0xd0] sm:$0xff] %vm721, %v954
  %1019 = vst.msk [vmem:[%s6 + $0xd8] sm:$0xff] %vm721, %v955
  %1020 = vst.msk [vmem:[%s6 + $0xe0] sm:$0xff] %vm721, %v956
  %1021 = vst.msk [vmem:[%s6 + $0xe8] sm:$0xff] %vm721, %v957
  %1022 = vst.msk [vmem:[%s6 + $0xf0] sm:$0xff] %vm721, %v958
  %1023 = vst.msk [vmem:[%s6 + $0xf8] sm:$0xff] %vm721, %v959
  %1024 = vst.msk [vmem:[%s6 + $0x100] sm:$0xff] %vm721, %v960
  %1025 = vst.msk [vmem:[%s6 + $0x108] sm:$0xff] %vm721, %v961
  %1026 = vst.msk [vmem:[%s6 + $0x110] sm:$0xff] %vm721, %v962
  %1027 = vst.msk [vmem:[%s6 + $0x118] sm:$0xff] %vm721, %v963
  %1028 = vst.msk [vmem:[%s6 + $0x120] sm:$0xff] %vm721, %v964
  %1029 = vst.msk [vmem:[%s6 + $0x128] sm:$0xff] %vm721, %v965
  %1030 = vst.msk [vmem:[%s6 + $0x130] sm:$0xff] %vm721, %v966
  %1031 = vst.msk [vmem:[%s6 + $0x138] sm:$0xff] %vm721, %v967
  %1032 = vst.msk [vmem:[%s6 + $0x140] sm:$0xff] %vm721, %v968
  %1033 = vst.msk [vmem:[%s6 + $0x148] sm:$0xff] %vm721, %v969
  %1034 = vst.msk [vmem:[%s6 + $0x150] sm:$0xff] %vm721, %v970
  %1035 = vst.msk [vmem:[%s6 + $0x158] sm:$0xff] %vm721, %v971
  %1036 = vst.msk [vmem:[%s6 + $0x160] sm:$0xff] %vm721, %v972
  %1037 = vst.msk [vmem:[%s6 + $0x168] sm:$0xff] %vm721, %v973
  %1038 = vst.msk [vmem:[%s6 + $0x170] sm:$0xff] %vm721, %v974
  %1039 = vst.msk [vmem:[%s6 + $0x178] sm:$0xff] %vm721, %v975
  %1040 = vst.msk [vmem:[%s6 + $0x180] sm:$0xff] %vm721, %v976
  %1041 = vst.msk [vmem:[%s6 + $0x188] sm:$0xff] %vm721, %v977
  %1042 = vst.msk [vmem:[%s6 + $0x190] sm:$0xff] %vm721, %v978
  %1043 = vst.msk [vmem:[%s6 + $0x198] sm:$0xff] %vm721, %v979
  %1044 = vst.msk [vmem:[%s6 + $0x1a0] sm:$0xff] %vm721, %v980
  %1045 = vst.msk [vmem:[%s6 + $0x1a8] sm:$0xff] %vm721, %v981
  %1046 = vst.msk [vmem:[%s6 + $0x1b0] sm:$0xff] %vm721, %v982
  %1047 = vst.msk [vmem:[%s6 + $0x1b8] sm:$0xff] %vm721, %v983
  %1048 = vst.msk [vmem:[%s6 + $0x1c0] sm:$0xff] %vm721, %v984
  %1049 = vst.msk [vmem:[%s6 + $0x1c8] sm:$0xff] %vm721, %v985
  %1050 = vst.msk [vmem:[%s6 + $0x1d0] sm:$0xff] %vm721, %v986
  %1051 = vst.msk [vmem:[%s6 + $0x1d8] sm:$0xff] %vm721, %v987
  %1052 = vst.msk [vmem:[%s6 + $0x1e0] sm:$0xff] %vm721, %v988
  %1053 = vst.msk [vmem:[%s6 + $0x1e8] sm:$0xff] %vm721, %v989
  %1054 = vst.msk [vmem:[%s6 + $0x1f0] sm:$0xff] %vm721, %v990
  %1055 = vst.msk [vmem:[%s6 + $0x1f8] sm:$0xff] %vm721, %v991
  // Predicated region
  $region22: #{run.41} parent=0 // pred_check
    _
  $region23: #{run.41} parent=0 // pred_check_branch
    %1057 = sbr.rel (0) target = $region25
  $region24: #{run.41} parent=0 // pred_region
    _
  $region25: #{run.41} parent=0 // pred_fallthru
    _
  // Predicated region
  $region26: #{run.41} parent=0 // pred_check
    _
  $region27: #{run.41} parent=0 // pred_check_branch
    %1059 = sbr.rel (0) target = $region29
  $region28: #{run.41} parent=0 // pred_region
    _
  $region29: #{run.41} parent=0 // pred_fallthru
    _
  // Predicated region
  $region30: #{run.41} parent=0 // pred_check
    _
  $region31: #{run.41} parent=0 // pred_check_branch
    %1061 = sbr.rel (0) target = $region33
  $region32: #{run.41} parent=0 // pred_region
    _
  $region33: #{run.41} parent=0 // pred_fallthru
    _
  // Predicated region
  $region34: #{run.41} parent=0 // pred_check
    _
  $region35: #{run.41} parent=0 // pred_check_branch
    %1063 = sbr.rel (0) target = $region37
  $region36: #{run.41} parent=0 // pred_region
    _
  $region37: #{run.41} parent=0 // pred_fallthru
    _

// kernel: run.48
$region0: #{run.48}
  #allocation0 [shape = 'u32[]', space=smem, size = 0x4, offset = 0x4, fixed_abs, tag = 'smem constant byte address 0x4 - core index']
  #allocation1 [shape = 'u32[144,128]{1,0:T(1,128)}', space=vmem, size = 0x12000, scoped, tag = 'internal scratch']
  %s0 = inlined_call_operand.vmem [shape: bf16[128,72], index: 0, kind: input, shape index: {}]
  %s1 = inlined_call_operand.vmem [shape: bf16[72,8], index: 1, kind: input, shape index: {}]
  %s2 = inlined_call_operand.vmem [shape: f32[128,8], index: 2, kind: input, shape index: {}]
  %s3 = inlined_call_operand.vmem [shape: f32[1,8], index: 3, kind: input, shape index: {}]
  %s4 = inlined_call_operand.vmem [shape: f32[1,8], index: 4, kind: input, shape index: {}]
  %s5 = inlined_call_operand.vmem [shape: f32[128,8], index: 5, kind: output, shape index: {0}]
  %s6 = inlined_call_operand.vmem [shape: f32[128,8], index: 6, kind: output, shape index: {1}]
  %7 = xla_tuple %s5, %s6
  %s8 = sld [smem:[#allocation0]]
  $region38: #{run.48} parent=0
    _
  %s10 = ssub.s32 1, %s8
  %s11 = scalar_select 0, %s10, %s8
  // Predicated region
  $region2: #{run.48} parent=0 // pred_check
    _
  $region3: #{run.48} parent=0 // pred_check_branch
    %13 = sbr.rel (0) target = $region5
  $region4: #{run.48} parent=0 // pred_region
    _
  $region5: #{run.48} parent=0 // pred_fallthru
    _
  // Predicated region
  $region6: #{run.48} parent=0 // pred_check
    _
  $region7: #{run.48} parent=0 // pred_check_branch
    %15 = sbr.rel (0) target = $region9
  $region8: #{run.48} parent=0 // pred_region
    _
  $region9: #{run.48} parent=0 // pred_fallthru
    _
  // Predicated region
  $region10: #{run.48} parent=0 // pred_check
    _
  $region11: #{run.48} parent=0 // pred_check_branch
    %17 = sbr.rel (0) target = $region13
  $region12: #{run.48} parent=0 // pred_region
    _
  $region13: #{run.48} parent=0 // pred_fallthru
    _
  // Predicated region
  $region14: #{run.48} parent=0 // pred_check
    _
  $region15: #{run.48} parent=0 // pred_check_branch
    %19 = sbr.rel (0) target = $region17
  $region16: #{run.48} parent=0 // pred_region
    _
  $region17: #{run.48} parent=0 // pred_fallthru
    _
  // Predicated region
  $region18: #{run.48} parent=0 // pred_check
    _
  $region19: #{run.48} parent=0 // pred_check_branch
    %21 = sbr.rel (0) target = $region21
  $region20: #{run.48} parent=0 // pred_region
    _
  $region21: #{run.48} parent=0 // pred_fallthru
    _
  %v23 = vld [vmem:[%s0] sm:$0xf]
  %v24 = vld [vmem:[%s0 + $0x4] sm:$0xf]
  %v25 = vld [vmem:[%s0 + $0x8] sm:$0xf]
  %v26 = vld [vmem:[%s0 + $0xc] sm:$0xf]
  %v27 = vld [vmem:[%s0 + $0x10] sm:$0xf]
  %v28 = vld [vmem:[%s0 + $0x14] sm:$0xf]
  %v29 = vld [vmem:[%s0 + $0x18] sm:$0xf]
  %v30 = vld [vmem:[%s0 + $0x1c] sm:$0xf]
  %v31 = vld [vmem:[%s0 + $0x20] sm:$0xf]
  %v32 = vld [vmem:[%s0 + $0x24] sm:$0xf]
  %v33 = vld [vmem:[%s0 + $0x28] sm:$0xf]
  %v34 = vld [vmem:[%s0 + $0x2c] sm:$0xf]
  %v35 = vld [vmem:[%s0 + $0x30] sm:$0xf]
  %v36 = vld [vmem:[%s0 + $0x34] sm:$0xf]
  %v37 = vld [vmem:[%s0 + $0x38] sm:$0xf]
  %v38 = vld [vmem:[%s0 + $0x3c] sm:$0xf]
  %v39 = vld [vmem:[%s1] sm:$0xf]
  %v40 = vld [vmem:[%s1 + $0x4] sm:$0xf]
  %v41 = vld [vmem:[%s1 + $0x8] sm:$0xf]
  %v42 = vld [vmem:[%s1 + $0xc] sm:$0xf]
  %v43 = vld [vmem:[%s1 + $0x10] sm:$0xf]
  %v44 = vld [vmem:[%s1 + $0x14] sm:$0xf]
  %v45 = vld [vmem:[%s1 + $0x18] sm:$0xf]
  %v46 = vld [vmem:[%s1 + $0x1c] sm:$0xf]
  %v47 = vld [vmem:[%s1 + $0x20] sm:$0xf]
  %v48 = vld [vmem:[%s2] sm:$0xff]
  %v49 = vld [vmem:[%s2 + $0x8] sm:$0xff]
  %v50 = vld [vmem:[%s2 + $0x10] sm:$0xff]
  %v51 = vld [vmem:[%s2 + $0x18] sm:$0xff]
  %v52 = vld [vmem:[%s2 + $0x20] sm:$0xff]
  %v53 = vld [vmem:[%s2 + $0x28] sm:$0xff]
  %v54 = vld [vmem:[%s2 + $0x30] sm:$0xff]
  %v55 = vld [vmem:[%s2 + $0x38] sm:$0xff]
  %v56 = vld [vmem:[%s2 + $0x40] sm:$0xff]
  %v57 = vld [vmem:[%s2 + $0x48] sm:$0xff]
  %v58 = vld [vmem:[%s2 + $0x50] sm:$0xff]
  %v59 = vld [vmem:[%s2 + $0x58] sm:$0xff]
  %v60 = vld [vmem:[%s2 + $0x60] sm:$0xff]
  %v61 = vld [vmem:[%s2 + $0x68] sm:$0xff]
  %v62 = vld [vmem:[%s2 + $0x70] sm:$0xff]
  %v63 = vld [vmem:[%s2 + $0x78] sm:$0xff]
  %v80 = vunpack.c.l.b16 %v23
  %v81 = vunpack.c.l.b16 %v24
  %v82 = vunpack.c.l.b16 %v25
  %v83 = vunpack.c.l.b16 %v26
  %v84 = vunpack.c.l.b16 %v27
  %v85 = vunpack.c.l.b16 %v28
  %v86 = vunpack.c.l.b16 %v29
  %v87 = vunpack.c.l.b16 %v30
  %v88 = vunpack.c.l.b16 %v31
  %v89 = vunpack.c.l.b16 %v32
  %v90 = vunpack.c.l.b16 %v33
  %v91 = vunpack.c.l.b16 %v34
  %v92 = vunpack.c.l.b16 %v35
  %v93 = vunpack.c.l.b16 %v36
  %v94 = vunpack.c.l.b16 %v37
  %v95 = vunpack.c.l.b16 %v38
  %v96 = vpack.c.b16 %v81, %v80
  %v97 = vpack.c.b16 %v83, %v82
  %v98 = vpack.c.b16 %v85, %v84
  %v99 = vpack.c.b16 %v87, %v86
  %v100 = vpack.c.b16 %v89, %v88
  %v101 = vpack.c.b16 %v91, %v90
  %v102 = vpack.c.b16 %v93, %v92
  %v103 = vpack.c.b16 %v95, %v94
  %v113 = vunpack.c.l.b16 %v39
  %v114 = vunpack.c.l.b16 %v40
  %v115 = vunpack.c.l.b16 %v41
  %v116 = vunpack.c.l.b16 %v42
  %v117 = vunpack.c.l.b16 %v43
  %v118 = vunpack.c.l.b16 %v44
  %v119 = vunpack.c.l.b16 %v45
  %v120 = vunpack.c.l.b16 %v46
  %v121 = vunpack.c.l.b16 %v47
  %v122 = vpack.c.b16 %v114, %v113
  %v123 = vpack.c.b16 %v116, %v115
  %v124 = vpack.c.b16 %v118, %v117
  %v125 = vpack.c.b16 %v120, %v119
  %v126 = vpack.c.b16 %v121, %v121
  %vm131 = vcmask 588800
  %v133 = vsel %vm131, %v96, 0
  %v136 = vsel %vm131, %v97, 0
  %v139 = vsel %vm131, %v98, 0
  %v142 = vsel %vm131, %v99, 0
  %v145 = vsel %vm131, %v100, 0
  %v148 = vsel %vm131, %v101, 0
  %v151 = vsel %vm131, %v102, 0
  %v154 = vsel %vm131, %v103, 0
  %vm156 = vcmask 1043456
  %v158 = vsel %vm156, %v126, 0
  %160 = vmatprep.subr.bf16.mxu0 0
  %161 = vmatpush1.bf16.msra.mxu0 0
  %162 = vmatprep.subr.bf16.mxu0 0
  %163 = vmatpush1.bf16.msra.mxu0 0
  %164 = vmatprep.subr.bf16.mxu0 0
  %165 = vmatpush1.bf16.msra.mxu0 0
  %166 = vmatprep.subr.bf16.mxu0 0
  %167 = vmatpush1.bf16.msra.mxu0 %v158
  %168 = vmatprep.subr.bf16.mxu0 0
  %169 = vmatpush1.bf16.msra.mxu0 %v125
  %170 = vmatprep.subr.bf16.mxu0 0
  %171 = vmatpush1.bf16.msra.mxu0 %v124
  %172 = vmatprep.subr.bf16.mxu0 0
  %173 = vmatpush1.bf16.msra.mxu0 %v123
  %174 = vmatprep.subr.bf16.mxu0 0
  %175 = vmatpush1.bf16.msra.mxu0 %v122
  %176 = vmatprep.subr.bf16.mxu0 0
  %177 = vmatpush2.bf16.msra.mxu0 0
  %178 = vmatprep.subr.bf16.mxu0 0
  %179 = vmatpush2.bf16.msra.mxu0 0
  %180 = vmatprep.subr.bf16.mxu0 0
  %181 = vmatpush2.bf16.msra.mxu0 0
  %182 = vmatprep.subr.bf16.mxu0 0
  %183 = vmatpush2.bf16.msra.mxu0 0
  %184 = vmatprep.subr.bf16.mxu0 0
  %185 = vmatpush2.bf16.msra.mxu0 0
  %186 = vmatprep.subr.bf16.mxu0 0
  %187 = vmatpush2.bf16.msra.mxu0 0
  %188 = vmatprep.subr.bf16.mxu0 0
  %189 = vmatpush2.bf16.msra.mxu0 0
  %190 = vmatprep.subr.bf16.mxu0 0
  %191 = vmatpush2.bf16.msra.mxu0 0
  %192 = vmatprep.mubr.bf16.mxu0 0
  %193 = vmatmul.mubr.bf16.gmra.mxu0 %v133
  %v194 = vpop.f32.mrf.mxu0
  %v195 = vadd.f32 %v48, %v194
  %v196 = vpop.f32.mrf.mxu0
  %v197 = vpop.f32.mrf.mxu0
  %v198 = vadd.f32 %v49, %v197
  %v199 = vpop.f32.mrf.mxu0
  %200 = vmatprep.mubr.bf16.mxu0 0
  %201 = vmatmul.mubr.bf16.gmra.mxu0 %v136
  %v202 = vpop.f32.mrf.mxu0
  %v203 = vadd.f32 %v50, %v202
  %v204 = vpop.f32.mrf.mxu0
  %v205 = vpop.f32.mrf.mxu0
  %v206 = vadd.f32 %v51, %v205
  %v207 = vpop.f32.mrf.mxu0
  %208 = vmatprep.mubr.bf16.mxu0 0
  %209 = vmatmul.mubr.bf16.gmra.mxu0 %v139
  %v210 = vpop.f32.mrf.mxu0
  %v211 = vadd.f32 %v52, %v210
  %v212 = vpop.f32.mrf.mxu0
  %v213 = vpop.f32.mrf.mxu0
  %v214 = vadd.f32 %v53, %v213
  %v215 = vpop.f32.mrf.mxu0
  %216 = vmatprep.mubr.bf16.mxu0 0
  %217 = vmatmul.mubr.bf16.gmra.mxu0 %v142
  %v218 = vpop.f32.mrf.mxu0
  %v219 = vadd.f32 %v54, %v218
  %v220 = vpop.f32.mrf.mxu0
  %v221 = vpop.f32.mrf.mxu0
  %v222 = vadd.f32 %v55, %v221
  %v223 = vpop.f32.mrf.mxu0
  %224 = vmatprep.mubr.bf16.mxu0 0
  %225 = vmatmul.mubr.bf16.gmra.mxu0 %v145
  %v226 = vpop.f32.mrf.mxu0
  %v227 = vadd.f32 %v56, %v226
  %v228 = vpop.f32.mrf.mxu0
  %v229 = vpop.f32.mrf.mxu0
  %v230 = vadd.f32 %v57, %v229
  %v231 = vpop.f32.mrf.mxu0
  %232 = vmatprep.mubr.bf16.mxu0 0
  %233 = vmatmul.mubr.bf16.gmra.mxu0 %v148
  %v234 = vpop.f32.mrf.mxu0
  %v235 = vadd.f32 %v58, %v234
  %v236 = vpop.f32.mrf.mxu0
  %v237 = vpop.f32.mrf.mxu0
  %v238 = vadd.f32 %v59, %v237
  %v239 = vpop.f32.mrf.mxu0
  %240 = vmatprep.mubr.bf16.mxu0 0
  %241 = vmatmul.mubr.bf16.gmra.mxu0 %v151
  %v242 = vpop.f32.mrf.mxu0
  %v243 = vadd.f32 %v60, %v242
  %v244 = vpop.f32.mrf.mxu0
  %v245 = vpop.f32.mrf.mxu0
  %v246 = vadd.f32 %v61, %v245
  %v247 = vpop.f32.mrf.mxu0
  %248 = vmatprep.mubr.bf16.mxu0 0
  %249 = vmatmul.mubr.bf16.gmra.mxu0 %v154
  %v250 = vpop.f32.mrf.mxu0
  %v251 = vadd.f32 %v62, %v250
  %v252 = vpop.f32.mrf.mxu0
  %v253 = vpop.f32.mrf.mxu0
  %v254 = vadd.f32 %v63, %v253
  %v255 = vpop.f32.mrf.mxu0
  %256 = vdwg.mxu0
  %vm257 = vcmask 64512
  %258 = vst.msk [vmem:[%s5] sm:$0xff] %vm257, %v195
  %259 = vst.msk [vmem:[%s5 + $0x8] sm:$0xff] %vm257, %v198
  %260 = vst.msk [vmem:[%s5 + $0x10] sm:$0xff] %vm257, %v203
  %261 = vst.msk [vmem:[%s5 + $0x18] sm:$0xff] %vm257, %v206
  %262 = vst.msk [vmem:[%s5 + $0x20] sm:$0xff] %vm257, %v211
  %263 = vst.msk [vmem:[%s5 + $0x28] sm:$0xff] %vm257, %v214
  %264 = vst.msk [vmem:[%s5 + $0x30] sm:$0xff] %vm257, %v219
  %265 = vst.msk [vmem:[%s5 + $0x38] sm:$0xff] %vm257, %v222
  %266 = vst.msk [vmem:[%s5 + $0x40] sm:$0xff] %vm257, %v227
  %267 = vst.msk [vmem:[%s5 + $0x48] sm:$0xff] %vm257, %v230
  %268 = vst.msk [vmem:[%s5 + $0x50] sm:$0xff] %vm257, %v235
  %269 = vst.msk [vmem:[%s5 + $0x58] sm:$0xff] %vm257, %v238
  %270 = vst.msk [vmem:[%s5 + $0x60] sm:$0xff] %vm257, %v243
  %271 = vst.msk [vmem:[%s5 + $0x68] sm:$0xff] %vm257, %v246
  %272 = vst.msk [vmem:[%s5 + $0x70] sm:$0xff] %vm257, %v251
  %273 = vst.msk [vmem:[%s5 + $0x78] sm:$0xff] %vm257, %v254
  %v274 = vld [vmem:[%s3] sm:$0x1]
  %v276 = vlaneseq
  %v277 = vshrl.u32 %v276, 7
  %v278 = vsub.s32 0, %v277
  %v279 = vrot.slane %v274, %v278
  %v281 = vmul.f32 %v195, %v279
  %v282 = vmul.f32 %v198, %v279
  %v283 = vmul.f32 %v203, %v279
  %v284 = vmul.f32 %v206, %v279
  %v285 = vmul.f32 %v211, %v279
  %v286 = vmul.f32 %v214, %v279
  %v287 = vmul.f32 %v219, %v279
  %v288 = vmul.f32 %v222, %v279
  %v289 = vmul.f32 %v227, %v279
  %v290 = vmul.f32 %v230, %v279
  %v291 = vmul.f32 %v235, %v279
  %v292 = vmul.f32 %v238, %v279
  %v293 = vmul.f32 %v243, %v279
  %v294 = vmul.f32 %v246, %v279
  %v295 = vmul.f32 %v251, %v279
  %v296 = vmul.f32 %v254, %v279
  %v297 = vld [vmem:[%s4] sm:$0x1]
  %v299 = vlaneseq
  %v300 = vshrl.u32 %v299, 7
  %v301 = vsub.s32 0, %v300
  %v302 = vrot.slane %v297, %v301
  %v304 = vadd.f32 %v281, %v302
  %v305 = vadd.f32 %v282, %v302
  %v306 = vadd.f32 %v283, %v302
  %v307 = vadd.f32 %v284, %v302
  %v308 = vadd.f32 %v285, %v302
  %v309 = vadd.f32 %v286, %v302
  %v310 = vadd.f32 %v287, %v302
  %v311 = vadd.f32 %v288, %v302
  %v312 = vadd.f32 %v289, %v302
  %v313 = vadd.f32 %v290, %v302
  %v314 = vadd.f32 %v291, %v302
  %v315 = vadd.f32 %v292, %v302
  %v316 = vadd.f32 %v293, %v302
  %v317 = vadd.f32 %v294, %v302
  %v318 = vadd.f32 %v295, %v302
  %v319 = vadd.f32 %v296, %v302
  %v320 = vmax.f32 %v304, 0.0
  %v321 = vmax.f32 %v305, 0.0
  %v322 = vmax.f32 %v306, 0.0
  %v323 = vmax.f32 %v307, 0.0
  %v324 = vmax.f32 %v308, 0.0
  %v325 = vmax.f32 %v309, 0.0
  %v326 = vmax.f32 %v310, 0.0
  %v327 = vmax.f32 %v311, 0.0
  %v328 = vmax.f32 %v312, 0.0
  %v329 = vmax.f32 %v313, 0.0
  %v330 = vmax.f32 %v314, 0.0
  %v331 = vmax.f32 %v315, 0.0
  %v332 = vmax.f32 %v316, 0.0
  %v333 = vmax.f32 %v317, 0.0
  %v334 = vmax.f32 %v318, 0.0
  %v335 = vmax.f32 %v319, 0.0
  %336 = vst.msk [vmem:[%s6] sm:$0xff] %vm257, %v320
  %337 = vst.msk [vmem:[%s6 + $0x8] sm:$0xff] %vm257, %v321
  %338 = vst.msk [vmem:[%s6 + $0x10] sm:$0xff] %vm257, %v322
  %339 = vst.msk [vmem:[%s6 + $0x18] sm:$0xff] %vm257, %v323
  %340 = vst.msk [vmem:[%s6 + $0x20] sm:$0xff] %vm257, %v324
  %341 = vst.msk [vmem:[%s6 + $0x28] sm:$0xff] %vm257, %v325
  %342 = vst.msk [vmem:[%s6 + $0x30] sm:$0xff] %vm257, %v326
  %343 = vst.msk [vmem:[%s6 + $0x38] sm:$0xff] %vm257, %v327
  %344 = vst.msk [vmem:[%s6 + $0x40] sm:$0xff] %vm257, %v328
  %345 = vst.msk [vmem:[%s6 + $0x48] sm:$0xff] %vm257, %v329
  %346 = vst.msk [vmem:[%s6 + $0x50] sm:$0xff] %vm257, %v330
  %347 = vst.msk [vmem:[%s6 + $0x58] sm:$0xff] %vm257, %v331
  %348 = vst.msk [vmem:[%s6 + $0x60] sm:$0xff] %vm257, %v332
  %349 = vst.msk [vmem:[%s6 + $0x68] sm:$0xff] %vm257, %v333
  %350 = vst.msk [vmem:[%s6 + $0x70] sm:$0xff] %vm257, %v334
  %351 = vst.msk [vmem:[%s6 + $0x78] sm:$0xff] %vm257, %v335
  // Predicated region
  $region22: #{run.48} parent=0 // pred_check
    _
  $region23: #{run.48} parent=0 // pred_check_branch
    %353 = sbr.rel (0) target = $region25
  $region24: #{run.48} parent=0 // pred_region
    _
  $region25: #{run.48} parent=0 // pred_fallthru
    _
  // Predicated region
  $region26: #{run.48} parent=0 // pred_check
    _
  $region27: #{run.48} parent=0 // pred_check_branch
    %355 = sbr.rel (0) target = $region29
  $region28: #{run.48} parent=0 // pred_region
    _
  $region29: #{run.48} parent=0 // pred_fallthru
    _
  // Predicated region
  $region30: #{run.48} parent=0 // pred_check
    _
  $region31: #{run.48} parent=0 // pred_check_branch
    %357 = sbr.rel (0) target = $region33
  $region32: #{run.48} parent=0 // pred_region
    _
  $region33: #{run.48} parent=0 // pred_fallthru
    _
  // Predicated region
  $region34: #{run.48} parent=0 // pred_check
    _
  $region35: #{run.48} parent=0 // pred_check_branch
    %359 = sbr.rel (0) target = $region37
  $region36: #{run.48} parent=0 // pred_region
    _
  $region37: #{run.48} parent=0 // pred_fallthru
    _

// kernel: run.49
$region0: #{run.49}
  #allocation0 [shape = 'u32[]', space=smem, size = 0x4, offset = 0x4, fixed_abs, tag = 'smem constant byte address 0x4 - core index']
  #allocation1 [shape = 'u32[144,128]{1,0:T(1,128)}', space=vmem, size = 0x12000, scoped, tag = 'internal scratch']
  %s0 = inlined_call_operand.vmem [shape: bf16[128,72], index: 0, kind: input, shape index: {}]
  %s1 = inlined_call_operand.vmem [shape: bf16[72,8], index: 1, kind: input, shape index: {}]
  %s2 = inlined_call_operand.vmem [shape: f32[1,8], index: 2, kind: input, shape index: {}]
  %s3 = inlined_call_operand.vmem [shape: f32[1,8], index: 3, kind: input, shape index: {}]
  %s4 = inlined_call_operand.vmem [shape: f32[128,8], index: 4, kind: output, shape index: {}]
  %s5 = sld [smem:[#allocation0]]
  $region26: #{run.49} parent=0
    _
  %s7 = ssub.s32 1, %s5
  %s8 = scalar_select 0, %s7, %s5
  // Predicated region
  $region2: #{run.49} parent=0 // pred_check
    _
  $region3: #{run.49} parent=0 // pred_check_branch
    %10 = sbr.rel (0) target = $region5
  $region4: #{run.49} parent=0 // pred_region
    _
  $region5: #{run.49} parent=0 // pred_fallthru
    _
  // Predicated region
  $region6: #{run.49} parent=0 // pred_check
    _
  $region7: #{run.49} parent=0 // pred_check_branch
    %12 = sbr.rel (0) target = $region9
  $region8: #{run.49} parent=0 // pred_region
    _
  $region9: #{run.49} parent=0 // pred_fallthru
    _
  // Predicated region
  $region10: #{run.49} parent=0 // pred_check
    _
  $region11: #{run.49} parent=0 // pred_check_branch
    %14 = sbr.rel (0) target = $region13
  $region12: #{run.49} parent=0 // pred_region
    _
  $region13: #{run.49} parent=0 // pred_fallthru
    _
  // Predicated region
  $region14: #{run.49} parent=0 // pred_check
    _
  $region15: #{run.49} parent=0 // pred_check_branch
    %16 = sbr.rel (0) target = $region17
  $region16: #{run.49} parent=0 // pred_region
    _
  $region17: #{run.49} parent=0 // pred_fallthru
    _
  %v18 = vld [vmem:[%s0] sm:$0xf]
  %v19 = vld [vmem:[%s0 + $0x4] sm:$0xf]
  %v20 = vld [vmem:[%s0 + $0x8] sm:$0xf]
  %v21 = vld [vmem:[%s0 + $0xc] sm:$0xf]
  %v22 = vld [vmem:[%s0 + $0x10] sm:$0xf]
  %v23 = vld [vmem:[%s0 + $0x14] sm:$0xf]
  %v24 = vld [vmem:[%s0 + $0x18] sm:$0xf]
  %v25 = vld [vmem:[%s0 + $0x1c] sm:$0xf]
  %v26 = vld [vmem:[%s0 + $0x20] sm:$0xf]
  %v27 = vld [vmem:[%s0 + $0x24] sm:$0xf]
  %v28 = vld [vmem:[%s0 + $0x28] sm:$0xf]
  %v29 = vld [vmem:[%s0 + $0x2c] sm:$0xf]
  %v30 = vld [vmem:[%s0 + $0x30] sm:$0xf]
  %v31 = vld [vmem:[%s0 + $0x34] sm:$0xf]
  %v32 = vld [vmem:[%s0 + $0x38] sm:$0xf]
  %v33 = vld [vmem:[%s0 + $0x3c] sm:$0xf]
  %v34 = vld [vmem:[%s1] sm:$0xf]
  %v35 = vld [vmem:[%s1 + $0x4] sm:$0xf]
  %v36 = vld [vmem:[%s1 + $0x8] sm:$0xf]
  %v37 = vld [vmem:[%s1 + $0xc] sm:$0xf]
  %v38 = vld [vmem:[%s1 + $0x10] sm:$0xf]
  %v39 = vld [vmem:[%s1 + $0x14] sm:$0xf]
  %v40 = vld [vmem:[%s1 + $0x18] sm:$0xf]
  %v41 = vld [vmem:[%s1 + $0x1c] sm:$0xf]
  %v42 = vld [vmem:[%s1 + $0x20] sm:$0xf]
  %v59 = vunpack.c.l.b16 %v18
  %v60 = vunpack.c.l.b16 %v19
  %v61 = vunpack.c.l.b16 %v20
  %v62 = vunpack.c.l.b16 %v21
  %v63 = vunpack.c.l.b16 %v22
  %v64 = vunpack.c.l.b16 %v23
  %v65 = vunpack.c.l.b16 %v24
  %v66 = vunpack.c.l.b16 %v25
  %v67 = vunpack.c.l.b16 %v26
  %v68 = vunpack.c.l.b16 %v27
  %v69 = vunpack.c.l.b16 %v28
  %v70 = vunpack.c.l.b16 %v29
  %v71 = vunpack.c.l.b16 %v30
  %v72 = vunpack.c.l.b16 %v31
  %v73 = vunpack.c.l.b16 %v32
  %v74 = vunpack.c.l.b16 %v33
  %v75 = vpack.c.b16 %v60, %v59
  %v76 = vpack.c.b16 %v62, %v61
  %v77 = vpack.c.b16 %v64, %v63
  %v78 = vpack.c.b16 %v66, %v65
  %v79 = vpack.c.b16 %v68, %v67
  %v80 = vpack.c.b16 %v70, %v69
  %v81 = vpack.c.b16 %v72, %v71
  %v82 = vpack.c.b16 %v74, %v73
  %v92 = vunpack.c.l.b16 %v34
  %v93 = vunpack.c.l.b16 %v35
  %v94 = vunpack.c.l.b16 %v36
  %v95 = vunpack.c.l.b16 %v37
  %v96 = vunpack.c.l.b16 %v38
  %v97 = vunpack.c.l.b16 %v39
  %v98 = vunpack.c.l.b16 %v40
  %v99 = vunpack.c.l.b16 %v41
  %v100 = vunpack.c.l.b16 %v42
  %v101 = vpack.c.b16 %v93, %v92
  %v102 = vpack.c.b16 %v95, %v94
  %v103 = vpack.c.b16 %v97, %v96
  %v104 = vpack.c.b16 %v99, %v98
  %v105 = vpack.c.b16 %v100, %v100
  %vm110 = vcmask 588800
  %v112 = vsel %vm110, %v75, 0
  %v115 = vsel %vm110, %v76, 0
  %v118 = vsel %vm110, %v77, 0
  %v121 = vsel %vm110, %v78, 0
  %v124 = vsel %vm110, %v79, 0
  %v127 = vsel %vm110, %v80, 0
  %v130 = vsel %vm110, %v81, 0
  %v133 = vsel %vm110, %v82, 0
  %vm135 = vcmask 1043456
  %v137 = vsel %vm135, %v105, 0
  %139 = vmatprep.subr.bf16.mxu0 0
  %140 = vmatpush1.bf16.msra.mxu0 0
  %141 = vmatprep.subr.bf16.mxu0 0
  %142 = vmatpush1.bf16.msra.mxu0 0
  %143 = vmatprep.subr.bf16.mxu0 0
  %144 = vmatpush1.bf16.msra.mxu0 0
  %145 = vmatprep.subr.bf16.mxu0 0
  %146 = vmatpush1.bf16.msra.mxu0 %v137
  %147 = vmatprep.subr.bf16.mxu0 0
  %148 = vmatpush1.bf16.msra.mxu0 %v104
  %149 = vmatprep.subr.bf16.mxu0 0
  %150 = vmatpush1.bf16.msra.mxu0 %v103
  %151 = vmatprep.subr.bf16.mxu0 0
  %152 = vmatpush1.bf16.msra.mxu0 %v102
  %153 = vmatprep.subr.bf16.mxu0 0
  %154 = vmatpush1.bf16.msra.mxu0 %v101
  %155 = vmatprep.subr.bf16.mxu0 0
  %156 = vmatpush2.bf16.msra.mxu0 0
  %157 = vmatprep.subr.bf16.mxu0 0
  %158 = vmatpush2.bf16.msra.mxu0 0
  %159 = vmatprep.subr.bf16.mxu0 0
  %160 = vmatpush2.bf16.msra.mxu0 0
  %161 = vmatprep.subr.bf16.mxu0 0
  %162 = vmatpush2.bf16.msra.mxu0 0
  %163 = vmatprep.subr.bf16.mxu0 0
  %164 = vmatpush2.bf16.msra.mxu0 0
  %165 = vmatprep.subr.bf16.mxu0 0
  %166 = vmatpush2.bf16.msra.mxu0 0
  %167 = vmatprep.subr.bf16.mxu0 0
  %168 = vmatpush2.bf16.msra.mxu0 0
  %169 = vmatprep.subr.bf16.mxu0 0
  %170 = vmatpush2.bf16.msra.mxu0 0
  %171 = vmatprep.mubr.bf16.mxu0 0
  %172 = vmatmul.mubr.bf16.gmra.mxu0 %v112
  %v173 = vpop.f32.mrf.mxu0
  %v174 = vadd.f32 0.0, %v173
  %v175 = vpop.f32.mrf.mxu0
  %v176 = vpop.f32.mrf.mxu0
  %v177 = vadd.f32 0.0, %v176
  %v178 = vpop.f32.mrf.mxu0
  %179 = vmatprep.mubr.bf16.mxu0 0
  %180 = vmatmul.mubr.bf16.gmra.mxu0 %v115
  %v181 = vpop.f32.mrf.mxu0
  %v182 = vadd.f32 0.0, %v181
  %v183 = vpop.f32.mrf.mxu0
  %v184 = vpop.f32.mrf.mxu0
  %v185 = vadd.f32 0.0, %v184
  %v186 = vpop.f32.mrf.mxu0
  %187 = vmatprep.mubr.bf16.mxu0 0
  %188 = vmatmul.mubr.bf16.gmra.mxu0 %v118
  %v189 = vpop.f32.mrf.mxu0
  %v190 = vadd.f32 0.0, %v189
  %v191 = vpop.f32.mrf.mxu0
  %v192 = vpop.f32.mrf.mxu0
  %v193 = vadd.f32 0.0, %v192
  %v194 = vpop.f32.mrf.mxu0
  %195 = vmatprep.mubr.bf16.mxu0 0
  %196 = vmatmul.mubr.bf16.gmra.mxu0 %v121
  %v197 = vpop.f32.mrf.mxu0
  %v198 = vadd.f32 0.0, %v197
  %v199 = vpop.f32.mrf.mxu0
  %v200 = vpop.f32.mrf.mxu0
  %v201 = vadd.f32 0.0, %v200
  %v202 = vpop.f32.mrf.mxu0
  %203 = vmatprep.mubr.bf16.mxu0 0
  %204 = vmatmul.mubr.bf16.gmra.mxu0 %v124
  %v205 = vpop.f32.mrf.mxu0
  %v206 = vadd.f32 0.0, %v205
  %v207 = vpop.f32.mrf.mxu0
  %v208 = vpop.f32.mrf.mxu0
  %v209 = vadd.f32 0.0, %v208
  %v210 = vpop.f32.mrf.mxu0
  %211 = vmatprep.mubr.bf16.mxu0 0
  %212 = vmatmul.mubr.bf16.gmra.mxu0 %v127
  %v213 = vpop.f32.mrf.mxu0
  %v214 = vadd.f32 0.0, %v213
  %v215 = vpop.f32.mrf.mxu0
  %v216 = vpop.f32.mrf.mxu0
  %v217 = vadd.f32 0.0, %v216
  %v218 = vpop.f32.mrf.mxu0
  %219 = vmatprep.mubr.bf16.mxu0 0
  %220 = vmatmul.mubr.bf16.gmra.mxu0 %v130
  %v221 = vpop.f32.mrf.mxu0
  %v222 = vadd.f32 0.0, %v221
  %v223 = vpop.f32.mrf.mxu0
  %v224 = vpop.f32.mrf.mxu0
  %v225 = vadd.f32 0.0, %v224
  %v226 = vpop.f32.mrf.mxu0
  %227 = vmatprep.mubr.bf16.mxu0 0
  %228 = vmatmul.mubr.bf16.gmra.mxu0 %v133
  %v229 = vpop.f32.mrf.mxu0
  %v230 = vadd.f32 0.0, %v229
  %v231 = vpop.f32.mrf.mxu0
  %v232 = vpop.f32.mrf.mxu0
  %v233 = vadd.f32 0.0, %v232
  %v234 = vpop.f32.mrf.mxu0
  %235 = vdwg.mxu0
  %v236 = vld [vmem:[%s2] sm:$0x1]
  %v238 = vlaneseq
  %v239 = vshrl.u32 %v238, 7
  %v240 = vsub.s32 0, %v239
  %v241 = vrot.slane %v236, %v240
  %v243 = vmul.f32 %v174, %v241
  %v244 = vmul.f32 %v177, %v241
  %v245 = vmul.f32 %v182, %v241
  %v246 = vmul.f32 %v185, %v241
  %v247 = vmul.f32 %v190, %v241
  %v248 = vmul.f32 %v193, %v241
  %v249 = vmul.f32 %v198, %v241
  %v250 = vmul.f32 %v201, %v241
  %v251 = vmul.f32 %v206, %v241
  %v252 = vmul.f32 %v209, %v241
  %v253 = vmul.f32 %v214, %v241
  %v254 = vmul.f32 %v217, %v241
  %v255 = vmul.f32 %v222, %v241
  %v256 = vmul.f32 %v225, %v241
  %v257 = vmul.f32 %v230, %v241
  %v258 = vmul.f32 %v233, %v241
  %v259 = vld [vmem:[%s3] sm:$0x1]
  %v261 = vlaneseq
  %v262 = vshrl.u32 %v261, 7
  %v263 = vsub.s32 0, %v262
  %v264 = vrot.slane %v259, %v263
  %v266 = vadd.f32 %v243, %v264
  %v267 = vadd.f32 %v244, %v264
  %v268 = vadd.f32 %v245, %v264
  %v269 = vadd.f32 %v246, %v264
  %v270 = vadd.f32 %v247, %v264
  %v271 = vadd.f32 %v248, %v264
  %v272 = vadd.f32 %v249, %v264
  %v273 = vadd.f32 %v250, %v264
  %v274 = vadd.f32 %v251, %v264
  %v275 = vadd.f32 %v252, %v264
  %v276 = vadd.f32 %v253, %v264
  %v277 = vadd.f32 %v254, %v264
  %v278 = vadd.f32 %v255, %v264
  %v279 = vadd.f32 %v256, %v264
  %v280 = vadd.f32 %v257, %v264
  %v281 = vadd.f32 %v258, %v264
  %v282 = vmax.f32 %v266, 0.0
  %v283 = vmax.f32 %v267, 0.0
  %v284 = vmax.f32 %v268, 0.0
  %v285 = vmax.f32 %v269, 0.0
  %v286 = vmax.f32 %v270, 0.0
  %v287 = vmax.f32 %v271, 0.0
  %v288 = vmax.f32 %v272, 0.0
  %v289 = vmax.f32 %v273, 0.0
  %v290 = vmax.f32 %v274, 0.0
  %v291 = vmax.f32 %v275, 0.0
  %v292 = vmax.f32 %v276, 0.0
  %v293 = vmax.f32 %v277, 0.0
  %v294 = vmax.f32 %v278, 0.0
  %v295 = vmax.f32 %v279, 0.0
  %v296 = vmax.f32 %v280, 0.0
  %v297 = vmax.f32 %v281, 0.0
  %vm298 = vcmask 64512
  %299 = vst.msk [vmem:[%s4] sm:$0xff] %vm298, %v282
  %300 = vst.msk [vmem:[%s4 + $0x8] sm:$0xff] %vm298, %v283
  %301 = vst.msk [vmem:[%s4 + $0x10] sm:$0xff] %vm298, %v284
  %302 = vst.msk [vmem:[%s4 + $0x18] sm:$0xff] %vm298, %v285
  %303 = vst.msk [vmem:[%s4 + $0x20] sm:$0xff] %vm298, %v286
  %304 = vst.msk [vmem:[%s4 + $0x28] sm:$0xff] %vm298, %v287
  %305 = vst.msk [vmem:[%s4 + $0x30] sm:$0xff] %vm298, %v288
  %306 = vst.msk [vmem:[%s4 + $0x38] sm:$0xff] %vm298, %v289
  %307 = vst.msk [vmem:[%s4 + $0x40] sm:$0xff] %vm298, %v290
  %308 = vst.msk [vmem:[%s4 + $0x48] sm:$0xff] %vm298, %v291
  %309 = vst.msk [vmem:[%s4 + $0x50] sm:$0xff] %vm298, %v292
  %310 = vst.msk [vmem:[%s4 + $0x58] sm:$0xff] %vm298, %v293
  %311 = vst.msk [vmem:[%s4 + $0x60] sm:$0xff] %vm298, %v294
  %312 = vst.msk [vmem:[%s4 + $0x68] sm:$0xff] %vm298, %v295
  %313 = vst.msk [vmem:[%s4 + $0x70] sm:$0xff] %vm298, %v296
  %314 = vst.msk [vmem:[%s4 + $0x78] sm:$0xff] %vm298, %v297
  // Predicated region
  $region18: #{run.49} parent=0 // pred_check
    _
  $region19: #{run.49} parent=0 // pred_check_branch
    %316 = sbr.rel (0) target = $region21
  $region20: #{run.49} parent=0 // pred_region
    _
  $region21: #{run.49} parent=0 // pred_fallthru
    _
  // Predicated region
  $region22: #{run.49} parent=0 // pred_check
    _
  $region23: #{run.49} parent=0 // pred_check_branch
    %318 = sbr.rel (0) target = $region25
  $region24: #{run.49} parent=0 // pred_region
    _
  $region25: #{run.49} parent=0 // pred_fallthru
    _

// kernel: run.55
$region0: #{run.55}
  #allocation0 [shape = 'u32[]', space=smem, size = 0x4, offset = 0x4, fixed_abs, tag = 'smem constant byte address 0x4 - core index']
  #allocation1 [shape = 'u32[144,128]{1,0:T(1,128)}', space=vmem, size = 0x12000, scoped, tag = 'internal scratch']
  %s0 = inlined_call_operand.vmem [shape: bf16[32,8], index: 0, kind: input, shape index: {}]
  %s1 = inlined_call_operand.vmem [shape: bf16[8,16], index: 1, kind: input, shape index: {}]
  %s2 = inlined_call_operand.vmem [shape: f32[32,16], index: 2, kind: output, shape index: {}]
  %s3 = sld [smem:[#allocation0]]
  $region18: #{run.55} parent=0
    _
  %s5 = ssub.s32 1, %s3
  %s6 = scalar_select 0, %s5, %s3
  // Predicated region
  $region2: #{run.55} parent=0 // pred_check
    _
  $region3: #{run.55} parent=0 // pred_check_branch
    %8 = sbr.rel (0) target = $region5
  $region4: #{run.55} parent=0 // pred_region
    _
  $region5: #{run.55} parent=0 // pred_fallthru
    _
  // Predicated region
  $region6: #{run.55} parent=0 // pred_check
    _
  $region7: #{run.55} parent=0 // pred_check_branch
    %10 = sbr.rel (0) target = $region9
  $region8: #{run.55} parent=0 // pred_region
    _
  $region9: #{run.55} parent=0 // pred_fallthru
    _
  %v12 = vld [vmem:[%s0] sm:$0xf]
  %v13 = vld [vmem:[%s0 + $0x4] sm:$0xf]
  %v14 = vld [vmem:[%s0 + $0x8] sm:$0xf]
  %v15 = vld [vmem:[%s0 + $0xc] sm:$0xf]
  %v16 = vld [vmem:[%s1] sm:$0xf]
  %v21 = vunpack.c.l.b16 %v12
  %v22 = vunpack.c.l.b16 %v13
  %v23 = vunpack.c.l.b16 %v14
  %v24 = vunpack.c.l.b16 %v15
  %v25 = vpack.c.b16 %v22, %v21
  %v26 = vpack.c.b16 %v24, %v23
  %vm27 = vcmask 64512
  %v29 = vsel %vm27, %v25, 0
  %v32 = vsel %vm27, %v26, 0
  %vm34 = vcmask 1043456
  %v36 = vsel %vm34, %v16, 0
  %38 = vmatprep.subr.bf16.mxu0 0
  %39 = vmatpush1.bf16.msra.mxu0 0
  %40 = vmatprep.subr.bf16.mxu0 0
  %41 = vmatpush1.bf16.msra.mxu0 0
  %42 = vmatprep.subr.bf16.mxu0 0
  %43 = vmatpush1.bf16.msra.mxu0 0
  %44 = vmatprep.subr.bf16.mxu0 0
  %45 = vmatpush1.bf16.msra.mxu0 0
  %46 = vmatprep.subr.bf16.mxu0 0
  %47 = vmatpush1.bf16.msra.mxu0 0
  %48 = vmatprep.subr.bf16.mxu0 0
  %49 = vmatpush1.bf16.msra.mxu0 0
  %50 = vmatprep.subr.bf16.mxu0 0
  %51 = vmatpush1.bf16.msra.mxu0 0
  %52 = vmatprep.subr.bf16.mxu0 0
  %53 = vmatpush1.bf16.msra.mxu0 %v36
  %54 = vmatprep.subr.bf16.mxu0 0
  %55 = vmatpush2.bf16.msra.mxu0 0
  %56 = vmatprep.subr.bf16.mxu0 0
  %57 = vmatpush2.bf16.msra.mxu0 0
  %58 = vmatprep.subr.bf16.mxu0 0
  %59 = vmatpush2.bf16.msra.mxu0 0
  %60 = vmatprep.subr.bf16.mxu0 0
  %61 = vmatpush2.bf16.msra.mxu0 0
  %62 = vmatprep.subr.bf16.mxu0 0
  %63 = vmatpush2.bf16.msra.mxu0 0
  %64 = vmatprep.subr.bf16.mxu0 0
  %65 = vmatpush2.bf16.msra.mxu0 0
  %66 = vmatprep.subr.bf16.mxu0 0
  %67 = vmatpush2.bf16.msra.mxu0 0
  %68 = vmatprep.subr.bf16.mxu0 0
  %69 = vmatpush2.bf16.msra.mxu0 0
  %70 = vmatprep.mubr.bf16.mxu0 0
  %71 = vmatmul.mubr.bf16.gmra.mxu0 %v29
  %v72 = vpop.f32.mrf.mxu0
  %v73 = vadd.f32 0.0, %v72
  %v74 = vpop.f32.mrf.mxu0
  %v75 = vpop.f32.mrf.mxu0
  %v76 = vadd.f32 0.0, %v75
  %v77 = vpop.f32.mrf.mxu0
  %78 = vmatprep.mubr.bf16.mxu0 0
  %79 = vmatmul.mubr.bf16.gmra.mxu0 %v32
  %v80 = vpop.f32.mrf.mxu0
  %v81 = vadd.f32 0.0, %v80
  %v82 = vpop.f32.mrf.mxu0
  %v83 = vpop.f32.mrf.mxu0
  %v84 = vadd.f32 0.0, %v83
  %v85 = vpop.f32.mrf.mxu0
  %86 = vdwg.mxu0
  %vm87 = vcmask 130048
  %88 = vst.msk [vmem:[%s2] sm:$0xff] %vm87, %v73
  %89 = vst.msk [vmem:[%s2 + $0x8] sm:$0xff] %vm87, %v76
  %90 = vst.msk [vmem:[%s2 + $0x10] sm:$0xff] %vm87, %v81
  %91 = vst.msk [vmem:[%s2 + $0x18] sm:$0xff] %vm87, %v84
  // Predicated region
  $region10: #{run.55} parent=0 // pred_check
    _
  $region11: #{run.55} parent=0 // pred_check_branch
    %93 = sbr.rel (0) target = $region13
  $region12: #{run.55} parent=0 // pred_region
    _
  $region13: #{run.55} parent=0 // pred_fallthru
    _
  // Predicated region
  $region14: #{run.55} parent=0 // pred_check
    _
  $region15: #{run.55} parent=0 // pred_check_branch
    %95 = sbr.rel (0) target = $region17
  $region16: #{run.55} parent=0 // pred_region
    _
  $region17: #{run.55} parent=0 // pred_fallthru
    _

// kernel: run.56
$region0: #{run.56}
  #allocation0 [shape = 'u32[]', space=smem, size = 0x4, offset = 0x4, fixed_abs, tag = 'smem constant byte address 0x4 - core index']
  #allocation1 [shape = 'u32[144,128]{1,0:T(1,128)}', space=vmem, size = 0x12000, scoped, tag = 'internal scratch']
  %s0 = inlined_call_operand.vmem [shape: bf16[32,72], index: 0, kind: input, shape index: {}]
  %s1 = inlined_call_operand.vmem [shape: bf16[72,16], index: 1, kind: input, shape index: {}]
  %s2 = inlined_call_operand.vmem [shape: f32[1,16], index: 2, kind: input, shape index: {}]
  %s3 = inlined_call_operand.vmem [shape: f32[1,16], index: 3, kind: input, shape index: {}]
  %s4 = inlined_call_operand.vmem [shape: f32[32,16], index: 4, kind: output, shape index: {}]
  %s5 = sld [smem:[#allocation0]]
  $region26: #{run.56} parent=0
    _
  %s7 = ssub.s32 1, %s5
  %s8 = scalar_select 0, %s7, %s5
  // Predicated region
  $region2: #{run.56} parent=0 // pred_check
    _
  $region3: #{run.56} parent=0 // pred_check_branch
    %10 = sbr.rel (0) target = $region5
  $region4: #{run.56} parent=0 // pred_region
    _
  $region5: #{run.56} parent=0 // pred_fallthru
    _
  // Predicated region
  $region6: #{run.56} parent=0 // pred_check
    _
  $region7: #{run.56} parent=0 // pred_check_branch
    %12 = sbr.rel (0) target = $region9
  $region8: #{run.56} parent=0 // pred_region
    _
  $region9: #{run.56} parent=0 // pred_fallthru
    _
  // Predicated region
  $region10: #{run.56} parent=0 // pred_check
    _
  $region11: #{run.56} parent=0 // pred_check_branch
    %14 = sbr.rel (0) target = $region13
  $region12: #{run.56} parent=0 // pred_region
    _
  $region13: #{run.56} parent=0 // pred_fallthru
    _
  // Predicated region
  $region14: #{run.56} parent=0 // pred_check
    _
  $region15: #{run.56} parent=0 // pred_check_branch
    %16 = sbr.rel (0) target = $region17
  $region16: #{run.56} parent=0 // pred_region
    _
  $region17: #{run.56} parent=0 // pred_fallthru
    _
  %v18 = vld [vmem:[%s0] sm:$0xf]
  %v19 = vld [vmem:[%s0 + $0x4] sm:$0xf]
  %v20 = vld [vmem:[%s0 + $0x8] sm:$0xf]
  %v21 = vld [vmem:[%s0 + $0xc] sm:$0xf]
  %v22 = vld [vmem:[%s1] sm:$0xf]
  %v23 = vld [vmem:[%s1 + $0x4] sm:$0xf]
  %v24 = vld [vmem:[%s1 + $0x8] sm:$0xf]
  %v25 = vld [vmem:[%s1 + $0xc] sm:$0xf]
  %v26 = vld [vmem:[%s1 + $0x10] sm:$0xf]
  %v27 = vld [vmem:[%s1 + $0x14] sm:$0xf]
  %v28 = vld [vmem:[%s1 + $0x18] sm:$0xf]
  %v29 = vld [vmem:[%s1 + $0x1c] sm:$0xf]
  %v30 = vld [vmem:[%s1 + $0x20] sm:$0xf]
  %v35 = vunpack.c.l.b16 %v18
  %v36 = vunpack.c.l.b16 %v19
  %v37 = vunpack.c.l.b16 %v20
  %v38 = vunpack.c.l.b16 %v21
  %v39 = vpack.c.b16 %v36, %v35
  %v40 = vpack.c.b16 %v38, %v37
  %v50 = vunpack.c.l.b16 %v22
  %v51 = vunpack.c.l.b16 %v23
  %v52 = vunpack.c.l.b16 %v24
  %v53 = vunpack.c.l.b16 %v25
  %v54 = vunpack.c.l.b16 %v26
  %v55 = vunpack.c.l.b16 %v27
  %v56 = vunpack.c.l.b16 %v28
  %v57 = vunpack.c.l.b16 %v29
  %v58 = vunpack.c.l.b16 %v30
  %v59 = vpack.c.b16 %v51, %v50
  %v60 = vpack.c.b16 %v53, %v52
  %v61 = vpack.c.b16 %v55, %v54
  %v62 = vpack.c.b16 %v57, %v56
  %v63 = vpack.c.b16 %v58, %v58
  %vm68 = vcmask 588800
  %v70 = vsel %vm68, %v39, 0
  %v73 = vsel %vm68, %v40, 0
  %vm75 = vcmask 1043456
  %v77 = vsel %vm75, %v63, 0
  %79 = vmatprep.subr.bf16.mxu0 0
  %80 = vmatpush1.bf16.msra.mxu0 0
  %81 = vmatprep.subr.bf16.mxu0 0
  %82 = vmatpush1.bf16.msra.mxu0 0
  %83 = vmatprep.subr.bf16.mxu0 0
  %84 = vmatpush1.bf16.msra.mxu0 0
  %85 = vmatprep.subr.bf16.mxu0 0
  %86 = vmatpush1.bf16.msra.mxu0 %v77
  %87 = vmatprep.subr.bf16.mxu0 0
  %88 = vmatpush1.bf16.msra.mxu0 %v62
  %89 = vmatprep.subr.bf16.mxu0 0
  %90 = vmatpush1.bf16.msra.mxu0 %v61
  %91 = vmatprep.subr.bf16.mxu0 0
  %92 = vmatpush1.bf16.msra.mxu0 %v60
  %93 = vmatprep.subr.bf16.mxu0 0
  %94 = vmatpush1.bf16.msra.mxu0 %v59
  %95 = vmatprep.subr.bf16.mxu0 0
  %96 = vmatpush2.bf16.msra.mxu0 0
  %97 = vmatprep.subr.bf16.mxu0 0
  %98 = vmatpush2.bf16.msra.mxu0 0
  %99 = vmatprep.subr.bf16.mxu0 0
  %100 = vmatpush2.bf16.msra.mxu0 0
  %101 = vmatprep.subr.bf16.mxu0 0
  %102 = vmatpush2.bf16.msra.mxu0 0
  %103 = vmatprep.subr.bf16.mxu0 0
  %104 = vmatpush2.bf16.msra.mxu0 0
  %105 = vmatprep.subr.bf16.mxu0 0
  %106 = vmatpush2.bf16.msra.mxu0 0
  %107 = vmatprep.subr.bf16.mxu0 0
  %108 = vmatpush2.bf16.msra.mxu0 0
  %109 = vmatprep.subr.bf16.mxu0 0
  %110 = vmatpush2.bf16.msra.mxu0 0
  %111 = vmatprep.mubr.bf16.mxu0 0
  %112 = vmatmul.mubr.bf16.gmra.mxu0 %v70
  %v113 = vpop.f32.mrf.mxu0
  %v114 = vadd.f32 0.0, %v113
  %v115 = vpop.f32.mrf.mxu0
  %v116 = vpop.f32.mrf.mxu0
  %v117 = vadd.f32 0.0, %v116
  %v118 = vpop.f32.mrf.mxu0
  %119 = vmatprep.mubr.bf16.mxu0 0
  %120 = vmatmul.mubr.bf16.gmra.mxu0 %v73
  %v121 = vpop.f32.mrf.mxu0
  %v122 = vadd.f32 0.0, %v121
  %v123 = vpop.f32.mrf.mxu0
  %v124 = vpop.f32.mrf.mxu0
  %v125 = vadd.f32 0.0, %v124
  %v126 = vpop.f32.mrf.mxu0
  %127 = vdwg.mxu0
  %v128 = vld [vmem:[%s2] sm:$0x1]
  %v130 = vlaneseq
  %v131 = vshrl.u32 %v130, 7
  %v132 = vsub.s32 0, %v131
  %v133 = vrot.slane %v128, %v132
  %v135 = vmul.f32 %v114, %v133
  %v136 = vmul.f32 %v117, %v133
  %v137 = vmul.f32 %v122, %v133
  %v138 = vmul.f32 %v125, %v133
  %v139 = vld [vmem:[%s3] sm:$0x1]
  %v141 = vlaneseq
  %v142 = vshrl.u32 %v141, 7
  %v143 = vsub.s32 0, %v142
  %v144 = vrot.slane %v139, %v143
  %v146 = vadd.f32 %v135, %v144
  %v147 = vadd.f32 %v136, %v144
  %v148 = vadd.f32 %v137, %v144
  %v149 = vadd.f32 %v138, %v144
  %v150 = vmax.f32 %v146, 0.0
  %v151 = vmax.f32 %v147, 0.0
  %v152 = vmax.f32 %v148, 0.0
  %v153 = vmax.f32 %v149, 0.0
  %vm154 = vcmask 130048
  %155 = vst.msk [vmem:[%s4] sm:$0xff] %vm154, %v150
  %156 = vst.msk [vmem:[%s4 + $0x8] sm:$0xff] %vm154, %v151
  %157 = vst.msk [vmem:[%s4 + $0x10] sm:$0xff] %vm154, %v152
  %158 = vst.msk [vmem:[%s4 + $0x18] sm:$0xff] %vm154, %v153
  // Predicated region
  $region18: #{run.56} parent=0 // pred_check
    _
  $region19: #{run.56} parent=0 // pred_check_branch
    %160 = sbr.rel (0) target = $region21
  $region20: #{run.56} parent=0 // pred_region
    _
  $region21: #{run.56} parent=0 // pred_fallthru
    _
  // Predicated region
  $region22: #{run.56} parent=0 // pred_check
    _
  $region23: #{run.56} parent=0 // pred_check_branch
    %162 = sbr.rel (0) target = $region25
  $region24: #{run.56} parent=0 // pred_region
    _
  $region25: #{run.56} parent=0 // pred_fallthru
    _

// kernel: run.57
$region0: #{run.57}
  #allocation0 [shape = 'u32[]', space=smem, size = 0x4, offset = 0x4, fixed_abs, tag = 'smem constant byte address 0x4 - core index']
  #allocation1 [shape = 'u32[144,128]{1,0:T(1,128)}', space=vmem, size = 0x12000, scoped, tag = 'internal scratch']
  %s0 = inlined_call_operand.vmem [shape: bf16[32,144], index: 0, kind: input, shape index: {}]
  %s1 = inlined_call_operand.vmem [shape: bf16[144,16], index: 1, kind: input, shape index: {}]
  %s2 = inlined_call_operand.vmem [shape: f32[32,16], index: 2, kind: input, shape index: {}]
  %s3 = inlined_call_operand.vmem [shape: f32[1,16], index: 3, kind: input, shape index: {}]
  %s4 = inlined_call_operand.vmem [shape: f32[1,16], index: 4, kind: input, shape index: {}]
  %s5 = inlined_call_operand.vmem [shape: f32[32,16], index: 5, kind: output, shape index: {0}]
  %s6 = inlined_call_operand.vmem [shape: f32[32,16], index: 6, kind: output, shape index: {1}]
  %7 = xla_tuple %s5, %s6
  %s8 = sld [smem:[#allocation0]]
  $region38: #{run.57} parent=0
    _
  %s10 = ssub.s32 1, %s8
  %s11 = scalar_select 0, %s10, %s8
  // Predicated region
  $region2: #{run.57} parent=0 // pred_check
    _
  $region3: #{run.57} parent=0 // pred_check_branch
    %13 = sbr.rel (0) target = $region5
  $region4: #{run.57} parent=0 // pred_region
    _
  $region5: #{run.57} parent=0 // pred_fallthru
    _
  // Predicated region
  $region6: #{run.57} parent=0 // pred_check
    _
  $region7: #{run.57} parent=0 // pred_check_branch
    %15 = sbr.rel (0) target = $region9
  $region8: #{run.57} parent=0 // pred_region
    _
  $region9: #{run.57} parent=0 // pred_fallthru
    _
  // Predicated region
  $region10: #{run.57} parent=0 // pred_check
    _
  $region11: #{run.57} parent=0 // pred_check_branch
    %17 = sbr.rel (0) target = $region13
  $region12: #{run.57} parent=0 // pred_region
    _
  $region13: #{run.57} parent=0 // pred_fallthru
    _
  // Predicated region
  $region14: #{run.57} parent=0 // pred_check
    _
  $region15: #{run.57} parent=0 // pred_check_branch
    %19 = sbr.rel (0) target = $region17
  $region16: #{run.57} parent=0 // pred_region
    _
  $region17: #{run.57} parent=0 // pred_fallthru
    _
  // Predicated region
  $region18: #{run.57} parent=0 // pred_check
    _
  $region19: #{run.57} parent=0 // pred_check_branch
    %21 = sbr.rel (0) target = $region21
  $region20: #{run.57} parent=0 // pred_region
    _
  $region21: #{run.57} parent=0 // pred_fallthru
    _
  %v23 = vld [vmem:[%s0] sm:$0xff]
  %v24 = vld [vmem:[%s0 + $0x8] sm:$0xff]
  %v25 = vld [vmem:[%s0 + $0x10] sm:$0xff]
  %v26 = vld [vmem:[%s0 + $0x18] sm:$0xff]
  %v27 = vld [vmem:[%s1] sm:$0xf]
  %v28 = vld [vmem:[%s1 + $0x4] sm:$0xf]
  %v29 = vld [vmem:[%s1 + $0x8] sm:$0xf]
  %v30 = vld [vmem:[%s1 + $0xc] sm:$0xf]
  %v31 = vld [vmem:[%s1 + $0x10] sm:$0xf]
  %v32 = vld [vmem:[%s1 + $0x14] sm:$0xf]
  %v33 = vld [vmem:[%s1 + $0x18] sm:$0xf]
  %v34 = vld [vmem:[%s1 + $0x1c] sm:$0xf]
  %v35 = vld [vmem:[%s1 + $0x20] sm:$0xf]
  %v36 = vld [vmem:[%s1 + $0x24] sm:$0xf]
  %v37 = vld [vmem:[%s1 + $0x28] sm:$0xf]
  %v38 = vld [vmem:[%s1 + $0x2c] sm:$0xf]
  %v39 = vld [vmem:[%s1 + $0x30] sm:$0xf]
  %v40 = vld [vmem:[%s1 + $0x34] sm:$0xf]
  %v41 = vld [vmem:[%s1 + $0x38] sm:$0xf]
  %v42 = vld [vmem:[%s1 + $0x3c] sm:$0xf]
  %v43 = vld [vmem:[%s1 + $0x40] sm:$0xf]
  %v44 = vld [vmem:[%s1 + $0x44] sm:$0xf]
  %v45 = vld [vmem:[%s2] sm:$0xff]
  %v46 = vld [vmem:[%s2 + $0x8] sm:$0xff]
  %v47 = vld [vmem:[%s2 + $0x10] sm:$0xff]
  %v48 = vld [vmem:[%s2 + $0x18] sm:$0xff]
  %v53 = vunpack.c.l.b16 %v23
  %v54 = vunpack.c.h.b16 %v23
  %v55 = vunpack.c.l.b16 %v24
  %v56 = vunpack.c.h.b16 %v24
  %v57 = vunpack.c.l.b16 %v25
  %v58 = vunpack.c.h.b16 %v25
  %v59 = vunpack.c.l.b16 %v26
  %v60 = vunpack.c.h.b16 %v26
  %v61 = vpack.c.b16 %v55, %v53
  %v62 = vpack.c.b16 %v56, %v54
  %v63 = vpack.c.b16 %v59, %v57
  %v64 = vpack.c.b16 %v60, %v58
  %v85 = vunpack.c.l.b16 %v27
  %v86 = vunpack.c.l.b16 %v28
  %v87 = vunpack.c.l.b16 %v29
  %v88 = vunpack.c.l.b16 %v30
  %v89 = vunpack.c.l.b16 %v31
  %v90 = vunpack.c.l.b16 %v32
  %v91 = vunpack.c.l.b16 %v33
  %v92 = vunpack.c.l.b16 %v34
  %v93 = vunpack.c.l.b16 %v35
  %v94 = vunpack.c.l.b16 %v36
  %v95 = vunpack.c.l.b16 %v37
  %v96 = vunpack.c.l.b16 %v38
  %v97 = vunpack.c.l.b16 %v39
  %v98 = vunpack.c.l.b16 %v40
  %v99 = vunpack.c.l.b16 %v41
  %v100 = vunpack.c.l.b16 %v42
  %v101 = vunpack.c.l.b16 %v43
  %v102 = vunpack.c.l.b16 %v44
  %v103 = vpack.c.b16 %v86, %v85
  %v104 = vpack.c.b16 %v88, %v87
  %v105 = vpack.c.b16 %v90, %v89
  %v106 = vpack.c.b16 %v92, %v91
  %v107 = vpack.c.b16 %v94, %v93
  %v108 = vpack.c.b16 %v96, %v95
  %v109 = vpack.c.b16 %v98, %v97
  %v110 = vpack.c.b16 %v100, %v99
  %v111 = vpack.c.b16 %v102, %v101
  %vm121 = vcmask 130048
  %v123 = vsel %vm121, %v62, 0
  %v126 = vsel %vm121, %v64, 0
  %128 = vmatprep.subr.bf16.mxu0 0
  %129 = vmatpush1.bf16.msra.mxu0 %v110
  %130 = vmatprep.subr.bf16.mxu0 0
  %131 = vmatpush1.bf16.msra.mxu0 %v109
  %132 = vmatprep.subr.bf16.mxu0 0
  %133 = vmatpush1.bf16.msra.mxu0 %v108
  %134 = vmatprep.subr.bf16.mxu0 0
  %135 = vmatpush1.bf16.msra.mxu0 %v107
  %136 = vmatprep.subr.bf16.mxu0 0
  %137 = vmatpush1.bf16.msra.mxu0 %v106
  %138 = vmatprep.subr.bf16.mxu0 0
  %139 = vmatpush1.bf16.msra.mxu0 %v105
  %140 = vmatprep.subr.bf16.mxu0 0
  %141 = vmatpush1.bf16.msra.mxu0 %v104
  %142 = vmatprep.subr.bf16.mxu0 0
  %143 = vmatpush1.bf16.msra.mxu0 %v103
  %144 = vmatprep.subr.bf16.mxu0 0
  %145 = vmatpush2.bf16.msra.mxu0 0
  %146 = vmatprep.subr.bf16.mxu0 0
  %147 = vmatpush2.bf16.msra.mxu0 0
  %148 = vmatprep.subr.bf16.mxu0 0
  %149 = vmatpush2.bf16.msra.mxu0 0
  %150 = vmatprep.subr.bf16.mxu0 0
  %151 = vmatpush2.bf16.msra.mxu0 0
  %152 = vmatprep.subr.bf16.mxu0 0
  %153 = vmatpush2.bf16.msra.mxu0 0
  %154 = vmatprep.subr.bf16.mxu0 0
  %155 = vmatpush2.bf16.msra.mxu0 0
  %156 = vmatprep.subr.bf16.mxu0 0
  %157 = vmatpush2.bf16.msra.mxu0 0
  %158 = vmatprep.subr.bf16.mxu0 0
  %159 = vmatpush2.bf16.msra.mxu0 %v111
  %160 = vmatprep.mubr.bf16.mxu0 %v123
  %161 = vmatmul.mubr.bf16.gmra.mxu0 %v61
  %v162 = vpop.f32.mrf.mxu0
  %v163 = vadd.f32 %v45, %v162
  %v164 = vpop.f32.mrf.mxu0
  %v165 = vpop.f32.mrf.mxu0
  %v166 = vadd.f32 %v46, %v165
  %v167 = vpop.f32.mrf.mxu0
  %168 = vmatprep.mubr.bf16.mxu0 %v126
  %169 = vmatmul.mubr.bf16.gmra.mxu0 %v63
  %v170 = vpop.f32.mrf.mxu0
  %v171 = vadd.f32 %v47, %v170
  %v172 = vpop.f32.mrf.mxu0
  %v173 = vpop.f32.mrf.mxu0
  %v174 = vadd.f32 %v48, %v173
  %v175 = vpop.f32.mrf.mxu0
  %176 = vdwg.mxu0
  %177 = vst.msk [vmem:[%s5] sm:$0xff] %vm121, %v163
  %178 = vst.msk [vmem:[%s5 + $0x8] sm:$0xff] %vm121, %v166
  %179 = vst.msk [vmem:[%s5 + $0x10] sm:$0xff] %vm121, %v171
  %180 = vst.msk [vmem:[%s5 + $0x18] sm:$0xff] %vm121, %v174
  %v181 = vld [vmem:[%s3] sm:$0x1]
  %v183 = vlaneseq
  %v184 = vshrl.u32 %v183, 7
  %v185 = vsub.s32 0, %v184
  %v186 = vrot.slane %v181, %v185
  %v188 = vmul.f32 %v163, %v186
  %v189 = vmul.f32 %v166, %v186
  %v190 = vmul.f32 %v171, %v186
  %v191 = vmul.f32 %v174, %v186
  %v192 = vld [vmem:[%s4] sm:$0x1]
  %v194 = vlaneseq
  %v195 = vshrl.u32 %v194, 7
  %v196 = vsub.s32 0, %v195
  %v197 = vrot.slane %v192, %v196
  %v199 = vadd.f32 %v188, %v197
  %v200 = vadd.f32 %v189, %v197
  %v201 = vadd.f32 %v190, %v197
  %v202 = vadd.f32 %v191, %v197
  %v203 = vmax.f32 %v199, 0.0
  %v204 = vmax.f32 %v200, 0.0
  %v205 = vmax.f32 %v201, 0.0
  %v206 = vmax.f32 %v202, 0.0
  %207 = vst.msk [vmem:[%s6] sm:$0xff] %vm121, %v203
  %208 = vst.msk [vmem:[%s6 + $0x8] sm:$0xff] %vm121, %v204
  %209 = vst.msk [vmem:[%s6 + $0x10] sm:$0xff] %vm121, %v205
  %210 = vst.msk [vmem:[%s6 + $0x18] sm:$0xff] %vm121, %v206
  // Predicated region
  $region22: #{run.57} parent=0 // pred_check
    _
  $region23: #{run.57} parent=0 // pred_check_branch
    %212 = sbr.rel (0) target = $region25
  $region24: #{run.57} parent=0 // pred_region
    _
  $region25: #{run.57} parent=0 // pred_fallthru
    _
  // Predicated region
  $region26: #{run.57} parent=0 // pred_check
    _
  $region27: #{run.57} parent=0 // pred_check_branch
    %214 = sbr.rel (0) target = $region29
  $region28: #{run.57} parent=0 // pred_region
    _
  $region29: #{run.57} parent=0 // pred_fallthru
    _
  // Predicated region
  $region30: #{run.57} parent=0 // pred_check
    _
  $region31: #{run.57} parent=0 // pred_check_branch
    %216 = sbr.rel (0) target = $region33
  $region32: #{run.57} parent=0 // pred_region
    _
  $region33: #{run.57} parent=0 // pred_fallthru
    _
  // Predicated region
  $region34: #{run.57} parent=0 // pred_check
    _
  $region35: #{run.57} parent=0 // pred_check_branch
    %218 = sbr.rel (0) target = $region37
  $region36: #{run.57} parent=0 // pred_region
    _
  $region37: #{run.57} parent=0 // pred_fallthru
    _

// kernel: run.58
$region0: #{run.58}
  #allocation0 [shape = 'u32[]', space=smem, size = 0x4, offset = 0x4, fixed_abs, tag = 'smem constant byte address 0x4 - core index']
  #allocation1 [shape = 'u32[144,128]{1,0:T(1,128)}', space=vmem, size = 0x12000, scoped, tag = 'internal scratch']
  %s0 = inlined_call_operand.vmem [shape: bf16[32,144], index: 0, kind: input, shape index: {}]
  %s1 = inlined_call_operand.vmem [shape: bf16[144,16], index: 1, kind: input, shape index: {}]
  %s2 = inlined_call_operand.vmem [shape: f32[1,16], index: 2, kind: input, shape index: {}]
  %s3 = inlined_call_operand.vmem [shape: f32[1,16], index: 3, kind: input, shape index: {}]
  %s4 = inlined_call_operand.vmem [shape: f32[32,16], index: 4, kind: output, shape index: {}]
  %s5 = sld [smem:[#allocation0]]
  $region26: #{run.58} parent=0
    _
  %s7 = ssub.s32 1, %s5
  %s8 = scalar_select 0, %s7, %s5
  // Predicated region
  $region2: #{run.58} parent=0 // pred_check
    _
  $region3: #{run.58} parent=0 // pred_check_branch
    %10 = sbr.rel (0) target = $region5
  $region4: #{run.58} parent=0 // pred_region
    _
  $region5: #{run.58} parent=0 // pred_fallthru
    _
  // Predicated region
  $region6: #{run.58} parent=0 // pred_check
    _
  $region7: #{run.58} parent=0 // pred_check_branch
    %12 = sbr.rel (0) target = $region9
  $region8: #{run.58} parent=0 // pred_region
    _
  $region9: #{run.58} parent=0 // pred_fallthru
    _
  // Predicated region
  $region10: #{run.58} parent=0 // pred_check
    _
  $region11: #{run.58} parent=0 // pred_check_branch
    %14 = sbr.rel (0) target = $region13
  $region12: #{run.58} parent=0 // pred_region
    _
  $region13: #{run.58} parent=0 // pred_fallthru
    _
  // Predicated region
  $region14: #{run.58} parent=0 // pred_check
    _
  $region15: #{run.58} parent=0 // pred_check_branch
    %16 = sbr.rel (0) target = $region17
  $region16: #{run.58} parent=0 // pred_region
    _
  $region17: #{run.58} parent=0 // pred_fallthru
    _
  %v18 = vld [vmem:[%s0] sm:$0xff]
  %v19 = vld [vmem:[%s0 + $0x8] sm:$0xff]
  %v20 = vld [vmem:[%s0 + $0x10] sm:$0xff]
  %v21 = vld [vmem:[%s0 + $0x18] sm:$0xff]
  %v22 = vld [vmem:[%s1] sm:$0xf]
  %v23 = vld [vmem:[%s1 + $0x4] sm:$0xf]
  %v24 = vld [vmem:[%s1 + $0x8] sm:$0xf]
  %v25 = vld [vmem:[%s1 + $0xc] sm:$0xf]
  %v26 = vld [vmem:[%s1 + $0x10] sm:$0xf]
  %v27 = vld [vmem:[%s1 + $0x14] sm:$0xf]
  %v28 = vld [vmem:[%s1 + $0x18] sm:$0xf]
  %v29 = vld [vmem:[%s1 + $0x1c] sm:$0xf]
  %v30 = vld [vmem:[%s1 + $0x20] sm:$0xf]
  %v31 = vld [vmem:[%s1 + $0x24] sm:$0xf]
  %v32 = vld [vmem:[%s1 + $0x28] sm:$0xf]
  %v33 = vld [vmem:[%s1 + $0x2c] sm:$0xf]
  %v34 = vld [vmem:[%s1 + $0x30] sm:$0xf]
  %v35 = vld [vmem:[%s1 + $0x34] sm:$0xf]
  %v36 = vld [vmem:[%s1 + $0x38] sm:$0xf]
  %v37 = vld [vmem:[%s1 + $0x3c] sm:$0xf]
  %v38 = vld [vmem:[%s1 + $0x40] sm:$0xf]
  %v39 = vld [vmem:[%s1 + $0x44] sm:$0xf]
  %v44 = vunpack.c.l.b16 %v18
  %v45 = vunpack.c.h.b16 %v18
  %v46 = vunpack.c.l.b16 %v19
  %v47 = vunpack.c.h.b16 %v19
  %v48 = vunpack.c.l.b16 %v20
  %v49 = vunpack.c.h.b16 %v20
  %v50 = vunpack.c.l.b16 %v21
  %v51 = vunpack.c.h.b16 %v21
  %v52 = vpack.c.b16 %v46, %v44
  %v53 = vpack.c.b16 %v47, %v45
  %v54 = vpack.c.b16 %v50, %v48
  %v55 = vpack.c.b16 %v51, %v49
  %v76 = vunpack.c.l.b16 %v22
  %v77 = vunpack.c.l.b16 %v23
  %v78 = vunpack.c.l.b16 %v24
  %v79 = vunpack.c.l.b16 %v25
  %v80 = vunpack.c.l.b16 %v26
  %v81 = vunpack.c.l.b16 %v27
  %v82 = vunpack.c.l.b16 %v28
  %v83 = vunpack.c.l.b16 %v29
  %v84 = vunpack.c.l.b16 %v30
  %v85 = vunpack.c.l.b16 %v31
  %v86 = vunpack.c.l.b16 %v32
  %v87 = vunpack.c.l.b16 %v33
  %v88 = vunpack.c.l.b16 %v34
  %v89 = vunpack.c.l.b16 %v35
  %v90 = vunpack.c.l.b16 %v36
  %v91 = vunpack.c.l.b16 %v37
  %v92 = vunpack.c.l.b16 %v38
  %v93 = vunpack.c.l.b16 %v39
  %v94 = vpack.c.b16 %v77, %v76
  %v95 = vpack.c.b16 %v79, %v78
  %v96 = vpack.c.b16 %v81, %v80
  %v97 = vpack.c.b16 %v83, %v82
  %v98 = vpack.c.b16 %v85, %v84
  %v99 = vpack.c.b16 %v87, %v86
  %v100 = vpack.c.b16 %v89, %v88
  %v101 = vpack.c.b16 %v91, %v90
  %v102 = vpack.c.b16 %v93, %v92
  %vm112 = vcmask 130048
  %v114 = vsel %vm112, %v53, 0
  %v117 = vsel %vm112, %v55, 0
  %119 = vmatprep.subr.bf16.mxu0 0
  %120 = vmatpush1.bf16.msra.mxu0 %v101
  %121 = vmatprep.subr.bf16.mxu0 0
  %122 = vmatpush1.bf16.msra.mxu0 %v100
  %123 = vmatprep.subr.bf16.mxu0 0
  %124 = vmatpush1.bf16.msra.mxu0 %v99
  %125 = vmatprep.subr.bf16.mxu0 0
  %126 = vmatpush1.bf16.msra.mxu0 %v98
  %127 = vmatprep.subr.bf16.mxu0 0
  %128 = vmatpush1.bf16.msra.mxu0 %v97
  %129 = vmatprep.subr.bf16.mxu0 0
  %130 = vmatpush1.bf16.msra.mxu0 %v96
  %131 = vmatprep.subr.bf16.mxu0 0
  %132 = vmatpush1.bf16.msra.mxu0 %v95
  %133 = vmatprep.subr.bf16.mxu0 0
  %134 = vmatpush1.bf16.msra.mxu0 %v94
  %135 = vmatprep.subr.bf16.mxu0 0
  %136 = vmatpush2.bf16.msra.mxu0 0
  %137 = vmatprep.subr.bf16.mxu0 0
  %138 = vmatpush2.bf16.msra.mxu0 0
  %139 = vmatprep.subr.bf16.mxu0 0
  %140 = vmatpush2.bf16.msra.mxu0 0
  %141 = vmatprep.subr.bf16.mxu0 0
  %142 = vmatpush2.bf16.msra.mxu0 0
  %143 = vmatprep.subr.bf16.mxu0 0
  %144 = vmatpush2.bf16.msra.mxu0 0
  %145 = vmatprep.subr.bf16.mxu0 0
  %146 = vmatpush2.bf16.msra.mxu0 0
  %147 = vmatprep.subr.bf16.mxu0 0
  %148 = vmatpush2.bf16.msra.mxu0 0
  %149 = vmatprep.subr.bf16.mxu0 0
  %150 = vmatpush2.bf16.msra.mxu0 %v102
  %151 = vmatprep.mubr.bf16.mxu0 %v114
  %152 = vmatmul.mubr.bf16.gmra.mxu0 %v52
  %v153 = vpop.f32.mrf.mxu0
  %v154 = vadd.f32 0.0, %v153
  %v155 = vpop.f32.mrf.mxu0
  %v156 = vpop.f32.mrf.mxu0
  %v157 = vadd.f32 0.0, %v156
  %v158 = vpop.f32.mrf.mxu0
  %159 = vmatprep.mubr.bf16.mxu0 %v117
  %160 = vmatmul.mubr.bf16.gmra.mxu0 %v54
  %v161 = vpop.f32.mrf.mxu0
  %v162 = vadd.f32 0.0, %v161
  %v163 = vpop.f32.mrf.mxu0
  %v164 = vpop.f32.mrf.mxu0
  %v165 = vadd.f32 0.0, %v164
  %v166 = vpop.f32.mrf.mxu0
  %167 = vdwg.mxu0
  %v168 = vld [vmem:[%s2] sm:$0x1]
  %v170 = vlaneseq
  %v171 = vshrl.u32 %v170, 7
  %v172 = vsub.s32 0, %v171
  %v173 = vrot.slane %v168, %v172
  %v175 = vmul.f32 %v154, %v173
  %v176 = vmul.f32 %v157, %v173
  %v177 = vmul.f32 %v162, %v173
  %v178 = vmul.f32 %v165, %v173
  %v179 = vld [vmem:[%s3] sm:$0x1]
  %v181 = vlaneseq
  %v182 = vshrl.u32 %v181, 7
  %v183 = vsub.s32 0, %v182
  %v184 = vrot.slane %v179, %v183
  %v186 = vadd.f32 %v175, %v184
  %v187 = vadd.f32 %v176, %v184
  %v188 = vadd.f32 %v177, %v184
  %v189 = vadd.f32 %v178, %v184
  %v190 = vmax.f32 %v186, 0.0
  %v191 = vmax.f32 %v187, 0.0
  %v192 = vmax.f32 %v188, 0.0
  %v193 = vmax.f32 %v189, 0.0
  %194 = vst.msk [vmem:[%s4] sm:$0xff] %vm112, %v190
  %195 = vst.msk [vmem:[%s4 + $0x8] sm:$0xff] %vm112, %v191
  %196 = vst.msk [vmem:[%s4 + $0x10] sm:$0xff] %vm112, %v192
  %197 = vst.msk [vmem:[%s4 + $0x18] sm:$0xff] %vm112, %v193
  // Predicated region
  $region18: #{run.58} parent=0 // pred_check
    _
  $region19: #{run.58} parent=0 // pred_check_branch
    %199 = sbr.rel (0) target = $region21
  $region20: #{run.58} parent=0 // pred_region
    _
  $region21: #{run.58} parent=0 // pred_fallthru
    _
  // Predicated region
  $region22: #{run.58} parent=0 // pred_check
    _
  $region23: #{run.58} parent=0 // pred_check_branch
    %201 = sbr.rel (0) target = $region25
  $region24: #{run.58} parent=0 // pred_region
    _
  $region25: #{run.58} parent=0 // pred_fallthru
    _

// kernel: run.69
$region0: #{run.69}
  #allocation0 [shape = 'u32[]', space=smem, size = 0x4, offset = 0x4, fixed_abs, tag = 'smem constant byte address 0x4 - core index']
  #allocation1 [shape = 'u32[144,128]{1,0:T(1,128)}', space=vmem, size = 0x12000, scoped, tag = 'internal scratch']
  %s0 = inlined_call_operand.vmem [shape: bf16[8,144], index: 0, kind: input, shape index: {}]
  %s1 = inlined_call_operand.vmem [shape: bf16[144,32], index: 1, kind: input, shape index: {}]
  %s2 = inlined_call_operand.vmem [shape: f32[1,32], index: 2, kind: input, shape index: {}]
  %s3 = inlined_call_operand.vmem [shape: f32[1,32], index: 3, kind: input, shape index: {}]
  %s4 = inlined_call_operand.vmem [shape: f32[8,32], index: 4, kind: output, shape index: {}]
  %s5 = sld [smem:[#allocation0]]
  $region26: #{run.69} parent=0
    _
  %s7 = ssub.s32 1, %s5
  %s8 = scalar_select 0, %s7, %s5
  // Predicated region
  $region2: #{run.69} parent=0 // pred_check
    _
  $region3: #{run.69} parent=0 // pred_check_branch
    %10 = sbr.rel (0) target = $region5
  $region4: #{run.69} parent=0 // pred_region
    _
  $region5: #{run.69} parent=0 // pred_fallthru
    _
  // Predicated region
  $region6: #{run.69} parent=0 // pred_check
    _
  $region7: #{run.69} parent=0 // pred_check_branch
    %12 = sbr.rel (0) target = $region9
  $region8: #{run.69} parent=0 // pred_region
    _
  $region9: #{run.69} parent=0 // pred_fallthru
    _
  // Predicated region
  $region10: #{run.69} parent=0 // pred_check
    _
  $region11: #{run.69} parent=0 // pred_check_branch
    %14 = sbr.rel (0) target = $region13
  $region12: #{run.69} parent=0 // pred_region
    _
  $region13: #{run.69} parent=0 // pred_fallthru
    _
  // Predicated region
  $region14: #{run.69} parent=0 // pred_check
    _
  $region15: #{run.69} parent=0 // pred_check_branch
    %16 = sbr.rel (0) target = $region17
  $region16: #{run.69} parent=0 // pred_region
    _
  $region17: #{run.69} parent=0 // pred_fallthru
    _
  %v18 = vld [vmem:[%s0] sm:$0xff]
  %v19 = vld [vmem:[%s1] sm:$0xf]
  %v20 = vld [vmem:[%s1 + $0x4] sm:$0xf]
  %v21 = vld [vmem:[%s1 + $0x8] sm:$0xf]
  %v22 = vld [vmem:[%s1 + $0xc] sm:$0xf]
  %v23 = vld [vmem:[%s1 + $0x10] sm:$0xf]
  %v24 = vld [vmem:[%s1 + $0x14] sm:$0xf]
  %v25 = vld [vmem:[%s1 + $0x18] sm:$0xf]
  %v26 = vld [vmem:[%s1 + $0x1c] sm:$0xf]
  %v27 = vld [vmem:[%s1 + $0x20] sm:$0xf]
  %v28 = vld [vmem:[%s1 + $0x24] sm:$0xf]
  %v29 = vld [vmem:[%s1 + $0x28] sm:$0xf]
  %v30 = vld [vmem:[%s1 + $0x2c] sm:$0xf]
  %v31 = vld [vmem:[%s1 + $0x30] sm:$0xf]
  %v32 = vld [vmem:[%s1 + $0x34] sm:$0xf]
  %v33 = vld [vmem:[%s1 + $0x38] sm:$0xf]
  %v34 = vld [vmem:[%s1 + $0x3c] sm:$0xf]
  %v35 = vld [vmem:[%s1 + $0x40] sm:$0xf]
  %v36 = vld [vmem:[%s1 + $0x44] sm:$0xf]
  %v38 = vunpack.c.l.b16 %v18
  %v39 = vunpack.c.h.b16 %v18
  %v40 = vpack.c.b16 %v38, %v38
  %v41 = vpack.c.b16 %v39, %v39
  %v61 = vunpack.c.l.b16 %v19
  %v62 = vunpack.c.l.b16 %v20
  %v63 = vunpack.c.l.b16 %v21
  %v64 = vunpack.c.l.b16 %v22
  %v65 = vunpack.c.l.b16 %v23
  %v66 = vunpack.c.l.b16 %v24
  %v67 = vunpack.c.l.b16 %v25
  %v68 = vunpack.c.l.b16 %v26
  %v69 = vunpack.c.l.b16 %v27
  %v70 = vunpack.c.l.b16 %v28
  %v71 = vunpack.c.l.b16 %v29
  %v72 = vunpack.c.l.b16 %v30
  %v73 = vunpack.c.l.b16 %v31
  %v74 = vunpack.c.l.b16 %v32
  %v75 = vunpack.c.l.b16 %v33
  %v76 = vunpack.c.l.b16 %v34
  %v77 = vunpack.c.l.b16 %v35
  %v78 = vunpack.c.l.b16 %v36
  %v79 = vpack.c.b16 %v62, %v61
  %v80 = vpack.c.b16 %v64, %v63
  %v81 = vpack.c.b16 %v66, %v65
  %v82 = vpack.c.b16 %v68, %v67
  %v83 = vpack.c.b16 %v70, %v69
  %v84 = vpack.c.b16 %v72, %v71
  %v85 = vpack.c.b16 %v74, %v73
  %v86 = vpack.c.b16 %v76, %v75
  %v87 = vpack.c.b16 %v78, %v77
  %vm97 = vcmask 130048
  %v99 = vsel %vm97, %v41, 0
  %101 = vmatprep.subr.bf16.mxu0 0
  %102 = vmatpush1.bf16.msra.mxu0 %v86
  %103 = vmatprep.subr.bf16.mxu0 0
  %104 = vmatpush1.bf16.msra.mxu0 %v85
  %105 = vmatprep.subr.bf16.mxu0 0
  %106 = vmatpush1.bf16.msra.mxu0 %v84
  %107 = vmatprep.subr.bf16.mxu0 0
  %108 = vmatpush1.bf16.msra.mxu0 %v83
  %109 = vmatprep.subr.bf16.mxu0 0
  %110 = vmatpush1.bf16.msra.mxu0 %v82
  %111 = vmatprep.subr.bf16.mxu0 0
  %112 = vmatpush1.bf16.msra.mxu0 %v81
  %113 = vmatprep.subr.bf16.mxu0 0
  %114 = vmatpush1.bf16.msra.mxu0 %v80
  %115 = vmatprep.subr.bf16.mxu0 0
  %116 = vmatpush1.bf16.msra.mxu0 %v79
  %117 = vmatprep.subr.bf16.mxu0 0
  %118 = vmatpush2.bf16.msra.mxu0 0
  %119 = vmatprep.subr.bf16.mxu0 0
  %120 = vmatpush2.bf16.msra.mxu0 0
  %121 = vmatprep.subr.bf16.mxu0 0
  %122 = vmatpush2.bf16.msra.mxu0 0
  %123 = vmatprep.subr.bf16.mxu0 0
  %124 = vmatpush2.bf16.msra.mxu0 0
  %125 = vmatprep.subr.bf16.mxu0 0
  %126 = vmatpush2.bf16.msra.mxu0 0
  %127 = vmatprep.subr.bf16.mxu0 0
  %128 = vmatpush2.bf16.msra.mxu0 0
  %129 = vmatprep.subr.bf16.mxu0 0
  %130 = vmatpush2.bf16.msra.mxu0 0
  %131 = vmatprep.subr.bf16.mxu0 0
  %132 = vmatpush2.bf16.msra.mxu0 %v87
  %133 = vmatprep.mubr.bf16.mxu0 %v99
  %134 = vmatmul.mubr.bf16.gmra.mxu0 %v40
  %v135 = vpop.f32.mrf.mxu0
  %v136 = vadd.f32 0.0, %v135
  %v137 = vpop.f32.mrf.mxu0
  %v138 = vpop.f32.mrf.mxu0
  %v139 = vpop.f32.mrf.mxu0
  %140 = vdwg.mxu0
  %v141 = vld [vmem:[%s2] sm:$0x1]
  %v143 = vlaneseq
  %v144 = vshrl.u32 %v143, 7
  %v145 = vsub.s32 0, %v144
  %v146 = vrot.slane %v141, %v145
  %v148 = vmul.f32 %v136, %v146
  %v149 = vld [vmem:[%s3] sm:$0x1]
  %v151 = vlaneseq
  %v152 = vshrl.u32 %v151, 7
  %v153 = vsub.s32 0, %v152
  %v154 = vrot.slane %v149, %v153
  %v156 = vadd.f32 %v148, %v154
  %v157 = vmax.f32 %v156, 0.0
  %vm158 = vcmask 261120
  %159 = vst.msk [vmem:[%s4] sm:$0xff] %vm158, %v157
  // Predicated region
  $region18: #{run.69} parent=0 // pred_check
    _
  $region19: #{run.69} parent=0 // pred_check_branch
    %161 = sbr.rel (0) target = $region21
  $region20: #{run.69} parent=0 // pred_region
    _
  $region21: #{run.69} parent=0 // pred_fallthru
    _
  // Predicated region
  $region22: #{run.69} parent=0 // pred_check
    _
  $region23: #{run.69} parent=0 // pred_check_branch
    %163 = sbr.rel (0) target = $region25
  $region24: #{run.69} parent=0 // pred_region
    _
  $region25: #{run.69} parent=0 // pred_fallthru
    _

// kernel: run.68
$region0: #{run.68}
  #allocation0 [shape = 'u32[]', space=smem, size = 0x4, offset = 0x4, fixed_abs, tag = 'smem constant byte address 0x4 - core index']
  #allocation1 [shape = 'u32[144,128]{1,0:T(1,128)}', space=vmem, size = 0x12000, scoped, tag = 'internal scratch']
  %s0 = inlined_call_operand.vmem [shape: bf16[8,16], index: 0, kind: input, shape index: {}]
  %s1 = inlined_call_operand.vmem [shape: bf16[16,32], index: 1, kind: input, shape index: {}]
  %s2 = inlined_call_operand.vmem [shape: f32[8,32], index: 2, kind: output, shape index: {}]
  %s3 = sld [smem:[#allocation0]]
  $region18: #{run.68} parent=0
    _
  %s5 = ssub.s32 1, %s3
  %s6 = scalar_select 0, %s5, %s3
  // Predicated region
  $region2: #{run.68} parent=0 // pred_check
    _
  $region3: #{run.68} parent=0 // pred_check_branch
    %8 = sbr.rel (0) target = $region5
  $region4: #{run.68} parent=0 // pred_region
    _
  $region5: #{run.68} parent=0 // pred_fallthru
    _
  // Predicated region
  $region6: #{run.68} parent=0 // pred_check
    _
  $region7: #{run.68} parent=0 // pred_check_branch
    %10 = sbr.rel (0) target = $region9
  $region8: #{run.68} parent=0 // pred_region
    _
  $region9: #{run.68} parent=0 // pred_fallthru
    _
  %v12 = vld [vmem:[%s0] sm:$0xf]
  %v13 = vld [vmem:[%s1] sm:$0xf]
  %v14 = vld [vmem:[%s1 + $0x4] sm:$0xf]
  %v17 = vunpack.c.l.b16 %v13
  %v18 = vunpack.c.l.b16 %v14
  %v19 = vpack.c.b16 %v18, %v17
  %vm21 = vcmask 130048
  %v23 = vsel %vm21, %v12, 0
  %25 = vmatprep.subr.bf16.mxu0 0
  %26 = vmatpush1.bf16.msra.mxu0 0
  %27 = vmatprep.subr.bf16.mxu0 0
  %28 = vmatpush1.bf16.msra.mxu0 0
  %29 = vmatprep.subr.bf16.mxu0 0
  %30 = vmatpush1.bf16.msra.mxu0 0
  %31 = vmatprep.subr.bf16.mxu0 0
  %32 = vmatpush1.bf16.msra.mxu0 0
  %33 = vmatprep.subr.bf16.mxu0 0
  %34 = vmatpush1.bf16.msra.mxu0 0
  %35 = vmatprep.subr.bf16.mxu0 0
  %36 = vmatpush1.bf16.msra.mxu0 0
  %37 = vmatprep.subr.bf16.mxu0 0
  %38 = vmatpush1.bf16.msra.mxu0 0
  %39 = vmatprep.subr.bf16.mxu0 0
  %40 = vmatpush1.bf16.msra.mxu0 %v19
  %41 = vmatprep.subr.bf16.mxu0 0
  %42 = vmatpush2.bf16.msra.mxu0 0
  %43 = vmatprep.subr.bf16.mxu0 0
  %44 = vmatpush2.bf16.msra.mxu0 0
  %45 = vmatprep.subr.bf16.mxu0 0
  %46 = vmatpush2.bf16.msra.mxu0 0
  %47 = vmatprep.subr.bf16.mxu0 0
  %48 = vmatpush2.bf16.msra.mxu0 0
  %49 = vmatprep.subr.bf16.mxu0 0
  %50 = vmatpush2.bf16.msra.mxu0 0
  %51 = vmatprep.subr.bf16.mxu0 0
  %52 = vmatpush2.bf16.msra.mxu0 0
  %53 = vmatprep.subr.bf16.mxu0 0
  %54 = vmatpush2.bf16.msra.mxu0 0
  %55 = vmatprep.subr.bf16.mxu0 0
  %56 = vmatpush2.bf16.msra.mxu0 0
  %57 = vmatprep.mubr.bf16.mxu0 0
  %58 = vmatmul.mubr.bf16.gmra.mxu0 %v23
  %v59 = vpop.f32.mrf.mxu0
  %v60 = vadd.f32 0.0, %v59
  %v61 = vpop.f32.mrf.mxu0
  %v62 = vpop.f32.mrf.mxu0
  %v63 = vpop.f32.mrf.mxu0
  %64 = vdwg.mxu0
  %vm65 = vcmask 261120
  %66 = vst.msk [vmem:[%s2] sm:$0xff] %vm65, %v60
  // Predicated region
  $region10: #{run.68} parent=0 // pred_check
    _
  $region11: #{run.68} parent=0 // pred_check_branch
    %68 = sbr.rel (0) target = $region13
  $region12: #{run.68} parent=0 // pred_region
    _
  $region13: #{run.68} parent=0 // pred_fallthru
    _
  // Predicated region
  $region14: #{run.68} parent=0 // pred_check
    _
  $region15: #{run.68} parent=0 // pred_check_branch
    %70 = sbr.rel (0) target = $region17
  $region16: #{run.68} parent=0 // pred_region
    _
  $region17: #{run.68} parent=0 // pred_fallthru
    _

// kernel: run.71
$region0: #{run.71}
  #allocation0 [shape = 'u32[]', space=smem, size = 0x4, offset = 0x4, fixed_abs, tag = 'smem constant byte address 0x4 - core index']
  #allocation1 [shape = 'u32[144,128]{1,0:T(1,128)}', space=vmem, size = 0x12000, scoped, tag = 'internal scratch']
  %s0 = inlined_call_operand.vmem [shape: bf16[8,288], index: 0, kind: input, shape index: {}]
  %s1 = inlined_call_operand.vmem [shape: bf16[288,32], index: 1, kind: input, shape index: {}]
  %s2 = inlined_call_operand.vmem [shape: f32[1,32], index: 2, kind: input, shape index: {}]
  %s3 = inlined_call_operand.vmem [shape: f32[1,32], index: 3, kind: input, shape index: {}]
  %s4 = inlined_call_operand.vmem [shape: f32[8,32], index: 4, kind: output, shape index: {}]
  %s5 = sld [smem:[#allocation0]]
  $region26: #{run.71} parent=0
    _
  %s7 = ssub.s32 1, %s5
  %s8 = scalar_select 0, %s7, %s5
  // Predicated region
  $region2: #{run.71} parent=0 // pred_check
    _
  $region3: #{run.71} parent=0 // pred_check_branch
    %10 = sbr.rel (0) target = $region5
  $region4: #{run.71} parent=0 // pred_region
    _
  $region5: #{run.71} parent=0 // pred_fallthru
    _
  // Predicated region
  $region6: #{run.71} parent=0 // pred_check
    _
  $region7: #{run.71} parent=0 // pred_check_branch
    %12 = sbr.rel (0) target = $region9
  $region8: #{run.71} parent=0 // pred_region
    _
  $region9: #{run.71} parent=0 // pred_fallthru
    _
  // Predicated region
  $region10: #{run.71} parent=0 // pred_check
    _
  $region11: #{run.71} parent=0 // pred_check_branch
    %14 = sbr.rel (0) target = $region13
  $region12: #{run.71} parent=0 // pred_region
    _
  $region13: #{run.71} parent=0 // pred_fallthru
    _
  // Predicated region
  $region14: #{run.71} parent=0 // pred_check
    _
  $region15: #{run.71} parent=0 // pred_check_branch
    %16 = sbr.rel (0) target = $region17
  $region16: #{run.71} parent=0 // pred_region
    _
  $region17: #{run.71} parent=0 // pred_fallthru
    _
  %v18 = vld [vmem:[%s0] sm:$0xff]
  %v19 = vld [vmem:[%s0 + $0x8] sm:$0xf]
  %v20 = vld [vmem:[%s1] sm:$0xf]
  %v21 = vld [vmem:[%s1 + $0x4] sm:$0xf]
  %v22 = vld [vmem:[%s1 + $0x8] sm:$0xf]
  %v23 = vld [vmem:[%s1 + $0xc] sm:$0xf]
  %v24 = vld [vmem:[%s1 + $0x10] sm:$0xf]
  %v25 = vld [vmem:[%s1 + $0x14] sm:$0xf]
  %v26 = vld [vmem:[%s1 + $0x18] sm:$0xf]
  %v27 = vld [vmem:[%s1 + $0x1c] sm:$0xf]
  %v28 = vld [vmem:[%s1 + $0x20] sm:$0xf]
  %v29 = vld [vmem:[%s1 + $0x24] sm:$0xf]
  %v30 = vld [vmem:[%s1 + $0x28] sm:$0xf]
  %v31 = vld [vmem:[%s1 + $0x2c] sm:$0xf]
  %v32 = vld [vmem:[%s1 + $0x30] sm:$0xf]
  %v33 = vld [vmem:[%s1 + $0x34] sm:$0xf]
  %v34 = vld [vmem:[%s1 + $0x38] sm:$0xf]
  %v35 = vld [vmem:[%s1 + $0x3c] sm:$0xf]
  %v36 = vld [vmem:[%s1 + $0x40] sm:$0xf]
  %v37 = vld [vmem:[%s1 + $0x44] sm:$0xf]
  %v38 = vld [vmem:[%s1 + $0x48] sm:$0xf]
  %v39 = vld [vmem:[%s1 + $0x4c] sm:$0xf]
  %v40 = vld [vmem:[%s1 + $0x50] sm:$0xf]
  %v41 = vld [vmem:[%s1 + $0x54] sm:$0xf]
  %v42 = vld [vmem:[%s1 + $0x58] sm:$0xf]
  %v43 = vld [vmem:[%s1 + $0x5c] sm:$0xf]
  %v44 = vld [vmem:[%s1 + $0x60] sm:$0xf]
  %v45 = vld [vmem:[%s1 + $0x64] sm:$0xf]
  %v46 = vld [vmem:[%s1 + $0x68] sm:$0xf]
  %v47 = vld [vmem:[%s1 + $0x6c] sm:$0xf]
  %v48 = vld [vmem:[%s1 + $0x70] sm:$0xf]
  %v49 = vld [vmem:[%s1 + $0x74] sm:$0xf]
  %v50 = vld [vmem:[%s1 + $0x78] sm:$0xf]
  %v51 = vld [vmem:[%s1 + $0x7c] sm:$0xf]
  %v52 = vld [vmem:[%s1 + $0x80] sm:$0xf]
  %v53 = vld [vmem:[%s1 + $0x84] sm:$0xf]
  %v54 = vld [vmem:[%s1 + $0x88] sm:$0xf]
  %v55 = vld [vmem:[%s1 + $0x8c] sm:$0xf]
  %v58 = vunpack.c.l.b16 %v18
  %v59 = vunpack.c.h.b16 %v18
  %v60 = vunpack.c.l.b16 %v19
  %v61 = vpack.c.b16 %v58, %v58
  %v62 = vpack.c.b16 %v59, %v59
  %v63 = vpack.c.b16 %v60, %v60
  %v102 = vunpack.c.l.b16 %v20
  %v103 = vunpack.c.l.b16 %v21
  %v104 = vunpack.c.l.b16 %v22
  %v105 = vunpack.c.l.b16 %v23
  %v106 = vunpack.c.l.b16 %v24
  %v107 = vunpack.c.l.b16 %v25
  %v108 = vunpack.c.l.b16 %v26
  %v109 = vunpack.c.l.b16 %v27
  %v110 = vunpack.c.l.b16 %v28
  %v111 = vunpack.c.l.b16 %v29
  %v112 = vunpack.c.l.b16 %v30
  %v113 = vunpack.c.l.b16 %v31
  %v114 = vunpack.c.l.b16 %v32
  %v115 = vunpack.c.l.b16 %v33
  %v116 = vunpack.c.l.b16 %v34
  %v117 = vunpack.c.l.b16 %v35
  %v118 = vunpack.c.l.b16 %v36
  %v119 = vunpack.c.l.b16 %v37
  %v120 = vunpack.c.l.b16 %v38
  %v121 = vunpack.c.l.b16 %v39
  %v122 = vunpack.c.l.b16 %v40
  %v123 = vunpack.c.l.b16 %v41
  %v124 = vunpack.c.l.b16 %v42
  %v125 = vunpack.c.l.b16 %v43
  %v126 = vunpack.c.l.b16 %v44
  %v127 = vunpack.c.l.b16 %v45
  %v128 = vunpack.c.l.b16 %v46
  %v129 = vunpack.c.l.b16 %v47
  %v130 = vunpack.c.l.b16 %v48
  %v131 = vunpack.c.l.b16 %v49
  %v132 = vunpack.c.l.b16 %v50
  %v133 = vunpack.c.l.b16 %v51
  %v134 = vunpack.c.l.b16 %v52
  %v135 = vunpack.c.l.b16 %v53
  %v136 = vunpack.c.l.b16 %v54
  %v137 = vunpack.c.l.b16 %v55
  %v138 = vpack.c.b16 %v103, %v102
  %v139 = vpack.c.b16 %v105, %v104
  %v140 = vpack.c.b16 %v107, %v106
  %v141 = vpack.c.b16 %v109, %v108
  %v142 = vpack.c.b16 %v111, %v110
  %v143 = vpack.c.b16 %v113, %v112
  %v144 = vpack.c.b16 %v115, %v114
  %v145 = vpack.c.b16 %v117, %v116
  %v146 = vpack.c.b16 %v119, %v118
  %v147 = vpack.c.b16 %v121, %v120
  %v148 = vpack.c.b16 %v123, %v122
  %v149 = vpack.c.b16 %v125, %v124
  %v150 = vpack.c.b16 %v127, %v126
  %v151 = vpack.c.b16 %v129, %v128
  %v152 = vpack.c.b16 %v131, %v130
  %v153 = vpack.c.b16 %v133, %v132
  %v154 = vpack.c.b16 %v135, %v134
  %v155 = vpack.c.b16 %v137, %v136
  %vm174 = vcmask 261120
  %v176 = vsel %vm174, %v63, 0
  %178 = vmatprep.subr.bf16.mxu0 0
  %179 = vmatpush1.bf16.msra.mxu0 %v145
  %180 = vmatprep.subr.bf16.mxu0 0
  %181 = vmatpush1.bf16.msra.mxu0 %v144
  %182 = vmatprep.subr.bf16.mxu0 0
  %183 = vmatpush1.bf16.msra.mxu0 %v143
  %184 = vmatprep.subr.bf16.mxu0 0
  %185 = vmatpush1.bf16.msra.mxu0 %v142
  %186 = vmatprep.subr.bf16.mxu0 0
  %187 = vmatpush1.bf16.msra.mxu0 %v141
  %188 = vmatprep.subr.bf16.mxu0 0
  %189 = vmatpush1.bf16.msra.mxu0 %v140
  %190 = vmatprep.subr.bf16.mxu0 0
  %191 = vmatpush1.bf16.msra.mxu0 %v139
  %192 = vmatprep.subr.bf16.mxu0 0
  %193 = vmatpush1.bf16.msra.mxu0 %v138
  %194 = vmatprep.subr.bf16.mxu0 0
  %195 = vmatpush2.bf16.msra.mxu0 %v153
  %196 = vmatprep.subr.bf16.mxu0 0
  %197 = vmatpush2.bf16.msra.mxu0 %v152
  %198 = vmatprep.subr.bf16.mxu0 0
  %199 = vmatpush2.bf16.msra.mxu0 %v151
  %200 = vmatprep.subr.bf16.mxu0 0
  %201 = vmatpush2.bf16.msra.mxu0 %v150
  %202 = vmatprep.subr.bf16.mxu0 0
  %203 = vmatpush2.bf16.msra.mxu0 %v149
  %204 = vmatprep.subr.bf16.mxu0 0
  %205 = vmatpush2.bf16.msra.mxu0 %v148
  %206 = vmatprep.subr.bf16.mxu0 0
  %207 = vmatpush2.bf16.msra.mxu0 %v147
  %208 = vmatprep.subr.bf16.mxu0 0
  %209 = vmatpush2.bf16.msra.mxu0 %v146
  %210 = vmatprep.mubr.bf16.mxu0 %v62
  %211 = vmatmul.mubr.bf16.gmra.mxu0 %v61
  %v212 = vpop.f32.mrf.mxu0
  %v213 = vadd.f32 0.0, %v212
  %v214 = vpop.f32.mrf.mxu0
  %v215 = vpop.f32.mrf.mxu0
  %v216 = vpop.f32.mrf.mxu0
  %217 = vdwg.mxu0
  %218 = vmatprep.subr.bf16.mxu0 0
  %219 = vmatpush1.bf16.msra.mxu0 0
  %220 = vmatprep.subr.bf16.mxu0 0
  %221 = vmatpush1.bf16.msra.mxu0 0
  %222 = vmatprep.subr.bf16.mxu0 0
  %223 = vmatpush1.bf16.msra.mxu0 0
  %224 = vmatprep.subr.bf16.mxu0 0
  %225 = vmatpush1.bf16.msra.mxu0 0
  %226 = vmatprep.subr.bf16.mxu0 0
  %227 = vmatpush1.bf16.msra.mxu0 0
  %228 = vmatprep.subr.bf16.mxu0 0
  %229 = vmatpush1.bf16.msra.mxu0 0
  %230 = vmatprep.subr.bf16.mxu0 0
  %231 = vmatpush1.bf16.msra.mxu0 %v155
  %232 = vmatprep.subr.bf16.mxu0 0
  %233 = vmatpush1.bf16.msra.mxu0 %v154
  %234 = vmatprep.subr.bf16.mxu0 0
  %235 = vmatpush2.bf16.msra.mxu0 0
  %236 = vmatprep.subr.bf16.mxu0 0
  %237 = vmatpush2.bf16.msra.mxu0 0
  %238 = vmatprep.subr.bf16.mxu0 0
  %239 = vmatpush2.bf16.msra.mxu0 0
  %240 = vmatprep.subr.bf16.mxu0 0
  %241 = vmatpush2.bf16.msra.mxu0 0
  %242 = vmatprep.subr.bf16.mxu0 0
  %243 = vmatpush2.bf16.msra.mxu0 0
  %244 = vmatprep.subr.bf16.mxu0 0
  %245 = vmatpush2.bf16.msra.mxu0 0
  %246 = vmatprep.subr.bf16.mxu0 0
  %247 = vmatpush2.bf16.msra.mxu0 0
  %248 = vmatprep.subr.bf16.mxu0 0
  %249 = vmatpush2.bf16.msra.mxu0 0
  %250 = vmatprep.mubr.bf16.mxu0 0
  %251 = vmatmul.mubr.bf16.gmra.mxu0 %v176
  %v252 = vpop.f32.mrf.mxu0
  %v253 = vadd.f32 %v213, %v252
  %v254 = vpop.f32.mrf.mxu0
  %v255 = vpop.f32.mrf.mxu0
  %v256 = vpop.f32.mrf.mxu0
  %257 = vdwg.mxu0
  %v258 = vld [vmem:[%s2] sm:$0x1]
  %v260 = vlaneseq
  %v261 = vshrl.u32 %v260, 7
  %v262 = vsub.s32 0, %v261
  %v263 = vrot.slane %v258, %v262
  %v265 = vmul.f32 %v253, %v263
  %v266 = vld [vmem:[%s3] sm:$0x1]
  %v268 = vlaneseq
  %v269 = vshrl.u32 %v268, 7
  %v270 = vsub.s32 0, %v269
  %v271 = vrot.slane %v266, %v270
  %v273 = vadd.f32 %v265, %v271
  %v274 = vmax.f32 %v273, 0.0
  %275 = vst.msk [vmem:[%s4] sm:$0xff] %vm174, %v274
  // Predicated region
  $region18: #{run.71} parent=0 // pred_check
    _
  $region19: #{run.71} parent=0 // pred_check_branch
    %277 = sbr.rel (0) target = $region21
  $region20: #{run.71} parent=0 // pred_region
    _
  $region21: #{run.71} parent=0 // pred_fallthru
    _
  // Predicated region
  $region22: #{run.71} parent=0 // pred_check
    _
  $region23: #{run.71} parent=0 // pred_check_branch
    %279 = sbr.rel (0) target = $region25
  $region24: #{run.71} parent=0 // pred_region
    _
  $region25: #{run.71} parent=0 // pred_fallthru
    _

// kernel: run.70
$region0: #{run.70}
  #allocation0 [shape = 'u32[]', space=smem, size = 0x4, offset = 0x4, fixed_abs, tag = 'smem constant byte address 0x4 - core index']
  #allocation1 [shape = 'u32[144,128]{1,0:T(1,128)}', space=vmem, size = 0x12000, scoped, tag = 'internal scratch']
  %s0 = inlined_call_operand.vmem [shape: bf16[8,288], index: 0, kind: input, shape index: {}]
  %s1 = inlined_call_operand.vmem [shape: bf16[288,32], index: 1, kind: input, shape index: {}]
  %s2 = inlined_call_operand.vmem [shape: f32[8,32], index: 2, kind: input, shape index: {}]
  %s3 = inlined_call_operand.vmem [shape: f32[1,32], index: 3, kind: input, shape index: {}]
  %s4 = inlined_call_operand.vmem [shape: f32[1,32], index: 4, kind: input, shape index: {}]
  %s5 = inlined_call_operand.vmem [shape: f32[8,32], index: 5, kind: output, shape index: {0}]
  %s6 = inlined_call_operand.vmem [shape: f32[8,32], index: 6, kind: output, shape index: {1}]
  %7 = xla_tuple %s5, %s6
  %s8 = sld [smem:[#allocation0]]
  $region38: #{run.70} parent=0
    _
  %s10 = ssub.s32 1, %s8
  %s11 = scalar_select 0, %s10, %s8
  // Predicated region
  $region2: #{run.70} parent=0 // pred_check
    _
  $region3: #{run.70} parent=0 // pred_check_branch
    %13 = sbr.rel (0) target = $region5
  $region4: #{run.70} parent=0 // pred_region
    _
  $region5: #{run.70} parent=0 // pred_fallthru
    _
  // Predicated region
  $region6: #{run.70} parent=0 // pred_check
    _
  $region7: #{run.70} parent=0 // pred_check_branch
    %15 = sbr.rel (0) target = $region9
  $region8: #{run.70} parent=0 // pred_region
    _
  $region9: #{run.70} parent=0 // pred_fallthru
    _
  // Predicated region
  $region10: #{run.70} parent=0 // pred_check
    _
  $region11: #{run.70} parent=0 // pred_check_branch
    %17 = sbr.rel (0) target = $region13
  $region12: #{run.70} parent=0 // pred_region
    _
  $region13: #{run.70} parent=0 // pred_fallthru
    _
  // Predicated region
  $region14: #{run.70} parent=0 // pred_check
    _
  $region15: #{run.70} parent=0 // pred_check_branch
    %19 = sbr.rel (0) target = $region17
  $region16: #{run.70} parent=0 // pred_region
    _
  $region17: #{run.70} parent=0 // pred_fallthru
    _
  // Predicated region
  $region18: #{run.70} parent=0 // pred_check
    _
  $region19: #{run.70} parent=0 // pred_check_branch
    %21 = sbr.rel (0) target = $region21
  $region20: #{run.70} parent=0 // pred_region
    _
  $region21: #{run.70} parent=0 // pred_fallthru
    _
  %v23 = vld [vmem:[%s0] sm:$0xff]
  %v24 = vld [vmem:[%s0 + $0x8] sm:$0xf]
  %v25 = vld [vmem:[%s1] sm:$0xf]
  %v26 = vld [vmem:[%s1 + $0x4] sm:$0xf]
  %v27 = vld [vmem:[%s1 + $0x8] sm:$0xf]
  %v28 = vld [vmem:[%s1 + $0xc] sm:$0xf]
  %v29 = vld [vmem:[%s1 + $0x10] sm:$0xf]
  %v30 = vld [vmem:[%s1 + $0x14] sm:$0xf]
  %v31 = vld [vmem:[%s1 + $0x18] sm:$0xf]
  %v32 = vld [vmem:[%s1 + $0x1c] sm:$0xf]
  %v33 = vld [vmem:[%s1 + $0x20] sm:$0xf]
  %v34 = vld [vmem:[%s1 + $0x24] sm:$0xf]
  %v35 = vld [vmem:[%s1 + $0x28] sm:$0xf]
  %v36 = vld [vmem:[%s1 + $0x2c] sm:$0xf]
  %v37 = vld [vmem:[%s1 + $0x30] sm:$0xf]
  %v38 = vld [vmem:[%s1 + $0x34] sm:$0xf]
  %v39 = vld [vmem:[%s1 + $0x38] sm:$0xf]
  %v40 = vld [vmem:[%s1 + $0x3c] sm:$0xf]
  %v41 = vld [vmem:[%s1 + $0x40] sm:$0xf]
  %v42 = vld [vmem:[%s1 + $0x44] sm:$0xf]
  %v43 = vld [vmem:[%s1 + $0x48] sm:$0xf]
  %v44 = vld [vmem:[%s1 + $0x4c] sm:$0xf]
  %v45 = vld [vmem:[%s1 + $0x50] sm:$0xf]
  %v46 = vld [vmem:[%s1 + $0x54] sm:$0xf]
  %v47 = vld [vmem:[%s1 + $0x58] sm:$0xf]
  %v48 = vld [vmem:[%s1 + $0x5c] sm:$0xf]
  %v49 = vld [vmem:[%s1 + $0x60] sm:$0xf]
  %v50 = vld [vmem:[%s1 + $0x64] sm:$0xf]
  %v51 = vld [vmem:[%s1 + $0x68] sm:$0xf]
  %v52 = vld [vmem:[%s1 + $0x6c] sm:$0xf]
  %v53 = vld [vmem:[%s1 + $0x70] sm:$0xf]
  %v54 = vld [vmem:[%s1 + $0x74] sm:$0xf]
  %v55 = vld [vmem:[%s1 + $0x78] sm:$0xf]
  %v56 = vld [vmem:[%s1 + $0x7c] sm:$0xf]
  %v57 = vld [vmem:[%s1 + $0x80] sm:$0xf]
  %v58 = vld [vmem:[%s1 + $0x84] sm:$0xf]
  %v59 = vld [vmem:[%s1 + $0x88] sm:$0xf]
  %v60 = vld [vmem:[%s1 + $0x8c] sm:$0xf]
  %v61 = vld [vmem:[%s2] sm:$0xff]
  %v64 = vunpack.c.l.b16 %v23
  %v65 = vunpack.c.h.b16 %v23
  %v66 = vunpack.c.l.b16 %v24
  %v67 = vpack.c.b16 %v64, %v64
  %v68 = vpack.c.b16 %v65, %v65
  %v69 = vpack.c.b16 %v66, %v66
  %v108 = vunpack.c.l.b16 %v25
  %v109 = vunpack.c.l.b16 %v26
  %v110 = vunpack.c.l.b16 %v27
  %v111 = vunpack.c.l.b16 %v28
  %v112 = vunpack.c.l.b16 %v29
  %v113 = vunpack.c.l.b16 %v30
  %v114 = vunpack.c.l.b16 %v31
  %v115 = vunpack.c.l.b16 %v32
  %v116 = vunpack.c.l.b16 %v33
  %v117 = vunpack.c.l.b16 %v34
  %v118 = vunpack.c.l.b16 %v35
  %v119 = vunpack.c.l.b16 %v36
  %v120 = vunpack.c.l.b16 %v37
  %v121 = vunpack.c.l.b16 %v38
  %v122 = vunpack.c.l.b16 %v39
  %v123 = vunpack.c.l.b16 %v40
  %v124 = vunpack.c.l.b16 %v41
  %v125 = vunpack.c.l.b16 %v42
  %v126 = vunpack.c.l.b16 %v43
  %v127 = vunpack.c.l.b16 %v44
  %v128 = vunpack.c.l.b16 %v45
  %v129 = vunpack.c.l.b16 %v46
  %v130 = vunpack.c.l.b16 %v47
  %v131 = vunpack.c.l.b16 %v48
  %v132 = vunpack.c.l.b16 %v49
  %v133 = vunpack.c.l.b16 %v50
  %v134 = vunpack.c.l.b16 %v51
  %v135 = vunpack.c.l.b16 %v52
  %v136 = vunpack.c.l.b16 %v53
  %v137 = vunpack.c.l.b16 %v54
  %v138 = vunpack.c.l.b16 %v55
  %v139 = vunpack.c.l.b16 %v56
  %v140 = vunpack.c.l.b16 %v57
  %v141 = vunpack.c.l.b16 %v58
  %v142 = vunpack.c.l.b16 %v59
  %v143 = vunpack.c.l.b16 %v60
  %v144 = vpack.c.b16 %v109, %v108
  %v145 = vpack.c.b16 %v111, %v110
  %v146 = vpack.c.b16 %v113, %v112
  %v147 = vpack.c.b16 %v115, %v114
  %v148 = vpack.c.b16 %v117, %v116
  %v149 = vpack.c.b16 %v119, %v118
  %v150 = vpack.c.b16 %v121, %v120
  %v151 = vpack.c.b16 %v123, %v122
  %v152 = vpack.c.b16 %v125, %v124
  %v153 = vpack.c.b16 %v127, %v126
  %v154 = vpack.c.b16 %v129, %v128
  %v155 = vpack.c.b16 %v131, %v130
  %v156 = vpack.c.b16 %v133, %v132
  %v157 = vpack.c.b16 %v135, %v134
  %v158 = vpack.c.b16 %v137, %v136
  %v159 = vpack.c.b16 %v139, %v138
  %v160 = vpack.c.b16 %v141, %v140
  %v161 = vpack.c.b16 %v143, %v142
  %vm180 = vcmask 261120
  %v182 = vsel %vm180, %v69, 0
  %184 = vmatprep.subr.bf16.mxu0 0
  %185 = vmatpush1.bf16.msra.mxu0 %v151
  %186 = vmatprep.subr.bf16.mxu0 0
  %187 = vmatpush1.bf16.msra.mxu0 %v150
  %188 = vmatprep.subr.bf16.mxu0 0
  %189 = vmatpush1.bf16.msra.mxu0 %v149
  %190 = vmatprep.subr.bf16.mxu0 0
  %191 = vmatpush1.bf16.msra.mxu0 %v148
  %192 = vmatprep.subr.bf16.mxu0 0
  %193 = vmatpush1.bf16.msra.mxu0 %v147
  %194 = vmatprep.subr.bf16.mxu0 0
  %195 = vmatpush1.bf16.msra.mxu0 %v146
  %196 = vmatprep.subr.bf16.mxu0 0
  %197 = vmatpush1.bf16.msra.mxu0 %v145
  %198 = vmatprep.subr.bf16.mxu0 0
  %199 = vmatpush1.bf16.msra.mxu0 %v144
  %200 = vmatprep.subr.bf16.mxu0 0
  %201 = vmatpush2.bf16.msra.mxu0 %v159
  %202 = vmatprep.subr.bf16.mxu0 0
  %203 = vmatpush2.bf16.msra.mxu0 %v158
  %204 = vmatprep.subr.bf16.mxu0 0
  %205 = vmatpush2.bf16.msra.mxu0 %v157
  %206 = vmatprep.subr.bf16.mxu0 0
  %207 = vmatpush2.bf16.msra.mxu0 %v156
  %208 = vmatprep.subr.bf16.mxu0 0
  %209 = vmatpush2.bf16.msra.mxu0 %v155
  %210 = vmatprep.subr.bf16.mxu0 0
  %211 = vmatpush2.bf16.msra.mxu0 %v154
  %212 = vmatprep.subr.bf16.mxu0 0
  %213 = vmatpush2.bf16.msra.mxu0 %v153
  %214 = vmatprep.subr.bf16.mxu0 0
  %215 = vmatpush2.bf16.msra.mxu0 %v152
  %216 = vmatprep.mubr.bf16.mxu0 %v68
  %217 = vmatmul.mubr.bf16.gmra.mxu0 %v67
  %v218 = vpop.f32.mrf.mxu0
  %v219 = vadd.f32 %v61, %v218
  %v220 = vpop.f32.mrf.mxu0
  %v221 = vpop.f32.mrf.mxu0
  %v222 = vpop.f32.mrf.mxu0
  %223 = vdwg.mxu0
  %224 = vmatprep.subr.bf16.mxu0 0
  %225 = vmatpush1.bf16.msra.mxu0 0
  %226 = vmatprep.subr.bf16.mxu0 0
  %227 = vmatpush1.bf16.msra.mxu0 0
  %228 = vmatprep.subr.bf16.mxu0 0
  %229 = vmatpush1.bf16.msra.mxu0 0
  %230 = vmatprep.subr.bf16.mxu0 0
  %231 = vmatpush1.bf16.msra.mxu0 0
  %232 = vmatprep.subr.bf16.mxu0 0
  %233 = vmatpush1.bf16.msra.mxu0 0
  %234 = vmatprep.subr.bf16.mxu0 0
  %235 = vmatpush1.bf16.msra.mxu0 0
  %236 = vmatprep.subr.bf16.mxu0 0
  %237 = vmatpush1.bf16.msra.mxu0 %v161
  %238 = vmatprep.subr.bf16.mxu0 0
  %239 = vmatpush1.bf16.msra.mxu0 %v160
  %240 = vmatprep.subr.bf16.mxu0 0
  %241 = vmatpush2.bf16.msra.mxu0 0
  %242 = vmatprep.subr.bf16.mxu0 0
  %243 = vmatpush2.bf16.msra.mxu0 0
  %244 = vmatprep.subr.bf16.mxu0 0
  %245 = vmatpush2.bf16.msra.mxu0 0
  %246 = vmatprep.subr.bf16.mxu0 0
  %247 = vmatpush2.bf16.msra.mxu0 0
  %248 = vmatprep.subr.bf16.mxu0 0
  %249 = vmatpush2.bf16.msra.mxu0 0
  %250 = vmatprep.subr.bf16.mxu0 0
  %251 = vmatpush2.bf16.msra.mxu0 0
  %252 = vmatprep.subr.bf16.mxu0 0
  %253 = vmatpush2.bf16.msra.mxu0 0
  %254 = vmatprep.subr.bf16.mxu0 0
  %255 = vmatpush2.bf16.msra.mxu0 0
  %256 = vmatprep.mubr.bf16.mxu0 0
  %257 = vmatmul.mubr.bf16.gmra.mxu0 %v182
  %v258 = vpop.f32.mrf.mxu0
  %v259 = vadd.f32 %v219, %v258
  %v260 = vpop.f32.mrf.mxu0
  %v261 = vpop.f32.mrf.mxu0
  %v262 = vpop.f32.mrf.mxu0
  %263 = vdwg.mxu0
  %264 = vst.msk [vmem:[%s5] sm:$0xff] %vm180, %v259
  %v265 = vld [vmem:[%s3] sm:$0x1]
  %v267 = vlaneseq
  %v268 = vshrl.u32 %v267, 7
  %v269 = vsub.s32 0, %v268
  %v270 = vrot.slane %v265, %v269
  %v272 = vmul.f32 %v259, %v270
  %v273 = vld [vmem:[%s4] sm:$0x1]
  %v275 = vlaneseq
  %v276 = vshrl.u32 %v275, 7
  %v277 = vsub.s32 0, %v276
  %v278 = vrot.slane %v273, %v277
  %v280 = vadd.f32 %v272, %v278
  %v281 = vmax.f32 %v280, 0.0
  %282 = vst.msk [vmem:[%s6] sm:$0xff] %vm180, %v281
  // Predicated region
  $region22: #{run.70} parent=0 // pred_check
    _
  $region23: #{run.70} parent=0 // pred_check_branch
    %284 = sbr.rel (0) target = $region25
  $region24: #{run.70} parent=0 // pred_region
    _
  $region25: #{run.70} parent=0 // pred_fallthru
    _
  // Predicated region
  $region26: #{run.70} parent=0 // pred_check
    _
  $region27: #{run.70} parent=0 // pred_check_branch
    %286 = sbr.rel (0) target = $region29
  $region28: #{run.70} parent=0 // pred_region
    _
  $region29: #{run.70} parent=0 // pred_fallthru
    _
  // Predicated region
  $region30: #{run.70} parent=0 // pred_check
    _
  $region31: #{run.70} parent=0 // pred_check_branch
    %288 = sbr.rel (0) target = $region33
  $region32: #{run.70} parent=0 // pred_region
    _
  $region33: #{run.70} parent=0 // pred_fallthru
    _
  // Predicated region
  $region34: #{run.70} parent=0 // pred_check
    _
  $region35: #{run.70} parent=0 // pred_check_branch
    %290 = sbr.rel (0) target = $region37
  $region36: #{run.70} parent=0 // pred_region
    _
  $region37: #{run.70} parent=0 // pred_fallthru
    _

// kernel: run.76
$region0: #{run.76}
  #allocation0 [shape = 'u32[]', space=smem, size = 0x4, offset = 0x4, fixed_abs, tag = 'smem constant byte address 0x4 - core index']
  #allocation1 [shape = 'u32[144,128]{1,0:T(1,128)}', space=vmem, size = 0x12000, scoped, tag = 'internal scratch']
  %s0 = inlined_call_operand.vmem [shape: bf16[8,288], index: 0, kind: input, shape index: {}]
  %s1 = inlined_call_operand.vmem [shape: bf16[288,32], index: 1, kind: input, shape index: {}]
  %s2 = inlined_call_operand.vmem [shape: f32[8,32], index: 2, kind: input, shape index: {}]
  %s3 = inlined_call_operand.vmem [shape: f32[1,32], index: 3, kind: input, shape index: {}]
  %s4 = inlined_call_operand.vmem [shape: f32[1,32], index: 4, kind: input, shape index: {}]
  %s5 = inlined_call_operand.vmem [shape: f32[8,32], index: 5, kind: output, shape index: {}]
  %s6 = sld [smem:[#allocation0]]
  $region30: #{run.76} parent=0
    _
  %s8 = ssub.s32 1, %s6
  %s9 = scalar_select 0, %s8, %s6
  // Predicated region
  $region2: #{run.76} parent=0 // pred_check
    _
  $region3: #{run.76} parent=0 // pred_check_branch
    %11 = sbr.rel (0) target = $region5
  $region4: #{run.76} parent=0 // pred_region
    _
  $region5: #{run.76} parent=0 // pred_fallthru
    _
  // Predicated region
  $region6: #{run.76} parent=0 // pred_check
    _
  $region7: #{run.76} parent=0 // pred_check_branch
    %13 = sbr.rel (0) target = $region9
  $region8: #{run.76} parent=0 // pred_region
    _
  $region9: #{run.76} parent=0 // pred_fallthru
    _
  // Predicated region
  $region10: #{run.76} parent=0 // pred_check
    _
  $region11: #{run.76} parent=0 // pred_check_branch
    %15 = sbr.rel (0) target = $region13
  $region12: #{run.76} parent=0 // pred_region
    _
  $region13: #{run.76} parent=0 // pred_fallthru
    _
  // Predicated region
  $region14: #{run.76} parent=0 // pred_check
    _
  $region15: #{run.76} parent=0 // pred_check_branch
    %17 = sbr.rel (0) target = $region17
  $region16: #{run.76} parent=0 // pred_region
    _
  $region17: #{run.76} parent=0 // pred_fallthru
    _
  // Predicated region
  $region18: #{run.76} parent=0 // pred_check
    _
  $region19: #{run.76} parent=0 // pred_check_branch
    %19 = sbr.rel (0) target = $region21
  $region20: #{run.76} parent=0 // pred_region
    _
  $region21: #{run.76} parent=0 // pred_fallthru
    _
  %v21 = vld [vmem:[%s0] sm:$0xff]
  %v22 = vld [vmem:[%s0 + $0x8] sm:$0xf]
  %v23 = vld [vmem:[%s1] sm:$0xf]
  %v24 = vld [vmem:[%s1 + $0x4] sm:$0xf]
  %v25 = vld [vmem:[%s1 + $0x8] sm:$0xf]
  %v26 = vld [vmem:[%s1 + $0xc] sm:$0xf]
  %v27 = vld [vmem:[%s1 + $0x10] sm:$0xf]
  %v28 = vld [vmem:[%s1 + $0x14] sm:$0xf]
  %v29 = vld [vmem:[%s1 + $0x18] sm:$0xf]
  %v30 = vld [vmem:[%s1 + $0x1c] sm:$0xf]
  %v31 = vld [vmem:[%s1 + $0x20] sm:$0xf]
  %v32 = vld [vmem:[%s1 + $0x24] sm:$0xf]
  %v33 = vld [vmem:[%s1 + $0x28] sm:$0xf]
  %v34 = vld [vmem:[%s1 + $0x2c] sm:$0xf]
  %v35 = vld [vmem:[%s1 + $0x30] sm:$0xf]
  %v36 = vld [vmem:[%s1 + $0x34] sm:$0xf]
  %v37 = vld [vmem:[%s1 + $0x38] sm:$0xf]
  %v38 = vld [vmem:[%s1 + $0x3c] sm:$0xf]
  %v39 = vld [vmem:[%s1 + $0x40] sm:$0xf]
  %v40 = vld [vmem:[%s1 + $0x44] sm:$0xf]
  %v41 = vld [vmem:[%s1 + $0x48] sm:$0xf]
  %v42 = vld [vmem:[%s1 + $0x4c] sm:$0xf]
  %v43 = vld [vmem:[%s1 + $0x50] sm:$0xf]
  %v44 = vld [vmem:[%s1 + $0x54] sm:$0xf]
  %v45 = vld [vmem:[%s1 + $0x58] sm:$0xf]
  %v46 = vld [vmem:[%s1 + $0x5c] sm:$0xf]
  %v47 = vld [vmem:[%s1 + $0x60] sm:$0xf]
  %v48 = vld [vmem:[%s1 + $0x64] sm:$0xf]
  %v49 = vld [vmem:[%s1 + $0x68] sm:$0xf]
  %v50 = vld [vmem:[%s1 + $0x6c] sm:$0xf]
  %v51 = vld [vmem:[%s1 + $0x70] sm:$0xf]
  %v52 = vld [vmem:[%s1 + $0x74] sm:$0xf]
  %v53 = vld [vmem:[%s1 + $0x78] sm:$0xf]
  %v54 = vld [vmem:[%s1 + $0x7c] sm:$0xf]
  %v55 = vld [vmem:[%s1 + $0x80] sm:$0xf]
  %v56 = vld [vmem:[%s1 + $0x84] sm:$0xf]
  %v57 = vld [vmem:[%s1 + $0x88] sm:$0xf]
  %v58 = vld [vmem:[%s1 + $0x8c] sm:$0xf]
  %v59 = vld [vmem:[%s2] sm:$0xff]
  %v62 = vunpack.c.l.b16 %v21
  %v63 = vunpack.c.h.b16 %v21
  %v64 = vunpack.c.l.b16 %v22
  %v65 = vpack.c.b16 %v62, %v62
  %v66 = vpack.c.b16 %v63, %v63
  %v67 = vpack.c.b16 %v64, %v64
  %v106 = vunpack.c.l.b16 %v23
  %v107 = vunpack.c.l.b16 %v24
  %v108 = vunpack.c.l.b16 %v25
  %v109 = vunpack.c.l.b16 %v26
  %v110 = vunpack.c.l.b16 %v27
  %v111 = vunpack.c.l.b16 %v28
  %v112 = vunpack.c.l.b16 %v29
  %v113 = vunpack.c.l.b16 %v30
  %v114 = vunpack.c.l.b16 %v31
  %v115 = vunpack.c.l.b16 %v32
  %v116 = vunpack.c.l.b16 %v33
  %v117 = vunpack.c.l.b16 %v34
  %v118 = vunpack.c.l.b16 %v35
  %v119 = vunpack.c.l.b16 %v36
  %v120 = vunpack.c.l.b16 %v37
  %v121 = vunpack.c.l.b16 %v38
  %v122 = vunpack.c.l.b16 %v39
  %v123 = vunpack.c.l.b16 %v40
  %v124 = vunpack.c.l.b16 %v41
  %v125 = vunpack.c.l.b16 %v42
  %v126 = vunpack.c.l.b16 %v43
  %v127 = vunpack.c.l.b16 %v44
  %v128 = vunpack.c.l.b16 %v45
  %v129 = vunpack.c.l.b16 %v46
  %v130 = vunpack.c.l.b16 %v47
  %v131 = vunpack.c.l.b16 %v48
  %v132 = vunpack.c.l.b16 %v49
  %v133 = vunpack.c.l.b16 %v50
  %v134 = vunpack.c.l.b16 %v51
  %v135 = vunpack.c.l.b16 %v52
  %v136 = vunpack.c.l.b16 %v53
  %v137 = vunpack.c.l.b16 %v54
  %v138 = vunpack.c.l.b16 %v55
  %v139 = vunpack.c.l.b16 %v56
  %v140 = vunpack.c.l.b16 %v57
  %v141 = vunpack.c.l.b16 %v58
  %v142 = vpack.c.b16 %v107, %v106
  %v143 = vpack.c.b16 %v109, %v108
  %v144 = vpack.c.b16 %v111, %v110
  %v145 = vpack.c.b16 %v113, %v112
  %v146 = vpack.c.b16 %v115, %v114
  %v147 = vpack.c.b16 %v117, %v116
  %v148 = vpack.c.b16 %v119, %v118
  %v149 = vpack.c.b16 %v121, %v120
  %v150 = vpack.c.b16 %v123, %v122
  %v151 = vpack.c.b16 %v125, %v124
  %v152 = vpack.c.b16 %v127, %v126
  %v153 = vpack.c.b16 %v129, %v128
  %v154 = vpack.c.b16 %v131, %v130
  %v155 = vpack.c.b16 %v133, %v132
  %v156 = vpack.c.b16 %v135, %v134
  %v157 = vpack.c.b16 %v137, %v136
  %v158 = vpack.c.b16 %v139, %v138
  %v159 = vpack.c.b16 %v141, %v140
  %vm178 = vcmask 261120
  %v180 = vsel %vm178, %v67, 0
  %182 = vmatprep.subr.bf16.mxu0 0
  %183 = vmatpush1.bf16.msra.mxu0 %v149
  %184 = vmatprep.subr.bf16.mxu0 0
  %185 = vmatpush1.bf16.msra.mxu0 %v148
  %186 = vmatprep.subr.bf16.mxu0 0
  %187 = vmatpush1.bf16.msra.mxu0 %v147
  %188 = vmatprep.subr.bf16.mxu0 0
  %189 = vmatpush1.bf16.msra.mxu0 %v146
  %190 = vmatprep.subr.bf16.mxu0 0
  %191 = vmatpush1.bf16.msra.mxu0 %v145
  %192 = vmatprep.subr.bf16.mxu0 0
  %193 = vmatpush1.bf16.msra.mxu0 %v144
  %194 = vmatprep.subr.bf16.mxu0 0
  %195 = vmatpush1.bf16.msra.mxu0 %v143
  %196 = vmatprep.subr.bf16.mxu0 0
  %197 = vmatpush1.bf16.msra.mxu0 %v142
  %198 = vmatprep.subr.bf16.mxu0 0
  %199 = vmatpush2.bf16.msra.mxu0 %v157
  %200 = vmatprep.subr.bf16.mxu0 0
  %201 = vmatpush2.bf16.msra.mxu0 %v156
  %202 = vmatprep.subr.bf16.mxu0 0
  %203 = vmatpush2.bf16.msra.mxu0 %v155
  %204 = vmatprep.subr.bf16.mxu0 0
  %205 = vmatpush2.bf16.msra.mxu0 %v154
  %206 = vmatprep.subr.bf16.mxu0 0
  %207 = vmatpush2.bf16.msra.mxu0 %v153
  %208 = vmatprep.subr.bf16.mxu0 0
  %209 = vmatpush2.bf16.msra.mxu0 %v152
  %210 = vmatprep.subr.bf16.mxu0 0
  %211 = vmatpush2.bf16.msra.mxu0 %v151
  %212 = vmatprep.subr.bf16.mxu0 0
  %213 = vmatpush2.bf16.msra.mxu0 %v150
  %214 = vmatprep.mubr.bf16.mxu0 %v66
  %215 = vmatmul.mubr.bf16.gmra.mxu0 %v65
  %v216 = vpop.f32.mrf.mxu0
  %v217 = vadd.f32 %v59, %v216
  %v218 = vpop.f32.mrf.mxu0
  %v219 = vpop.f32.mrf.mxu0
  %v220 = vpop.f32.mrf.mxu0
  %221 = vdwg.mxu0
  %222 = vmatprep.subr.bf16.mxu0 0
  %223 = vmatpush1.bf16.msra.mxu0 0
  %224 = vmatprep.subr.bf16.mxu0 0
  %225 = vmatpush1.bf16.msra.mxu0 0
  %226 = vmatprep.subr.bf16.mxu0 0
  %227 = vmatpush1.bf16.msra.mxu0 0
  %228 = vmatprep.subr.bf16.mxu0 0
  %229 = vmatpush1.bf16.msra.mxu0 0
  %230 = vmatprep.subr.bf16.mxu0 0
  %231 = vmatpush1.bf16.msra.mxu0 0
  %232 = vmatprep.subr.bf16.mxu0 0
  %233 = vmatpush1.bf16.msra.mxu0 0
  %234 = vmatprep.subr.bf16.mxu0 0
  %235 = vmatpush1.bf16.msra.mxu0 %v159
  %236 = vmatprep.subr.bf16.mxu0 0
  %237 = vmatpush1.bf16.msra.mxu0 %v158
  %238 = vmatprep.subr.bf16.mxu0 0
  %239 = vmatpush2.bf16.msra.mxu0 0
  %240 = vmatprep.subr.bf16.mxu0 0
  %241 = vmatpush2.bf16.msra.mxu0 0
  %242 = vmatprep.subr.bf16.mxu0 0
  %243 = vmatpush2.bf16.msra.mxu0 0
  %244 = vmatprep.subr.bf16.mxu0 0
  %245 = vmatpush2.bf16.msra.mxu0 0
  %246 = vmatprep.subr.bf16.mxu0 0
  %247 = vmatpush2.bf16.msra.mxu0 0
  %248 = vmatprep.subr.bf16.mxu0 0
  %249 = vmatpush2.bf16.msra.mxu0 0
  %250 = vmatprep.subr.bf16.mxu0 0
  %251 = vmatpush2.bf16.msra.mxu0 0
  %252 = vmatprep.subr.bf16.mxu0 0
  %253 = vmatpush2.bf16.msra.mxu0 0
  %254 = vmatprep.mubr.bf16.mxu0 0
  %255 = vmatmul.mubr.bf16.gmra.mxu0 %v180
  %v256 = vpop.f32.mrf.mxu0
  %v257 = vadd.f32 %v217, %v256
  %v258 = vpop.f32.mrf.mxu0
  %v259 = vpop.f32.mrf.mxu0
  %v260 = vpop.f32.mrf.mxu0
  %261 = vdwg.mxu0
  %v262 = vld [vmem:[%s3] sm:$0x1]
  %v264 = vlaneseq
  %v265 = vshrl.u32 %v264, 7
  %v266 = vsub.s32 0, %v265
  %v267 = vrot.slane %v262, %v266
  %v269 = vmul.f32 %v257, %v267
  %v270 = vld [vmem:[%s4] sm:$0x1]
  %v272 = vlaneseq
  %v273 = vshrl.u32 %v272, 7
  %v274 = vsub.s32 0, %v273
  %v275 = vrot.slane %v270, %v274
  %v277 = vadd.f32 %v269, %v275
  %v278 = vmax.f32 %v277, 0.0
  %vm279 = vcmask 257024
  %v280 = vsel %vm279, %v278, 0.0
  %v281 = vrot.slane %v280, 4
  %v282 = vadd.f32 %v280, %v281
  %v283 = vrot.slane %v282, 2
  %v284 = vadd.f32 %v282, %v283
  %v285 = vrot.slane %v284, 1
  %v286 = vadd.f32 %v284, %v285
  %v287 = vrcp.pop 4.0
  %v288 = vmul.f32 %v286, %v287
  %v289 = vsel %vm279, %v278, -inf
  %v290 = vrot.slane %v289, 4
  %v291 = vmax.f32 %v289, %v290
  %v292 = vrot.slane %v291, 2
  %v293 = vmax.f32 %v291, %v292
  %v294 = vrot.slane %v293, 1
  %v295 = vmax.f32 %v293, %v294
  %v296 = vadd.f32 %v288, %v295
  %vm297 = vcmask 253952
  %298 = vst.msk [vmem:[%s5] sm:$0x1] %vm297, %v296
  %v300 = vrot.slane %v278, 4
  %v302 = vsel %vm279, %v300, 0.0
  %v303 = vrot.slane %v302, 4
  %v304 = vadd.f32 %v302, %v303
  %v305 = vrot.slane %v304, 2
  %v306 = vadd.f32 %v304, %v305
  %v307 = vrot.slane %v306, 1
  %v308 = vadd.f32 %v306, %v307
  %v309 = vmul.f32 %v308, %v287
  %vm310 = vcmask 261124
  %v311 = vsel %vm310, %v278, -inf
  %v312 = vrot.slane %v311, 4
  %v313 = vmax.f32 %v311, %v312
  %v314 = vrot.slane %v313, 2
  %v315 = vmax.f32 %v313, %v314
  %v316 = vrot.slane %v315, 1
  %v317 = vmax.f32 %v315, %v316
  %v318 = vadd.f32 %v309, %v317
  %319 = vst.msk [vmem:[%s5 + $0x1] sm:$0x1] %vm297, %v318
  %vm320 = vcmask 259072
  %321 = vst.msk [vmem:[%s5 + $0x2] sm:$0x3f] %vm320, 0.0
  // Predicated region
  $region22: #{run.76} parent=0 // pred_check
    _
  $region23: #{run.76} parent=0 // pred_check_branch
    %323 = sbr.rel (0) target = $region25
  $region24: #{run.76} parent=0 // pred_region
    _
  $region25: #{run.76} parent=0 // pred_fallthru
    _
  // Predicated region
  $region26: #{run.76} parent=0 // pred_check
    _
  $region27: #{run.76} parent=0 // pred_check_branch
    %325 = sbr.rel (0) target = $region29
  $region28: #{run.76} parent=0 // pred_region
    _
  $region29: #{run.76} parent=0 // pred_fallthru
    _

// kernel: run.77
$region0: #{run.77}
  #allocation0 [shape = 'u32[]', space=smem, size = 0x4, offset = 0x4, fixed_abs, tag = 'smem constant byte address 0x4 - core index']
  #allocation1 [shape = 'u32[144,128]{1,0:T(1,128)}', space=vmem, size = 0x12000, scoped, tag = 'internal scratch']
  %s0 = inlined_call_operand.vmem [shape: f32[8,32], index: 0, kind: input, shape index: {}]
  %s1 = inlined_call_operand.vmem [shape: f32[32,16], index: 1, kind: input, shape index: {}]
  %s2 = inlined_call_operand.vmem [shape: f32[1,16], index: 2, kind: input, shape index: {}]
  %s3 = inlined_call_operand.vmem [shape: f32[16,10], index: 3, kind: input, shape index: {}]
  %s4 = inlined_call_operand.vmem [shape: f32[16,10], index: 4, kind: input, shape index: {}]
  %s5 = inlined_call_operand.vmem [shape: f32[1,10], index: 5, kind: input, shape index: {}]
  %s6 = inlined_call_operand.hbm [shape: f32[8,16], index: 6, kind: output, shape index: {0}]
  %s7 = inlined_call_operand.vmem [shape: f32[8,10], index: 7, kind: output, shape index: {1}]
  %s8 = inlined_call_operand.vmem [shape: f32[8,10], index: 8, kind: output, shape index: {2}]
  %9 = xla_tuple %s6, %s7, %s8
  %s10 = sld [smem:[#allocation0]]
  $region50: #{run.77} parent=0
    _
  %s12 = ssub.s32 1, %s10
  %s13 = scalar_select 0, %s12, %s10
  $region1: #{run.77} parent=0
    #allocation2 [shape = 'u8[4096]{0}', space=vmem, size = 0x1000, scoped, tag = 'output window, operand 0, single buffered']
    #allocation3 [shape = 's32[1]{0}', space=sflag, size = 0x4, scoped, tag = 'scoped memory for run.77']
    %14 = vsyncpa [#allocation3], 0
    // Predicated region
    $region2: #{run.77} parent=1 // pred_check
      _
    $region3: #{run.77} parent=1 // pred_check_branch
      %16 = sbr.rel (0) target = $region5
    $region4: #{run.77} parent=1 // pred_region
      _
    $region5: #{run.77} parent=1 // pred_fallthru
      _
    // Predicated region
    $region6: #{run.77} parent=1 // pred_check
      _
    $region7: #{run.77} parent=1 // pred_check_branch
      %18 = sbr.rel (0) target = $region9
    $region8: #{run.77} parent=1 // pred_region
      _
    $region9: #{run.77} parent=1 // pred_fallthru
      _
    // Predicated region
    $region10: #{run.77} parent=1 // pred_check
      _
    $region11: #{run.77} parent=1 // pred_check_branch
      %20 = sbr.rel (0) target = $region13
    $region12: #{run.77} parent=1 // pred_region
      _
    $region13: #{run.77} parent=1 // pred_fallthru
      _
    // Predicated region
    $region14: #{run.77} parent=1 // pred_check
      _
    $region15: #{run.77} parent=1 // pred_check_branch
      %22 = sbr.rel (0) target = $region17
    $region16: #{run.77} parent=1 // pred_region
      _
    $region17: #{run.77} parent=1 // pred_fallthru
      _
    // Predicated region
    $region18: #{run.77} parent=1 // pred_check
      _
    $region19: #{run.77} parent=1 // pred_check_branch
      %24 = sbr.rel (0) target = $region21
    $region20: #{run.77} parent=1 // pred_region
      _
    $region21: #{run.77} parent=1 // pred_fallthru
      _
    // Predicated region
    $region22: #{run.77} parent=1 // pred_check
      _
    $region23: #{run.77} parent=1 // pred_check_branch
      %26 = sbr.rel (0) target = $region25
    $region24: #{run.77} parent=1 // pred_region
      _
    $region25: #{run.77} parent=1 // pred_fallthru
      _
    %v27 = vld [vmem:[%s0] sm:$0xff]
    %v28 = vld [vmem:[%s1] sm:$0xff]
    %v29 = vld [vmem:[%s1 + $0x8] sm:$0xff]
    %v30 = vld [vmem:[%s1 + $0x10] sm:$0xff]
    %v31 = vld [vmem:[%s1 + $0x18] sm:$0xff]
    %v32 = vld [vmem:[%s2] sm:$0x1]
    %v34 = vlaneseq
    %v35 = vshrl.u32 %v34, 7
    %v36 = vsub.s32 0, %v35
    %v37 = vrot.slane %v32, %v36
    %vm39 = vcmask 261120
    %v41 = vsel %vm39, %v27, 0
    %43 = vmatprep.subr.mxu0 0.0
    %44 = vmatpush1.msra.mxu0 0.0
    %45 = vmatprep.subr.mxu0 0.0
    %46 = vmatpush1.msra.mxu0 0.0
    %47 = vmatprep.subr.mxu0 0.0
    %48 = vmatpush1.msra.mxu0 0.0
    %49 = vmatprep.subr.mxu0 0.0
    %50 = vmatpush1.msra.mxu0 0.0
    %51 = vmatprep.subr.mxu0 0.0
    %52 = vmatpush1.msra.mxu0 0.0
    %53 = vmatprep.subr.mxu0 0.0
    %54 = vmatpush1.msra.mxu0 0.0
    %55 = vmatprep.subr.mxu0 0.0
    %56 = vmatpush1.msra.mxu0 0.0
    %57 = vmatprep.subr.mxu0 0.0
    %58 = vmatpush1.msra.mxu0 0.0
    %59 = vmatprep.subr.mxu0 0.0
    %60 = vmatpush1.msra.mxu0 0.0
    %61 = vmatprep.subr.mxu0 0.0
    %62 = vmatpush1.msra.mxu0 0.0
    %63 = vmatprep.subr.mxu0 0.0
    %64 = vmatpush1.msra.mxu0 0.0
    %65 = vmatprep.subr.mxu0 0.0
    %66 = vmatpush1.msra.mxu0 0.0
    %67 = vmatprep.subr.mxu0 0.0
    %68 = vmatpush1.msra.mxu0 %v31
    %69 = vmatprep.subr.mxu0 0.0
    %70 = vmatpush1.msra.mxu0 %v30
    %71 = vmatprep.subr.mxu0 0.0
    %72 = vmatpush1.msra.mxu0 %v29
    %73 = vmatprep.subr.mxu0 0.0
    %74 = vmatpush1.msra.mxu0 %v28
    %75 = vmatprep.subr.mxu0 0.0
    %76 = vmatpush2.msra.mxu0 0.0
    %77 = vmatprep.subr.mxu0 0.0
    %78 = vmatpush2.msra.mxu0 0.0
    %79 = vmatprep.subr.mxu0 0.0
    %80 = vmatpush2.msra.mxu0 0.0
    %81 = vmatprep.subr.mxu0 0.0
    %82 = vmatpush2.msra.mxu0 0.0
    %83 = vmatprep.subr.mxu0 0.0
    %84 = vmatpush2.msra.mxu0 0.0
    %85 = vmatprep.subr.mxu0 0.0
    %86 = vmatpush2.msra.mxu0 0.0
    %87 = vmatprep.subr.mxu0 0.0
    %88 = vmatpush2.msra.mxu0 0.0
    %89 = vmatprep.subr.mxu0 0.0
    %90 = vmatpush2.msra.mxu0 0.0
    %91 = vmatprep.subr.mxu0 0.0
    %92 = vmatpush2.msra.mxu0 0.0
    %93 = vmatprep.subr.mxu0 0.0
    %94 = vmatpush2.msra.mxu0 0.0
    %95 = vmatprep.subr.mxu0 0.0
    %96 = vmatpush2.msra.mxu0 0.0
    %97 = vmatprep.subr.mxu0 0.0
    %98 = vmatpush2.msra.mxu0 0.0
    %99 = vmatprep.subr.mxu0 0.0
    %100 = vmatpush2.msra.mxu0 0.0
    %101 = vmatprep.subr.mxu0 0.0
    %102 = vmatpush2.msra.mxu0 0.0
    %103 = vmatprep.subr.mxu0 0.0
    %104 = vmatpush2.msra.mxu0 0.0
    %105 = vmatprep.subr.mxu0 0.0
    %106 = vmatpush2.msra.mxu0 0.0
    %107 = vmatprep.mubr.f32.mxu0 0.0
    %108 = vmatmul.mubr.f32.gmra.mxu0 %v41
    %v109 = vpop.f32.mrf.mxu0
    %v110 = vadd.f32 %v37, %v109
    %v111 = vpop.f32.mrf.mxu0
    %112 = vdwg.mxu0
    %v113 = vmul.f32 %v110, %v110
    %vm114 = vcmask 130048
    %v115 = vsel %vm114, %v113, 0.0
    %116 = vadd.xlane.f32.xlu0 %v115
    %v117 = vpop.xlane.xlu0 %116
    %v118 = vmax.f32 %v117, 1e-30
    %v119 = vrsqrt.pop %v118
    %v120 = vmul.f32 %v119, 4.0
    %v121 = vmul.f32 %v110, %v120
    %122 = vst.msk [vmem:[#allocation2] sm:$0xff] %vm114, %v121
    %v123 = vld [vmem:[%s3] sm:$0xff]
    %v124 = vld [vmem:[%s3 + $0x8] sm:$0xff]
    %v126 = vsel %vm114, %v121, 0
    %128 = vmatprep.subr.mxu0 0.0
    %129 = vmatpush1.msra.mxu0 0.0
    %130 = vmatprep.subr.mxu0 0.0
    %131 = vmatpush1.msra.mxu0 0.0
    %132 = vmatprep.subr.mxu0 0.0
    %133 = vmatpush1.msra.mxu0 0.0
    %134 = vmatprep.subr.mxu0 0.0
    %135 = vmatpush1.msra.mxu0 0.0
    %136 = vmatprep.subr.mxu0 0.0
    %137 = vmatpush1.msra.mxu0 0.0
    %138 = vmatprep.subr.mxu0 0.0
    %139 = vmatpush1.msra.mxu0 0.0
    %140 = vmatprep.subr.mxu0 0.0
    %141 = vmatpush1.msra.mxu0 0.0
    %142 = vmatprep.subr.mxu0 0.0
    %143 = vmatpush1.msra.mxu0 0.0
    %144 = vmatprep.subr.mxu0 0.0
    %145 = vmatpush1.msra.mxu0 0.0
    %146 = vmatprep.subr.mxu0 0.0
    %147 = vmatpush1.msra.mxu0 0.0
    %148 = vmatprep.subr.mxu0 0.0
    %149 = vmatpush1.msra.mxu0 0.0
    %150 = vmatprep.subr.mxu0 0.0
    %151 = vmatpush1.msra.mxu0 0.0
    %152 = vmatprep.subr.mxu0 0.0
    %153 = vmatpush1.msra.mxu0 0.0
    %154 = vmatprep.subr.mxu0 0.0
    %155 = vmatpush1.msra.mxu0 0.0
    %156 = vmatprep.subr.mxu0 0.0
    %157 = vmatpush1.msra.mxu0 %v124
    %158 = vmatprep.subr.mxu0 0.0
    %159 = vmatpush1.msra.mxu0 %v123
    %160 = vmatprep.subr.mxu0 0.0
    %161 = vmatpush2.msra.mxu0 0.0
    %162 = vmatprep.subr.mxu0 0.0
    %163 = vmatpush2.msra.mxu0 0.0
    %164 = vmatprep.subr.mxu0 0.0
    %165 = vmatpush2.msra.mxu0 0.0
    %166 = vmatprep.subr.mxu0 0.0
    %167 = vmatpush2.msra.mxu0 0.0
    %168 = vmatprep.subr.mxu0 0.0
    %169 = vmatpush2.msra.mxu0 0.0
    %170 = vmatprep.subr.mxu0 0.0
    %171 = vmatpush2.msra.mxu0 0.0
    %172 = vmatprep.subr.mxu0 0.0
    %173 = vmatpush2.msra.mxu0 0.0
    %174 = vmatprep.subr.mxu0 0.0
    %175 = vmatpush2.msra.mxu0 0.0
    %176 = vmatprep.subr.mxu0 0.0
    %177 = vmatpush2.msra.mxu0 0.0
    %178 = vmatprep.subr.mxu0 0.0
    %179 = vmatpush2.msra.mxu0 0.0
    %180 = vmatprep.subr.mxu0 0.0
    %181 = vmatpush2.msra.mxu0 0.0
    %182 = vmatprep.subr.mxu0 0.0
    %183 = vmatpush2.msra.mxu0 0.0
    %184 = vmatprep.subr.mxu0 0.0
    %185 = vmatpush2.msra.mxu0 0.0
    %186 = vmatprep.subr.mxu0 0.0
    %187 = vmatpush2.msra.mxu0 0.0
    %188 = vmatprep.subr.mxu0 0.0
    %189 = vmatpush2.msra.mxu0 0.0
    %190 = vmatprep.subr.mxu0 0.0
    %191 = vmatpush2.msra.mxu0 0.0
    %192 = vmatprep.mubr.f32.mxu0 0.0
    %193 = vmatmul.mubr.f32.gmra.mxu0 %v126
    %v194 = vpop.f32.mrf.mxu0
    %v195 = vadd.f32 0.0, %v194
    %v196 = vpop.f32.mrf.mxu0
    %197 = vdwg.mxu0
    %vm198 = vcmask 80896
    %199 = vst.msk [vmem:[%s7] sm:$0xff] %vm198, %v195
    %v200 = vld [vmem:[%s4] sm:$0xff]
    %v201 = vld [vmem:[%s4 + $0x8] sm:$0xff]
    %v202 = vld [vmem:[%s5] sm:$0x1]
    %v204 = vlaneseq
    %v205 = vshrl.u32 %v204, 7
    %v206 = vsub.s32 0, %v205
    %v207 = vrot.slane %v202, %v206
    %209 = vmatprep.subr.mxu0 0.0
    %210 = vmatpush1.msra.mxu0 0.0
    %211 = vmatprep.subr.mxu0 0.0
    %212 = vmatpush1.msra.mxu0 0.0
    %213 = vmatprep.subr.mxu0 0.0
    %214 = vmatpush1.msra.mxu0 0.0
    %215 = vmatprep.subr.mxu0 0.0
    %216 = vmatpush1.msra.mxu0 0.0
    %217 = vmatprep.subr.mxu0 0.0
    %218 = vmatpush1.msra.mxu0 0.0
    %219 = vmatprep.subr.mxu0 0.0
    %220 = vmatpush1.msra.mxu0 0.0
    %221 = vmatprep.subr.mxu0 0.0
    %222 = vmatpush1.msra.mxu0 0.0
    %223 = vmatprep.subr.mxu0 0.0
    %224 = vmatpush1.msra.mxu0 0.0
    %225 = vmatprep.subr.mxu0 0.0
    %226 = vmatpush1.msra.mxu0 0.0
    %227 = vmatprep.subr.mxu0 0.0
    %228 = vmatpush1.msra.mxu0 0.0
    %229 = vmatprep.subr.mxu0 0.0
    %230 = vmatpush1.msra.mxu0 0.0
    %231 = vmatprep.subr.mxu0 0.0
    %232 = vmatpush1.msra.mxu0 0.0
    %233 = vmatprep.subr.mxu0 0.0
    %234 = vmatpush1.msra.mxu0 0.0
    %235 = vmatprep.subr.mxu0 0.0
    %236 = vmatpush1.msra.mxu0 0.0
    %237 = vmatprep.subr.mxu0 0.0
    %238 = vmatpush1.msra.mxu0 %v201
    %239 = vmatprep.subr.mxu0 0.0
    %240 = vmatpush1.msra.mxu0 %v200
    %241 = vmatprep.subr.mxu0 0.0
    %242 = vmatpush2.msra.mxu0 0.0
    %243 = vmatprep.subr.mxu0 0.0
    %244 = vmatpush2.msra.mxu0 0.0
    %245 = vmatprep.subr.mxu0 0.0
    %246 = vmatpush2.msra.mxu0 0.0
    %247 = vmatprep.subr.mxu0 0.0
    %248 = vmatpush2.msra.mxu0 0.0
    %249 = vmatprep.subr.mxu0 0.0
    %250 = vmatpush2.msra.mxu0 0.0
    %251 = vmatprep.subr.mxu0 0.0
    %252 = vmatpush2.msra.mxu0 0.0
    %253 = vmatprep.subr.mxu0 0.0
    %254 = vmatpush2.msra.mxu0 0.0
    %255 = vmatprep.subr.mxu0 0.0
    %256 = vmatpush2.msra.mxu0 0.0
    %257 = vmatprep.subr.mxu0 0.0
    %258 = vmatpush2.msra.mxu0 0.0
    %259 = vmatprep.subr.mxu0 0.0
    %260 = vmatpush2.msra.mxu0 0.0
    %261 = vmatprep.subr.mxu0 0.0
    %262 = vmatpush2.msra.mxu0 0.0
    %263 = vmatprep.subr.mxu0 0.0
    %264 = vmatpush2.msra.mxu0 0.0
    %265 = vmatprep.subr.mxu0 0.0
    %266 = vmatpush2.msra.mxu0 0.0
    %267 = vmatprep.subr.mxu0 0.0
    %268 = vmatpush2.msra.mxu0 0.0
    %269 = vmatprep.subr.mxu0 0.0
    %270 = vmatpush2.msra.mxu0 0.0
    %271 = vmatprep.subr.mxu0 0.0
    %272 = vmatpush2.msra.mxu0 0.0
    %273 = vmatprep.mubr.f32.mxu0 0.0
    %274 = vmatmul.mubr.f32.gmra.mxu0 %v126
    %v275 = vpop.f32.mrf.mxu0
    %v276 = vadd.f32 %v207, %v275
    %v277 = vpop.f32.mrf.mxu0
    %278 = vdwg.mxu0
    %279 = vst.msk [vmem:[%s8] sm:$0xff] %vm198, %v276
    // Predicated region
    $region26: #{run.77} parent=1 // pred_check
      _
    $region27: #{run.77} parent=1 // pred_check_branch
      %281 = sbr.rel (0) target = $region29
    $region28: #{run.77} parent=1 // pred_region
      %s283 = ssub.s32 128, 128
      %284 = vsyncadd [#allocation3], %s283
      %s286 = sshll.u32 [#allocation2], 4
      %s287 = int_to_ptr.vmem [resolvable:$true] %s286
      %289 = dma.vmem_to_hbm [thread:$0]  %s287, 128, %s6, [#allocation3]
    $region29: #{run.77} parent=1 // pred_fallthru
      _
    // Predicated region
    $region30: #{run.77} parent=1 // pred_check
      _
    $region31: #{run.77} parent=1 // pred_check_branch
      %291 = sbr.rel (0) target = $region33
    $region32: #{run.77} parent=1 // pred_region
      _
    $region33: #{run.77} parent=1 // pred_fallthru
      _
    // Predicated region
    $region34: #{run.77} parent=1 // pred_check
      _
    $region35: #{run.77} parent=1 // pred_check_branch
      %293 = sbr.rel (0) target = $region37
    $region36: #{run.77} parent=1 // pred_region
      _
    $region37: #{run.77} parent=1 // pred_fallthru
      _
    // Predicated region
    $region38: #{run.77} parent=1 // pred_check
      _
    $region39: #{run.77} parent=1 // pred_check_branch
      %295 = sbr.rel (0) target = $region41
    $region40: #{run.77} parent=1 // pred_region
      %296 = dma.done [#allocation3], 128
    $region41: #{run.77} parent=1 // pred_fallthru
      _
    // Predicated region
    $region42: #{run.77} parent=1 // pred_check
      _
    $region43: #{run.77} parent=1 // pred_check_branch
      %298 = sbr.rel (0) target = $region45
    $region44: #{run.77} parent=1 // pred_region
      _
    $region45: #{run.77} parent=1 // pred_fallthru
      _
    // Predicated region
    $region46: #{run.77} parent=1 // pred_check
      _
    $region47: #{run.77} parent=1 // pred_check_branch
      %300 = sbr.rel (0) target = $region49
    $region48: #{run.77} parent=1 // pred_region
      _
    $region49: #{run.77} parent=1 // pred_fallthru
      _
    %301 = vsyncpa [#allocation3], 1

</llo_original>
